<compile_context>
chip_gen: v6e
topology: v6e:2x2x1
jax: 0.10.0
libtpu: 0.0.40
codegen_flags: <defaults>
</compile_context>

<pallas_src>
import jax
import jax.numpy as jnp
from jax import lax
from jax.experimental import pallas as pl
from jax.experimental.pallas import tpu as pltpu

IN_FEATURES = 4096
OUT_FEATURES = 8192


def _linear_kernel(x_ref, w_ref, b_ref, o_ref):
    # x_ref: [B, K], w_ref: [tn, K] (PyTorch [out, in] layout), b_ref: [1, tn]
    # Contract last dim of x with last dim of w -> [B, tn].
    y = lax.dot_general(
        x_ref[...],
        w_ref[...],
        dimension_numbers=(((1,), (1,)), ((), ())),
        preferred_element_type=jnp.float32,
    )
    o_ref[...] = (y + b_ref[...]).astype(o_ref.dtype)


def reconstructor_forward(x, weight, bias, *, tn=1024):
    """y = x @ weight.T + bias  (PyTorch nn.Linear semantics).

    x:      [B, 4096]  float32
    weight: [8192, 4096]  (PyTorch [out, in] layout; used as-is, no transpose)
    bias:   [8192]
    returns [B, 8192]
    """
    B, K = x.shape
    N, K_w = weight.shape
    assert K == K_w
    assert N % tn == 0

    b2 = bias.reshape(1, N)  # 2-D so it tiles along lanes

    grid = (N // tn,)

    return pl.pallas_call(
        _linear_kernel,
        out_shape=jax.ShapeDtypeStruct((B, N), x.dtype),
        grid_spec=pltpu.PrefetchScalarGridSpec(
            num_scalar_prefetch=0,
            grid=grid,
            in_specs=[
                pl.BlockSpec((B, K), lambda j: (0, 0)),    # x: resident, fetched once
                pl.BlockSpec((tn, K), lambda j: (j, 0)),   # W tile, native [N, K] layout
                pl.BlockSpec((1, tn), lambda j: (0, j)),   # bias tile
            ],
            out_specs=pl.BlockSpec((B, tn), lambda j: (0, j)),
        ),
        compiler_params=pltpu.CompilerParams(
            dimension_semantics=("parallel",),
            # 2 x 16 MiB double-buffered W tiles + x/bias/out buffers ~ 33 MiB.
            vmem_limit_bytes=40 << 20,
        ),
    )(x, weight, b2)


def init_params(key):
    # Deterministic init mirroring PyTorch nn.Linear default:
    # U(-1/sqrt(in_features), 1/sqrt(in_features)) for both weight and bias.
    kw, kb = jax.random.split(key)
    bound = 1.0 / jnp.sqrt(jnp.float32(IN_FEATURES))
    weight = jax.random.uniform(
        kw, (OUT_FEATURES, IN_FEATURES), jnp.float32, -bound, bound
    )
    bias = jax.random.uniform(kb, (OUT_FEATURES,), jnp.float32, -bound, bound)
    return weight, bias


if __name__ == "__main__":
    key = jax.random.PRNGKey(0)
    k_x, k_p = jax.random.split(key)

    B = 8  # small batch (meets the f32 (8,128) sublane minimum, no padding)
    x = jax.random.normal(k_x, (B, IN_FEATURES), jnp.float32)
    weight, bias = init_params(k_p)

    y = reconstructor_forward(x, weight, bias)
    y = jax.block_until_ready(y)

    # Correctness check against plain JAX reference.
    y_ref = x @ weight.T + bias
    assert y.shape == (B, OUT_FEATURES)
    assert jnp.allclose(y, y_ref, atol=1e-3, rtol=1e-3)

    print("KERNEL_OK")
</pallas_src>

<mosaic_0001>
module attributes {stable_mosaic.version = 11 : i64} {
  func.func @_linear_kernel(%arg0: i32, %arg1: memref<8x4096xf32, #tpu.memory_space<vmem>>, %arg2: memref<1024x4096xf32, #tpu.memory_space<vmem>>, %arg3: memref<1x1024xf32, #tpu.memory_space<vmem>>, %arg4: memref<8x1024xf32, #tpu.memory_space<vmem>>) attributes {dimension_semantics = [#tpu.dimension_semantics<parallel>], iteration_bounds = array<i64: 8>, scalar_prefetch = 0 : i64, scratch_operands = 0 : i64, tpu.core_type = #tpu.core_type<tc>, window_params = [{pipeline_mode = #tpu.pipeline_mode<synchronous>, transform_indices = @transform_0, window_bounds = array<i64: 8, 4096>}, {transform_indices = @transform_1, window_bounds = array<i64: 1024, 4096>}, {transform_indices = @transform_2, window_bounds = array<i64: 1, 1024>}, {transform_indices = @transform_3, window_bounds = array<i64: 8, 1024>}]} {
    %c0 = arith.constant 0 : index
    %c0_0 = arith.constant 0 : index
    %0 = vector.load %arg1[%c0, %c0_0] : memref<8x4096xf32, #tpu.memory_space<vmem>>, vector<8x4096xf32>
    %c0_1 = arith.constant 0 : index
    %c0_2 = arith.constant 0 : index
    %1 = vector.load %arg2[%c0_1, %c0_2] : memref<1024x4096xf32, #tpu.memory_space<vmem>>, vector<1024x4096xf32>
    %cst = arith.constant dense<0.000000e+00> : vector<8x1024xf32>
    %2 = tpu.matmul %0, %1, %cst {dimension_numbers = #tpu.dot_dimension_numbers<[1], [1], [0], [0], [0, 0, 1, 0], [], []>} : vector<8x4096xf32>, vector<1024x4096xf32>, vector<8x1024xf32> -> vector<8x1024xf32>
    %c0_3 = arith.constant 0 : index
    %c0_4 = arith.constant 0 : index
    %3 = vector.load %arg3[%c0_3, %c0_4] : memref<1x1024xf32, #tpu.memory_space<vmem>>, vector<1x1024xf32>
    %4 = vector.broadcast %3 : vector<1x1024xf32> to vector<8x1024xf32>
    %5 = arith.addf %2, %4 : vector<8x1024xf32>
    %c0_5 = arith.constant 0 : index
    %c0_6 = arith.constant 0 : index
    %6 = vector.load %arg4[%c0_5, %c0_6] : memref<8x1024xf32, #tpu.memory_space<vmem>>, vector<8x1024xf32>
    tpu.vector_store %arg4[%c0_5, %c0_6], %5 {strides = array<i32>} : memref<8x1024xf32, #tpu.memory_space<vmem>>, vector<8x1024xf32>,
    return
  }
  func.func @transform_0(%arg0: i32) -> (i32, i32) {
    %c0_i32 = arith.constant 0 : i32
    %c0_i32_0 = arith.constant 0 : i32
    %c0_i32_1 = arith.constant 0 : i32
    return %c0_i32, %c0_i32_0 : i32, i32
  }
  func.func @transform_1(%arg0: i32) -> (i32, i32) {
    %c0_i32 = arith.constant 0 : i32
    %c0_i32_0 = arith.constant 0 : i32
    return %arg0, %c0_i32 : i32, i32
  }
  func.func @transform_2(%arg0: i32) -> (i32, i32) {
    %c0_i32 = arith.constant 0 : i32
    %c0_i32_0 = arith.constant 0 : i32
    return %c0_i32, %arg0 : i32, i32
  }
  func.func @transform_3(%arg0: i32) -> (i32, i32) {
    %c0_i32 = arith.constant 0 : i32
    %c0_i32_0 = arith.constant 0 : i32
    return %c0_i32, %arg0 : i32, i32
  }
}

</mosaic_0001>

<llo_original>
// kernel: tpu_custom_call.1
$region0: #{tpu_custom_call.1}
  #allocation0 [shape = 'u32[]', space=smem, size = 0x4, offset = 0x4, fixed_abs, tag = 'smem constant byte address 0x4 - core index']
  #allocation1 [shape = 'u32[144,128]{1,0:T(1,128)}', space=vmem, size = 0x12000, scoped, tag = 'internal scratch']
  %s0 = inlined_call_operand.hbm [shape: f32[8,4096], index: 0, kind: input, shape index: {}]
  %s1 = inlined_call_operand.hbm [shape: f32[8192,4096], index: 1, kind: input, shape index: {}]
  %s2 = inlined_call_operand.hbm [shape: f32[1,8192], index: 2, kind: input, shape index: {}]
  %s3 = inlined_call_operand.hbm [shape: f32[8,8192], index: 3, kind: output, shape index: {}]
  %s4 = sld [smem:[#allocation0]]
  $region57: #{tpu_custom_call.1} parent=0
    _
  %s6 = ssub.s32 1, %s4
  %s7 = scalar_select 0, %s6, %s4
  $region1: #{tpu_custom_call.1} parent=0
    #allocation2 [shape = 'u8[131072]{0}', space=vmem, size = 0x20000, scoped, tag = 'input window, operand 0, single buffered']
    #allocation3 [shape = 's32[2]{0}', space=sflag, size = 0x8, scoped, tag = 'scoped memory for tpu_custom_call.1']
    #allocation4 [shape = 's32[2]{0}', space=sflag, size = 0x8, scoped, tag = 'scoped memory for tpu_custom_call.1']
    #allocation5 [shape = 'u8[33554432]{0}', space=vmem, size = 0x2000000, scoped, tag = 'input window, operand 1']
    #allocation6 [shape = 's32[2]{0}', space=sflag, size = 0x8, scoped, tag = 'scoped memory for tpu_custom_call.1']
    #allocation7 [shape = 'u8[8192]{0}', space=vmem, size = 0x2000, scoped, tag = 'input window, operand 2']
    #allocation8 [shape = 'u8[65536]{0}', space=vmem, size = 0x10000, scoped, tag = 'output window, operand 0']
    %8 = vsyncpa [#allocation3], 0
    %9 = vsyncpa [#allocation6], 0
    %s10 = scalar_lea.sflag [#allocation6], 1
    %11 = vsyncpa %s10, 0
    %12 = vsyncpa [#allocation4], 0
    %s13 = scalar_lea.sflag [#allocation4], 1
    %14 = vsyncpa %s13, 0
    loop: start=0, step=1, limit=10
    $region2: #{tpu_custom_call.1} parent=1 // loop_pre_header
      _
    $region3: #{tpu_custom_call.1} parent=1 // loop_header
      %s16 = sphi 0, %s20
      %p17 = scmp.ge.s32.totalorder %s16, 10
      %s24 = sphi 0, %s24
      %s26 = sphi 0, %s24
      %s27 = sphi 0, %s26
      %s41 = sphi 0, %s27
      %s47 = sphi 0, %s49
      %s50 = sphi 0, %s47
      %s51 = sphi 0, %s50
      %s67 = sphi 0, %s51
      %s73 = sphi 0, %s75
      %s76 = sphi 0, %s73
      %s77 = sphi 0, %s76
      %s93 = sphi 0, %s77
      %s99 = sphi 0, %s101
      %s102 = sphi 0, %s99
      %s103 = sphi 0, %s102
      %s119 = sphi 0, %s103
    $region4: #{tpu_custom_call.1} parent=1 // loop_header_branch
      %19 = sbr.rel (%p17) target = $region8
    $region5: #{tpu_custom_call.1} parent=1 // loop_body
      %s21 = ssub.s32 %s16, 1
      %s22 = ssub.s32 %s16, 2
      %s23 = sadd.s32 %s16, 1
      %s25 = sadd.s32 %s24, 1
      %p28 = scmp.eq.s32.totalorder %s16, 7
      %p29 = scmp.ne.s32.totalorder %s24, %s26
      %p30 = scmp.eq.s32.totalorder %s16, 0
      %p31 = por %p29, %p30
      %p32 = scmp.ne.s32.totalorder %s24, %s26
      %p33 = scmp.eq.s32.totalorder %s21, 7
      %p34 = por %p32, %p33
      %p35 = scmp.ne.s32.totalorder %s26, %s27
      %p36 = scmp.eq.s32.totalorder %s21, 0
      %p37 = por %p35, %p36
      %p38 = scmp.ne.s32.totalorder %s26, %s27
      %p39 = scmp.eq.s32.totalorder %s22, 7
      %p40 = por %p38, %p39
      %p42 = scmp.ne.s32.totalorder %s27, %s41
      %p43 = scmp.eq.s32.totalorder %s22, 0
      %p44 = por %p42, %p43
      %s45 = ssub.s32 %s16, %s23
      %p46 = scmp.eq.s32.totalorder %s45, 0
      %s48 = sadd.s32 %s47, 1
      %s49 = scalar_select %p46, %s47, %s48
      %p52 = pneg %p46
      %p53 = scmp.eq.s32.totalorder %s16, 7
      %p54 = por %p52, %p53
      %p55 = scmp.ne.s32.totalorder %s47, %s50
      %p56 = scmp.eq.s32.totalorder %s16, 0
      %p57 = por %p55, %p56
      %p58 = scmp.ne.s32.totalorder %s47, %s50
      %p59 = scmp.eq.s32.totalorder %s21, 7
      %p60 = por %p58, %p59
      %p61 = scmp.ne.s32.totalorder %s50, %s51
      %p62 = scmp.eq.s32.totalorder %s21, 0
      %p63 = por %p61, %p62
      %p64 = scmp.ne.s32.totalorder %s50, %s51
      %p65 = scmp.eq.s32.totalorder %s22, 7
      %p66 = por %p64, %p65
      %p68 = scmp.ne.s32.totalorder %s51, %s67
      %p69 = scmp.eq.s32.totalorder %s22, 0
      %p70 = por %p68, %p69
      %s71 = ssub.s32 %s16, %s23
      %p72 = scmp.eq.s32.totalorder %s71, 0
      %s74 = sadd.s32 %s73, 1
      %s75 = scalar_select %p72, %s73, %s74
      %p78 = pneg %p72
      %p79 = scmp.eq.s32.totalorder %s16, 7
      %p80 = por %p78, %p79
      %p81 = scmp.ne.s32.totalorder %s73, %s76
      %p82 = scmp.eq.s32.totalorder %s16, 0
      %p83 = por %p81, %p82
      %p84 = scmp.ne.s32.totalorder %s73, %s76
      %p85 = scmp.eq.s32.totalorder %s21, 7
      %p86 = por %p84, %p85
      %p87 = scmp.ne.s32.totalorder %s76, %s77
      %p88 = scmp.eq.s32.totalorder %s21, 0
      %p89 = por %p87, %p88
      %p90 = scmp.ne.s32.totalorder %s76, %s77
      %p91 = scmp.eq.s32.totalorder %s22, 7
      %p92 = por %p90, %p91
      %p94 = scmp.ne.s32.totalorder %s77, %s93
      %p95 = scmp.eq.s32.totalorder %s22, 0
      %p96 = por %p94, %p95
      %s97 = ssub.s32 %s16, %s23
      %p98 = scmp.eq.s32.totalorder %s97, 0
      %s100 = sadd.s32 %s99, 1
      %s101 = scalar_select %p98, %s99, %s100
      %p104 = pneg %p98
      %p105 = scmp.eq.s32.totalorder %s16, 7
      %p106 = por %p104, %p105
      %p107 = scmp.ne.s32.totalorder %s99, %s102
      %p108 = scmp.eq.s32.totalorder %s16, 0
      %p109 = por %p107, %p108
      %p110 = scmp.ne.s32.totalorder %s99, %s102
      %p111 = scmp.eq.s32.totalorder %s21, 7
      %p112 = por %p110, %p111
      %p113 = scmp.ne.s32.totalorder %s102, %s103
      %p114 = scmp.eq.s32.totalorder %s21, 0
      %p115 = por %p113, %p114
      %p116 = scmp.ne.s32.totalorder %s102, %s103
      %p117 = scmp.eq.s32.totalorder %s22, 7
      %p118 = por %p116, %p117
      %p120 = scmp.ne.s32.totalorder %s103, %s119
      %p121 = scmp.eq.s32.totalorder %s22, 0
      %p122 = por %p120, %p121
      %p123 = scmp.le.s32.totalorder 1, %s16
      %p124 = scmp.lt.s32.totalorder %s16, 9
      %p125 = pnand %p123, %p124
      %p126 = pneg %p125
      // Predicated region
      $region9: #{tpu_custom_call.1} parent=5 // pred_check
        _
      $region10: #{tpu_custom_call.1} parent=5 // pred_check_branch
        %128 = sbr.rel (%p125) target = $region12
      $region11: #{tpu_custom_call.1} parent=5 // pred_region
        %s129 = ssub.s32 %s16, 1
        // Predicated region
        $region13: #{tpu_custom_call.1} parent=11 // pred_check
          %p130 = pneg %p37
        $region14: #{tpu_custom_call.1} parent=11 // pred_check_branch
          %132 = sbr.rel (%p130) target = $region16
        $region15: #{tpu_custom_call.1} parent=11 // pred_region
          %s134 = ssub.s32 4096, 4096
          %135 = vsyncadd [#allocation3], %s134
          %s137 = sshll.u32 [#allocation2], 4
          %s138 = int_to_ptr.vmem [resolvable:$true] %s137
          %140 = dma.hbm_to_vmem [thread:$0]  %s0, 4096, %s138, [#allocation3]
        $region16: #{tpu_custom_call.1} parent=11 // pred_fallthru
          _
      $region12: #{tpu_custom_call.1} parent=5 // pred_fallthru
        _
      %p141 = scmp.lt.s32.totalorder %s16, 8
      // Predicated region
      $region17: #{tpu_custom_call.1} parent=5 // pred_check
        %p142 = pneg %p141
      $region18: #{tpu_custom_call.1} parent=5 // pred_check_branch
        %144 = sbr.rel (%p142) target = $region20
      $region19: #{tpu_custom_call.1} parent=5 // pred_region
        // Predicated region
        $region21: #{tpu_custom_call.1} parent=19 // pred_check
          %p145 = pneg %p57
        $region22: #{tpu_custom_call.1} parent=19 // pred_check_branch
          %147 = sbr.rel (%p145) target = $region24
        $region23: #{tpu_custom_call.1} parent=19 // pred_region
          %s148 = sand.u32 %s16, 1
          %s149 = scalar_lea.sflag [#allocation6], %s148
          %s150 = sand.u32 %s47, 1
          %s151 = smul.addr %s150, 32768
          %s152 = scalar_lea.vmem [#allocation5], %s151
          %s153 = smul.u32 128, %s16
          %s155 = ssub.s32 524288, 524288
          %156 = vsyncadd %s149, %s155
          %s157 = smul.addr %s153, 32
          %s158 = smul.addr %s157, 128
          %s159 = scalar_lea.hbm %s1, %s158
          %s160 = sshll.u32 %s152, 4
          %s161 = int_to_ptr.vmem [resolvable:$true] %s160
          %166 = dma.hbm_to_vmem [thread:$0]  %s159, 524288, %s161, %s149, 4096, 4096, 256
        $region24: #{tpu_custom_call.1} parent=19 // pred_fallthru
          _
        // Predicated region
        $region25: #{tpu_custom_call.1} parent=19 // pred_check
          %p167 = pneg %p83
        $region26: #{tpu_custom_call.1} parent=19 // pred_check_branch
          %169 = sbr.rel (%p167) target = $region28
        $region27: #{tpu_custom_call.1} parent=19 // pred_region
          %s170 = sand.u32 %s16, 1
          %s171 = scalar_lea.sflag [#allocation6], %s170
          %s172 = sand.u32 %s73, 1
          %s173 = smul.addr %s172, 8
          %s174 = scalar_lea.vmem [#allocation7], %s173
          %s175 = smul.u32 8, %s16
          %s177 = ssub.s32 128, 128
          %178 = vsyncadd %s171, %s177
          %s179 = smul.addr %s175, 16
          %s180 = scalar_lea.hbm %s2, %s179
          %s182 = sshll.u32 %s174, 4
          %s183 = int_to_ptr.vmem [resolvable:$true] %s182
          %185 = dma.hbm_to_vmem [thread:$0]  %s180, 128, %s183, %s171
        $region28: #{tpu_custom_call.1} parent=19 // pred_fallthru
          _
      $region20: #{tpu_custom_call.1} parent=5 // pred_fallthru
        _
      %p186 = scmp.le.s32.totalorder 1, %s16
      %p187 = scmp.lt.s32.totalorder %s16, 9
      %p188 = pnand %p186, %p187
      %p189 = pneg %p188
      // Predicated region
      $region29: #{tpu_custom_call.1} parent=5 // pred_check
        _
      $region30: #{tpu_custom_call.1} parent=5 // pred_check_branch
        %191 = sbr.rel (%p188) target = $region32
      $region31: #{tpu_custom_call.1} parent=5 // pred_region
        %s192 = ssub.s32 %s16, 1
        // Predicated region
        $region33: #{tpu_custom_call.1} parent=31 // pred_check
          %p193 = pneg %p37
        $region34: #{tpu_custom_call.1} parent=31 // pred_check_branch
          %195 = sbr.rel (%p193) target = $region36
        $region35: #{tpu_custom_call.1} parent=31 // pred_region
          %196 = dma.done [#allocation3], 4096
        $region36: #{tpu_custom_call.1} parent=31 // pred_fallthru
          _
        %s197 = sand.u32 %s21, 1
        %s198 = scalar_lea.sflag [#allocation6], %s197
        %s199 = sand.u32 %s50, 1
        %s200 = smul.addr %s199, 32768
        %s201 = scalar_lea.vmem [#allocation5], %s200
        // Predicated region
        $region37: #{tpu_custom_call.1} parent=31 // pred_check
          %p202 = pneg %p63
        $region38: #{tpu_custom_call.1} parent=31 // pred_check_branch
          %204 = sbr.rel (%p202) target = $region40
        $region39: #{tpu_custom_call.1} parent=31 // pred_region
          %205 = dma.done %s198, 524288
        $region40: #{tpu_custom_call.1} parent=31 // pred_fallthru
          _
        %s206 = sand.u32 %s21, 1
        %s207 = scalar_lea.sflag [#allocation6], %s206
        %s208 = sand.u32 %s76, 1
        %s209 = smul.addr %s208, 8
        %s210 = scalar_lea.vmem [#allocation7], %s209
        // Predicated region
        $region41: #{tpu_custom_call.1} parent=31 // pred_check
          %p211 = pneg %p89
        $region42: #{tpu_custom_call.1} parent=31 // pred_check_branch
          %213 = sbr.rel (%p211) target = $region44
        $region43: #{tpu_custom_call.1} parent=31 // pred_region
          %214 = dma.done %s207, 128
        $region44: #{tpu_custom_call.1} parent=31 // pred_fallthru
          _
        %p215 = pneg %p37
        %p216 = pneg %p34
        %s217 = sand.u32 %s21, 1
        %s218 = scalar_lea.sflag [#allocation6], %s217
        %s219 = sand.u32 %s50, 1
        %s220 = smul.addr %s219, 32768
        %s221 = scalar_lea.vmem [#allocation5], %s220
        %p222 = pneg %p63
        %p223 = pneg %p60
        %s224 = sand.u32 %s21, 1
        %s225 = scalar_lea.sflag [#allocation6], %s224
        %s226 = sand.u32 %s76, 1
        %s227 = smul.addr %s226, 8
        %s228 = scalar_lea.vmem [#allocation7], %s227
        %p229 = pneg %p89
        %p230 = pneg %p86
        %p231 = pneg %p115
        %p232 = pneg %p112
        %s233 = sand.u32 %s102, 1
        %s234 = scalar_lea.sflag [#allocation4], %s233
        %s235 = sand.u32 %s102, 1
        %s236 = smul.addr %s235, 64
        %s237 = scalar_lea.vmem [#allocation8], %s236
        %s238 = smul.u32 128, %s21
        %s239 = smul.u32 8, %s21
        %s240 = smul.u32 8, %s21
        %v241 = vld [vmem:[#allocation2] sm:$0xff]
        %v242 = vld [vmem:[#allocation2 + $0x8] sm:$0xff]
        %v243 = vld [vmem:[#allocation2 + $0x10] sm:$0xff]
        %v244 = vld [vmem:[#allocation2 + $0x18] sm:$0xff]
        %v245 = vld [vmem:[#allocation2 + $0x20] sm:$0xff]
        %v246 = vld [vmem:[#allocation2 + $0x28] sm:$0xff]
        %v247 = vld [vmem:[#allocation2 + $0x30] sm:$0xff]
        %v248 = vld [vmem:[#allocation2 + $0x38] sm:$0xff]
        %v249 = vld [vmem:[#allocation2 + $0x40] sm:$0xff]
        %v250 = vld [vmem:[#allocation2 + $0x48] sm:$0xff]
        %v251 = vld [vmem:[#allocation2 + $0x50] sm:$0xff]
        %v252 = vld [vmem:[#allocation2 + $0x58] sm:$0xff]
        %v253 = vld [vmem:[#allocation2 + $0x60] sm:$0xff]
        %v254 = vld [vmem:[#allocation2 + $0x68] sm:$0xff]
        %v255 = vld [vmem:[#allocation2 + $0x70] sm:$0xff]
        %v256 = vld [vmem:[#allocation2 + $0x78] sm:$0xff]
        %v257 = vld [vmem:[#allocation2 + $0x80] sm:$0xff]
        %v258 = vld [vmem:[#allocation2 + $0x88] sm:$0xff]
        %v259 = vld [vmem:[#allocation2 + $0x90] sm:$0xff]
        %v260 = vld [vmem:[#allocation2 + $0x98] sm:$0xff]
        %v261 = vld [vmem:[#allocation2 + $0xa0] sm:$0xff]
        %v262 = vld [vmem:[#allocation2 + $0xa8] sm:$0xff]
        %v263 = vld [vmem:[#allocation2 + $0xb0] sm:$0xff]
        %v264 = vld [vmem:[#allocation2 + $0xb8] sm:$0xff]
        %v265 = vld [vmem:[#allocation2 + $0xc0] sm:$0xff]
        %v266 = vld [vmem:[#allocation2 + $0xc8] sm:$0xff]
        %v267 = vld [vmem:[#allocation2 + $0xd0] sm:$0xff]
        %v268 = vld [vmem:[#allocation2 + $0xd8] sm:$0xff]
        %v269 = vld [vmem:[#allocation2 + $0xe0] sm:$0xff]
        %v270 = vld [vmem:[#allocation2 + $0xe8] sm:$0xff]
        %v271 = vld [vmem:[#allocation2 + $0xf0] sm:$0xff]
        %v272 = vld [vmem:[#allocation2 + $0xf8] sm:$0xff]
        %v273 = vld [vmem:[%s201] sm:$0xff]
        %v274 = vld [vmem:[%s201 + $0x8] sm:$0xff]
        %v275 = vld [vmem:[%s201 + $0x10] sm:$0xff]
        %v276 = vld [vmem:[%s201 + $0x18] sm:$0xff]
        %v277 = vld [vmem:[%s201 + $0x20] sm:$0xff]
        %v278 = vld [vmem:[%s201 + $0x28] sm:$0xff]
        %v279 = vld [vmem:[%s201 + $0x30] sm:$0xff]
        %v280 = vld [vmem:[%s201 + $0x38] sm:$0xff]
        %v281 = vld [vmem:[%s201 + $0x40] sm:$0xff]
        %v282 = vld [vmem:[%s201 + $0x48] sm:$0xff]
        %v283 = vld [vmem:[%s201 + $0x50] sm:$0xff]
        %v284 = vld [vmem:[%s201 + $0x58] sm:$0xff]
        %v285 = vld [vmem:[%s201 + $0x60] sm:$0xff]
        %v286 = vld [vmem:[%s201 + $0x68] sm:$0xff]
        %v287 = vld [vmem:[%s201 + $0x70] sm:$0xff]
        %v288 = vld [vmem:[%s201 + $0x78] sm:$0xff]
        %v289 = vld [vmem:[%s201 + $0x80] sm:$0xff]
        %v290 = vld [vmem:[%s201 + $0x88] sm:$0xff]
        %v291 = vld [vmem:[%s201 + $0x90] sm:$0xff]
        %v292 = vld [vmem:[%s201 + $0x98] sm:$0xff]
        %v293 = vld [vmem:[%s201 + $0xa0] sm:$0xff]
        %v294 = vld [vmem:[%s201 + $0xa8] sm:$0xff]
        %v295 = vld [vmem:[%s201 + $0xb0] sm:$0xff]
        %v296 = vld [vmem:[%s201 + $0xb8] sm:$0xff]
        %v297 = vld [vmem:[%s201 + $0xc0] sm:$0xff]
        %v298 = vld [vmem:[%s201 + $0xc8] sm:$0xff]
        %v299 = vld [vmem:[%s201 + $0xd0] sm:$0xff]
        %v300 = vld [vmem:[%s201 + $0xd8] sm:$0xff]
        %v301 = vld [vmem:[%s201 + $0xe0] sm:$0xff]
        %v302 = vld [vmem:[%s201 + $0xe8] sm:$0xff]
        %v303 = vld [vmem:[%s201 + $0xf0] sm:$0xff]
        %v304 = vld [vmem:[%s201 + $0xf8] sm:$0xff]
        %v305 = vld [vmem:[%s201 + $0x100] sm:$0xff]
        %v306 = vld [vmem:[%s201 + $0x108] sm:$0xff]
        %v307 = vld [vmem:[%s201 + $0x110] sm:$0xff]
        %v308 = vld [vmem:[%s201 + $0x118] sm:$0xff]
        %v309 = vld [vmem:[%s201 + $0x120] sm:$0xff]
        %v310 = vld [vmem:[%s201 + $0x128] sm:$0xff]
        %v311 = vld [vmem:[%s201 + $0x130] sm:$0xff]
        %v312 = vld [vmem:[%s201 + $0x138] sm:$0xff]
        %v313 = vld [vmem:[%s201 + $0x140] sm:$0xff]
        %v314 = vld [vmem:[%s201 + $0x148] sm:$0xff]
        %v315 = vld [vmem:[%s201 + $0x150] sm:$0xff]
        %v316 = vld [vmem:[%s201 + $0x158] sm:$0xff]
        %v317 = vld [vmem:[%s201 + $0x160] sm:$0xff]
        %v318 = vld [vmem:[%s201 + $0x168] sm:$0xff]
        %v319 = vld [vmem:[%s201 + $0x170] sm:$0xff]
        %v320 = vld [vmem:[%s201 + $0x178] sm:$0xff]
        %v321 = vld [vmem:[%s201 + $0x180] sm:$0xff]
        %v322 = vld [vmem:[%s201 + $0x188] sm:$0xff]
        %v323 = vld [vmem:[%s201 + $0x190] sm:$0xff]
        %v324 = vld [vmem:[%s201 + $0x198] sm:$0xff]
        %v325 = vld [vmem:[%s201 + $0x1a0] sm:$0xff]
        %v326 = vld [vmem:[%s201 + $0x1a8] sm:$0xff]
        %v327 = vld [vmem:[%s201 + $0x1b0] sm:$0xff]
        %v328 = vld [vmem:[%s201 + $0x1b8] sm:$0xff]
        %v329 = vld [vmem:[%s201 + $0x1c0] sm:$0xff]
        %v330 = vld [vmem:[%s201 + $0x1c8] sm:$0xff]
        %v331 = vld [vmem:[%s201 + $0x1d0] sm:$0xff]
        %v332 = vld [vmem:[%s201 + $0x1d8] sm:$0xff]
        %v333 = vld [vmem:[%s201 + $0x1e0] sm:$0xff]
        %v334 = vld [vmem:[%s201 + $0x1e8] sm:$0xff]
        %v335 = vld [vmem:[%s201 + $0x1f0] sm:$0xff]
        %v336 = vld [vmem:[%s201 + $0x1f8] sm:$0xff]
        %v337 = vld [vmem:[%s201 + $0x200] sm:$0xff]
        %v338 = vld [vmem:[%s201 + $0x208] sm:$0xff]
        %v339 = vld [vmem:[%s201 + $0x210] sm:$0xff]
        %v340 = vld [vmem:[%s201 + $0x218] sm:$0xff]
        %v341 = vld [vmem:[%s201 + $0x220] sm:$0xff]
        %v342 = vld [vmem:[%s201 + $0x228] sm:$0xff]
        %v343 = vld [vmem:[%s201 + $0x230] sm:$0xff]
        %v344 = vld [vmem:[%s201 + $0x238] sm:$0xff]
        %v345 = vld [vmem:[%s201 + $0x240] sm:$0xff]
        %v346 = vld [vmem:[%s201 + $0x248] sm:$0xff]
        %v347 = vld [vmem:[%s201 + $0x250] sm:$0xff]
        %v348 = vld [vmem:[%s201 + $0x258] sm:$0xff]
        %v349 = vld [vmem:[%s201 + $0x260] sm:$0xff]
        %v350 = vld [vmem:[%s201 + $0x268] sm:$0xff]
        %v351 = vld [vmem:[%s201 + $0x270] sm:$0xff]
        %v352 = vld [vmem:[%s201 + $0x278] sm:$0xff]
        %v353 = vld [vmem:[%s201 + $0x280] sm:$0xff]
        %v354 = vld [vmem:[%s201 + $0x288] sm:$0xff]
        %v355 = vld [vmem:[%s201 + $0x290] sm:$0xff]
        %v356 = vld [vmem:[%s201 + $0x298] sm:$0xff]
        %v357 = vld [vmem:[%s201 + $0x2a0] sm:$0xff]
        %v358 = vld [vmem:[%s201 + $0x2a8] sm:$0xff]
        %v359 = vld [vmem:[%s201 + $0x2b0] sm:$0xff]
        %v360 = vld [vmem:[%s201 + $0x2b8] sm:$0xff]
        %v361 = vld [vmem:[%s201 + $0x2c0] sm:$0xff]
        %v362 = vld [vmem:[%s201 + $0x2c8] sm:$0xff]
        %v363 = vld [vmem:[%s201 + $0x2d0] sm:$0xff]
        %v364 = vld [vmem:[%s201 + $0x2d8] sm:$0xff]
        %v365 = vld [vmem:[%s201 + $0x2e0] sm:$0xff]
        %v366 = vld [vmem:[%s201 + $0x2e8] sm:$0xff]
        %v367 = vld [vmem:[%s201 + $0x2f0] sm:$0xff]
        %v368 = vld [vmem:[%s201 + $0x2f8] sm:$0xff]
        %v369 = vld [vmem:[%s201 + $0x300] sm:$0xff]
        %v370 = vld [vmem:[%s201 + $0x308] sm:$0xff]
        %v371 = vld [vmem:[%s201 + $0x310] sm:$0xff]
        %v372 = vld [vmem:[%s201 + $0x318] sm:$0xff]
        %v373 = vld [vmem:[%s201 + $0x320] sm:$0xff]
        %v374 = vld [vmem:[%s201 + $0x328] sm:$0xff]
        %v375 = vld [vmem:[%s201 + $0x330] sm:$0xff]
        %v376 = vld [vmem:[%s201 + $0x338] sm:$0xff]
        %v377 = vld [vmem:[%s201 + $0x340] sm:$0xff]
        %v378 = vld [vmem:[%s201 + $0x348] sm:$0xff]
        %v379 = vld [vmem:[%s201 + $0x350] sm:$0xff]
        %v380 = vld [vmem:[%s201 + $0x358] sm:$0xff]
        %v381 = vld [vmem:[%s201 + $0x360] sm:$0xff]
        %v382 = vld [vmem:[%s201 + $0x368] sm:$0xff]
        %v383 = vld [vmem:[%s201 + $0x370] sm:$0xff]
        %v384 = vld [vmem:[%s201 + $0x378] sm:$0xff]
        %v385 = vld [vmem:[%s201 + $0x380] sm:$0xff]
        %v386 = vld [vmem:[%s201 + $0x388] sm:$0xff]
        %v387 = vld [vmem:[%s201 + $0x390] sm:$0xff]
        %v388 = vld [vmem:[%s201 + $0x398] sm:$0xff]
        %v389 = vld [vmem:[%s201 + $0x3a0] sm:$0xff]
        %v390 = vld [vmem:[%s201 + $0x3a8] sm:$0xff]
        %v391 = vld [vmem:[%s201 + $0x3b0] sm:$0xff]
        %v392 = vld [vmem:[%s201 + $0x3b8] sm:$0xff]
        %v393 = vld [vmem:[%s201 + $0x3c0] sm:$0xff]
        %v394 = vld [vmem:[%s201 + $0x3c8] sm:$0xff]
        %v395 = vld [vmem:[%s201 + $0x3d0] sm:$0xff]
        %v396 = vld [vmem:[%s201 + $0x3d8] sm:$0xff]
        %v397 = vld [vmem:[%s201 + $0x3e0] sm:$0xff]
        %v398 = vld [vmem:[%s201 + $0x3e8] sm:$0xff]
        %v399 = vld [vmem:[%s201 + $0x3f0] sm:$0xff]
        %v400 = vld [vmem:[%s201 + $0x3f8] sm:$0xff]
        %v401 = vld [vmem:[%s201 + $0x400] sm:$0xff]
        %v402 = vld [vmem:[%s201 + $0x408] sm:$0xff]
        %v403 = vld [vmem:[%s201 + $0x410] sm:$0xff]
        %v404 = vld [vmem:[%s201 + $0x418] sm:$0xff]
        %v405 = vld [vmem:[%s201 + $0x420] sm:$0xff]
        %v406 = vld [vmem:[%s201 + $0x428] sm:$0xff]
        %v407 = vld [vmem:[%s201 + $0x430] sm:$0xff]
        %v408 = vld [vmem:[%s201 + $0x438] sm:$0xff]
        %v409 = vld [vmem:[%s201 + $0x440] sm:$0xff]
        %v410 = vld [vmem:[%s201 + $0x448] sm:$0xff]
        %v411 = vld [vmem:[%s201 + $0x450] sm:$0xff]
        %v412 = vld [vmem:[%s201 + $0x458] sm:$0xff]
        %v413 = vld [vmem:[%s201 + $0x460] sm:$0xff]
        %v414 = vld [vmem:[%s201 + $0x468] sm:$0xff]
        %v415 = vld [vmem:[%s201 + $0x470] sm:$0xff]
        %v416 = vld [vmem:[%s201 + $0x478] sm:$0xff]
        %v417 = vld [vmem:[%s201 + $0x480] sm:$0xff]
        %v418 = vld [vmem:[%s201 + $0x488] sm:$0xff]
        %v419 = vld [vmem:[%s201 + $0x490] sm:$0xff]
        %v420 = vld [vmem:[%s201 + $0x498] sm:$0xff]
        %v421 = vld [vmem:[%s201 + $0x4a0] sm:$0xff]
        %v422 = vld [vmem:[%s201 + $0x4a8] sm:$0xff]
        %v423 = vld [vmem:[%s201 + $0x4b0] sm:$0xff]
        %v424 = vld [vmem:[%s201 + $0x4b8] sm:$0xff]
        %v425 = vld [vmem:[%s201 + $0x4c0] sm:$0xff]
        %v426 = vld [vmem:[%s201 + $0x4c8] sm:$0xff]
        %v427 = vld [vmem:[%s201 + $0x4d0] sm:$0xff]
        %v428 = vld [vmem:[%s201 + $0x4d8] sm:$0xff]
        %v429 = vld [vmem:[%s201 + $0x4e0] sm:$0xff]
        %v430 = vld [vmem:[%s201 + $0x4e8] sm:$0xff]
        %v431 = vld [vmem:[%s201 + $0x4f0] sm:$0xff]
        %v432 = vld [vmem:[%s201 + $0x4f8] sm:$0xff]
        %v433 = vld [vmem:[%s201 + $0x500] sm:$0xff]
        %v434 = vld [vmem:[%s201 + $0x508] sm:$0xff]
        %v435 = vld [vmem:[%s201 + $0x510] sm:$0xff]
        %v436 = vld [vmem:[%s201 + $0x518] sm:$0xff]
        %v437 = vld [vmem:[%s201 + $0x520] sm:$0xff]
        %v438 = vld [vmem:[%s201 + $0x528] sm:$0xff]
        %v439 = vld [vmem:[%s201 + $0x530] sm:$0xff]
        %v440 = vld [vmem:[%s201 + $0x538] sm:$0xff]
        %v441 = vld [vmem:[%s201 + $0x540] sm:$0xff]
        %v442 = vld [vmem:[%s201 + $0x548] sm:$0xff]
        %v443 = vld [vmem:[%s201 + $0x550] sm:$0xff]
        %v444 = vld [vmem:[%s201 + $0x558] sm:$0xff]
        %v445 = vld [vmem:[%s201 + $0x560] sm:$0xff]
        %v446 = vld [vmem:[%s201 + $0x568] sm:$0xff]
        %v447 = vld [vmem:[%s201 + $0x570] sm:$0xff]
        %v448 = vld [vmem:[%s201 + $0x578] sm:$0xff]
        %v449 = vld [vmem:[%s201 + $0x580] sm:$0xff]
        %v450 = vld [vmem:[%s201 + $0x588] sm:$0xff]
        %v451 = vld [vmem:[%s201 + $0x590] sm:$0xff]
        %v452 = vld [vmem:[%s201 + $0x598] sm:$0xff]
        %v453 = vld [vmem:[%s201 + $0x5a0] sm:$0xff]
        %v454 = vld [vmem:[%s201 + $0x5a8] sm:$0xff]
        %v455 = vld [vmem:[%s201 + $0x5b0] sm:$0xff]
        %v456 = vld [vmem:[%s201 + $0x5b8] sm:$0xff]
        %v457 = vld [vmem:[%s201 + $0x5c0] sm:$0xff]
        %v458 = vld [vmem:[%s201 + $0x5c8] sm:$0xff]
        %v459 = vld [vmem:[%s201 + $0x5d0] sm:$0xff]
        %v460 = vld [vmem:[%s201 + $0x5d8] sm:$0xff]
        %v461 = vld [vmem:[%s201 + $0x5e0] sm:$0xff]
        %v462 = vld [vmem:[%s201 + $0x5e8] sm:$0xff]
        %v463 = vld [vmem:[%s201 + $0x5f0] sm:$0xff]
        %v464 = vld [vmem:[%s201 + $0x5f8] sm:$0xff]
        %v465 = vld [vmem:[%s201 + $0x600] sm:$0xff]
        %v466 = vld [vmem:[%s201 + $0x608] sm:$0xff]
        %v467 = vld [vmem:[%s201 + $0x610] sm:$0xff]
        %v468 = vld [vmem:[%s201 + $0x618] sm:$0xff]
        %v469 = vld [vmem:[%s201 + $0x620] sm:$0xff]
        %v470 = vld [vmem:[%s201 + $0x628] sm:$0xff]
        %v471 = vld [vmem:[%s201 + $0x630] sm:$0xff]
        %v472 = vld [vmem:[%s201 + $0x638] sm:$0xff]
        %v473 = vld [vmem:[%s201 + $0x640] sm:$0xff]
        %v474 = vld [vmem:[%s201 + $0x648] sm:$0xff]
        %v475 = vld [vmem:[%s201 + $0x650] sm:$0xff]
        %v476 = vld [vmem:[%s201 + $0x658] sm:$0xff]
        %v477 = vld [vmem:[%s201 + $0x660] sm:$0xff]
        %v478 = vld [vmem:[%s201 + $0x668] sm:$0xff]
        %v479 = vld [vmem:[%s201 + $0x670] sm:$0xff]
        %v480 = vld [vmem:[%s201 + $0x678] sm:$0xff]
        %v481 = vld [vmem:[%s201 + $0x680] sm:$0xff]
        %v482 = vld [vmem:[%s201 + $0x688] sm:$0xff]
        %v483 = vld [vmem:[%s201 + $0x690] sm:$0xff]
        %v484 = vld [vmem:[%s201 + $0x698] sm:$0xff]
        %v485 = vld [vmem:[%s201 + $0x6a0] sm:$0xff]
        %v486 = vld [vmem:[%s201 + $0x6a8] sm:$0xff]
        %v487 = vld [vmem:[%s201 + $0x6b0] sm:$0xff]
        %v488 = vld [vmem:[%s201 + $0x6b8] sm:$0xff]
        %v489 = vld [vmem:[%s201 + $0x6c0] sm:$0xff]
        %v490 = vld [vmem:[%s201 + $0x6c8] sm:$0xff]
        %v491 = vld [vmem:[%s201 + $0x6d0] sm:$0xff]
        %v492 = vld [vmem:[%s201 + $0x6d8] sm:$0xff]
        %v493 = vld [vmem:[%s201 + $0x6e0] sm:$0xff]
        %v494 = vld [vmem:[%s201 + $0x6e8] sm:$0xff]
        %v495 = vld [vmem:[%s201 + $0x6f0] sm:$0xff]
        %v496 = vld [vmem:[%s201 + $0x6f8] sm:$0xff]
        %v497 = vld [vmem:[%s201 + $0x700] sm:$0xff]
        %v498 = vld [vmem:[%s201 + $0x708] sm:$0xff]
        %v499 = vld [vmem:[%s201 + $0x710] sm:$0xff]
        %v500 = vld [vmem:[%s201 + $0x718] sm:$0xff]
        %v501 = vld [vmem:[%s201 + $0x720] sm:$0xff]
        %v502 = vld [vmem:[%s201 + $0x728] sm:$0xff]
        %v503 = vld [vmem:[%s201 + $0x730] sm:$0xff]
        %v504 = vld [vmem:[%s201 + $0x738] sm:$0xff]
        %v505 = vld [vmem:[%s201 + $0x740] sm:$0xff]
        %v506 = vld [vmem:[%s201 + $0x748] sm:$0xff]
        %v507 = vld [vmem:[%s201 + $0x750] sm:$0xff]
        %v508 = vld [vmem:[%s201 + $0x758] sm:$0xff]
        %v509 = vld [vmem:[%s201 + $0x760] sm:$0xff]
        %v510 = vld [vmem:[%s201 + $0x768] sm:$0xff]
        %v511 = vld [vmem:[%s201 + $0x770] sm:$0xff]
        %v512 = vld [vmem:[%s201 + $0x778] sm:$0xff]
        %v513 = vld [vmem:[%s201 + $0x780] sm:$0xff]
        %v514 = vld [vmem:[%s201 + $0x788] sm:$0xff]
        %v515 = vld [vmem:[%s201 + $0x790] sm:$0xff]
        %v516 = vld [vmem:[%s201 + $0x798] sm:$0xff]
        %v517 = vld [vmem:[%s201 + $0x7a0] sm:$0xff]
        %v518 = vld [vmem:[%s201 + $0x7a8] sm:$0xff]
        %v519 = vld [vmem:[%s201 + $0x7b0] sm:$0xff]
        %v520 = vld [vmem:[%s201 + $0x7b8] sm:$0xff]
        %v521 = vld [vmem:[%s201 + $0x7c0] sm:$0xff]
        %v522 = vld [vmem:[%s201 + $0x7c8] sm:$0xff]
        %v523 = vld [vmem:[%s201 + $0x7d0] sm:$0xff]
        %v524 = vld [vmem:[%s201 + $0x7d8] sm:$0xff]
        %v525 = vld [vmem:[%s201 + $0x7e0] sm:$0xff]
        %v526 = vld [vmem:[%s201 + $0x7e8] sm:$0xff]
        %v527 = vld [vmem:[%s201 + $0x7f0] sm:$0xff]
        %v528 = vld [vmem:[%s201 + $0x7f8] sm:$0xff]
        %v529 = vld [vmem:[%s201 + $0x800] sm:$0xff]
        %v530 = vld [vmem:[%s201 + $0x808] sm:$0xff]
        %v531 = vld [vmem:[%s201 + $0x810] sm:$0xff]
        %v532 = vld [vmem:[%s201 + $0x818] sm:$0xff]
        %v533 = vld [vmem:[%s201 + $0x820] sm:$0xff]
        %v534 = vld [vmem:[%s201 + $0x828] sm:$0xff]
        %v535 = vld [vmem:[%s201 + $0x830] sm:$0xff]
        %v536 = vld [vmem:[%s201 + $0x838] sm:$0xff]
        %v537 = vld [vmem:[%s201 + $0x840] sm:$0xff]
        %v538 = vld [vmem:[%s201 + $0x848] sm:$0xff]
        %v539 = vld [vmem:[%s201 + $0x850] sm:$0xff]
        %v540 = vld [vmem:[%s201 + $0x858] sm:$0xff]
        %v541 = vld [vmem:[%s201 + $0x860] sm:$0xff]
        %v542 = vld [vmem:[%s201 + $0x868] sm:$0xff]
        %v543 = vld [vmem:[%s201 + $0x870] sm:$0xff]
        %v544 = vld [vmem:[%s201 + $0x878] sm:$0xff]
        %v545 = vld [vmem:[%s201 + $0x880] sm:$0xff]
        %v546 = vld [vmem:[%s201 + $0x888] sm:$0xff]
        %v547 = vld [vmem:[%s201 + $0x890] sm:$0xff]
        %v548 = vld [vmem:[%s201 + $0x898] sm:$0xff]
        %v549 = vld [vmem:[%s201 + $0x8a0] sm:$0xff]
        %v550 = vld [vmem:[%s201 + $0x8a8] sm:$0xff]
        %v551 = vld [vmem:[%s201 + $0x8b0] sm:$0xff]
        %v552 = vld [vmem:[%s201 + $0x8b8] sm:$0xff]
        %v553 = vld [vmem:[%s201 + $0x8c0] sm:$0xff]
        %v554 = vld [vmem:[%s201 + $0x8c8] sm:$0xff]
        %v555 = vld [vmem:[%s201 + $0x8d0] sm:$0xff]
        %v556 = vld [vmem:[%s201 + $0x8d8] sm:$0xff]
        %v557 = vld [vmem:[%s201 + $0x8e0] sm:$0xff]
        %v558 = vld [vmem:[%s201 + $0x8e8] sm:$0xff]
        %v559 = vld [vmem:[%s201 + $0x8f0] sm:$0xff]
        %v560 = vld [vmem:[%s201 + $0x8f8] sm:$0xff]
        %v561 = vld [vmem:[%s201 + $0x900] sm:$0xff]
        %v562 = vld [vmem:[%s201 + $0x908] sm:$0xff]
        %v563 = vld [vmem:[%s201 + $0x910] sm:$0xff]
        %v564 = vld [vmem:[%s201 + $0x918] sm:$0xff]
        %v565 = vld [vmem:[%s201 + $0x920] sm:$0xff]
        %v566 = vld [vmem:[%s201 + $0x928] sm:$0xff]
        %v567 = vld [vmem:[%s201 + $0x930] sm:$0xff]
        %v568 = vld [vmem:[%s201 + $0x938] sm:$0xff]
        %v569 = vld [vmem:[%s201 + $0x940] sm:$0xff]
        %v570 = vld [vmem:[%s201 + $0x948] sm:$0xff]
        %v571 = vld [vmem:[%s201 + $0x950] sm:$0xff]
        %v572 = vld [vmem:[%s201 + $0x958] sm:$0xff]
        %v573 = vld [vmem:[%s201 + $0x960] sm:$0xff]
        %v574 = vld [vmem:[%s201 + $0x968] sm:$0xff]
        %v575 = vld [vmem:[%s201 + $0x970] sm:$0xff]
        %v576 = vld [vmem:[%s201 + $0x978] sm:$0xff]
        %v577 = vld [vmem:[%s201 + $0x980] sm:$0xff]
        %v578 = vld [vmem:[%s201 + $0x988] sm:$0xff]
        %v579 = vld [vmem:[%s201 + $0x990] sm:$0xff]
        %v580 = vld [vmem:[%s201 + $0x998] sm:$0xff]
        %v581 = vld [vmem:[%s201 + $0x9a0] sm:$0xff]
        %v582 = vld [vmem:[%s201 + $0x9a8] sm:$0xff]
        %v583 = vld [vmem:[%s201 + $0x9b0] sm:$0xff]
        %v584 = vld [vmem:[%s201 + $0x9b8] sm:$0xff]
        %v585 = vld [vmem:[%s201 + $0x9c0] sm:$0xff]
        %v586 = vld [vmem:[%s201 + $0x9c8] sm:$0xff]
        %v587 = vld [vmem:[%s201 + $0x9d0] sm:$0xff]
        %v588 = vld [vmem:[%s201 + $0x9d8] sm:$0xff]
        %v589 = vld [vmem:[%s201 + $0x9e0] sm:$0xff]
        %v590 = vld [vmem:[%s201 + $0x9e8] sm:$0xff]
        %v591 = vld [vmem:[%s201 + $0x9f0] sm:$0xff]
        %v592 = vld [vmem:[%s201 + $0x9f8] sm:$0xff]
        %v593 = vld [vmem:[%s201 + $0xa00] sm:$0xff]
        %v594 = vld [vmem:[%s201 + $0xa08] sm:$0xff]
        %v595 = vld [vmem:[%s201 + $0xa10] sm:$0xff]
        %v596 = vld [vmem:[%s201 + $0xa18] sm:$0xff]
        %v597 = vld [vmem:[%s201 + $0xa20] sm:$0xff]
        %v598 = vld [vmem:[%s201 + $0xa28] sm:$0xff]
        %v599 = vld [vmem:[%s201 + $0xa30] sm:$0xff]
        %v600 = vld [vmem:[%s201 + $0xa38] sm:$0xff]
        %v601 = vld [vmem:[%s201 + $0xa40] sm:$0xff]
        %v602 = vld [vmem:[%s201 + $0xa48] sm:$0xff]
        %v603 = vld [vmem:[%s201 + $0xa50] sm:$0xff]
        %v604 = vld [vmem:[%s201 + $0xa58] sm:$0xff]
        %v605 = vld [vmem:[%s201 + $0xa60] sm:$0xff]
        %v606 = vld [vmem:[%s201 + $0xa68] sm:$0xff]
        %v607 = vld [vmem:[%s201 + $0xa70] sm:$0xff]
        %v608 = vld [vmem:[%s201 + $0xa78] sm:$0xff]
        %v609 = vld [vmem:[%s201 + $0xa80] sm:$0xff]
        %v610 = vld [vmem:[%s201 + $0xa88] sm:$0xff]
        %v611 = vld [vmem:[%s201 + $0xa90] sm:$0xff]
        %v612 = vld [vmem:[%s201 + $0xa98] sm:$0xff]
        %v613 = vld [vmem:[%s201 + $0xaa0] sm:$0xff]
        %v614 = vld [vmem:[%s201 + $0xaa8] sm:$0xff]
        %v615 = vld [vmem:[%s201 + $0xab0] sm:$0xff]
        %v616 = vld [vmem:[%s201 + $0xab8] sm:$0xff]
        %v617 = vld [vmem:[%s201 + $0xac0] sm:$0xff]
        %v618 = vld [vmem:[%s201 + $0xac8] sm:$0xff]
        %v619 = vld [vmem:[%s201 + $0xad0] sm:$0xff]
        %v620 = vld [vmem:[%s201 + $0xad8] sm:$0xff]
        %v621 = vld [vmem:[%s201 + $0xae0] sm:$0xff]
        %v622 = vld [vmem:[%s201 + $0xae8] sm:$0xff]
        %v623 = vld [vmem:[%s201 + $0xaf0] sm:$0xff]
        %v624 = vld [vmem:[%s201 + $0xaf8] sm:$0xff]
        %v625 = vld [vmem:[%s201 + $0xb00] sm:$0xff]
        %v626 = vld [vmem:[%s201 + $0xb08] sm:$0xff]
        %v627 = vld [vmem:[%s201 + $0xb10] sm:$0xff]
        %v628 = vld [vmem:[%s201 + $0xb18] sm:$0xff]
        %v629 = vld [vmem:[%s201 + $0xb20] sm:$0xff]
        %v630 = vld [vmem:[%s201 + $0xb28] sm:$0xff]
        %v631 = vld [vmem:[%s201 + $0xb30] sm:$0xff]
        %v632 = vld [vmem:[%s201 + $0xb38] sm:$0xff]
        %v633 = vld [vmem:[%s201 + $0xb40] sm:$0xff]
        %v634 = vld [vmem:[%s201 + $0xb48] sm:$0xff]
        %v635 = vld [vmem:[%s201 + $0xb50] sm:$0xff]
        %v636 = vld [vmem:[%s201 + $0xb58] sm:$0xff]
        %v637 = vld [vmem:[%s201 + $0xb60] sm:$0xff]
        %v638 = vld [vmem:[%s201 + $0xb68] sm:$0xff]
        %v639 = vld [vmem:[%s201 + $0xb70] sm:$0xff]
        %v640 = vld [vmem:[%s201 + $0xb78] sm:$0xff]
        %v641 = vld [vmem:[%s201 + $0xb80] sm:$0xff]
        %v642 = vld [vmem:[%s201 + $0xb88] sm:$0xff]
        %v643 = vld [vmem:[%s201 + $0xb90] sm:$0xff]
        %v644 = vld [vmem:[%s201 + $0xb98] sm:$0xff]
        %v645 = vld [vmem:[%s201 + $0xba0] sm:$0xff]
        %v646 = vld [vmem:[%s201 + $0xba8] sm:$0xff]
        %v647 = vld [vmem:[%s201 + $0xbb0] sm:$0xff]
        %v648 = vld [vmem:[%s201 + $0xbb8] sm:$0xff]
        %v649 = vld [vmem:[%s201 + $0xbc0] sm:$0xff]
        %v650 = vld [vmem:[%s201 + $0xbc8] sm:$0xff]
        %v651 = vld [vmem:[%s201 + $0xbd0] sm:$0xff]
        %v652 = vld [vmem:[%s201 + $0xbd8] sm:$0xff]
        %v653 = vld [vmem:[%s201 + $0xbe0] sm:$0xff]
        %v654 = vld [vmem:[%s201 + $0xbe8] sm:$0xff]
        %v655 = vld [vmem:[%s201 + $0xbf0] sm:$0xff]
        %v656 = vld [vmem:[%s201 + $0xbf8] sm:$0xff]
        %v657 = vld [vmem:[%s201 + $0xc00] sm:$0xff]
        %v658 = vld [vmem:[%s201 + $0xc08] sm:$0xff]
        %v659 = vld [vmem:[%s201 + $0xc10] sm:$0xff]
        %v660 = vld [vmem:[%s201 + $0xc18] sm:$0xff]
        %v661 = vld [vmem:[%s201 + $0xc20] sm:$0xff]
        %v662 = vld [vmem:[%s201 + $0xc28] sm:$0xff]
        %v663 = vld [vmem:[%s201 + $0xc30] sm:$0xff]
        %v664 = vld [vmem:[%s201 + $0xc38] sm:$0xff]
        %v665 = vld [vmem:[%s201 + $0xc40] sm:$0xff]
        %v666 = vld [vmem:[%s201 + $0xc48] sm:$0xff]
        %v667 = vld [vmem:[%s201 + $0xc50] sm:$0xff]
        %v668 = vld [vmem:[%s201 + $0xc58] sm:$0xff]
        %v669 = vld [vmem:[%s201 + $0xc60] sm:$0xff]
        %v670 = vld [vmem:[%s201 + $0xc68] sm:$0xff]
        %v671 = vld [vmem:[%s201 + $0xc70] sm:$0xff]
        %v672 = vld [vmem:[%s201 + $0xc78] sm:$0xff]
        %v673 = vld [vmem:[%s201 + $0xc80] sm:$0xff]
        %v674 = vld [vmem:[%s201 + $0xc88] sm:$0xff]
        %v675 = vld [vmem:[%s201 + $0xc90] sm:$0xff]
        %v676 = vld [vmem:[%s201 + $0xc98] sm:$0xff]
        %v677 = vld [vmem:[%s201 + $0xca0] sm:$0xff]
        %v678 = vld [vmem:[%s201 + $0xca8] sm:$0xff]
        %v679 = vld [vmem:[%s201 + $0xcb0] sm:$0xff]
        %v680 = vld [vmem:[%s201 + $0xcb8] sm:$0xff]
        %v681 = vld [vmem:[%s201 + $0xcc0] sm:$0xff]
        %v682 = vld [vmem:[%s201 + $0xcc8] sm:$0xff]
        %v683 = vld [vmem:[%s201 + $0xcd0] sm:$0xff]
        %v684 = vld [vmem:[%s201 + $0xcd8] sm:$0xff]
        %v685 = vld [vmem:[%s201 + $0xce0] sm:$0xff]
        %v686 = vld [vmem:[%s201 + $0xce8] sm:$0xff]
        %v687 = vld [vmem:[%s201 + $0xcf0] sm:$0xff]
        %v688 = vld [vmem:[%s201 + $0xcf8] sm:$0xff]
        %v689 = vld [vmem:[%s201 + $0xd00] sm:$0xff]
        %v690 = vld [vmem:[%s201 + $0xd08] sm:$0xff]
        %v691 = vld [vmem:[%s201 + $0xd10] sm:$0xff]
        %v692 = vld [vmem:[%s201 + $0xd18] sm:$0xff]
        %v693 = vld [vmem:[%s201 + $0xd20] sm:$0xff]
        %v694 = vld [vmem:[%s201 + $0xd28] sm:$0xff]
        %v695 = vld [vmem:[%s201 + $0xd30] sm:$0xff]
        %v696 = vld [vmem:[%s201 + $0xd38] sm:$0xff]
        %v697 = vld [vmem:[%s201 + $0xd40] sm:$0xff]
        %v698 = vld [vmem:[%s201 + $0xd48] sm:$0xff]
        %v699 = vld [vmem:[%s201 + $0xd50] sm:$0xff]
        %v700 = vld [vmem:[%s201 + $0xd58] sm:$0xff]
        %v701 = vld [vmem:[%s201 + $0xd60] sm:$0xff]
        %v702 = vld [vmem:[%s201 + $0xd68] sm:$0xff]
        %v703 = vld [vmem:[%s201 + $0xd70] sm:$0xff]
        %v704 = vld [vmem:[%s201 + $0xd78] sm:$0xff]
        %v705 = vld [vmem:[%s201 + $0xd80] sm:$0xff]
        %v706 = vld [vmem:[%s201 + $0xd88] sm:$0xff]
        %v707 = vld [vmem:[%s201 + $0xd90] sm:$0xff]
        %v708 = vld [vmem:[%s201 + $0xd98] sm:$0xff]
        %v709 = vld [vmem:[%s201 + $0xda0] sm:$0xff]
        %v710 = vld [vmem:[%s201 + $0xda8] sm:$0xff]
        %v711 = vld [vmem:[%s201 + $0xdb0] sm:$0xff]
        %v712 = vld [vmem:[%s201 + $0xdb8] sm:$0xff]
        %v713 = vld [vmem:[%s201 + $0xdc0] sm:$0xff]
        %v714 = vld [vmem:[%s201 + $0xdc8] sm:$0xff]
        %v715 = vld [vmem:[%s201 + $0xdd0] sm:$0xff]
        %v716 = vld [vmem:[%s201 + $0xdd8] sm:$0xff]
        %v717 = vld [vmem:[%s201 + $0xde0] sm:$0xff]
        %v718 = vld [vmem:[%s201 + $0xde8] sm:$0xff]
        %v719 = vld [vmem:[%s201 + $0xdf0] sm:$0xff]
        %v720 = vld [vmem:[%s201 + $0xdf8] sm:$0xff]
        %v721 = vld [vmem:[%s201 + $0xe00] sm:$0xff]
        %v722 = vld [vmem:[%s201 + $0xe08] sm:$0xff]
        %v723 = vld [vmem:[%s201 + $0xe10] sm:$0xff]
        %v724 = vld [vmem:[%s201 + $0xe18] sm:$0xff]
        %v725 = vld [vmem:[%s201 + $0xe20] sm:$0xff]
        %v726 = vld [vmem:[%s201 + $0xe28] sm:$0xff]
        %v727 = vld [vmem:[%s201 + $0xe30] sm:$0xff]
        %v728 = vld [vmem:[%s201 + $0xe38] sm:$0xff]
        %v729 = vld [vmem:[%s201 + $0xe40] sm:$0xff]
        %v730 = vld [vmem:[%s201 + $0xe48] sm:$0xff]
        %v731 = vld [vmem:[%s201 + $0xe50] sm:$0xff]
        %v732 = vld [vmem:[%s201 + $0xe58] sm:$0xff]
        %v733 = vld [vmem:[%s201 + $0xe60] sm:$0xff]
        %v734 = vld [vmem:[%s201 + $0xe68] sm:$0xff]
        %v735 = vld [vmem:[%s201 + $0xe70] sm:$0xff]
        %v736 = vld [vmem:[%s201 + $0xe78] sm:$0xff]
        %v737 = vld [vmem:[%s201 + $0xe80] sm:$0xff]
        %v738 = vld [vmem:[%s201 + $0xe88] sm:$0xff]
        %v739 = vld [vmem:[%s201 + $0xe90] sm:$0xff]
        %v740 = vld [vmem:[%s201 + $0xe98] sm:$0xff]
        %v741 = vld [vmem:[%s201 + $0xea0] sm:$0xff]
        %v742 = vld [vmem:[%s201 + $0xea8] sm:$0xff]
        %v743 = vld [vmem:[%s201 + $0xeb0] sm:$0xff]
        %v744 = vld [vmem:[%s201 + $0xeb8] sm:$0xff]
        %v745 = vld [vmem:[%s201 + $0xec0] sm:$0xff]
        %v746 = vld [vmem:[%s201 + $0xec8] sm:$0xff]
        %v747 = vld [vmem:[%s201 + $0xed0] sm:$0xff]
        %v748 = vld [vmem:[%s201 + $0xed8] sm:$0xff]
        %v749 = vld [vmem:[%s201 + $0xee0] sm:$0xff]
        %v750 = vld [vmem:[%s201 + $0xee8] sm:$0xff]
        %v751 = vld [vmem:[%s201 + $0xef0] sm:$0xff]
        %v752 = vld [vmem:[%s201 + $0xef8] sm:$0xff]
        %v753 = vld [vmem:[%s201 + $0xf00] sm:$0xff]
        %v754 = vld [vmem:[%s201 + $0xf08] sm:$0xff]
        %v755 = vld [vmem:[%s201 + $0xf10] sm:$0xff]
        %v756 = vld [vmem:[%s201 + $0xf18] sm:$0xff]
        %v757 = vld [vmem:[%s201 + $0xf20] sm:$0xff]
        %v758 = vld [vmem:[%s201 + $0xf28] sm:$0xff]
        %v759 = vld [vmem:[%s201 + $0xf30] sm:$0xff]
        %v760 = vld [vmem:[%s201 + $0xf38] sm:$0xff]
        %v761 = vld [vmem:[%s201 + $0xf40] sm:$0xff]
        %v762 = vld [vmem:[%s201 + $0xf48] sm:$0xff]
        %v763 = vld [vmem:[%s201 + $0xf50] sm:$0xff]
        %v764 = vld [vmem:[%s201 + $0xf58] sm:$0xff]
        %v765 = vld [vmem:[%s201 + $0xf60] sm:$0xff]
        %v766 = vld [vmem:[%s201 + $0xf68] sm:$0xff]
        %v767 = vld [vmem:[%s201 + $0xf70] sm:$0xff]
        %v768 = vld [vmem:[%s201 + $0xf78] sm:$0xff]
        %v769 = vld [vmem:[%s201 + $0xf80] sm:$0xff]
        %v770 = vld [vmem:[%s201 + $0xf88] sm:$0xff]
        %v771 = vld [vmem:[%s201 + $0xf90] sm:$0xff]
        %v772 = vld [vmem:[%s201 + $0xf98] sm:$0xff]
        %v773 = vld [vmem:[%s201 + $0xfa0] sm:$0xff]
        %v774 = vld [vmem:[%s201 + $0xfa8] sm:$0xff]
        %v775 = vld [vmem:[%s201 + $0xfb0] sm:$0xff]
        %v776 = vld [vmem:[%s201 + $0xfb8] sm:$0xff]
        %v777 = vld [vmem:[%s201 + $0xfc0] sm:$0xff]
        %v778 = vld [vmem:[%s201 + $0xfc8] sm:$0xff]
        %v779 = vld [vmem:[%s201 + $0xfd0] sm:$0xff]
        %v780 = vld [vmem:[%s201 + $0xfd8] sm:$0xff]
        %v781 = vld [vmem:[%s201 + $0xfe0] sm:$0xff]
        %v782 = vld [vmem:[%s201 + $0xfe8] sm:$0xff]
        %v783 = vld [vmem:[%s201 + $0xff0] sm:$0xff]
        %v784 = vld [vmem:[%s201 + $0xff8] sm:$0xff]
        %v785 = vld [vmem:[%s201 + $0x1000] sm:$0xff]
        %v786 = vld [vmem:[%s201 + $0x1008] sm:$0xff]
        %v787 = vld [vmem:[%s201 + $0x1010] sm:$0xff]
        %v788 = vld [vmem:[%s201 + $0x1018] sm:$0xff]
        %v789 = vld [vmem:[%s201 + $0x1020] sm:$0xff]
        %v790 = vld [vmem:[%s201 + $0x1028] sm:$0xff]
        %v791 = vld [vmem:[%s201 + $0x1030] sm:$0xff]
        %v792 = vld [vmem:[%s201 + $0x1038] sm:$0xff]
        %v793 = vld [vmem:[%s201 + $0x1040] sm:$0xff]
        %v794 = vld [vmem:[%s201 + $0x1048] sm:$0xff]
        %v795 = vld [vmem:[%s201 + $0x1050] sm:$0xff]
        %v796 = vld [vmem:[%s201 + $0x1058] sm:$0xff]
        %v797 = vld [vmem:[%s201 + $0x1060] sm:$0xff]
        %v798 = vld [vmem:[%s201 + $0x1068] sm:$0xff]
        %v799 = vld [vmem:[%s201 + $0x1070] sm:$0xff]
        %v800 = vld [vmem:[%s201 + $0x1078] sm:$0xff]
        %v801 = vld [vmem:[%s201 + $0x1080] sm:$0xff]
        %v802 = vld [vmem:[%s201 + $0x1088] sm:$0xff]
        %v803 = vld [vmem:[%s201 + $0x1090] sm:$0xff]
        %v804 = vld [vmem:[%s201 + $0x1098] sm:$0xff]
        %v805 = vld [vmem:[%s201 + $0x10a0] sm:$0xff]
        %v806 = vld [vmem:[%s201 + $0x10a8] sm:$0xff]
        %v807 = vld [vmem:[%s201 + $0x10b0] sm:$0xff]
        %v808 = vld [vmem:[%s201 + $0x10b8] sm:$0xff]
        %v809 = vld [vmem:[%s201 + $0x10c0] sm:$0xff]
        %v810 = vld [vmem:[%s201 + $0x10c8] sm:$0xff]
        %v811 = vld [vmem:[%s201 + $0x10d0] sm:$0xff]
        %v812 = vld [vmem:[%s201 + $0x10d8] sm:$0xff]
        %v813 = vld [vmem:[%s201 + $0x10e0] sm:$0xff]
        %v814 = vld [vmem:[%s201 + $0x10e8] sm:$0xff]
        %v815 = vld [vmem:[%s201 + $0x10f0] sm:$0xff]
        %v816 = vld [vmem:[%s201 + $0x10f8] sm:$0xff]
        %v817 = vld [vmem:[%s201 + $0x1100] sm:$0xff]
        %v818 = vld [vmem:[%s201 + $0x1108] sm:$0xff]
        %v819 = vld [vmem:[%s201 + $0x1110] sm:$0xff]
        %v820 = vld [vmem:[%s201 + $0x1118] sm:$0xff]
        %v821 = vld [vmem:[%s201 + $0x1120] sm:$0xff]
        %v822 = vld [vmem:[%s201 + $0x1128] sm:$0xff]
        %v823 = vld [vmem:[%s201 + $0x1130] sm:$0xff]
        %v824 = vld [vmem:[%s201 + $0x1138] sm:$0xff]
        %v825 = vld [vmem:[%s201 + $0x1140] sm:$0xff]
        %v826 = vld [vmem:[%s201 + $0x1148] sm:$0xff]
        %v827 = vld [vmem:[%s201 + $0x1150] sm:$0xff]
        %v828 = vld [vmem:[%s201 + $0x1158] sm:$0xff]
        %v829 = vld [vmem:[%s201 + $0x1160] sm:$0xff]
        %v830 = vld [vmem:[%s201 + $0x1168] sm:$0xff]
        %v831 = vld [vmem:[%s201 + $0x1170] sm:$0xff]
        %v832 = vld [vmem:[%s201 + $0x1178] sm:$0xff]
        %v833 = vld [vmem:[%s201 + $0x1180] sm:$0xff]
        %v834 = vld [vmem:[%s201 + $0x1188] sm:$0xff]
        %v835 = vld [vmem:[%s201 + $0x1190] sm:$0xff]
        %v836 = vld [vmem:[%s201 + $0x1198] sm:$0xff]
        %v837 = vld [vmem:[%s201 + $0x11a0] sm:$0xff]
        %v838 = vld [vmem:[%s201 + $0x11a8] sm:$0xff]
        %v839 = vld [vmem:[%s201 + $0x11b0] sm:$0xff]
        %v840 = vld [vmem:[%s201 + $0x11b8] sm:$0xff]
        %v841 = vld [vmem:[%s201 + $0x11c0] sm:$0xff]
        %v842 = vld [vmem:[%s201 + $0x11c8] sm:$0xff]
        %v843 = vld [vmem:[%s201 + $0x11d0] sm:$0xff]
        %v844 = vld [vmem:[%s201 + $0x11d8] sm:$0xff]
        %v845 = vld [vmem:[%s201 + $0x11e0] sm:$0xff]
        %v846 = vld [vmem:[%s201 + $0x11e8] sm:$0xff]
        %v847 = vld [vmem:[%s201 + $0x11f0] sm:$0xff]
        %v848 = vld [vmem:[%s201 + $0x11f8] sm:$0xff]
        %v849 = vld [vmem:[%s201 + $0x1200] sm:$0xff]
        %v850 = vld [vmem:[%s201 + $0x1208] sm:$0xff]
        %v851 = vld [vmem:[%s201 + $0x1210] sm:$0xff]
        %v852 = vld [vmem:[%s201 + $0x1218] sm:$0xff]
        %v853 = vld [vmem:[%s201 + $0x1220] sm:$0xff]
        %v854 = vld [vmem:[%s201 + $0x1228] sm:$0xff]
        %v855 = vld [vmem:[%s201 + $0x1230] sm:$0xff]
        %v856 = vld [vmem:[%s201 + $0x1238] sm:$0xff]
        %v857 = vld [vmem:[%s201 + $0x1240] sm:$0xff]
        %v858 = vld [vmem:[%s201 + $0x1248] sm:$0xff]
        %v859 = vld [vmem:[%s201 + $0x1250] sm:$0xff]
        %v860 = vld [vmem:[%s201 + $0x1258] sm:$0xff]
        %v861 = vld [vmem:[%s201 + $0x1260] sm:$0xff]
        %v862 = vld [vmem:[%s201 + $0x1268] sm:$0xff]
        %v863 = vld [vmem:[%s201 + $0x1270] sm:$0xff]
        %v864 = vld [vmem:[%s201 + $0x1278] sm:$0xff]
        %v865 = vld [vmem:[%s201 + $0x1280] sm:$0xff]
        %v866 = vld [vmem:[%s201 + $0x1288] sm:$0xff]
        %v867 = vld [vmem:[%s201 + $0x1290] sm:$0xff]
        %v868 = vld [vmem:[%s201 + $0x1298] sm:$0xff]
        %v869 = vld [vmem:[%s201 + $0x12a0] sm:$0xff]
        %v870 = vld [vmem:[%s201 + $0x12a8] sm:$0xff]
        %v871 = vld [vmem:[%s201 + $0x12b0] sm:$0xff]
        %v872 = vld [vmem:[%s201 + $0x12b8] sm:$0xff]
        %v873 = vld [vmem:[%s201 + $0x12c0] sm:$0xff]
        %v874 = vld [vmem:[%s201 + $0x12c8] sm:$0xff]
        %v875 = vld [vmem:[%s201 + $0x12d0] sm:$0xff]
        %v876 = vld [vmem:[%s201 + $0x12d8] sm:$0xff]
        %v877 = vld [vmem:[%s201 + $0x12e0] sm:$0xff]
        %v878 = vld [vmem:[%s201 + $0x12e8] sm:$0xff]
        %v879 = vld [vmem:[%s201 + $0x12f0] sm:$0xff]
        %v880 = vld [vmem:[%s201 + $0x12f8] sm:$0xff]
        %v881 = vld [vmem:[%s201 + $0x1300] sm:$0xff]
        %v882 = vld [vmem:[%s201 + $0x1308] sm:$0xff]
        %v883 = vld [vmem:[%s201 + $0x1310] sm:$0xff]
        %v884 = vld [vmem:[%s201 + $0x1318] sm:$0xff]
        %v885 = vld [vmem:[%s201 + $0x1320] sm:$0xff]
        %v886 = vld [vmem:[%s201 + $0x1328] sm:$0xff]
        %v887 = vld [vmem:[%s201 + $0x1330] sm:$0xff]
        %v888 = vld [vmem:[%s201 + $0x1338] sm:$0xff]
        %v889 = vld [vmem:[%s201 + $0x1340] sm:$0xff]
        %v890 = vld [vmem:[%s201 + $0x1348] sm:$0xff]
        %v891 = vld [vmem:[%s201 + $0x1350] sm:$0xff]
        %v892 = vld [vmem:[%s201 + $0x1358] sm:$0xff]
        %v893 = vld [vmem:[%s201 + $0x1360] sm:$0xff]
        %v894 = vld [vmem:[%s201 + $0x1368] sm:$0xff]
        %v895 = vld [vmem:[%s201 + $0x1370] sm:$0xff]
        %v896 = vld [vmem:[%s201 + $0x1378] sm:$0xff]
        %v897 = vld [vmem:[%s201 + $0x1380] sm:$0xff]
        %v898 = vld [vmem:[%s201 + $0x1388] sm:$0xff]
        %v899 = vld [vmem:[%s201 + $0x1390] sm:$0xff]
        %v900 = vld [vmem:[%s201 + $0x1398] sm:$0xff]
        %v901 = vld [vmem:[%s201 + $0x13a0] sm:$0xff]
        %v902 = vld [vmem:[%s201 + $0x13a8] sm:$0xff]
        %v903 = vld [vmem:[%s201 + $0x13b0] sm:$0xff]
        %v904 = vld [vmem:[%s201 + $0x13b8] sm:$0xff]
        %v905 = vld [vmem:[%s201 + $0x13c0] sm:$0xff]
        %v906 = vld [vmem:[%s201 + $0x13c8] sm:$0xff]
        %v907 = vld [vmem:[%s201 + $0x13d0] sm:$0xff]
        %v908 = vld [vmem:[%s201 + $0x13d8] sm:$0xff]
        %v909 = vld [vmem:[%s201 + $0x13e0] sm:$0xff]
        %v910 = vld [vmem:[%s201 + $0x13e8] sm:$0xff]
        %v911 = vld [vmem:[%s201 + $0x13f0] sm:$0xff]
        %v912 = vld [vmem:[%s201 + $0x13f8] sm:$0xff]
        %v913 = vld [vmem:[%s201 + $0x1400] sm:$0xff]
        %v914 = vld [vmem:[%s201 + $0x1408] sm:$0xff]
        %v915 = vld [vmem:[%s201 + $0x1410] sm:$0xff]
        %v916 = vld [vmem:[%s201 + $0x1418] sm:$0xff]
        %v917 = vld [vmem:[%s201 + $0x1420] sm:$0xff]
        %v918 = vld [vmem:[%s201 + $0x1428] sm:$0xff]
        %v919 = vld [vmem:[%s201 + $0x1430] sm:$0xff]
        %v920 = vld [vmem:[%s201 + $0x1438] sm:$0xff]
        %v921 = vld [vmem:[%s201 + $0x1440] sm:$0xff]
        %v922 = vld [vmem:[%s201 + $0x1448] sm:$0xff]
        %v923 = vld [vmem:[%s201 + $0x1450] sm:$0xff]
        %v924 = vld [vmem:[%s201 + $0x1458] sm:$0xff]
        %v925 = vld [vmem:[%s201 + $0x1460] sm:$0xff]
        %v926 = vld [vmem:[%s201 + $0x1468] sm:$0xff]
        %v927 = vld [vmem:[%s201 + $0x1470] sm:$0xff]
        %v928 = vld [vmem:[%s201 + $0x1478] sm:$0xff]
        %v929 = vld [vmem:[%s201 + $0x1480] sm:$0xff]
        %v930 = vld [vmem:[%s201 + $0x1488] sm:$0xff]
        %v931 = vld [vmem:[%s201 + $0x1490] sm:$0xff]
        %v932 = vld [vmem:[%s201 + $0x1498] sm:$0xff]
        %v933 = vld [vmem:[%s201 + $0x14a0] sm:$0xff]
        %v934 = vld [vmem:[%s201 + $0x14a8] sm:$0xff]
        %v935 = vld [vmem:[%s201 + $0x14b0] sm:$0xff]
        %v936 = vld [vmem:[%s201 + $0x14b8] sm:$0xff]
        %v937 = vld [vmem:[%s201 + $0x14c0] sm:$0xff]
        %v938 = vld [vmem:[%s201 + $0x14c8] sm:$0xff]
        %v939 = vld [vmem:[%s201 + $0x14d0] sm:$0xff]
        %v940 = vld [vmem:[%s201 + $0x14d8] sm:$0xff]
        %v941 = vld [vmem:[%s201 + $0x14e0] sm:$0xff]
        %v942 = vld [vmem:[%s201 + $0x14e8] sm:$0xff]
        %v943 = vld [vmem:[%s201 + $0x14f0] sm:$0xff]
        %v944 = vld [vmem:[%s201 + $0x14f8] sm:$0xff]
        %v945 = vld [vmem:[%s201 + $0x1500] sm:$0xff]
        %v946 = vld [vmem:[%s201 + $0x1508] sm:$0xff]
        %v947 = vld [vmem:[%s201 + $0x1510] sm:$0xff]
        %v948 = vld [vmem:[%s201 + $0x1518] sm:$0xff]
        %v949 = vld [vmem:[%s201 + $0x1520] sm:$0xff]
        %v950 = vld [vmem:[%s201 + $0x1528] sm:$0xff]
        %v951 = vld [vmem:[%s201 + $0x1530] sm:$0xff]
        %v952 = vld [vmem:[%s201 + $0x1538] sm:$0xff]
        %v953 = vld [vmem:[%s201 + $0x1540] sm:$0xff]
        %v954 = vld [vmem:[%s201 + $0x1548] sm:$0xff]
        %v955 = vld [vmem:[%s201 + $0x1550] sm:$0xff]
        %v956 = vld [vmem:[%s201 + $0x1558] sm:$0xff]
        %v957 = vld [vmem:[%s201 + $0x1560] sm:$0xff]
        %v958 = vld [vmem:[%s201 + $0x1568] sm:$0xff]
        %v959 = vld [vmem:[%s201 + $0x1570] sm:$0xff]
        %v960 = vld [vmem:[%s201 + $0x1578] sm:$0xff]
        %v961 = vld [vmem:[%s201 + $0x1580] sm:$0xff]
        %v962 = vld [vmem:[%s201 + $0x1588] sm:$0xff]
        %v963 = vld [vmem:[%s201 + $0x1590] sm:$0xff]
        %v964 = vld [vmem:[%s201 + $0x1598] sm:$0xff]
        %v965 = vld [vmem:[%s201 + $0x15a0] sm:$0xff]
        %v966 = vld [vmem:[%s201 + $0x15a8] sm:$0xff]
        %v967 = vld [vmem:[%s201 + $0x15b0] sm:$0xff]
        %v968 = vld [vmem:[%s201 + $0x15b8] sm:$0xff]
        %v969 = vld [vmem:[%s201 + $0x15c0] sm:$0xff]
        %v970 = vld [vmem:[%s201 + $0x15c8] sm:$0xff]
        %v971 = vld [vmem:[%s201 + $0x15d0] sm:$0xff]
        %v972 = vld [vmem:[%s201 + $0x15d8] sm:$0xff]
        %v973 = vld [vmem:[%s201 + $0x15e0] sm:$0xff]
        %v974 = vld [vmem:[%s201 + $0x15e8] sm:$0xff]
        %v975 = vld [vmem:[%s201 + $0x15f0] sm:$0xff]
        %v976 = vld [vmem:[%s201 + $0x15f8] sm:$0xff]
        %v977 = vld [vmem:[%s201 + $0x1600] sm:$0xff]
        %v978 = vld [vmem:[%s201 + $0x1608] sm:$0xff]
        %v979 = vld [vmem:[%s201 + $0x1610] sm:$0xff]
        %v980 = vld [vmem:[%s201 + $0x1618] sm:$0xff]
        %v981 = vld [vmem:[%s201 + $0x1620] sm:$0xff]
        %v982 = vld [vmem:[%s201 + $0x1628] sm:$0xff]
        %v983 = vld [vmem:[%s201 + $0x1630] sm:$0xff]
        %v984 = vld [vmem:[%s201 + $0x1638] sm:$0xff]
        %v985 = vld [vmem:[%s201 + $0x1640] sm:$0xff]
        %v986 = vld [vmem:[%s201 + $0x1648] sm:$0xff]
        %v987 = vld [vmem:[%s201 + $0x1650] sm:$0xff]
        %v988 = vld [vmem:[%s201 + $0x1658] sm:$0xff]
        %v989 = vld [vmem:[%s201 + $0x1660] sm:$0xff]
        %v990 = vld [vmem:[%s201 + $0x1668] sm:$0xff]
        %v991 = vld [vmem:[%s201 + $0x1670] sm:$0xff]
        %v992 = vld [vmem:[%s201 + $0x1678] sm:$0xff]
        %v993 = vld [vmem:[%s201 + $0x1680] sm:$0xff]
        %v994 = vld [vmem:[%s201 + $0x1688] sm:$0xff]
        %v995 = vld [vmem:[%s201 + $0x1690] sm:$0xff]
        %v996 = vld [vmem:[%s201 + $0x1698] sm:$0xff]
        %v997 = vld [vmem:[%s201 + $0x16a0] sm:$0xff]
        %v998 = vld [vmem:[%s201 + $0x16a8] sm:$0xff]
        %v999 = vld [vmem:[%s201 + $0x16b0] sm:$0xff]
        %v1000 = vld [vmem:[%s201 + $0x16b8] sm:$0xff]
        %v1001 = vld [vmem:[%s201 + $0x16c0] sm:$0xff]
        %v1002 = vld [vmem:[%s201 + $0x16c8] sm:$0xff]
        %v1003 = vld [vmem:[%s201 + $0x16d0] sm:$0xff]
        %v1004 = vld [vmem:[%s201 + $0x16d8] sm:$0xff]
        %v1005 = vld [vmem:[%s201 + $0x16e0] sm:$0xff]
        %v1006 = vld [vmem:[%s201 + $0x16e8] sm:$0xff]
        %v1007 = vld [vmem:[%s201 + $0x16f0] sm:$0xff]
        %v1008 = vld [vmem:[%s201 + $0x16f8] sm:$0xff]
        %v1009 = vld [vmem:[%s201 + $0x1700] sm:$0xff]
        %v1010 = vld [vmem:[%s201 + $0x1708] sm:$0xff]
        %v1011 = vld [vmem:[%s201 + $0x1710] sm:$0xff]
        %v1012 = vld [vmem:[%s201 + $0x1718] sm:$0xff]
        %v1013 = vld [vmem:[%s201 + $0x1720] sm:$0xff]
        %v1014 = vld [vmem:[%s201 + $0x1728] sm:$0xff]
        %v1015 = vld [vmem:[%s201 + $0x1730] sm:$0xff]
        %v1016 = vld [vmem:[%s201 + $0x1738] sm:$0xff]
        %v1017 = vld [vmem:[%s201 + $0x1740] sm:$0xff]
        %v1018 = vld [vmem:[%s201 + $0x1748] sm:$0xff]
        %v1019 = vld [vmem:[%s201 + $0x1750] sm:$0xff]
        %v1020 = vld [vmem:[%s201 + $0x1758] sm:$0xff]
        %v1021 = vld [vmem:[%s201 + $0x1760] sm:$0xff]
        %v1022 = vld [vmem:[%s201 + $0x1768] sm:$0xff]
        %v1023 = vld [vmem:[%s201 + $0x1770] sm:$0xff]
        %v1024 = vld [vmem:[%s201 + $0x1778] sm:$0xff]
        %v1025 = vld [vmem:[%s201 + $0x1780] sm:$0xff]
        %v1026 = vld [vmem:[%s201 + $0x1788] sm:$0xff]
        %v1027 = vld [vmem:[%s201 + $0x1790] sm:$0xff]
        %v1028 = vld [vmem:[%s201 + $0x1798] sm:$0xff]
        %v1029 = vld [vmem:[%s201 + $0x17a0] sm:$0xff]
        %v1030 = vld [vmem:[%s201 + $0x17a8] sm:$0xff]
        %v1031 = vld [vmem:[%s201 + $0x17b0] sm:$0xff]
        %v1032 = vld [vmem:[%s201 + $0x17b8] sm:$0xff]
        %v1033 = vld [vmem:[%s201 + $0x17c0] sm:$0xff]
        %v1034 = vld [vmem:[%s201 + $0x17c8] sm:$0xff]
        %v1035 = vld [vmem:[%s201 + $0x17d0] sm:$0xff]
        %v1036 = vld [vmem:[%s201 + $0x17d8] sm:$0xff]
        %v1037 = vld [vmem:[%s201 + $0x17e0] sm:$0xff]
        %v1038 = vld [vmem:[%s201 + $0x17e8] sm:$0xff]
        %v1039 = vld [vmem:[%s201 + $0x17f0] sm:$0xff]
        %v1040 = vld [vmem:[%s201 + $0x17f8] sm:$0xff]
        %v1041 = vld [vmem:[%s201 + $0x1800] sm:$0xff]
        %v1042 = vld [vmem:[%s201 + $0x1808] sm:$0xff]
        %v1043 = vld [vmem:[%s201 + $0x1810] sm:$0xff]
        %v1044 = vld [vmem:[%s201 + $0x1818] sm:$0xff]
        %v1045 = vld [vmem:[%s201 + $0x1820] sm:$0xff]
        %v1046 = vld [vmem:[%s201 + $0x1828] sm:$0xff]
        %v1047 = vld [vmem:[%s201 + $0x1830] sm:$0xff]
        %v1048 = vld [vmem:[%s201 + $0x1838] sm:$0xff]
        %v1049 = vld [vmem:[%s201 + $0x1840] sm:$0xff]
        %v1050 = vld [vmem:[%s201 + $0x1848] sm:$0xff]
        %v1051 = vld [vmem:[%s201 + $0x1850] sm:$0xff]
        %v1052 = vld [vmem:[%s201 + $0x1858] sm:$0xff]
        %v1053 = vld [vmem:[%s201 + $0x1860] sm:$0xff]
        %v1054 = vld [vmem:[%s201 + $0x1868] sm:$0xff]
        %v1055 = vld [vmem:[%s201 + $0x1870] sm:$0xff]
        %v1056 = vld [vmem:[%s201 + $0x1878] sm:$0xff]
        %v1057 = vld [vmem:[%s201 + $0x1880] sm:$0xff]
        %v1058 = vld [vmem:[%s201 + $0x1888] sm:$0xff]
        %v1059 = vld [vmem:[%s201 + $0x1890] sm:$0xff]
        %v1060 = vld [vmem:[%s201 + $0x1898] sm:$0xff]
        %v1061 = vld [vmem:[%s201 + $0x18a0] sm:$0xff]
        %v1062 = vld [vmem:[%s201 + $0x18a8] sm:$0xff]
        %v1063 = vld [vmem:[%s201 + $0x18b0] sm:$0xff]
        %v1064 = vld [vmem:[%s201 + $0x18b8] sm:$0xff]
        %v1065 = vld [vmem:[%s201 + $0x18c0] sm:$0xff]
        %v1066 = vld [vmem:[%s201 + $0x18c8] sm:$0xff]
        %v1067 = vld [vmem:[%s201 + $0x18d0] sm:$0xff]
        %v1068 = vld [vmem:[%s201 + $0x18d8] sm:$0xff]
        %v1069 = vld [vmem:[%s201 + $0x18e0] sm:$0xff]
        %v1070 = vld [vmem:[%s201 + $0x18e8] sm:$0xff]
        %v1071 = vld [vmem:[%s201 + $0x18f0] sm:$0xff]
        %v1072 = vld [vmem:[%s201 + $0x18f8] sm:$0xff]
        %v1073 = vld [vmem:[%s201 + $0x1900] sm:$0xff]
        %v1074 = vld [vmem:[%s201 + $0x1908] sm:$0xff]
        %v1075 = vld [vmem:[%s201 + $0x1910] sm:$0xff]
        %v1076 = vld [vmem:[%s201 + $0x1918] sm:$0xff]
        %v1077 = vld [vmem:[%s201 + $0x1920] sm:$0xff]
        %v1078 = vld [vmem:[%s201 + $0x1928] sm:$0xff]
        %v1079 = vld [vmem:[%s201 + $0x1930] sm:$0xff]
        %v1080 = vld [vmem:[%s201 + $0x1938] sm:$0xff]
        %v1081 = vld [vmem:[%s201 + $0x1940] sm:$0xff]
        %v1082 = vld [vmem:[%s201 + $0x1948] sm:$0xff]
        %v1083 = vld [vmem:[%s201 + $0x1950] sm:$0xff]
        %v1084 = vld [vmem:[%s201 + $0x1958] sm:$0xff]
        %v1085 = vld [vmem:[%s201 + $0x1960] sm:$0xff]
        %v1086 = vld [vmem:[%s201 + $0x1968] sm:$0xff]
        %v1087 = vld [vmem:[%s201 + $0x1970] sm:$0xff]
        %v1088 = vld [vmem:[%s201 + $0x1978] sm:$0xff]
        %v1089 = vld [vmem:[%s201 + $0x1980] sm:$0xff]
        %v1090 = vld [vmem:[%s201 + $0x1988] sm:$0xff]
        %v1091 = vld [vmem:[%s201 + $0x1990] sm:$0xff]
        %v1092 = vld [vmem:[%s201 + $0x1998] sm:$0xff]
        %v1093 = vld [vmem:[%s201 + $0x19a0] sm:$0xff]
        %v1094 = vld [vmem:[%s201 + $0x19a8] sm:$0xff]
        %v1095 = vld [vmem:[%s201 + $0x19b0] sm:$0xff]
        %v1096 = vld [vmem:[%s201 + $0x19b8] sm:$0xff]
        %v1097 = vld [vmem:[%s201 + $0x19c0] sm:$0xff]
        %v1098 = vld [vmem:[%s201 + $0x19c8] sm:$0xff]
        %v1099 = vld [vmem:[%s201 + $0x19d0] sm:$0xff]
        %v1100 = vld [vmem:[%s201 + $0x19d8] sm:$0xff]
        %v1101 = vld [vmem:[%s201 + $0x19e0] sm:$0xff]
        %v1102 = vld [vmem:[%s201 + $0x19e8] sm:$0xff]
        %v1103 = vld [vmem:[%s201 + $0x19f0] sm:$0xff]
        %v1104 = vld [vmem:[%s201 + $0x19f8] sm:$0xff]
        %v1105 = vld [vmem:[%s201 + $0x1a00] sm:$0xff]
        %v1106 = vld [vmem:[%s201 + $0x1a08] sm:$0xff]
        %v1107 = vld [vmem:[%s201 + $0x1a10] sm:$0xff]
        %v1108 = vld [vmem:[%s201 + $0x1a18] sm:$0xff]
        %v1109 = vld [vmem:[%s201 + $0x1a20] sm:$0xff]
        %v1110 = vld [vmem:[%s201 + $0x1a28] sm:$0xff]
        %v1111 = vld [vmem:[%s201 + $0x1a30] sm:$0xff]
        %v1112 = vld [vmem:[%s201 + $0x1a38] sm:$0xff]
        %v1113 = vld [vmem:[%s201 + $0x1a40] sm:$0xff]
        %v1114 = vld [vmem:[%s201 + $0x1a48] sm:$0xff]
        %v1115 = vld [vmem:[%s201 + $0x1a50] sm:$0xff]
        %v1116 = vld [vmem:[%s201 + $0x1a58] sm:$0xff]
        %v1117 = vld [vmem:[%s201 + $0x1a60] sm:$0xff]
        %v1118 = vld [vmem:[%s201 + $0x1a68] sm:$0xff]
        %v1119 = vld [vmem:[%s201 + $0x1a70] sm:$0xff]
        %v1120 = vld [vmem:[%s201 + $0x1a78] sm:$0xff]
        %v1121 = vld [vmem:[%s201 + $0x1a80] sm:$0xff]
        %v1122 = vld [vmem:[%s201 + $0x1a88] sm:$0xff]
        %v1123 = vld [vmem:[%s201 + $0x1a90] sm:$0xff]
        %v1124 = vld [vmem:[%s201 + $0x1a98] sm:$0xff]
        %v1125 = vld [vmem:[%s201 + $0x1aa0] sm:$0xff]
        %v1126 = vld [vmem:[%s201 + $0x1aa8] sm:$0xff]
        %v1127 = vld [vmem:[%s201 + $0x1ab0] sm:$0xff]
        %v1128 = vld [vmem:[%s201 + $0x1ab8] sm:$0xff]
        %v1129 = vld [vmem:[%s201 + $0x1ac0] sm:$0xff]
        %v1130 = vld [vmem:[%s201 + $0x1ac8] sm:$0xff]
        %v1131 = vld [vmem:[%s201 + $0x1ad0] sm:$0xff]
        %v1132 = vld [vmem:[%s201 + $0x1ad8] sm:$0xff]
        %v1133 = vld [vmem:[%s201 + $0x1ae0] sm:$0xff]
        %v1134 = vld [vmem:[%s201 + $0x1ae8] sm:$0xff]
        %v1135 = vld [vmem:[%s201 + $0x1af0] sm:$0xff]
        %v1136 = vld [vmem:[%s201 + $0x1af8] sm:$0xff]
        %v1137 = vld [vmem:[%s201 + $0x1b00] sm:$0xff]
        %v1138 = vld [vmem:[%s201 + $0x1b08] sm:$0xff]
        %v1139 = vld [vmem:[%s201 + $0x1b10] sm:$0xff]
        %v1140 = vld [vmem:[%s201 + $0x1b18] sm:$0xff]
        %v1141 = vld [vmem:[%s201 + $0x1b20] sm:$0xff]
        %v1142 = vld [vmem:[%s201 + $0x1b28] sm:$0xff]
        %v1143 = vld [vmem:[%s201 + $0x1b30] sm:$0xff]
        %v1144 = vld [vmem:[%s201 + $0x1b38] sm:$0xff]
        %v1145 = vld [vmem:[%s201 + $0x1b40] sm:$0xff]
        %v1146 = vld [vmem:[%s201 + $0x1b48] sm:$0xff]
        %v1147 = vld [vmem:[%s201 + $0x1b50] sm:$0xff]
        %v1148 = vld [vmem:[%s201 + $0x1b58] sm:$0xff]
        %v1149 = vld [vmem:[%s201 + $0x1b60] sm:$0xff]
        %v1150 = vld [vmem:[%s201 + $0x1b68] sm:$0xff]
        %v1151 = vld [vmem:[%s201 + $0x1b70] sm:$0xff]
        %v1152 = vld [vmem:[%s201 + $0x1b78] sm:$0xff]
        %v1153 = vld [vmem:[%s201 + $0x1b80] sm:$0xff]
        %v1154 = vld [vmem:[%s201 + $0x1b88] sm:$0xff]
        %v1155 = vld [vmem:[%s201 + $0x1b90] sm:$0xff]
        %v1156 = vld [vmem:[%s201 + $0x1b98] sm:$0xff]
        %v1157 = vld [vmem:[%s201 + $0x1ba0] sm:$0xff]
        %v1158 = vld [vmem:[%s201 + $0x1ba8] sm:$0xff]
        %v1159 = vld [vmem:[%s201 + $0x1bb0] sm:$0xff]
        %v1160 = vld [vmem:[%s201 + $0x1bb8] sm:$0xff]
        %v1161 = vld [vmem:[%s201 + $0x1bc0] sm:$0xff]
        %v1162 = vld [vmem:[%s201 + $0x1bc8] sm:$0xff]
        %v1163 = vld [vmem:[%s201 + $0x1bd0] sm:$0xff]
        %v1164 = vld [vmem:[%s201 + $0x1bd8] sm:$0xff]
        %v1165 = vld [vmem:[%s201 + $0x1be0] sm:$0xff]
        %v1166 = vld [vmem:[%s201 + $0x1be8] sm:$0xff]
        %v1167 = vld [vmem:[%s201 + $0x1bf0] sm:$0xff]
        %v1168 = vld [vmem:[%s201 + $0x1bf8] sm:$0xff]
        %v1169 = vld [vmem:[%s201 + $0x1c00] sm:$0xff]
        %v1170 = vld [vmem:[%s201 + $0x1c08] sm:$0xff]
        %v1171 = vld [vmem:[%s201 + $0x1c10] sm:$0xff]
        %v1172 = vld [vmem:[%s201 + $0x1c18] sm:$0xff]
        %v1173 = vld [vmem:[%s201 + $0x1c20] sm:$0xff]
        %v1174 = vld [vmem:[%s201 + $0x1c28] sm:$0xff]
        %v1175 = vld [vmem:[%s201 + $0x1c30] sm:$0xff]
        %v1176 = vld [vmem:[%s201 + $0x1c38] sm:$0xff]
        %v1177 = vld [vmem:[%s201 + $0x1c40] sm:$0xff]
        %v1178 = vld [vmem:[%s201 + $0x1c48] sm:$0xff]
        %v1179 = vld [vmem:[%s201 + $0x1c50] sm:$0xff]
        %v1180 = vld [vmem:[%s201 + $0x1c58] sm:$0xff]
        %v1181 = vld [vmem:[%s201 + $0x1c60] sm:$0xff]
        %v1182 = vld [vmem:[%s201 + $0x1c68] sm:$0xff]
        %v1183 = vld [vmem:[%s201 + $0x1c70] sm:$0xff]
        %v1184 = vld [vmem:[%s201 + $0x1c78] sm:$0xff]
        %v1185 = vld [vmem:[%s201 + $0x1c80] sm:$0xff]
        %v1186 = vld [vmem:[%s201 + $0x1c88] sm:$0xff]
        %v1187 = vld [vmem:[%s201 + $0x1c90] sm:$0xff]
        %v1188 = vld [vmem:[%s201 + $0x1c98] sm:$0xff]
        %v1189 = vld [vmem:[%s201 + $0x1ca0] sm:$0xff]
        %v1190 = vld [vmem:[%s201 + $0x1ca8] sm:$0xff]
        %v1191 = vld [vmem:[%s201 + $0x1cb0] sm:$0xff]
        %v1192 = vld [vmem:[%s201 + $0x1cb8] sm:$0xff]
        %v1193 = vld [vmem:[%s201 + $0x1cc0] sm:$0xff]
        %v1194 = vld [vmem:[%s201 + $0x1cc8] sm:$0xff]
        %v1195 = vld [vmem:[%s201 + $0x1cd0] sm:$0xff]
        %v1196 = vld [vmem:[%s201 + $0x1cd8] sm:$0xff]
        %v1197 = vld [vmem:[%s201 + $0x1ce0] sm:$0xff]
        %v1198 = vld [vmem:[%s201 + $0x1ce8] sm:$0xff]
        %v1199 = vld [vmem:[%s201 + $0x1cf0] sm:$0xff]
        %v1200 = vld [vmem:[%s201 + $0x1cf8] sm:$0xff]
        %v1201 = vld [vmem:[%s201 + $0x1d00] sm:$0xff]
        %v1202 = vld [vmem:[%s201 + $0x1d08] sm:$0xff]
        %v1203 = vld [vmem:[%s201 + $0x1d10] sm:$0xff]
        %v1204 = vld [vmem:[%s201 + $0x1d18] sm:$0xff]
        %v1205 = vld [vmem:[%s201 + $0x1d20] sm:$0xff]
        %v1206 = vld [vmem:[%s201 + $0x1d28] sm:$0xff]
        %v1207 = vld [vmem:[%s201 + $0x1d30] sm:$0xff]
        %v1208 = vld [vmem:[%s201 + $0x1d38] sm:$0xff]
        %v1209 = vld [vmem:[%s201 + $0x1d40] sm:$0xff]
        %v1210 = vld [vmem:[%s201 + $0x1d48] sm:$0xff]
        %v1211 = vld [vmem:[%s201 + $0x1d50] sm:$0xff]
        %v1212 = vld [vmem:[%s201 + $0x1d58] sm:$0xff]
        %v1213 = vld [vmem:[%s201 + $0x1d60] sm:$0xff]
        %v1214 = vld [vmem:[%s201 + $0x1d68] sm:$0xff]
        %v1215 = vld [vmem:[%s201 + $0x1d70] sm:$0xff]
        %v1216 = vld [vmem:[%s201 + $0x1d78] sm:$0xff]
        %v1217 = vld [vmem:[%s201 + $0x1d80] sm:$0xff]
        %v1218 = vld [vmem:[%s201 + $0x1d88] sm:$0xff]
        %v1219 = vld [vmem:[%s201 + $0x1d90] sm:$0xff]
        %v1220 = vld [vmem:[%s201 + $0x1d98] sm:$0xff]
        %v1221 = vld [vmem:[%s201 + $0x1da0] sm:$0xff]
        %v1222 = vld [vmem:[%s201 + $0x1da8] sm:$0xff]
        %v1223 = vld [vmem:[%s201 + $0x1db0] sm:$0xff]
        %v1224 = vld [vmem:[%s201 + $0x1db8] sm:$0xff]
        %v1225 = vld [vmem:[%s201 + $0x1dc0] sm:$0xff]
        %v1226 = vld [vmem:[%s201 + $0x1dc8] sm:$0xff]
        %v1227 = vld [vmem:[%s201 + $0x1dd0] sm:$0xff]
        %v1228 = vld [vmem:[%s201 + $0x1dd8] sm:$0xff]
        %v1229 = vld [vmem:[%s201 + $0x1de0] sm:$0xff]
        %v1230 = vld [vmem:[%s201 + $0x1de8] sm:$0xff]
        %v1231 = vld [vmem:[%s201 + $0x1df0] sm:$0xff]
        %v1232 = vld [vmem:[%s201 + $0x1df8] sm:$0xff]
        %v1233 = vld [vmem:[%s201 + $0x1e00] sm:$0xff]
        %v1234 = vld [vmem:[%s201 + $0x1e08] sm:$0xff]
        %v1235 = vld [vmem:[%s201 + $0x1e10] sm:$0xff]
        %v1236 = vld [vmem:[%s201 + $0x1e18] sm:$0xff]
        %v1237 = vld [vmem:[%s201 + $0x1e20] sm:$0xff]
        %v1238 = vld [vmem:[%s201 + $0x1e28] sm:$0xff]
        %v1239 = vld [vmem:[%s201 + $0x1e30] sm:$0xff]
        %v1240 = vld [vmem:[%s201 + $0x1e38] sm:$0xff]
        %v1241 = vld [vmem:[%s201 + $0x1e40] sm:$0xff]
        %v1242 = vld [vmem:[%s201 + $0x1e48] sm:$0xff]
        %v1243 = vld [vmem:[%s201 + $0x1e50] sm:$0xff]
        %v1244 = vld [vmem:[%s201 + $0x1e58] sm:$0xff]
        %v1245 = vld [vmem:[%s201 + $0x1e60] sm:$0xff]
        %v1246 = vld [vmem:[%s201 + $0x1e68] sm:$0xff]
        %v1247 = vld [vmem:[%s201 + $0x1e70] sm:$0xff]
        %v1248 = vld [vmem:[%s201 + $0x1e78] sm:$0xff]
        %v1249 = vld [vmem:[%s201 + $0x1e80] sm:$0xff]
        %v1250 = vld [vmem:[%s201 + $0x1e88] sm:$0xff]
        %v1251 = vld [vmem:[%s201 + $0x1e90] sm:$0xff]
        %v1252 = vld [vmem:[%s201 + $0x1e98] sm:$0xff]
        %v1253 = vld [vmem:[%s201 + $0x1ea0] sm:$0xff]
        %v1254 = vld [vmem:[%s201 + $0x1ea8] sm:$0xff]
        %v1255 = vld [vmem:[%s201 + $0x1eb0] sm:$0xff]
        %v1256 = vld [vmem:[%s201 + $0x1eb8] sm:$0xff]
        %v1257 = vld [vmem:[%s201 + $0x1ec0] sm:$0xff]
        %v1258 = vld [vmem:[%s201 + $0x1ec8] sm:$0xff]
        %v1259 = vld [vmem:[%s201 + $0x1ed0] sm:$0xff]
        %v1260 = vld [vmem:[%s201 + $0x1ed8] sm:$0xff]
        %v1261 = vld [vmem:[%s201 + $0x1ee0] sm:$0xff]
        %v1262 = vld [vmem:[%s201 + $0x1ee8] sm:$0xff]
        %v1263 = vld [vmem:[%s201 + $0x1ef0] sm:$0xff]
        %v1264 = vld [vmem:[%s201 + $0x1ef8] sm:$0xff]
        %v1265 = vld [vmem:[%s201 + $0x1f00] sm:$0xff]
        %v1266 = vld [vmem:[%s201 + $0x1f08] sm:$0xff]
        %v1267 = vld [vmem:[%s201 + $0x1f10] sm:$0xff]
        %v1268 = vld [vmem:[%s201 + $0x1f18] sm:$0xff]
        %v1269 = vld [vmem:[%s201 + $0x1f20] sm:$0xff]
        %v1270 = vld [vmem:[%s201 + $0x1f28] sm:$0xff]
        %v1271 = vld [vmem:[%s201 + $0x1f30] sm:$0xff]
        %v1272 = vld [vmem:[%s201 + $0x1f38] sm:$0xff]
        %v1273 = vld [vmem:[%s201 + $0x1f40] sm:$0xff]
        %v1274 = vld [vmem:[%s201 + $0x1f48] sm:$0xff]
        %v1275 = vld [vmem:[%s201 + $0x1f50] sm:$0xff]
        %v1276 = vld [vmem:[%s201 + $0x1f58] sm:$0xff]
        %v1277 = vld [vmem:[%s201 + $0x1f60] sm:$0xff]
        %v1278 = vld [vmem:[%s201 + $0x1f68] sm:$0xff]
        %v1279 = vld [vmem:[%s201 + $0x1f70] sm:$0xff]
        %v1280 = vld [vmem:[%s201 + $0x1f78] sm:$0xff]
        %v1281 = vld [vmem:[%s201 + $0x1f80] sm:$0xff]
        %v1282 = vld [vmem:[%s201 + $0x1f88] sm:$0xff]
        %v1283 = vld [vmem:[%s201 + $0x1f90] sm:$0xff]
        %v1284 = vld [vmem:[%s201 + $0x1f98] sm:$0xff]
        %v1285 = vld [vmem:[%s201 + $0x1fa0] sm:$0xff]
        %v1286 = vld [vmem:[%s201 + $0x1fa8] sm:$0xff]
        %v1287 = vld [vmem:[%s201 + $0x1fb0] sm:$0xff]
        %v1288 = vld [vmem:[%s201 + $0x1fb8] sm:$0xff]
        %v1289 = vld [vmem:[%s201 + $0x1fc0] sm:$0xff]
        %v1290 = vld [vmem:[%s201 + $0x1fc8] sm:$0xff]
        %v1291 = vld [vmem:[%s201 + $0x1fd0] sm:$0xff]
        %v1292 = vld [vmem:[%s201 + $0x1fd8] sm:$0xff]
        %v1293 = vld [vmem:[%s201 + $0x1fe0] sm:$0xff]
        %v1294 = vld [vmem:[%s201 + $0x1fe8] sm:$0xff]
        %v1295 = vld [vmem:[%s201 + $0x1ff0] sm:$0xff]
        %v1296 = vld [vmem:[%s201 + $0x1ff8] sm:$0xff]
        %v1297 = vld [vmem:[%s201 + $0x2000] sm:$0xff]
        %v1298 = vld [vmem:[%s201 + $0x2008] sm:$0xff]
        %v1299 = vld [vmem:[%s201 + $0x2010] sm:$0xff]
        %v1300 = vld [vmem:[%s201 + $0x2018] sm:$0xff]
        %v1301 = vld [vmem:[%s201 + $0x2020] sm:$0xff]
        %v1302 = vld [vmem:[%s201 + $0x2028] sm:$0xff]
        %v1303 = vld [vmem:[%s201 + $0x2030] sm:$0xff]
        %v1304 = vld [vmem:[%s201 + $0x2038] sm:$0xff]
        %v1305 = vld [vmem:[%s201 + $0x2040] sm:$0xff]
        %v1306 = vld [vmem:[%s201 + $0x2048] sm:$0xff]
        %v1307 = vld [vmem:[%s201 + $0x2050] sm:$0xff]
        %v1308 = vld [vmem:[%s201 + $0x2058] sm:$0xff]
        %v1309 = vld [vmem:[%s201 + $0x2060] sm:$0xff]
        %v1310 = vld [vmem:[%s201 + $0x2068] sm:$0xff]
        %v1311 = vld [vmem:[%s201 + $0x2070] sm:$0xff]
        %v1312 = vld [vmem:[%s201 + $0x2078] sm:$0xff]
        %v1313 = vld [vmem:[%s201 + $0x2080] sm:$0xff]
        %v1314 = vld [vmem:[%s201 + $0x2088] sm:$0xff]
        %v1315 = vld [vmem:[%s201 + $0x2090] sm:$0xff]
        %v1316 = vld [vmem:[%s201 + $0x2098] sm:$0xff]
        %v1317 = vld [vmem:[%s201 + $0x20a0] sm:$0xff]
        %v1318 = vld [vmem:[%s201 + $0x20a8] sm:$0xff]
        %v1319 = vld [vmem:[%s201 + $0x20b0] sm:$0xff]
        %v1320 = vld [vmem:[%s201 + $0x20b8] sm:$0xff]
        %v1321 = vld [vmem:[%s201 + $0x20c0] sm:$0xff]
        %v1322 = vld [vmem:[%s201 + $0x20c8] sm:$0xff]
        %v1323 = vld [vmem:[%s201 + $0x20d0] sm:$0xff]
        %v1324 = vld [vmem:[%s201 + $0x20d8] sm:$0xff]
        %v1325 = vld [vmem:[%s201 + $0x20e0] sm:$0xff]
        %v1326 = vld [vmem:[%s201 + $0x20e8] sm:$0xff]
        %v1327 = vld [vmem:[%s201 + $0x20f0] sm:$0xff]
        %v1328 = vld [vmem:[%s201 + $0x20f8] sm:$0xff]
        %v1329 = vld [vmem:[%s201 + $0x2100] sm:$0xff]
        %v1330 = vld [vmem:[%s201 + $0x2108] sm:$0xff]
        %v1331 = vld [vmem:[%s201 + $0x2110] sm:$0xff]
        %v1332 = vld [vmem:[%s201 + $0x2118] sm:$0xff]
        %v1333 = vld [vmem:[%s201 + $0x2120] sm:$0xff]
        %v1334 = vld [vmem:[%s201 + $0x2128] sm:$0xff]
        %v1335 = vld [vmem:[%s201 + $0x2130] sm:$0xff]
        %v1336 = vld [vmem:[%s201 + $0x2138] sm:$0xff]
        %v1337 = vld [vmem:[%s201 + $0x2140] sm:$0xff]
        %v1338 = vld [vmem:[%s201 + $0x2148] sm:$0xff]
        %v1339 = vld [vmem:[%s201 + $0x2150] sm:$0xff]
        %v1340 = vld [vmem:[%s201 + $0x2158] sm:$0xff]
        %v1341 = vld [vmem:[%s201 + $0x2160] sm:$0xff]
        %v1342 = vld [vmem:[%s201 + $0x2168] sm:$0xff]
        %v1343 = vld [vmem:[%s201 + $0x2170] sm:$0xff]
        %v1344 = vld [vmem:[%s201 + $0x2178] sm:$0xff]
        %v1345 = vld [vmem:[%s201 + $0x2180] sm:$0xff]
        %v1346 = vld [vmem:[%s201 + $0x2188] sm:$0xff]
        %v1347 = vld [vmem:[%s201 + $0x2190] sm:$0xff]
        %v1348 = vld [vmem:[%s201 + $0x2198] sm:$0xff]
        %v1349 = vld [vmem:[%s201 + $0x21a0] sm:$0xff]
        %v1350 = vld [vmem:[%s201 + $0x21a8] sm:$0xff]
        %v1351 = vld [vmem:[%s201 + $0x21b0] sm:$0xff]
        %v1352 = vld [vmem:[%s201 + $0x21b8] sm:$0xff]
        %v1353 = vld [vmem:[%s201 + $0x21c0] sm:$0xff]
        %v1354 = vld [vmem:[%s201 + $0x21c8] sm:$0xff]
        %v1355 = vld [vmem:[%s201 + $0x21d0] sm:$0xff]
        %v1356 = vld [vmem:[%s201 + $0x21d8] sm:$0xff]
        %v1357 = vld [vmem:[%s201 + $0x21e0] sm:$0xff]
        %v1358 = vld [vmem:[%s201 + $0x21e8] sm:$0xff]
        %v1359 = vld [vmem:[%s201 + $0x21f0] sm:$0xff]
        %v1360 = vld [vmem:[%s201 + $0x21f8] sm:$0xff]
        %v1361 = vld [vmem:[%s201 + $0x2200] sm:$0xff]
        %v1362 = vld [vmem:[%s201 + $0x2208] sm:$0xff]
        %v1363 = vld [vmem:[%s201 + $0x2210] sm:$0xff]
        %v1364 = vld [vmem:[%s201 + $0x2218] sm:$0xff]
        %v1365 = vld [vmem:[%s201 + $0x2220] sm:$0xff]
        %v1366 = vld [vmem:[%s201 + $0x2228] sm:$0xff]
        %v1367 = vld [vmem:[%s201 + $0x2230] sm:$0xff]
        %v1368 = vld [vmem:[%s201 + $0x2238] sm:$0xff]
        %v1369 = vld [vmem:[%s201 + $0x2240] sm:$0xff]
        %v1370 = vld [vmem:[%s201 + $0x2248] sm:$0xff]
        %v1371 = vld [vmem:[%s201 + $0x2250] sm:$0xff]
        %v1372 = vld [vmem:[%s201 + $0x2258] sm:$0xff]
        %v1373 = vld [vmem:[%s201 + $0x2260] sm:$0xff]
        %v1374 = vld [vmem:[%s201 + $0x2268] sm:$0xff]
        %v1375 = vld [vmem:[%s201 + $0x2270] sm:$0xff]
        %v1376 = vld [vmem:[%s201 + $0x2278] sm:$0xff]
        %v1377 = vld [vmem:[%s201 + $0x2280] sm:$0xff]
        %v1378 = vld [vmem:[%s201 + $0x2288] sm:$0xff]
        %v1379 = vld [vmem:[%s201 + $0x2290] sm:$0xff]
        %v1380 = vld [vmem:[%s201 + $0x2298] sm:$0xff]
        %v1381 = vld [vmem:[%s201 + $0x22a0] sm:$0xff]
        %v1382 = vld [vmem:[%s201 + $0x22a8] sm:$0xff]
        %v1383 = vld [vmem:[%s201 + $0x22b0] sm:$0xff]
        %v1384 = vld [vmem:[%s201 + $0x22b8] sm:$0xff]
        %v1385 = vld [vmem:[%s201 + $0x22c0] sm:$0xff]
        %v1386 = vld [vmem:[%s201 + $0x22c8] sm:$0xff]
        %v1387 = vld [vmem:[%s201 + $0x22d0] sm:$0xff]
        %v1388 = vld [vmem:[%s201 + $0x22d8] sm:$0xff]
        %v1389 = vld [vmem:[%s201 + $0x22e0] sm:$0xff]
        %v1390 = vld [vmem:[%s201 + $0x22e8] sm:$0xff]
        %v1391 = vld [vmem:[%s201 + $0x22f0] sm:$0xff]
        %v1392 = vld [vmem:[%s201 + $0x22f8] sm:$0xff]
        %v1393 = vld [vmem:[%s201 + $0x2300] sm:$0xff]
        %v1394 = vld [vmem:[%s201 + $0x2308] sm:$0xff]
        %v1395 = vld [vmem:[%s201 + $0x2310] sm:$0xff]
        %v1396 = vld [vmem:[%s201 + $0x2318] sm:$0xff]
        %v1397 = vld [vmem:[%s201 + $0x2320] sm:$0xff]
        %v1398 = vld [vmem:[%s201 + $0x2328] sm:$0xff]
        %v1399 = vld [vmem:[%s201 + $0x2330] sm:$0xff]
        %v1400 = vld [vmem:[%s201 + $0x2338] sm:$0xff]
        %v1401 = vld [vmem:[%s201 + $0x2340] sm:$0xff]
        %v1402 = vld [vmem:[%s201 + $0x2348] sm:$0xff]
        %v1403 = vld [vmem:[%s201 + $0x2350] sm:$0xff]
        %v1404 = vld [vmem:[%s201 + $0x2358] sm:$0xff]
        %v1405 = vld [vmem:[%s201 + $0x2360] sm:$0xff]
        %v1406 = vld [vmem:[%s201 + $0x2368] sm:$0xff]
        %v1407 = vld [vmem:[%s201 + $0x2370] sm:$0xff]
        %v1408 = vld [vmem:[%s201 + $0x2378] sm:$0xff]
        %v1409 = vld [vmem:[%s201 + $0x2380] sm:$0xff]
        %v1410 = vld [vmem:[%s201 + $0x2388] sm:$0xff]
        %v1411 = vld [vmem:[%s201 + $0x2390] sm:$0xff]
        %v1412 = vld [vmem:[%s201 + $0x2398] sm:$0xff]
        %v1413 = vld [vmem:[%s201 + $0x23a0] sm:$0xff]
        %v1414 = vld [vmem:[%s201 + $0x23a8] sm:$0xff]
        %v1415 = vld [vmem:[%s201 + $0x23b0] sm:$0xff]
        %v1416 = vld [vmem:[%s201 + $0x23b8] sm:$0xff]
        %v1417 = vld [vmem:[%s201 + $0x23c0] sm:$0xff]
        %v1418 = vld [vmem:[%s201 + $0x23c8] sm:$0xff]
        %v1419 = vld [vmem:[%s201 + $0x23d0] sm:$0xff]
        %v1420 = vld [vmem:[%s201 + $0x23d8] sm:$0xff]
        %v1421 = vld [vmem:[%s201 + $0x23e0] sm:$0xff]
        %v1422 = vld [vmem:[%s201 + $0x23e8] sm:$0xff]
        %v1423 = vld [vmem:[%s201 + $0x23f0] sm:$0xff]
        %v1424 = vld [vmem:[%s201 + $0x23f8] sm:$0xff]
        %v1425 = vld [vmem:[%s201 + $0x2400] sm:$0xff]
        %v1426 = vld [vmem:[%s201 + $0x2408] sm:$0xff]
        %v1427 = vld [vmem:[%s201 + $0x2410] sm:$0xff]
        %v1428 = vld [vmem:[%s201 + $0x2418] sm:$0xff]
        %v1429 = vld [vmem:[%s201 + $0x2420] sm:$0xff]
        %v1430 = vld [vmem:[%s201 + $0x2428] sm:$0xff]
        %v1431 = vld [vmem:[%s201 + $0x2430] sm:$0xff]
        %v1432 = vld [vmem:[%s201 + $0x2438] sm:$0xff]
        %v1433 = vld [vmem:[%s201 + $0x2440] sm:$0xff]
        %v1434 = vld [vmem:[%s201 + $0x2448] sm:$0xff]
        %v1435 = vld [vmem:[%s201 + $0x2450] sm:$0xff]
        %v1436 = vld [vmem:[%s201 + $0x2458] sm:$0xff]
        %v1437 = vld [vmem:[%s201 + $0x2460] sm:$0xff]
        %v1438 = vld [vmem:[%s201 + $0x2468] sm:$0xff]
        %v1439 = vld [vmem:[%s201 + $0x2470] sm:$0xff]
        %v1440 = vld [vmem:[%s201 + $0x2478] sm:$0xff]
        %v1441 = vld [vmem:[%s201 + $0x2480] sm:$0xff]
        %v1442 = vld [vmem:[%s201 + $0x2488] sm:$0xff]
        %v1443 = vld [vmem:[%s201 + $0x2490] sm:$0xff]
        %v1444 = vld [vmem:[%s201 + $0x2498] sm:$0xff]
        %v1445 = vld [vmem:[%s201 + $0x24a0] sm:$0xff]
        %v1446 = vld [vmem:[%s201 + $0x24a8] sm:$0xff]
        %v1447 = vld [vmem:[%s201 + $0x24b0] sm:$0xff]
        %v1448 = vld [vmem:[%s201 + $0x24b8] sm:$0xff]
        %v1449 = vld [vmem:[%s201 + $0x24c0] sm:$0xff]
        %v1450 = vld [vmem:[%s201 + $0x24c8] sm:$0xff]
        %v1451 = vld [vmem:[%s201 + $0x24d0] sm:$0xff]
        %v1452 = vld [vmem:[%s201 + $0x24d8] sm:$0xff]
        %v1453 = vld [vmem:[%s201 + $0x24e0] sm:$0xff]
        %v1454 = vld [vmem:[%s201 + $0x24e8] sm:$0xff]
        %v1455 = vld [vmem:[%s201 + $0x24f0] sm:$0xff]
        %v1456 = vld [vmem:[%s201 + $0x24f8] sm:$0xff]
        %v1457 = vld [vmem:[%s201 + $0x2500] sm:$0xff]
        %v1458 = vld [vmem:[%s201 + $0x2508] sm:$0xff]
        %v1459 = vld [vmem:[%s201 + $0x2510] sm:$0xff]
        %v1460 = vld [vmem:[%s201 + $0x2518] sm:$0xff]
        %v1461 = vld [vmem:[%s201 + $0x2520] sm:$0xff]
        %v1462 = vld [vmem:[%s201 + $0x2528] sm:$0xff]
        %v1463 = vld [vmem:[%s201 + $0x2530] sm:$0xff]
        %v1464 = vld [vmem:[%s201 + $0x2538] sm:$0xff]
        %v1465 = vld [vmem:[%s201 + $0x2540] sm:$0xff]
        %v1466 = vld [vmem:[%s201 + $0x2548] sm:$0xff]
        %v1467 = vld [vmem:[%s201 + $0x2550] sm:$0xff]
        %v1468 = vld [vmem:[%s201 + $0x2558] sm:$0xff]
        %v1469 = vld [vmem:[%s201 + $0x2560] sm:$0xff]
        %v1470 = vld [vmem:[%s201 + $0x2568] sm:$0xff]
        %v1471 = vld [vmem:[%s201 + $0x2570] sm:$0xff]
        %v1472 = vld [vmem:[%s201 + $0x2578] sm:$0xff]
        %v1473 = vld [vmem:[%s201 + $0x2580] sm:$0xff]
        %v1474 = vld [vmem:[%s201 + $0x2588] sm:$0xff]
        %v1475 = vld [vmem:[%s201 + $0x2590] sm:$0xff]
        %v1476 = vld [vmem:[%s201 + $0x2598] sm:$0xff]
        %v1477 = vld [vmem:[%s201 + $0x25a0] sm:$0xff]
        %v1478 = vld [vmem:[%s201 + $0x25a8] sm:$0xff]
        %v1479 = vld [vmem:[%s201 + $0x25b0] sm:$0xff]
        %v1480 = vld [vmem:[%s201 + $0x25b8] sm:$0xff]
        %v1481 = vld [vmem:[%s201 + $0x25c0] sm:$0xff]
        %v1482 = vld [vmem:[%s201 + $0x25c8] sm:$0xff]
        %v1483 = vld [vmem:[%s201 + $0x25d0] sm:$0xff]
        %v1484 = vld [vmem:[%s201 + $0x25d8] sm:$0xff]
        %v1485 = vld [vmem:[%s201 + $0x25e0] sm:$0xff]
        %v1486 = vld [vmem:[%s201 + $0x25e8] sm:$0xff]
        %v1487 = vld [vmem:[%s201 + $0x25f0] sm:$0xff]
        %v1488 = vld [vmem:[%s201 + $0x25f8] sm:$0xff]
        %v1489 = vld [vmem:[%s201 + $0x2600] sm:$0xff]
        %v1490 = vld [vmem:[%s201 + $0x2608] sm:$0xff]
        %v1491 = vld [vmem:[%s201 + $0x2610] sm:$0xff]
        %v1492 = vld [vmem:[%s201 + $0x2618] sm:$0xff]
        %v1493 = vld [vmem:[%s201 + $0x2620] sm:$0xff]
        %v1494 = vld [vmem:[%s201 + $0x2628] sm:$0xff]
        %v1495 = vld [vmem:[%s201 + $0x2630] sm:$0xff]
        %v1496 = vld [vmem:[%s201 + $0x2638] sm:$0xff]
        %v1497 = vld [vmem:[%s201 + $0x2640] sm:$0xff]
        %v1498 = vld [vmem:[%s201 + $0x2648] sm:$0xff]
        %v1499 = vld [vmem:[%s201 + $0x2650] sm:$0xff]
        %v1500 = vld [vmem:[%s201 + $0x2658] sm:$0xff]
        %v1501 = vld [vmem:[%s201 + $0x2660] sm:$0xff]
        %v1502 = vld [vmem:[%s201 + $0x2668] sm:$0xff]
        %v1503 = vld [vmem:[%s201 + $0x2670] sm:$0xff]
        %v1504 = vld [vmem:[%s201 + $0x2678] sm:$0xff]
        %v1505 = vld [vmem:[%s201 + $0x2680] sm:$0xff]
        %v1506 = vld [vmem:[%s201 + $0x2688] sm:$0xff]
        %v1507 = vld [vmem:[%s201 + $0x2690] sm:$0xff]
        %v1508 = vld [vmem:[%s201 + $0x2698] sm:$0xff]
        %v1509 = vld [vmem:[%s201 + $0x26a0] sm:$0xff]
        %v1510 = vld [vmem:[%s201 + $0x26a8] sm:$0xff]
        %v1511 = vld [vmem:[%s201 + $0x26b0] sm:$0xff]
        %v1512 = vld [vmem:[%s201 + $0x26b8] sm:$0xff]
        %v1513 = vld [vmem:[%s201 + $0x26c0] sm:$0xff]
        %v1514 = vld [vmem:[%s201 + $0x26c8] sm:$0xff]
        %v1515 = vld [vmem:[%s201 + $0x26d0] sm:$0xff]
        %v1516 = vld [vmem:[%s201 + $0x26d8] sm:$0xff]
        %v1517 = vld [vmem:[%s201 + $0x26e0] sm:$0xff]
        %v1518 = vld [vmem:[%s201 + $0x26e8] sm:$0xff]
        %v1519 = vld [vmem:[%s201 + $0x26f0] sm:$0xff]
        %v1520 = vld [vmem:[%s201 + $0x26f8] sm:$0xff]
        %v1521 = vld [vmem:[%s201 + $0x2700] sm:$0xff]
        %v1522 = vld [vmem:[%s201 + $0x2708] sm:$0xff]
        %v1523 = vld [vmem:[%s201 + $0x2710] sm:$0xff]
        %v1524 = vld [vmem:[%s201 + $0x2718] sm:$0xff]
        %v1525 = vld [vmem:[%s201 + $0x2720] sm:$0xff]
        %v1526 = vld [vmem:[%s201 + $0x2728] sm:$0xff]
        %v1527 = vld [vmem:[%s201 + $0x2730] sm:$0xff]
        %v1528 = vld [vmem:[%s201 + $0x2738] sm:$0xff]
        %v1529 = vld [vmem:[%s201 + $0x2740] sm:$0xff]
        %v1530 = vld [vmem:[%s201 + $0x2748] sm:$0xff]
        %v1531 = vld [vmem:[%s201 + $0x2750] sm:$0xff]
        %v1532 = vld [vmem:[%s201 + $0x2758] sm:$0xff]
        %v1533 = vld [vmem:[%s201 + $0x2760] sm:$0xff]
        %v1534 = vld [vmem:[%s201 + $0x2768] sm:$0xff]
        %v1535 = vld [vmem:[%s201 + $0x2770] sm:$0xff]
        %v1536 = vld [vmem:[%s201 + $0x2778] sm:$0xff]
        %v1537 = vld [vmem:[%s201 + $0x2780] sm:$0xff]
        %v1538 = vld [vmem:[%s201 + $0x2788] sm:$0xff]
        %v1539 = vld [vmem:[%s201 + $0x2790] sm:$0xff]
        %v1540 = vld [vmem:[%s201 + $0x2798] sm:$0xff]
        %v1541 = vld [vmem:[%s201 + $0x27a0] sm:$0xff]
        %v1542 = vld [vmem:[%s201 + $0x27a8] sm:$0xff]
        %v1543 = vld [vmem:[%s201 + $0x27b0] sm:$0xff]
        %v1544 = vld [vmem:[%s201 + $0x27b8] sm:$0xff]
        %v1545 = vld [vmem:[%s201 + $0x27c0] sm:$0xff]
        %v1546 = vld [vmem:[%s201 + $0x27c8] sm:$0xff]
        %v1547 = vld [vmem:[%s201 + $0x27d0] sm:$0xff]
        %v1548 = vld [vmem:[%s201 + $0x27d8] sm:$0xff]
        %v1549 = vld [vmem:[%s201 + $0x27e0] sm:$0xff]
        %v1550 = vld [vmem:[%s201 + $0x27e8] sm:$0xff]
        %v1551 = vld [vmem:[%s201 + $0x27f0] sm:$0xff]
        %v1552 = vld [vmem:[%s201 + $0x27f8] sm:$0xff]
        %v1553 = vld [vmem:[%s201 + $0x2800] sm:$0xff]
        %v1554 = vld [vmem:[%s201 + $0x2808] sm:$0xff]
        %v1555 = vld [vmem:[%s201 + $0x2810] sm:$0xff]
        %v1556 = vld [vmem:[%s201 + $0x2818] sm:$0xff]
        %v1557 = vld [vmem:[%s201 + $0x2820] sm:$0xff]
        %v1558 = vld [vmem:[%s201 + $0x2828] sm:$0xff]
        %v1559 = vld [vmem:[%s201 + $0x2830] sm:$0xff]
        %v1560 = vld [vmem:[%s201 + $0x2838] sm:$0xff]
        %v1561 = vld [vmem:[%s201 + $0x2840] sm:$0xff]
        %v1562 = vld [vmem:[%s201 + $0x2848] sm:$0xff]
        %v1563 = vld [vmem:[%s201 + $0x2850] sm:$0xff]
        %v1564 = vld [vmem:[%s201 + $0x2858] sm:$0xff]
        %v1565 = vld [vmem:[%s201 + $0x2860] sm:$0xff]
        %v1566 = vld [vmem:[%s201 + $0x2868] sm:$0xff]
        %v1567 = vld [vmem:[%s201 + $0x2870] sm:$0xff]
        %v1568 = vld [vmem:[%s201 + $0x2878] sm:$0xff]
        %v1569 = vld [vmem:[%s201 + $0x2880] sm:$0xff]
        %v1570 = vld [vmem:[%s201 + $0x2888] sm:$0xff]
        %v1571 = vld [vmem:[%s201 + $0x2890] sm:$0xff]
        %v1572 = vld [vmem:[%s201 + $0x2898] sm:$0xff]
        %v1573 = vld [vmem:[%s201 + $0x28a0] sm:$0xff]
        %v1574 = vld [vmem:[%s201 + $0x28a8] sm:$0xff]
        %v1575 = vld [vmem:[%s201 + $0x28b0] sm:$0xff]
        %v1576 = vld [vmem:[%s201 + $0x28b8] sm:$0xff]
        %v1577 = vld [vmem:[%s201 + $0x28c0] sm:$0xff]
        %v1578 = vld [vmem:[%s201 + $0x28c8] sm:$0xff]
        %v1579 = vld [vmem:[%s201 + $0x28d0] sm:$0xff]
        %v1580 = vld [vmem:[%s201 + $0x28d8] sm:$0xff]
        %v1581 = vld [vmem:[%s201 + $0x28e0] sm:$0xff]
        %v1582 = vld [vmem:[%s201 + $0x28e8] sm:$0xff]
        %v1583 = vld [vmem:[%s201 + $0x28f0] sm:$0xff]
        %v1584 = vld [vmem:[%s201 + $0x28f8] sm:$0xff]
        %v1585 = vld [vmem:[%s201 + $0x2900] sm:$0xff]
        %v1586 = vld [vmem:[%s201 + $0x2908] sm:$0xff]
        %v1587 = vld [vmem:[%s201 + $0x2910] sm:$0xff]
        %v1588 = vld [vmem:[%s201 + $0x2918] sm:$0xff]
        %v1589 = vld [vmem:[%s201 + $0x2920] sm:$0xff]
        %v1590 = vld [vmem:[%s201 + $0x2928] sm:$0xff]
        %v1591 = vld [vmem:[%s201 + $0x2930] sm:$0xff]
        %v1592 = vld [vmem:[%s201 + $0x2938] sm:$0xff]
        %v1593 = vld [vmem:[%s201 + $0x2940] sm:$0xff]
        %v1594 = vld [vmem:[%s201 + $0x2948] sm:$0xff]
        %v1595 = vld [vmem:[%s201 + $0x2950] sm:$0xff]
        %v1596 = vld [vmem:[%s201 + $0x2958] sm:$0xff]
        %v1597 = vld [vmem:[%s201 + $0x2960] sm:$0xff]
        %v1598 = vld [vmem:[%s201 + $0x2968] sm:$0xff]
        %v1599 = vld [vmem:[%s201 + $0x2970] sm:$0xff]
        %v1600 = vld [vmem:[%s201 + $0x2978] sm:$0xff]
        %v1601 = vld [vmem:[%s201 + $0x2980] sm:$0xff]
        %v1602 = vld [vmem:[%s201 + $0x2988] sm:$0xff]
        %v1603 = vld [vmem:[%s201 + $0x2990] sm:$0xff]
        %v1604 = vld [vmem:[%s201 + $0x2998] sm:$0xff]
        %v1605 = vld [vmem:[%s201 + $0x29a0] sm:$0xff]
        %v1606 = vld [vmem:[%s201 + $0x29a8] sm:$0xff]
        %v1607 = vld [vmem:[%s201 + $0x29b0] sm:$0xff]
        %v1608 = vld [vmem:[%s201 + $0x29b8] sm:$0xff]
        %v1609 = vld [vmem:[%s201 + $0x29c0] sm:$0xff]
        %v1610 = vld [vmem:[%s201 + $0x29c8] sm:$0xff]
        %v1611 = vld [vmem:[%s201 + $0x29d0] sm:$0xff]
        %v1612 = vld [vmem:[%s201 + $0x29d8] sm:$0xff]
        %v1613 = vld [vmem:[%s201 + $0x29e0] sm:$0xff]
        %v1614 = vld [vmem:[%s201 + $0x29e8] sm:$0xff]
        %v1615 = vld [vmem:[%s201 + $0x29f0] sm:$0xff]
        %v1616 = vld [vmem:[%s201 + $0x29f8] sm:$0xff]
        %v1617 = vld [vmem:[%s201 + $0x2a00] sm:$0xff]
        %v1618 = vld [vmem:[%s201 + $0x2a08] sm:$0xff]
        %v1619 = vld [vmem:[%s201 + $0x2a10] sm:$0xff]
        %v1620 = vld [vmem:[%s201 + $0x2a18] sm:$0xff]
        %v1621 = vld [vmem:[%s201 + $0x2a20] sm:$0xff]
        %v1622 = vld [vmem:[%s201 + $0x2a28] sm:$0xff]
        %v1623 = vld [vmem:[%s201 + $0x2a30] sm:$0xff]
        %v1624 = vld [vmem:[%s201 + $0x2a38] sm:$0xff]
        %v1625 = vld [vmem:[%s201 + $0x2a40] sm:$0xff]
        %v1626 = vld [vmem:[%s201 + $0x2a48] sm:$0xff]
        %v1627 = vld [vmem:[%s201 + $0x2a50] sm:$0xff]
        %v1628 = vld [vmem:[%s201 + $0x2a58] sm:$0xff]
        %v1629 = vld [vmem:[%s201 + $0x2a60] sm:$0xff]
        %v1630 = vld [vmem:[%s201 + $0x2a68] sm:$0xff]
        %v1631 = vld [vmem:[%s201 + $0x2a70] sm:$0xff]
        %v1632 = vld [vmem:[%s201 + $0x2a78] sm:$0xff]
        %v1633 = vld [vmem:[%s201 + $0x2a80] sm:$0xff]
        %v1634 = vld [vmem:[%s201 + $0x2a88] sm:$0xff]
        %v1635 = vld [vmem:[%s201 + $0x2a90] sm:$0xff]
        %v1636 = vld [vmem:[%s201 + $0x2a98] sm:$0xff]
        %v1637 = vld [vmem:[%s201 + $0x2aa0] sm:$0xff]
        %v1638 = vld [vmem:[%s201 + $0x2aa8] sm:$0xff]
        %v1639 = vld [vmem:[%s201 + $0x2ab0] sm:$0xff]
        %v1640 = vld [vmem:[%s201 + $0x2ab8] sm:$0xff]
        %v1641 = vld [vmem:[%s201 + $0x2ac0] sm:$0xff]
        %v1642 = vld [vmem:[%s201 + $0x2ac8] sm:$0xff]
        %v1643 = vld [vmem:[%s201 + $0x2ad0] sm:$0xff]
        %v1644 = vld [vmem:[%s201 + $0x2ad8] sm:$0xff]
        %v1645 = vld [vmem:[%s201 + $0x2ae0] sm:$0xff]
        %v1646 = vld [vmem:[%s201 + $0x2ae8] sm:$0xff]
        %v1647 = vld [vmem:[%s201 + $0x2af0] sm:$0xff]
        %v1648 = vld [vmem:[%s201 + $0x2af8] sm:$0xff]
        %v1649 = vld [vmem:[%s201 + $0x2b00] sm:$0xff]
        %v1650 = vld [vmem:[%s201 + $0x2b08] sm:$0xff]
        %v1651 = vld [vmem:[%s201 + $0x2b10] sm:$0xff]
        %v1652 = vld [vmem:[%s201 + $0x2b18] sm:$0xff]
        %v1653 = vld [vmem:[%s201 + $0x2b20] sm:$0xff]
        %v1654 = vld [vmem:[%s201 + $0x2b28] sm:$0xff]
        %v1655 = vld [vmem:[%s201 + $0x2b30] sm:$0xff]
        %v1656 = vld [vmem:[%s201 + $0x2b38] sm:$0xff]
        %v1657 = vld [vmem:[%s201 + $0x2b40] sm:$0xff]
        %v1658 = vld [vmem:[%s201 + $0x2b48] sm:$0xff]
        %v1659 = vld [vmem:[%s201 + $0x2b50] sm:$0xff]
        %v1660 = vld [vmem:[%s201 + $0x2b58] sm:$0xff]
        %v1661 = vld [vmem:[%s201 + $0x2b60] sm:$0xff]
        %v1662 = vld [vmem:[%s201 + $0x2b68] sm:$0xff]
        %v1663 = vld [vmem:[%s201 + $0x2b70] sm:$0xff]
        %v1664 = vld [vmem:[%s201 + $0x2b78] sm:$0xff]
        %v1665 = vld [vmem:[%s201 + $0x2b80] sm:$0xff]
        %v1666 = vld [vmem:[%s201 + $0x2b88] sm:$0xff]
        %v1667 = vld [vmem:[%s201 + $0x2b90] sm:$0xff]
        %v1668 = vld [vmem:[%s201 + $0x2b98] sm:$0xff]
        %v1669 = vld [vmem:[%s201 + $0x2ba0] sm:$0xff]
        %v1670 = vld [vmem:[%s201 + $0x2ba8] sm:$0xff]
        %v1671 = vld [vmem:[%s201 + $0x2bb0] sm:$0xff]
        %v1672 = vld [vmem:[%s201 + $0x2bb8] sm:$0xff]
        %v1673 = vld [vmem:[%s201 + $0x2bc0] sm:$0xff]
        %v1674 = vld [vmem:[%s201 + $0x2bc8] sm:$0xff]
        %v1675 = vld [vmem:[%s201 + $0x2bd0] sm:$0xff]
        %v1676 = vld [vmem:[%s201 + $0x2bd8] sm:$0xff]
        %v1677 = vld [vmem:[%s201 + $0x2be0] sm:$0xff]
        %v1678 = vld [vmem:[%s201 + $0x2be8] sm:$0xff]
        %v1679 = vld [vmem:[%s201 + $0x2bf0] sm:$0xff]
        %v1680 = vld [vmem:[%s201 + $0x2bf8] sm:$0xff]
        %v1681 = vld [vmem:[%s201 + $0x2c00] sm:$0xff]
        %v1682 = vld [vmem:[%s201 + $0x2c08] sm:$0xff]
        %v1683 = vld [vmem:[%s201 + $0x2c10] sm:$0xff]
        %v1684 = vld [vmem:[%s201 + $0x2c18] sm:$0xff]
        %v1685 = vld [vmem:[%s201 + $0x2c20] sm:$0xff]
        %v1686 = vld [vmem:[%s201 + $0x2c28] sm:$0xff]
        %v1687 = vld [vmem:[%s201 + $0x2c30] sm:$0xff]
        %v1688 = vld [vmem:[%s201 + $0x2c38] sm:$0xff]
        %v1689 = vld [vmem:[%s201 + $0x2c40] sm:$0xff]
        %v1690 = vld [vmem:[%s201 + $0x2c48] sm:$0xff]
        %v1691 = vld [vmem:[%s201 + $0x2c50] sm:$0xff]
        %v1692 = vld [vmem:[%s201 + $0x2c58] sm:$0xff]
        %v1693 = vld [vmem:[%s201 + $0x2c60] sm:$0xff]
        %v1694 = vld [vmem:[%s201 + $0x2c68] sm:$0xff]
        %v1695 = vld [vmem:[%s201 + $0x2c70] sm:$0xff]
        %v1696 = vld [vmem:[%s201 + $0x2c78] sm:$0xff]
        %v1697 = vld [vmem:[%s201 + $0x2c80] sm:$0xff]
        %v1698 = vld [vmem:[%s201 + $0x2c88] sm:$0xff]
        %v1699 = vld [vmem:[%s201 + $0x2c90] sm:$0xff]
        %v1700 = vld [vmem:[%s201 + $0x2c98] sm:$0xff]
        %v1701 = vld [vmem:[%s201 + $0x2ca0] sm:$0xff]
        %v1702 = vld [vmem:[%s201 + $0x2ca8] sm:$0xff]
        %v1703 = vld [vmem:[%s201 + $0x2cb0] sm:$0xff]
        %v1704 = vld [vmem:[%s201 + $0x2cb8] sm:$0xff]
        %v1705 = vld [vmem:[%s201 + $0x2cc0] sm:$0xff]
        %v1706 = vld [vmem:[%s201 + $0x2cc8] sm:$0xff]
        %v1707 = vld [vmem:[%s201 + $0x2cd0] sm:$0xff]
        %v1708 = vld [vmem:[%s201 + $0x2cd8] sm:$0xff]
        %v1709 = vld [vmem:[%s201 + $0x2ce0] sm:$0xff]
        %v1710 = vld [vmem:[%s201 + $0x2ce8] sm:$0xff]
        %v1711 = vld [vmem:[%s201 + $0x2cf0] sm:$0xff]
        %v1712 = vld [vmem:[%s201 + $0x2cf8] sm:$0xff]
        %v1713 = vld [vmem:[%s201 + $0x2d00] sm:$0xff]
        %v1714 = vld [vmem:[%s201 + $0x2d08] sm:$0xff]
        %v1715 = vld [vmem:[%s201 + $0x2d10] sm:$0xff]
        %v1716 = vld [vmem:[%s201 + $0x2d18] sm:$0xff]
        %v1717 = vld [vmem:[%s201 + $0x2d20] sm:$0xff]
        %v1718 = vld [vmem:[%s201 + $0x2d28] sm:$0xff]
        %v1719 = vld [vmem:[%s201 + $0x2d30] sm:$0xff]
        %v1720 = vld [vmem:[%s201 + $0x2d38] sm:$0xff]
        %v1721 = vld [vmem:[%s201 + $0x2d40] sm:$0xff]
        %v1722 = vld [vmem:[%s201 + $0x2d48] sm:$0xff]
        %v1723 = vld [vmem:[%s201 + $0x2d50] sm:$0xff]
        %v1724 = vld [vmem:[%s201 + $0x2d58] sm:$0xff]
        %v1725 = vld [vmem:[%s201 + $0x2d60] sm:$0xff]
        %v1726 = vld [vmem:[%s201 + $0x2d68] sm:$0xff]
        %v1727 = vld [vmem:[%s201 + $0x2d70] sm:$0xff]
        %v1728 = vld [vmem:[%s201 + $0x2d78] sm:$0xff]
        %v1729 = vld [vmem:[%s201 + $0x2d80] sm:$0xff]
        %v1730 = vld [vmem:[%s201 + $0x2d88] sm:$0xff]
        %v1731 = vld [vmem:[%s201 + $0x2d90] sm:$0xff]
        %v1732 = vld [vmem:[%s201 + $0x2d98] sm:$0xff]
        %v1733 = vld [vmem:[%s201 + $0x2da0] sm:$0xff]
        %v1734 = vld [vmem:[%s201 + $0x2da8] sm:$0xff]
        %v1735 = vld [vmem:[%s201 + $0x2db0] sm:$0xff]
        %v1736 = vld [vmem:[%s201 + $0x2db8] sm:$0xff]
        %v1737 = vld [vmem:[%s201 + $0x2dc0] sm:$0xff]
        %v1738 = vld [vmem:[%s201 + $0x2dc8] sm:$0xff]
        %v1739 = vld [vmem:[%s201 + $0x2dd0] sm:$0xff]
        %v1740 = vld [vmem:[%s201 + $0x2dd8] sm:$0xff]
        %v1741 = vld [vmem:[%s201 + $0x2de0] sm:$0xff]
        %v1742 = vld [vmem:[%s201 + $0x2de8] sm:$0xff]
        %v1743 = vld [vmem:[%s201 + $0x2df0] sm:$0xff]
        %v1744 = vld [vmem:[%s201 + $0x2df8] sm:$0xff]
        %v1745 = vld [vmem:[%s201 + $0x2e00] sm:$0xff]
        %v1746 = vld [vmem:[%s201 + $0x2e08] sm:$0xff]
        %v1747 = vld [vmem:[%s201 + $0x2e10] sm:$0xff]
        %v1748 = vld [vmem:[%s201 + $0x2e18] sm:$0xff]
        %v1749 = vld [vmem:[%s201 + $0x2e20] sm:$0xff]
        %v1750 = vld [vmem:[%s201 + $0x2e28] sm:$0xff]
        %v1751 = vld [vmem:[%s201 + $0x2e30] sm:$0xff]
        %v1752 = vld [vmem:[%s201 + $0x2e38] sm:$0xff]
        %v1753 = vld [vmem:[%s201 + $0x2e40] sm:$0xff]
        %v1754 = vld [vmem:[%s201 + $0x2e48] sm:$0xff]
        %v1755 = vld [vmem:[%s201 + $0x2e50] sm:$0xff]
        %v1756 = vld [vmem:[%s201 + $0x2e58] sm:$0xff]
        %v1757 = vld [vmem:[%s201 + $0x2e60] sm:$0xff]
        %v1758 = vld [vmem:[%s201 + $0x2e68] sm:$0xff]
        %v1759 = vld [vmem:[%s201 + $0x2e70] sm:$0xff]
        %v1760 = vld [vmem:[%s201 + $0x2e78] sm:$0xff]
        %v1761 = vld [vmem:[%s201 + $0x2e80] sm:$0xff]
        %v1762 = vld [vmem:[%s201 + $0x2e88] sm:$0xff]
        %v1763 = vld [vmem:[%s201 + $0x2e90] sm:$0xff]
        %v1764 = vld [vmem:[%s201 + $0x2e98] sm:$0xff]
        %v1765 = vld [vmem:[%s201 + $0x2ea0] sm:$0xff]
        %v1766 = vld [vmem:[%s201 + $0x2ea8] sm:$0xff]
        %v1767 = vld [vmem:[%s201 + $0x2eb0] sm:$0xff]
        %v1768 = vld [vmem:[%s201 + $0x2eb8] sm:$0xff]
        %v1769 = vld [vmem:[%s201 + $0x2ec0] sm:$0xff]
        %v1770 = vld [vmem:[%s201 + $0x2ec8] sm:$0xff]
        %v1771 = vld [vmem:[%s201 + $0x2ed0] sm:$0xff]
        %v1772 = vld [vmem:[%s201 + $0x2ed8] sm:$0xff]
        %v1773 = vld [vmem:[%s201 + $0x2ee0] sm:$0xff]
        %v1774 = vld [vmem:[%s201 + $0x2ee8] sm:$0xff]
        %v1775 = vld [vmem:[%s201 + $0x2ef0] sm:$0xff]
        %v1776 = vld [vmem:[%s201 + $0x2ef8] sm:$0xff]
        %v1777 = vld [vmem:[%s201 + $0x2f00] sm:$0xff]
        %v1778 = vld [vmem:[%s201 + $0x2f08] sm:$0xff]
        %v1779 = vld [vmem:[%s201 + $0x2f10] sm:$0xff]
        %v1780 = vld [vmem:[%s201 + $0x2f18] sm:$0xff]
        %v1781 = vld [vmem:[%s201 + $0x2f20] sm:$0xff]
        %v1782 = vld [vmem:[%s201 + $0x2f28] sm:$0xff]
        %v1783 = vld [vmem:[%s201 + $0x2f30] sm:$0xff]
        %v1784 = vld [vmem:[%s201 + $0x2f38] sm:$0xff]
        %v1785 = vld [vmem:[%s201 + $0x2f40] sm:$0xff]
        %v1786 = vld [vmem:[%s201 + $0x2f48] sm:$0xff]
        %v1787 = vld [vmem:[%s201 + $0x2f50] sm:$0xff]
        %v1788 = vld [vmem:[%s201 + $0x2f58] sm:$0xff]
        %v1789 = vld [vmem:[%s201 + $0x2f60] sm:$0xff]
        %v1790 = vld [vmem:[%s201 + $0x2f68] sm:$0xff]
        %v1791 = vld [vmem:[%s201 + $0x2f70] sm:$0xff]
        %v1792 = vld [vmem:[%s201 + $0x2f78] sm:$0xff]
        %v1793 = vld [vmem:[%s201 + $0x2f80] sm:$0xff]
        %v1794 = vld [vmem:[%s201 + $0x2f88] sm:$0xff]
        %v1795 = vld [vmem:[%s201 + $0x2f90] sm:$0xff]
        %v1796 = vld [vmem:[%s201 + $0x2f98] sm:$0xff]
        %v1797 = vld [vmem:[%s201 + $0x2fa0] sm:$0xff]
        %v1798 = vld [vmem:[%s201 + $0x2fa8] sm:$0xff]
        %v1799 = vld [vmem:[%s201 + $0x2fb0] sm:$0xff]
        %v1800 = vld [vmem:[%s201 + $0x2fb8] sm:$0xff]
        %v1801 = vld [vmem:[%s201 + $0x2fc0] sm:$0xff]
        %v1802 = vld [vmem:[%s201 + $0x2fc8] sm:$0xff]
        %v1803 = vld [vmem:[%s201 + $0x2fd0] sm:$0xff]
        %v1804 = vld [vmem:[%s201 + $0x2fd8] sm:$0xff]
        %v1805 = vld [vmem:[%s201 + $0x2fe0] sm:$0xff]
        %v1806 = vld [vmem:[%s201 + $0x2fe8] sm:$0xff]
        %v1807 = vld [vmem:[%s201 + $0x2ff0] sm:$0xff]
        %v1808 = vld [vmem:[%s201 + $0x2ff8] sm:$0xff]
        %v1809 = vld [vmem:[%s201 + $0x3000] sm:$0xff]
        %v1810 = vld [vmem:[%s201 + $0x3008] sm:$0xff]
        %v1811 = vld [vmem:[%s201 + $0x3010] sm:$0xff]
        %v1812 = vld [vmem:[%s201 + $0x3018] sm:$0xff]
        %v1813 = vld [vmem:[%s201 + $0x3020] sm:$0xff]
        %v1814 = vld [vmem:[%s201 + $0x3028] sm:$0xff]
        %v1815 = vld [vmem:[%s201 + $0x3030] sm:$0xff]
        %v1816 = vld [vmem:[%s201 + $0x3038] sm:$0xff]
        %v1817 = vld [vmem:[%s201 + $0x3040] sm:$0xff]
        %v1818 = vld [vmem:[%s201 + $0x3048] sm:$0xff]
        %v1819 = vld [vmem:[%s201 + $0x3050] sm:$0xff]
        %v1820 = vld [vmem:[%s201 + $0x3058] sm:$0xff]
        %v1821 = vld [vmem:[%s201 + $0x3060] sm:$0xff]
        %v1822 = vld [vmem:[%s201 + $0x3068] sm:$0xff]
        %v1823 = vld [vmem:[%s201 + $0x3070] sm:$0xff]
        %v1824 = vld [vmem:[%s201 + $0x3078] sm:$0xff]
        %v1825 = vld [vmem:[%s201 + $0x3080] sm:$0xff]
        %v1826 = vld [vmem:[%s201 + $0x3088] sm:$0xff]
        %v1827 = vld [vmem:[%s201 + $0x3090] sm:$0xff]
        %v1828 = vld [vmem:[%s201 + $0x3098] sm:$0xff]
        %v1829 = vld [vmem:[%s201 + $0x30a0] sm:$0xff]
        %v1830 = vld [vmem:[%s201 + $0x30a8] sm:$0xff]
        %v1831 = vld [vmem:[%s201 + $0x30b0] sm:$0xff]
        %v1832 = vld [vmem:[%s201 + $0x30b8] sm:$0xff]
        %v1833 = vld [vmem:[%s201 + $0x30c0] sm:$0xff]
        %v1834 = vld [vmem:[%s201 + $0x30c8] sm:$0xff]
        %v1835 = vld [vmem:[%s201 + $0x30d0] sm:$0xff]
        %v1836 = vld [vmem:[%s201 + $0x30d8] sm:$0xff]
        %v1837 = vld [vmem:[%s201 + $0x30e0] sm:$0xff]
        %v1838 = vld [vmem:[%s201 + $0x30e8] sm:$0xff]
        %v1839 = vld [vmem:[%s201 + $0x30f0] sm:$0xff]
        %v1840 = vld [vmem:[%s201 + $0x30f8] sm:$0xff]
        %v1841 = vld [vmem:[%s201 + $0x3100] sm:$0xff]
        %v1842 = vld [vmem:[%s201 + $0x3108] sm:$0xff]
        %v1843 = vld [vmem:[%s201 + $0x3110] sm:$0xff]
        %v1844 = vld [vmem:[%s201 + $0x3118] sm:$0xff]
        %v1845 = vld [vmem:[%s201 + $0x3120] sm:$0xff]
        %v1846 = vld [vmem:[%s201 + $0x3128] sm:$0xff]
        %v1847 = vld [vmem:[%s201 + $0x3130] sm:$0xff]
        %v1848 = vld [vmem:[%s201 + $0x3138] sm:$0xff]
        %v1849 = vld [vmem:[%s201 + $0x3140] sm:$0xff]
        %v1850 = vld [vmem:[%s201 + $0x3148] sm:$0xff]
        %v1851 = vld [vmem:[%s201 + $0x3150] sm:$0xff]
        %v1852 = vld [vmem:[%s201 + $0x3158] sm:$0xff]
        %v1853 = vld [vmem:[%s201 + $0x3160] sm:$0xff]
        %v1854 = vld [vmem:[%s201 + $0x3168] sm:$0xff]
        %v1855 = vld [vmem:[%s201 + $0x3170] sm:$0xff]
        %v1856 = vld [vmem:[%s201 + $0x3178] sm:$0xff]
        %v1857 = vld [vmem:[%s201 + $0x3180] sm:$0xff]
        %v1858 = vld [vmem:[%s201 + $0x3188] sm:$0xff]
        %v1859 = vld [vmem:[%s201 + $0x3190] sm:$0xff]
        %v1860 = vld [vmem:[%s201 + $0x3198] sm:$0xff]
        %v1861 = vld [vmem:[%s201 + $0x31a0] sm:$0xff]
        %v1862 = vld [vmem:[%s201 + $0x31a8] sm:$0xff]
        %v1863 = vld [vmem:[%s201 + $0x31b0] sm:$0xff]
        %v1864 = vld [vmem:[%s201 + $0x31b8] sm:$0xff]
        %v1865 = vld [vmem:[%s201 + $0x31c0] sm:$0xff]
        %v1866 = vld [vmem:[%s201 + $0x31c8] sm:$0xff]
        %v1867 = vld [vmem:[%s201 + $0x31d0] sm:$0xff]
        %v1868 = vld [vmem:[%s201 + $0x31d8] sm:$0xff]
        %v1869 = vld [vmem:[%s201 + $0x31e0] sm:$0xff]
        %v1870 = vld [vmem:[%s201 + $0x31e8] sm:$0xff]
        %v1871 = vld [vmem:[%s201 + $0x31f0] sm:$0xff]
        %v1872 = vld [vmem:[%s201 + $0x31f8] sm:$0xff]
        %v1873 = vld [vmem:[%s201 + $0x3200] sm:$0xff]
        %v1874 = vld [vmem:[%s201 + $0x3208] sm:$0xff]
        %v1875 = vld [vmem:[%s201 + $0x3210] sm:$0xff]
        %v1876 = vld [vmem:[%s201 + $0x3218] sm:$0xff]
        %v1877 = vld [vmem:[%s201 + $0x3220] sm:$0xff]
        %v1878 = vld [vmem:[%s201 + $0x3228] sm:$0xff]
        %v1879 = vld [vmem:[%s201 + $0x3230] sm:$0xff]
        %v1880 = vld [vmem:[%s201 + $0x3238] sm:$0xff]
        %v1881 = vld [vmem:[%s201 + $0x3240] sm:$0xff]
        %v1882 = vld [vmem:[%s201 + $0x3248] sm:$0xff]
        %v1883 = vld [vmem:[%s201 + $0x3250] sm:$0xff]
        %v1884 = vld [vmem:[%s201 + $0x3258] sm:$0xff]
        %v1885 = vld [vmem:[%s201 + $0x3260] sm:$0xff]
        %v1886 = vld [vmem:[%s201 + $0x3268] sm:$0xff]
        %v1887 = vld [vmem:[%s201 + $0x3270] sm:$0xff]
        %v1888 = vld [vmem:[%s201 + $0x3278] sm:$0xff]
        %v1889 = vld [vmem:[%s201 + $0x3280] sm:$0xff]
        %v1890 = vld [vmem:[%s201 + $0x3288] sm:$0xff]
        %v1891 = vld [vmem:[%s201 + $0x3290] sm:$0xff]
        %v1892 = vld [vmem:[%s201 + $0x3298] sm:$0xff]
        %v1893 = vld [vmem:[%s201 + $0x32a0] sm:$0xff]
        %v1894 = vld [vmem:[%s201 + $0x32a8] sm:$0xff]
        %v1895 = vld [vmem:[%s201 + $0x32b0] sm:$0xff]
        %v1896 = vld [vmem:[%s201 + $0x32b8] sm:$0xff]
        %v1897 = vld [vmem:[%s201 + $0x32c0] sm:$0xff]
        %v1898 = vld [vmem:[%s201 + $0x32c8] sm:$0xff]
        %v1899 = vld [vmem:[%s201 + $0x32d0] sm:$0xff]
        %v1900 = vld [vmem:[%s201 + $0x32d8] sm:$0xff]
        %v1901 = vld [vmem:[%s201 + $0x32e0] sm:$0xff]
        %v1902 = vld [vmem:[%s201 + $0x32e8] sm:$0xff]
        %v1903 = vld [vmem:[%s201 + $0x32f0] sm:$0xff]
        %v1904 = vld [vmem:[%s201 + $0x32f8] sm:$0xff]
        %v1905 = vld [vmem:[%s201 + $0x3300] sm:$0xff]
        %v1906 = vld [vmem:[%s201 + $0x3308] sm:$0xff]
        %v1907 = vld [vmem:[%s201 + $0x3310] sm:$0xff]
        %v1908 = vld [vmem:[%s201 + $0x3318] sm:$0xff]
        %v1909 = vld [vmem:[%s201 + $0x3320] sm:$0xff]
        %v1910 = vld [vmem:[%s201 + $0x3328] sm:$0xff]
        %v1911 = vld [vmem:[%s201 + $0x3330] sm:$0xff]
        %v1912 = vld [vmem:[%s201 + $0x3338] sm:$0xff]
        %v1913 = vld [vmem:[%s201 + $0x3340] sm:$0xff]
        %v1914 = vld [vmem:[%s201 + $0x3348] sm:$0xff]
        %v1915 = vld [vmem:[%s201 + $0x3350] sm:$0xff]
        %v1916 = vld [vmem:[%s201 + $0x3358] sm:$0xff]
        %v1917 = vld [vmem:[%s201 + $0x3360] sm:$0xff]
        %v1918 = vld [vmem:[%s201 + $0x3368] sm:$0xff]
        %v1919 = vld [vmem:[%s201 + $0x3370] sm:$0xff]
        %v1920 = vld [vmem:[%s201 + $0x3378] sm:$0xff]
        %v1921 = vld [vmem:[%s201 + $0x3380] sm:$0xff]
        %v1922 = vld [vmem:[%s201 + $0x3388] sm:$0xff]
        %v1923 = vld [vmem:[%s201 + $0x3390] sm:$0xff]
        %v1924 = vld [vmem:[%s201 + $0x3398] sm:$0xff]
        %v1925 = vld [vmem:[%s201 + $0x33a0] sm:$0xff]
        %v1926 = vld [vmem:[%s201 + $0x33a8] sm:$0xff]
        %v1927 = vld [vmem:[%s201 + $0x33b0] sm:$0xff]
        %v1928 = vld [vmem:[%s201 + $0x33b8] sm:$0xff]
        %v1929 = vld [vmem:[%s201 + $0x33c0] sm:$0xff]
        %v1930 = vld [vmem:[%s201 + $0x33c8] sm:$0xff]
        %v1931 = vld [vmem:[%s201 + $0x33d0] sm:$0xff]
        %v1932 = vld [vmem:[%s201 + $0x33d8] sm:$0xff]
        %v1933 = vld [vmem:[%s201 + $0x33e0] sm:$0xff]
        %v1934 = vld [vmem:[%s201 + $0x33e8] sm:$0xff]
        %v1935 = vld [vmem:[%s201 + $0x33f0] sm:$0xff]
        %v1936 = vld [vmem:[%s201 + $0x33f8] sm:$0xff]
        %v1937 = vld [vmem:[%s201 + $0x3400] sm:$0xff]
        %v1938 = vld [vmem:[%s201 + $0x3408] sm:$0xff]
        %v1939 = vld [vmem:[%s201 + $0x3410] sm:$0xff]
        %v1940 = vld [vmem:[%s201 + $0x3418] sm:$0xff]
        %v1941 = vld [vmem:[%s201 + $0x3420] sm:$0xff]
        %v1942 = vld [vmem:[%s201 + $0x3428] sm:$0xff]
        %v1943 = vld [vmem:[%s201 + $0x3430] sm:$0xff]
        %v1944 = vld [vmem:[%s201 + $0x3438] sm:$0xff]
        %v1945 = vld [vmem:[%s201 + $0x3440] sm:$0xff]
        %v1946 = vld [vmem:[%s201 + $0x3448] sm:$0xff]
        %v1947 = vld [vmem:[%s201 + $0x3450] sm:$0xff]
        %v1948 = vld [vmem:[%s201 + $0x3458] sm:$0xff]
        %v1949 = vld [vmem:[%s201 + $0x3460] sm:$0xff]
        %v1950 = vld [vmem:[%s201 + $0x3468] sm:$0xff]
        %v1951 = vld [vmem:[%s201 + $0x3470] sm:$0xff]
        %v1952 = vld [vmem:[%s201 + $0x3478] sm:$0xff]
        %v1953 = vld [vmem:[%s201 + $0x3480] sm:$0xff]
        %v1954 = vld [vmem:[%s201 + $0x3488] sm:$0xff]
        %v1955 = vld [vmem:[%s201 + $0x3490] sm:$0xff]
        %v1956 = vld [vmem:[%s201 + $0x3498] sm:$0xff]
        %v1957 = vld [vmem:[%s201 + $0x34a0] sm:$0xff]
        %v1958 = vld [vmem:[%s201 + $0x34a8] sm:$0xff]
        %v1959 = vld [vmem:[%s201 + $0x34b0] sm:$0xff]
        %v1960 = vld [vmem:[%s201 + $0x34b8] sm:$0xff]
        %v1961 = vld [vmem:[%s201 + $0x34c0] sm:$0xff]
        %v1962 = vld [vmem:[%s201 + $0x34c8] sm:$0xff]
        %v1963 = vld [vmem:[%s201 + $0x34d0] sm:$0xff]
        %v1964 = vld [vmem:[%s201 + $0x34d8] sm:$0xff]
        %v1965 = vld [vmem:[%s201 + $0x34e0] sm:$0xff]
        %v1966 = vld [vmem:[%s201 + $0x34e8] sm:$0xff]
        %v1967 = vld [vmem:[%s201 + $0x34f0] sm:$0xff]
        %v1968 = vld [vmem:[%s201 + $0x34f8] sm:$0xff]
        %v1969 = vld [vmem:[%s201 + $0x3500] sm:$0xff]
        %v1970 = vld [vmem:[%s201 + $0x3508] sm:$0xff]
        %v1971 = vld [vmem:[%s201 + $0x3510] sm:$0xff]
        %v1972 = vld [vmem:[%s201 + $0x3518] sm:$0xff]
        %v1973 = vld [vmem:[%s201 + $0x3520] sm:$0xff]
        %v1974 = vld [vmem:[%s201 + $0x3528] sm:$0xff]
        %v1975 = vld [vmem:[%s201 + $0x3530] sm:$0xff]
        %v1976 = vld [vmem:[%s201 + $0x3538] sm:$0xff]
        %v1977 = vld [vmem:[%s201 + $0x3540] sm:$0xff]
        %v1978 = vld [vmem:[%s201 + $0x3548] sm:$0xff]
        %v1979 = vld [vmem:[%s201 + $0x3550] sm:$0xff]
        %v1980 = vld [vmem:[%s201 + $0x3558] sm:$0xff]
        %v1981 = vld [vmem:[%s201 + $0x3560] sm:$0xff]
        %v1982 = vld [vmem:[%s201 + $0x3568] sm:$0xff]
        %v1983 = vld [vmem:[%s201 + $0x3570] sm:$0xff]
        %v1984 = vld [vmem:[%s201 + $0x3578] sm:$0xff]
        %v1985 = vld [vmem:[%s201 + $0x3580] sm:$0xff]
        %v1986 = vld [vmem:[%s201 + $0x3588] sm:$0xff]
        %v1987 = vld [vmem:[%s201 + $0x3590] sm:$0xff]
        %v1988 = vld [vmem:[%s201 + $0x3598] sm:$0xff]
        %v1989 = vld [vmem:[%s201 + $0x35a0] sm:$0xff]
        %v1990 = vld [vmem:[%s201 + $0x35a8] sm:$0xff]
        %v1991 = vld [vmem:[%s201 + $0x35b0] sm:$0xff]
        %v1992 = vld [vmem:[%s201 + $0x35b8] sm:$0xff]
        %v1993 = vld [vmem:[%s201 + $0x35c0] sm:$0xff]
        %v1994 = vld [vmem:[%s201 + $0x35c8] sm:$0xff]
        %v1995 = vld [vmem:[%s201 + $0x35d0] sm:$0xff]
        %v1996 = vld [vmem:[%s201 + $0x35d8] sm:$0xff]
        %v1997 = vld [vmem:[%s201 + $0x35e0] sm:$0xff]
        %v1998 = vld [vmem:[%s201 + $0x35e8] sm:$0xff]
        %v1999 = vld [vmem:[%s201 + $0x35f0] sm:$0xff]
        %v2000 = vld [vmem:[%s201 + $0x35f8] sm:$0xff]
        %v2001 = vld [vmem:[%s201 + $0x3600] sm:$0xff]
        %v2002 = vld [vmem:[%s201 + $0x3608] sm:$0xff]
        %v2003 = vld [vmem:[%s201 + $0x3610] sm:$0xff]
        %v2004 = vld [vmem:[%s201 + $0x3618] sm:$0xff]
        %v2005 = vld [vmem:[%s201 + $0x3620] sm:$0xff]
        %v2006 = vld [vmem:[%s201 + $0x3628] sm:$0xff]
        %v2007 = vld [vmem:[%s201 + $0x3630] sm:$0xff]
        %v2008 = vld [vmem:[%s201 + $0x3638] sm:$0xff]
        %v2009 = vld [vmem:[%s201 + $0x3640] sm:$0xff]
        %v2010 = vld [vmem:[%s201 + $0x3648] sm:$0xff]
        %v2011 = vld [vmem:[%s201 + $0x3650] sm:$0xff]
        %v2012 = vld [vmem:[%s201 + $0x3658] sm:$0xff]
        %v2013 = vld [vmem:[%s201 + $0x3660] sm:$0xff]
        %v2014 = vld [vmem:[%s201 + $0x3668] sm:$0xff]
        %v2015 = vld [vmem:[%s201 + $0x3670] sm:$0xff]
        %v2016 = vld [vmem:[%s201 + $0x3678] sm:$0xff]
        %v2017 = vld [vmem:[%s201 + $0x3680] sm:$0xff]
        %v2018 = vld [vmem:[%s201 + $0x3688] sm:$0xff]
        %v2019 = vld [vmem:[%s201 + $0x3690] sm:$0xff]
        %v2020 = vld [vmem:[%s201 + $0x3698] sm:$0xff]
        %v2021 = vld [vmem:[%s201 + $0x36a0] sm:$0xff]
        %v2022 = vld [vmem:[%s201 + $0x36a8] sm:$0xff]
        %v2023 = vld [vmem:[%s201 + $0x36b0] sm:$0xff]
        %v2024 = vld [vmem:[%s201 + $0x36b8] sm:$0xff]
        %v2025 = vld [vmem:[%s201 + $0x36c0] sm:$0xff]
        %v2026 = vld [vmem:[%s201 + $0x36c8] sm:$0xff]
        %v2027 = vld [vmem:[%s201 + $0x36d0] sm:$0xff]
        %v2028 = vld [vmem:[%s201 + $0x36d8] sm:$0xff]
        %v2029 = vld [vmem:[%s201 + $0x36e0] sm:$0xff]
        %v2030 = vld [vmem:[%s201 + $0x36e8] sm:$0xff]
        %v2031 = vld [vmem:[%s201 + $0x36f0] sm:$0xff]
        %v2032 = vld [vmem:[%s201 + $0x36f8] sm:$0xff]
        %v2033 = vld [vmem:[%s201 + $0x3700] sm:$0xff]
        %v2034 = vld [vmem:[%s201 + $0x3708] sm:$0xff]
        %v2035 = vld [vmem:[%s201 + $0x3710] sm:$0xff]
        %v2036 = vld [vmem:[%s201 + $0x3718] sm:$0xff]
        %v2037 = vld [vmem:[%s201 + $0x3720] sm:$0xff]
        %v2038 = vld [vmem:[%s201 + $0x3728] sm:$0xff]
        %v2039 = vld [vmem:[%s201 + $0x3730] sm:$0xff]
        %v2040 = vld [vmem:[%s201 + $0x3738] sm:$0xff]
        %v2041 = vld [vmem:[%s201 + $0x3740] sm:$0xff]
        %v2042 = vld [vmem:[%s201 + $0x3748] sm:$0xff]
        %v2043 = vld [vmem:[%s201 + $0x3750] sm:$0xff]
        %v2044 = vld [vmem:[%s201 + $0x3758] sm:$0xff]
        %v2045 = vld [vmem:[%s201 + $0x3760] sm:$0xff]
        %v2046 = vld [vmem:[%s201 + $0x3768] sm:$0xff]
        %v2047 = vld [vmem:[%s201 + $0x3770] sm:$0xff]
        %v2048 = vld [vmem:[%s201 + $0x3778] sm:$0xff]
        %v2049 = vld [vmem:[%s201 + $0x3780] sm:$0xff]
        %v2050 = vld [vmem:[%s201 + $0x3788] sm:$0xff]
        %v2051 = vld [vmem:[%s201 + $0x3790] sm:$0xff]
        %v2052 = vld [vmem:[%s201 + $0x3798] sm:$0xff]
        %v2053 = vld [vmem:[%s201 + $0x37a0] sm:$0xff]
        %v2054 = vld [vmem:[%s201 + $0x37a8] sm:$0xff]
        %v2055 = vld [vmem:[%s201 + $0x37b0] sm:$0xff]
        %v2056 = vld [vmem:[%s201 + $0x37b8] sm:$0xff]
        %v2057 = vld [vmem:[%s201 + $0x37c0] sm:$0xff]
        %v2058 = vld [vmem:[%s201 + $0x37c8] sm:$0xff]
        %v2059 = vld [vmem:[%s201 + $0x37d0] sm:$0xff]
        %v2060 = vld [vmem:[%s201 + $0x37d8] sm:$0xff]
        %v2061 = vld [vmem:[%s201 + $0x37e0] sm:$0xff]
        %v2062 = vld [vmem:[%s201 + $0x37e8] sm:$0xff]
        %v2063 = vld [vmem:[%s201 + $0x37f0] sm:$0xff]
        %v2064 = vld [vmem:[%s201 + $0x37f8] sm:$0xff]
        %v2065 = vld [vmem:[%s201 + $0x3800] sm:$0xff]
        %v2066 = vld [vmem:[%s201 + $0x3808] sm:$0xff]
        %v2067 = vld [vmem:[%s201 + $0x3810] sm:$0xff]
        %v2068 = vld [vmem:[%s201 + $0x3818] sm:$0xff]
        %v2069 = vld [vmem:[%s201 + $0x3820] sm:$0xff]
        %v2070 = vld [vmem:[%s201 + $0x3828] sm:$0xff]
        %v2071 = vld [vmem:[%s201 + $0x3830] sm:$0xff]
        %v2072 = vld [vmem:[%s201 + $0x3838] sm:$0xff]
        %v2073 = vld [vmem:[%s201 + $0x3840] sm:$0xff]
        %v2074 = vld [vmem:[%s201 + $0x3848] sm:$0xff]
        %v2075 = vld [vmem:[%s201 + $0x3850] sm:$0xff]
        %v2076 = vld [vmem:[%s201 + $0x3858] sm:$0xff]
        %v2077 = vld [vmem:[%s201 + $0x3860] sm:$0xff]
        %v2078 = vld [vmem:[%s201 + $0x3868] sm:$0xff]
        %v2079 = vld [vmem:[%s201 + $0x3870] sm:$0xff]
        %v2080 = vld [vmem:[%s201 + $0x3878] sm:$0xff]
        %v2081 = vld [vmem:[%s201 + $0x3880] sm:$0xff]
        %v2082 = vld [vmem:[%s201 + $0x3888] sm:$0xff]
        %v2083 = vld [vmem:[%s201 + $0x3890] sm:$0xff]
        %v2084 = vld [vmem:[%s201 + $0x3898] sm:$0xff]
        %v2085 = vld [vmem:[%s201 + $0x38a0] sm:$0xff]
        %v2086 = vld [vmem:[%s201 + $0x38a8] sm:$0xff]
        %v2087 = vld [vmem:[%s201 + $0x38b0] sm:$0xff]
        %v2088 = vld [vmem:[%s201 + $0x38b8] sm:$0xff]
        %v2089 = vld [vmem:[%s201 + $0x38c0] sm:$0xff]
        %v2090 = vld [vmem:[%s201 + $0x38c8] sm:$0xff]
        %v2091 = vld [vmem:[%s201 + $0x38d0] sm:$0xff]
        %v2092 = vld [vmem:[%s201 + $0x38d8] sm:$0xff]
        %v2093 = vld [vmem:[%s201 + $0x38e0] sm:$0xff]
        %v2094 = vld [vmem:[%s201 + $0x38e8] sm:$0xff]
        %v2095 = vld [vmem:[%s201 + $0x38f0] sm:$0xff]
        %v2096 = vld [vmem:[%s201 + $0x38f8] sm:$0xff]
        %v2097 = vld [vmem:[%s201 + $0x3900] sm:$0xff]
        %v2098 = vld [vmem:[%s201 + $0x3908] sm:$0xff]
        %v2099 = vld [vmem:[%s201 + $0x3910] sm:$0xff]
        %v2100 = vld [vmem:[%s201 + $0x3918] sm:$0xff]
        %v2101 = vld [vmem:[%s201 + $0x3920] sm:$0xff]
        %v2102 = vld [vmem:[%s201 + $0x3928] sm:$0xff]
        %v2103 = vld [vmem:[%s201 + $0x3930] sm:$0xff]
        %v2104 = vld [vmem:[%s201 + $0x3938] sm:$0xff]
        %v2105 = vld [vmem:[%s201 + $0x3940] sm:$0xff]
        %v2106 = vld [vmem:[%s201 + $0x3948] sm:$0xff]
        %v2107 = vld [vmem:[%s201 + $0x3950] sm:$0xff]
        %v2108 = vld [vmem:[%s201 + $0x3958] sm:$0xff]
        %v2109 = vld [vmem:[%s201 + $0x3960] sm:$0xff]
        %v2110 = vld [vmem:[%s201 + $0x3968] sm:$0xff]
        %v2111 = vld [vmem:[%s201 + $0x3970] sm:$0xff]
        %v2112 = vld [vmem:[%s201 + $0x3978] sm:$0xff]
        %v2113 = vld [vmem:[%s201 + $0x3980] sm:$0xff]
        %v2114 = vld [vmem:[%s201 + $0x3988] sm:$0xff]
        %v2115 = vld [vmem:[%s201 + $0x3990] sm:$0xff]
        %v2116 = vld [vmem:[%s201 + $0x3998] sm:$0xff]
        %v2117 = vld [vmem:[%s201 + $0x39a0] sm:$0xff]
        %v2118 = vld [vmem:[%s201 + $0x39a8] sm:$0xff]
        %v2119 = vld [vmem:[%s201 + $0x39b0] sm:$0xff]
        %v2120 = vld [vmem:[%s201 + $0x39b8] sm:$0xff]
        %v2121 = vld [vmem:[%s201 + $0x39c0] sm:$0xff]
        %v2122 = vld [vmem:[%s201 + $0x39c8] sm:$0xff]
        %v2123 = vld [vmem:[%s201 + $0x39d0] sm:$0xff]
        %v2124 = vld [vmem:[%s201 + $0x39d8] sm:$0xff]
        %v2125 = vld [vmem:[%s201 + $0x39e0] sm:$0xff]
        %v2126 = vld [vmem:[%s201 + $0x39e8] sm:$0xff]
        %v2127 = vld [vmem:[%s201 + $0x39f0] sm:$0xff]
        %v2128 = vld [vmem:[%s201 + $0x39f8] sm:$0xff]
        %v2129 = vld [vmem:[%s201 + $0x3a00] sm:$0xff]
        %v2130 = vld [vmem:[%s201 + $0x3a08] sm:$0xff]
        %v2131 = vld [vmem:[%s201 + $0x3a10] sm:$0xff]
        %v2132 = vld [vmem:[%s201 + $0x3a18] sm:$0xff]
        %v2133 = vld [vmem:[%s201 + $0x3a20] sm:$0xff]
        %v2134 = vld [vmem:[%s201 + $0x3a28] sm:$0xff]
        %v2135 = vld [vmem:[%s201 + $0x3a30] sm:$0xff]
        %v2136 = vld [vmem:[%s201 + $0x3a38] sm:$0xff]
        %v2137 = vld [vmem:[%s201 + $0x3a40] sm:$0xff]
        %v2138 = vld [vmem:[%s201 + $0x3a48] sm:$0xff]
        %v2139 = vld [vmem:[%s201 + $0x3a50] sm:$0xff]
        %v2140 = vld [vmem:[%s201 + $0x3a58] sm:$0xff]
        %v2141 = vld [vmem:[%s201 + $0x3a60] sm:$0xff]
        %v2142 = vld [vmem:[%s201 + $0x3a68] sm:$0xff]
        %v2143 = vld [vmem:[%s201 + $0x3a70] sm:$0xff]
        %v2144 = vld [vmem:[%s201 + $0x3a78] sm:$0xff]
        %v2145 = vld [vmem:[%s201 + $0x3a80] sm:$0xff]
        %v2146 = vld [vmem:[%s201 + $0x3a88] sm:$0xff]
        %v2147 = vld [vmem:[%s201 + $0x3a90] sm:$0xff]
        %v2148 = vld [vmem:[%s201 + $0x3a98] sm:$0xff]
        %v2149 = vld [vmem:[%s201 + $0x3aa0] sm:$0xff]
        %v2150 = vld [vmem:[%s201 + $0x3aa8] sm:$0xff]
        %v2151 = vld [vmem:[%s201 + $0x3ab0] sm:$0xff]
        %v2152 = vld [vmem:[%s201 + $0x3ab8] sm:$0xff]
        %v2153 = vld [vmem:[%s201 + $0x3ac0] sm:$0xff]
        %v2154 = vld [vmem:[%s201 + $0x3ac8] sm:$0xff]
        %v2155 = vld [vmem:[%s201 + $0x3ad0] sm:$0xff]
        %v2156 = vld [vmem:[%s201 + $0x3ad8] sm:$0xff]
        %v2157 = vld [vmem:[%s201 + $0x3ae0] sm:$0xff]
        %v2158 = vld [vmem:[%s201 + $0x3ae8] sm:$0xff]
        %v2159 = vld [vmem:[%s201 + $0x3af0] sm:$0xff]
        %v2160 = vld [vmem:[%s201 + $0x3af8] sm:$0xff]
        %v2161 = vld [vmem:[%s201 + $0x3b00] sm:$0xff]
        %v2162 = vld [vmem:[%s201 + $0x3b08] sm:$0xff]
        %v2163 = vld [vmem:[%s201 + $0x3b10] sm:$0xff]
        %v2164 = vld [vmem:[%s201 + $0x3b18] sm:$0xff]
        %v2165 = vld [vmem:[%s201 + $0x3b20] sm:$0xff]
        %v2166 = vld [vmem:[%s201 + $0x3b28] sm:$0xff]
        %v2167 = vld [vmem:[%s201 + $0x3b30] sm:$0xff]
        %v2168 = vld [vmem:[%s201 + $0x3b38] sm:$0xff]
        %v2169 = vld [vmem:[%s201 + $0x3b40] sm:$0xff]
        %v2170 = vld [vmem:[%s201 + $0x3b48] sm:$0xff]
        %v2171 = vld [vmem:[%s201 + $0x3b50] sm:$0xff]
        %v2172 = vld [vmem:[%s201 + $0x3b58] sm:$0xff]
        %v2173 = vld [vmem:[%s201 + $0x3b60] sm:$0xff]
        %v2174 = vld [vmem:[%s201 + $0x3b68] sm:$0xff]
        %v2175 = vld [vmem:[%s201 + $0x3b70] sm:$0xff]
        %v2176 = vld [vmem:[%s201 + $0x3b78] sm:$0xff]
        %v2177 = vld [vmem:[%s201 + $0x3b80] sm:$0xff]
        %v2178 = vld [vmem:[%s201 + $0x3b88] sm:$0xff]
        %v2179 = vld [vmem:[%s201 + $0x3b90] sm:$0xff]
        %v2180 = vld [vmem:[%s201 + $0x3b98] sm:$0xff]
        %v2181 = vld [vmem:[%s201 + $0x3ba0] sm:$0xff]
        %v2182 = vld [vmem:[%s201 + $0x3ba8] sm:$0xff]
        %v2183 = vld [vmem:[%s201 + $0x3bb0] sm:$0xff]
        %v2184 = vld [vmem:[%s201 + $0x3bb8] sm:$0xff]
        %v2185 = vld [vmem:[%s201 + $0x3bc0] sm:$0xff]
        %v2186 = vld [vmem:[%s201 + $0x3bc8] sm:$0xff]
        %v2187 = vld [vmem:[%s201 + $0x3bd0] sm:$0xff]
        %v2188 = vld [vmem:[%s201 + $0x3bd8] sm:$0xff]
        %v2189 = vld [vmem:[%s201 + $0x3be0] sm:$0xff]
        %v2190 = vld [vmem:[%s201 + $0x3be8] sm:$0xff]
        %v2191 = vld [vmem:[%s201 + $0x3bf0] sm:$0xff]
        %v2192 = vld [vmem:[%s201 + $0x3bf8] sm:$0xff]
        %v2193 = vld [vmem:[%s201 + $0x3c00] sm:$0xff]
        %v2194 = vld [vmem:[%s201 + $0x3c08] sm:$0xff]
        %v2195 = vld [vmem:[%s201 + $0x3c10] sm:$0xff]
        %v2196 = vld [vmem:[%s201 + $0x3c18] sm:$0xff]
        %v2197 = vld [vmem:[%s201 + $0x3c20] sm:$0xff]
        %v2198 = vld [vmem:[%s201 + $0x3c28] sm:$0xff]
        %v2199 = vld [vmem:[%s201 + $0x3c30] sm:$0xff]
        %v2200 = vld [vmem:[%s201 + $0x3c38] sm:$0xff]
        %v2201 = vld [vmem:[%s201 + $0x3c40] sm:$0xff]
        %v2202 = vld [vmem:[%s201 + $0x3c48] sm:$0xff]
        %v2203 = vld [vmem:[%s201 + $0x3c50] sm:$0xff]
        %v2204 = vld [vmem:[%s201 + $0x3c58] sm:$0xff]
        %v2205 = vld [vmem:[%s201 + $0x3c60] sm:$0xff]
        %v2206 = vld [vmem:[%s201 + $0x3c68] sm:$0xff]
        %v2207 = vld [vmem:[%s201 + $0x3c70] sm:$0xff]
        %v2208 = vld [vmem:[%s201 + $0x3c78] sm:$0xff]
        %v2209 = vld [vmem:[%s201 + $0x3c80] sm:$0xff]
        %v2210 = vld [vmem:[%s201 + $0x3c88] sm:$0xff]
        %v2211 = vld [vmem:[%s201 + $0x3c90] sm:$0xff]
        %v2212 = vld [vmem:[%s201 + $0x3c98] sm:$0xff]
        %v2213 = vld [vmem:[%s201 + $0x3ca0] sm:$0xff]
        %v2214 = vld [vmem:[%s201 + $0x3ca8] sm:$0xff]
        %v2215 = vld [vmem:[%s201 + $0x3cb0] sm:$0xff]
        %v2216 = vld [vmem:[%s201 + $0x3cb8] sm:$0xff]
        %v2217 = vld [vmem:[%s201 + $0x3cc0] sm:$0xff]
        %v2218 = vld [vmem:[%s201 + $0x3cc8] sm:$0xff]
        %v2219 = vld [vmem:[%s201 + $0x3cd0] sm:$0xff]
        %v2220 = vld [vmem:[%s201 + $0x3cd8] sm:$0xff]
        %v2221 = vld [vmem:[%s201 + $0x3ce0] sm:$0xff]
        %v2222 = vld [vmem:[%s201 + $0x3ce8] sm:$0xff]
        %v2223 = vld [vmem:[%s201 + $0x3cf0] sm:$0xff]
        %v2224 = vld [vmem:[%s201 + $0x3cf8] sm:$0xff]
        %v2225 = vld [vmem:[%s201 + $0x3d00] sm:$0xff]
        %v2226 = vld [vmem:[%s201 + $0x3d08] sm:$0xff]
        %v2227 = vld [vmem:[%s201 + $0x3d10] sm:$0xff]
        %v2228 = vld [vmem:[%s201 + $0x3d18] sm:$0xff]
        %v2229 = vld [vmem:[%s201 + $0x3d20] sm:$0xff]
        %v2230 = vld [vmem:[%s201 + $0x3d28] sm:$0xff]
        %v2231 = vld [vmem:[%s201 + $0x3d30] sm:$0xff]
        %v2232 = vld [vmem:[%s201 + $0x3d38] sm:$0xff]
        %v2233 = vld [vmem:[%s201 + $0x3d40] sm:$0xff]
        %v2234 = vld [vmem:[%s201 + $0x3d48] sm:$0xff]
        %v2235 = vld [vmem:[%s201 + $0x3d50] sm:$0xff]
        %v2236 = vld [vmem:[%s201 + $0x3d58] sm:$0xff]
        %v2237 = vld [vmem:[%s201 + $0x3d60] sm:$0xff]
        %v2238 = vld [vmem:[%s201 + $0x3d68] sm:$0xff]
        %v2239 = vld [vmem:[%s201 + $0x3d70] sm:$0xff]
        %v2240 = vld [vmem:[%s201 + $0x3d78] sm:$0xff]
        %v2241 = vld [vmem:[%s201 + $0x3d80] sm:$0xff]
        %v2242 = vld [vmem:[%s201 + $0x3d88] sm:$0xff]
        %v2243 = vld [vmem:[%s201 + $0x3d90] sm:$0xff]
        %v2244 = vld [vmem:[%s201 + $0x3d98] sm:$0xff]
        %v2245 = vld [vmem:[%s201 + $0x3da0] sm:$0xff]
        %v2246 = vld [vmem:[%s201 + $0x3da8] sm:$0xff]
        %v2247 = vld [vmem:[%s201 + $0x3db0] sm:$0xff]
        %v2248 = vld [vmem:[%s201 + $0x3db8] sm:$0xff]
        %v2249 = vld [vmem:[%s201 + $0x3dc0] sm:$0xff]
        %v2250 = vld [vmem:[%s201 + $0x3dc8] sm:$0xff]
        %v2251 = vld [vmem:[%s201 + $0x3dd0] sm:$0xff]
        %v2252 = vld [vmem:[%s201 + $0x3dd8] sm:$0xff]
        %v2253 = vld [vmem:[%s201 + $0x3de0] sm:$0xff]
        %v2254 = vld [vmem:[%s201 + $0x3de8] sm:$0xff]
        %v2255 = vld [vmem:[%s201 + $0x3df0] sm:$0xff]
        %v2256 = vld [vmem:[%s201 + $0x3df8] sm:$0xff]
        %v2257 = vld [vmem:[%s201 + $0x3e00] sm:$0xff]
        %v2258 = vld [vmem:[%s201 + $0x3e08] sm:$0xff]
        %v2259 = vld [vmem:[%s201 + $0x3e10] sm:$0xff]
        %v2260 = vld [vmem:[%s201 + $0x3e18] sm:$0xff]
        %v2261 = vld [vmem:[%s201 + $0x3e20] sm:$0xff]
        %v2262 = vld [vmem:[%s201 + $0x3e28] sm:$0xff]
        %v2263 = vld [vmem:[%s201 + $0x3e30] sm:$0xff]
        %v2264 = vld [vmem:[%s201 + $0x3e38] sm:$0xff]
        %v2265 = vld [vmem:[%s201 + $0x3e40] sm:$0xff]
        %v2266 = vld [vmem:[%s201 + $0x3e48] sm:$0xff]
        %v2267 = vld [vmem:[%s201 + $0x3e50] sm:$0xff]
        %v2268 = vld [vmem:[%s201 + $0x3e58] sm:$0xff]
        %v2269 = vld [vmem:[%s201 + $0x3e60] sm:$0xff]
        %v2270 = vld [vmem:[%s201 + $0x3e68] sm:$0xff]
        %v2271 = vld [vmem:[%s201 + $0x3e70] sm:$0xff]
        %v2272 = vld [vmem:[%s201 + $0x3e78] sm:$0xff]
        %v2273 = vld [vmem:[%s201 + $0x3e80] sm:$0xff]
        %v2274 = vld [vmem:[%s201 + $0x3e88] sm:$0xff]
        %v2275 = vld [vmem:[%s201 + $0x3e90] sm:$0xff]
        %v2276 = vld [vmem:[%s201 + $0x3e98] sm:$0xff]
        %v2277 = vld [vmem:[%s201 + $0x3ea0] sm:$0xff]
        %v2278 = vld [vmem:[%s201 + $0x3ea8] sm:$0xff]
        %v2279 = vld [vmem:[%s201 + $0x3eb0] sm:$0xff]
        %v2280 = vld [vmem:[%s201 + $0x3eb8] sm:$0xff]
        %v2281 = vld [vmem:[%s201 + $0x3ec0] sm:$0xff]
        %v2282 = vld [vmem:[%s201 + $0x3ec8] sm:$0xff]
        %v2283 = vld [vmem:[%s201 + $0x3ed0] sm:$0xff]
        %v2284 = vld [vmem:[%s201 + $0x3ed8] sm:$0xff]
        %v2285 = vld [vmem:[%s201 + $0x3ee0] sm:$0xff]
        %v2286 = vld [vmem:[%s201 + $0x3ee8] sm:$0xff]
        %v2287 = vld [vmem:[%s201 + $0x3ef0] sm:$0xff]
        %v2288 = vld [vmem:[%s201 + $0x3ef8] sm:$0xff]
        %v2289 = vld [vmem:[%s201 + $0x3f00] sm:$0xff]
        %v2290 = vld [vmem:[%s201 + $0x3f08] sm:$0xff]
        %v2291 = vld [vmem:[%s201 + $0x3f10] sm:$0xff]
        %v2292 = vld [vmem:[%s201 + $0x3f18] sm:$0xff]
        %v2293 = vld [vmem:[%s201 + $0x3f20] sm:$0xff]
        %v2294 = vld [vmem:[%s201 + $0x3f28] sm:$0xff]
        %v2295 = vld [vmem:[%s201 + $0x3f30] sm:$0xff]
        %v2296 = vld [vmem:[%s201 + $0x3f38] sm:$0xff]
        %v2297 = vld [vmem:[%s201 + $0x3f40] sm:$0xff]
        %v2298 = vld [vmem:[%s201 + $0x3f48] sm:$0xff]
        %v2299 = vld [vmem:[%s201 + $0x3f50] sm:$0xff]
        %v2300 = vld [vmem:[%s201 + $0x3f58] sm:$0xff]
        %v2301 = vld [vmem:[%s201 + $0x3f60] sm:$0xff]
        %v2302 = vld [vmem:[%s201 + $0x3f68] sm:$0xff]
        %v2303 = vld [vmem:[%s201 + $0x3f70] sm:$0xff]
        %v2304 = vld [vmem:[%s201 + $0x3f78] sm:$0xff]
        %v2305 = vld [vmem:[%s201 + $0x3f80] sm:$0xff]
        %v2306 = vld [vmem:[%s201 + $0x3f88] sm:$0xff]
        %v2307 = vld [vmem:[%s201 + $0x3f90] sm:$0xff]
        %v2308 = vld [vmem:[%s201 + $0x3f98] sm:$0xff]
        %v2309 = vld [vmem:[%s201 + $0x3fa0] sm:$0xff]
        %v2310 = vld [vmem:[%s201 + $0x3fa8] sm:$0xff]
        %v2311 = vld [vmem:[%s201 + $0x3fb0] sm:$0xff]
        %v2312 = vld [vmem:[%s201 + $0x3fb8] sm:$0xff]
        %v2313 = vld [vmem:[%s201 + $0x3fc0] sm:$0xff]
        %v2314 = vld [vmem:[%s201 + $0x3fc8] sm:$0xff]
        %v2315 = vld [vmem:[%s201 + $0x3fd0] sm:$0xff]
        %v2316 = vld [vmem:[%s201 + $0x3fd8] sm:$0xff]
        %v2317 = vld [vmem:[%s201 + $0x3fe0] sm:$0xff]
        %v2318 = vld [vmem:[%s201 + $0x3fe8] sm:$0xff]
        %v2319 = vld [vmem:[%s201 + $0x3ff0] sm:$0xff]
        %v2320 = vld [vmem:[%s201 + $0x3ff8] sm:$0xff]
        %v2321 = vld [vmem:[%s201 + $0x4000] sm:$0xff]
        %v2322 = vld [vmem:[%s201 + $0x4008] sm:$0xff]
        %v2323 = vld [vmem:[%s201 + $0x4010] sm:$0xff]
        %v2324 = vld [vmem:[%s201 + $0x4018] sm:$0xff]
        %v2325 = vld [vmem:[%s201 + $0x4020] sm:$0xff]
        %v2326 = vld [vmem:[%s201 + $0x4028] sm:$0xff]
        %v2327 = vld [vmem:[%s201 + $0x4030] sm:$0xff]
        %v2328 = vld [vmem:[%s201 + $0x4038] sm:$0xff]
        %v2329 = vld [vmem:[%s201 + $0x4040] sm:$0xff]
        %v2330 = vld [vmem:[%s201 + $0x4048] sm:$0xff]
        %v2331 = vld [vmem:[%s201 + $0x4050] sm:$0xff]
        %v2332 = vld [vmem:[%s201 + $0x4058] sm:$0xff]
        %v2333 = vld [vmem:[%s201 + $0x4060] sm:$0xff]
        %v2334 = vld [vmem:[%s201 + $0x4068] sm:$0xff]
        %v2335 = vld [vmem:[%s201 + $0x4070] sm:$0xff]
        %v2336 = vld [vmem:[%s201 + $0x4078] sm:$0xff]
        %v2337 = vld [vmem:[%s201 + $0x4080] sm:$0xff]
        %v2338 = vld [vmem:[%s201 + $0x4088] sm:$0xff]
        %v2339 = vld [vmem:[%s201 + $0x4090] sm:$0xff]
        %v2340 = vld [vmem:[%s201 + $0x4098] sm:$0xff]
        %v2341 = vld [vmem:[%s201 + $0x40a0] sm:$0xff]
        %v2342 = vld [vmem:[%s201 + $0x40a8] sm:$0xff]
        %v2343 = vld [vmem:[%s201 + $0x40b0] sm:$0xff]
        %v2344 = vld [vmem:[%s201 + $0x40b8] sm:$0xff]
        %v2345 = vld [vmem:[%s201 + $0x40c0] sm:$0xff]
        %v2346 = vld [vmem:[%s201 + $0x40c8] sm:$0xff]
        %v2347 = vld [vmem:[%s201 + $0x40d0] sm:$0xff]
        %v2348 = vld [vmem:[%s201 + $0x40d8] sm:$0xff]
        %v2349 = vld [vmem:[%s201 + $0x40e0] sm:$0xff]
        %v2350 = vld [vmem:[%s201 + $0x40e8] sm:$0xff]
        %v2351 = vld [vmem:[%s201 + $0x40f0] sm:$0xff]
        %v2352 = vld [vmem:[%s201 + $0x40f8] sm:$0xff]
        %v2353 = vld [vmem:[%s201 + $0x4100] sm:$0xff]
        %v2354 = vld [vmem:[%s201 + $0x4108] sm:$0xff]
        %v2355 = vld [vmem:[%s201 + $0x4110] sm:$0xff]
        %v2356 = vld [vmem:[%s201 + $0x4118] sm:$0xff]
        %v2357 = vld [vmem:[%s201 + $0x4120] sm:$0xff]
        %v2358 = vld [vmem:[%s201 + $0x4128] sm:$0xff]
        %v2359 = vld [vmem:[%s201 + $0x4130] sm:$0xff]
        %v2360 = vld [vmem:[%s201 + $0x4138] sm:$0xff]
        %v2361 = vld [vmem:[%s201 + $0x4140] sm:$0xff]
        %v2362 = vld [vmem:[%s201 + $0x4148] sm:$0xff]
        %v2363 = vld [vmem:[%s201 + $0x4150] sm:$0xff]
        %v2364 = vld [vmem:[%s201 + $0x4158] sm:$0xff]
        %v2365 = vld [vmem:[%s201 + $0x4160] sm:$0xff]
        %v2366 = vld [vmem:[%s201 + $0x4168] sm:$0xff]
        %v2367 = vld [vmem:[%s201 + $0x4170] sm:$0xff]
        %v2368 = vld [vmem:[%s201 + $0x4178] sm:$0xff]
        %v2369 = vld [vmem:[%s201 + $0x4180] sm:$0xff]
        %v2370 = vld [vmem:[%s201 + $0x4188] sm:$0xff]
        %v2371 = vld [vmem:[%s201 + $0x4190] sm:$0xff]
        %v2372 = vld [vmem:[%s201 + $0x4198] sm:$0xff]
        %v2373 = vld [vmem:[%s201 + $0x41a0] sm:$0xff]
        %v2374 = vld [vmem:[%s201 + $0x41a8] sm:$0xff]
        %v2375 = vld [vmem:[%s201 + $0x41b0] sm:$0xff]
        %v2376 = vld [vmem:[%s201 + $0x41b8] sm:$0xff]
        %v2377 = vld [vmem:[%s201 + $0x41c0] sm:$0xff]
        %v2378 = vld [vmem:[%s201 + $0x41c8] sm:$0xff]
        %v2379 = vld [vmem:[%s201 + $0x41d0] sm:$0xff]
        %v2380 = vld [vmem:[%s201 + $0x41d8] sm:$0xff]
        %v2381 = vld [vmem:[%s201 + $0x41e0] sm:$0xff]
        %v2382 = vld [vmem:[%s201 + $0x41e8] sm:$0xff]
        %v2383 = vld [vmem:[%s201 + $0x41f0] sm:$0xff]
        %v2384 = vld [vmem:[%s201 + $0x41f8] sm:$0xff]
        %v2385 = vld [vmem:[%s201 + $0x4200] sm:$0xff]
        %v2386 = vld [vmem:[%s201 + $0x4208] sm:$0xff]
        %v2387 = vld [vmem:[%s201 + $0x4210] sm:$0xff]
        %v2388 = vld [vmem:[%s201 + $0x4218] sm:$0xff]
        %v2389 = vld [vmem:[%s201 + $0x4220] sm:$0xff]
        %v2390 = vld [vmem:[%s201 + $0x4228] sm:$0xff]
        %v2391 = vld [vmem:[%s201 + $0x4230] sm:$0xff]
        %v2392 = vld [vmem:[%s201 + $0x4238] sm:$0xff]
        %v2393 = vld [vmem:[%s201 + $0x4240] sm:$0xff]
        %v2394 = vld [vmem:[%s201 + $0x4248] sm:$0xff]
        %v2395 = vld [vmem:[%s201 + $0x4250] sm:$0xff]
        %v2396 = vld [vmem:[%s201 + $0x4258] sm:$0xff]
        %v2397 = vld [vmem:[%s201 + $0x4260] sm:$0xff]
        %v2398 = vld [vmem:[%s201 + $0x4268] sm:$0xff]
        %v2399 = vld [vmem:[%s201 + $0x4270] sm:$0xff]
        %v2400 = vld [vmem:[%s201 + $0x4278] sm:$0xff]
        %v2401 = vld [vmem:[%s201 + $0x4280] sm:$0xff]
        %v2402 = vld [vmem:[%s201 + $0x4288] sm:$0xff]
        %v2403 = vld [vmem:[%s201 + $0x4290] sm:$0xff]
        %v2404 = vld [vmem:[%s201 + $0x4298] sm:$0xff]
        %v2405 = vld [vmem:[%s201 + $0x42a0] sm:$0xff]
        %v2406 = vld [vmem:[%s201 + $0x42a8] sm:$0xff]
        %v2407 = vld [vmem:[%s201 + $0x42b0] sm:$0xff]
        %v2408 = vld [vmem:[%s201 + $0x42b8] sm:$0xff]
        %v2409 = vld [vmem:[%s201 + $0x42c0] sm:$0xff]
        %v2410 = vld [vmem:[%s201 + $0x42c8] sm:$0xff]
        %v2411 = vld [vmem:[%s201 + $0x42d0] sm:$0xff]
        %v2412 = vld [vmem:[%s201 + $0x42d8] sm:$0xff]
        %v2413 = vld [vmem:[%s201 + $0x42e0] sm:$0xff]
        %v2414 = vld [vmem:[%s201 + $0x42e8] sm:$0xff]
        %v2415 = vld [vmem:[%s201 + $0x42f0] sm:$0xff]
        %v2416 = vld [vmem:[%s201 + $0x42f8] sm:$0xff]
        %v2417 = vld [vmem:[%s201 + $0x4300] sm:$0xff]
        %v2418 = vld [vmem:[%s201 + $0x4308] sm:$0xff]
        %v2419 = vld [vmem:[%s201 + $0x4310] sm:$0xff]
        %v2420 = vld [vmem:[%s201 + $0x4318] sm:$0xff]
        %v2421 = vld [vmem:[%s201 + $0x4320] sm:$0xff]
        %v2422 = vld [vmem:[%s201 + $0x4328] sm:$0xff]
        %v2423 = vld [vmem:[%s201 + $0x4330] sm:$0xff]
        %v2424 = vld [vmem:[%s201 + $0x4338] sm:$0xff]
        %v2425 = vld [vmem:[%s201 + $0x4340] sm:$0xff]
        %v2426 = vld [vmem:[%s201 + $0x4348] sm:$0xff]
        %v2427 = vld [vmem:[%s201 + $0x4350] sm:$0xff]
        %v2428 = vld [vmem:[%s201 + $0x4358] sm:$0xff]
        %v2429 = vld [vmem:[%s201 + $0x4360] sm:$0xff]
        %v2430 = vld [vmem:[%s201 + $0x4368] sm:$0xff]
        %v2431 = vld [vmem:[%s201 + $0x4370] sm:$0xff]
        %v2432 = vld [vmem:[%s201 + $0x4378] sm:$0xff]
        %v2433 = vld [vmem:[%s201 + $0x4380] sm:$0xff]
        %v2434 = vld [vmem:[%s201 + $0x4388] sm:$0xff]
        %v2435 = vld [vmem:[%s201 + $0x4390] sm:$0xff]
        %v2436 = vld [vmem:[%s201 + $0x4398] sm:$0xff]
        %v2437 = vld [vmem:[%s201 + $0x43a0] sm:$0xff]
        %v2438 = vld [vmem:[%s201 + $0x43a8] sm:$0xff]
        %v2439 = vld [vmem:[%s201 + $0x43b0] sm:$0xff]
        %v2440 = vld [vmem:[%s201 + $0x43b8] sm:$0xff]
        %v2441 = vld [vmem:[%s201 + $0x43c0] sm:$0xff]
        %v2442 = vld [vmem:[%s201 + $0x43c8] sm:$0xff]
        %v2443 = vld [vmem:[%s201 + $0x43d0] sm:$0xff]
        %v2444 = vld [vmem:[%s201 + $0x43d8] sm:$0xff]
        %v2445 = vld [vmem:[%s201 + $0x43e0] sm:$0xff]
        %v2446 = vld [vmem:[%s201 + $0x43e8] sm:$0xff]
        %v2447 = vld [vmem:[%s201 + $0x43f0] sm:$0xff]
        %v2448 = vld [vmem:[%s201 + $0x43f8] sm:$0xff]
        %v2449 = vld [vmem:[%s201 + $0x4400] sm:$0xff]
        %v2450 = vld [vmem:[%s201 + $0x4408] sm:$0xff]
        %v2451 = vld [vmem:[%s201 + $0x4410] sm:$0xff]
        %v2452 = vld [vmem:[%s201 + $0x4418] sm:$0xff]
        %v2453 = vld [vmem:[%s201 + $0x4420] sm:$0xff]
        %v2454 = vld [vmem:[%s201 + $0x4428] sm:$0xff]
        %v2455 = vld [vmem:[%s201 + $0x4430] sm:$0xff]
        %v2456 = vld [vmem:[%s201 + $0x4438] sm:$0xff]
        %v2457 = vld [vmem:[%s201 + $0x4440] sm:$0xff]
        %v2458 = vld [vmem:[%s201 + $0x4448] sm:$0xff]
        %v2459 = vld [vmem:[%s201 + $0x4450] sm:$0xff]
        %v2460 = vld [vmem:[%s201 + $0x4458] sm:$0xff]
        %v2461 = vld [vmem:[%s201 + $0x4460] sm:$0xff]
        %v2462 = vld [vmem:[%s201 + $0x4468] sm:$0xff]
        %v2463 = vld [vmem:[%s201 + $0x4470] sm:$0xff]
        %v2464 = vld [vmem:[%s201 + $0x4478] sm:$0xff]
        %v2465 = vld [vmem:[%s201 + $0x4480] sm:$0xff]
        %v2466 = vld [vmem:[%s201 + $0x4488] sm:$0xff]
        %v2467 = vld [vmem:[%s201 + $0x4490] sm:$0xff]
        %v2468 = vld [vmem:[%s201 + $0x4498] sm:$0xff]
        %v2469 = vld [vmem:[%s201 + $0x44a0] sm:$0xff]
        %v2470 = vld [vmem:[%s201 + $0x44a8] sm:$0xff]
        %v2471 = vld [vmem:[%s201 + $0x44b0] sm:$0xff]
        %v2472 = vld [vmem:[%s201 + $0x44b8] sm:$0xff]
        %v2473 = vld [vmem:[%s201 + $0x44c0] sm:$0xff]
        %v2474 = vld [vmem:[%s201 + $0x44c8] sm:$0xff]
        %v2475 = vld [vmem:[%s201 + $0x44d0] sm:$0xff]
        %v2476 = vld [vmem:[%s201 + $0x44d8] sm:$0xff]
        %v2477 = vld [vmem:[%s201 + $0x44e0] sm:$0xff]
        %v2478 = vld [vmem:[%s201 + $0x44e8] sm:$0xff]
        %v2479 = vld [vmem:[%s201 + $0x44f0] sm:$0xff]
        %v2480 = vld [vmem:[%s201 + $0x44f8] sm:$0xff]
        %v2481 = vld [vmem:[%s201 + $0x4500] sm:$0xff]
        %v2482 = vld [vmem:[%s201 + $0x4508] sm:$0xff]
        %v2483 = vld [vmem:[%s201 + $0x4510] sm:$0xff]
        %v2484 = vld [vmem:[%s201 + $0x4518] sm:$0xff]
        %v2485 = vld [vmem:[%s201 + $0x4520] sm:$0xff]
        %v2486 = vld [vmem:[%s201 + $0x4528] sm:$0xff]
        %v2487 = vld [vmem:[%s201 + $0x4530] sm:$0xff]
        %v2488 = vld [vmem:[%s201 + $0x4538] sm:$0xff]
        %v2489 = vld [vmem:[%s201 + $0x4540] sm:$0xff]
        %v2490 = vld [vmem:[%s201 + $0x4548] sm:$0xff]
        %v2491 = vld [vmem:[%s201 + $0x4550] sm:$0xff]
        %v2492 = vld [vmem:[%s201 + $0x4558] sm:$0xff]
        %v2493 = vld [vmem:[%s201 + $0x4560] sm:$0xff]
        %v2494 = vld [vmem:[%s201 + $0x4568] sm:$0xff]
        %v2495 = vld [vmem:[%s201 + $0x4570] sm:$0xff]
        %v2496 = vld [vmem:[%s201 + $0x4578] sm:$0xff]
        %v2497 = vld [vmem:[%s201 + $0x4580] sm:$0xff]
        %v2498 = vld [vmem:[%s201 + $0x4588] sm:$0xff]
        %v2499 = vld [vmem:[%s201 + $0x4590] sm:$0xff]
        %v2500 = vld [vmem:[%s201 + $0x4598] sm:$0xff]
        %v2501 = vld [vmem:[%s201 + $0x45a0] sm:$0xff]
        %v2502 = vld [vmem:[%s201 + $0x45a8] sm:$0xff]
        %v2503 = vld [vmem:[%s201 + $0x45b0] sm:$0xff]
        %v2504 = vld [vmem:[%s201 + $0x45b8] sm:$0xff]
        %v2505 = vld [vmem:[%s201 + $0x45c0] sm:$0xff]
        %v2506 = vld [vmem:[%s201 + $0x45c8] sm:$0xff]
        %v2507 = vld [vmem:[%s201 + $0x45d0] sm:$0xff]
        %v2508 = vld [vmem:[%s201 + $0x45d8] sm:$0xff]
        %v2509 = vld [vmem:[%s201 + $0x45e0] sm:$0xff]
        %v2510 = vld [vmem:[%s201 + $0x45e8] sm:$0xff]
        %v2511 = vld [vmem:[%s201 + $0x45f0] sm:$0xff]
        %v2512 = vld [vmem:[%s201 + $0x45f8] sm:$0xff]
        %v2513 = vld [vmem:[%s201 + $0x4600] sm:$0xff]
        %v2514 = vld [vmem:[%s201 + $0x4608] sm:$0xff]
        %v2515 = vld [vmem:[%s201 + $0x4610] sm:$0xff]
        %v2516 = vld [vmem:[%s201 + $0x4618] sm:$0xff]
        %v2517 = vld [vmem:[%s201 + $0x4620] sm:$0xff]
        %v2518 = vld [vmem:[%s201 + $0x4628] sm:$0xff]
        %v2519 = vld [vmem:[%s201 + $0x4630] sm:$0xff]
        %v2520 = vld [vmem:[%s201 + $0x4638] sm:$0xff]
        %v2521 = vld [vmem:[%s201 + $0x4640] sm:$0xff]
        %v2522 = vld [vmem:[%s201 + $0x4648] sm:$0xff]
        %v2523 = vld [vmem:[%s201 + $0x4650] sm:$0xff]
        %v2524 = vld [vmem:[%s201 + $0x4658] sm:$0xff]
        %v2525 = vld [vmem:[%s201 + $0x4660] sm:$0xff]
        %v2526 = vld [vmem:[%s201 + $0x4668] sm:$0xff]
        %v2527 = vld [vmem:[%s201 + $0x4670] sm:$0xff]
        %v2528 = vld [vmem:[%s201 + $0x4678] sm:$0xff]
        %v2529 = vld [vmem:[%s201 + $0x4680] sm:$0xff]
        %v2530 = vld [vmem:[%s201 + $0x4688] sm:$0xff]
        %v2531 = vld [vmem:[%s201 + $0x4690] sm:$0xff]
        %v2532 = vld [vmem:[%s201 + $0x4698] sm:$0xff]
        %v2533 = vld [vmem:[%s201 + $0x46a0] sm:$0xff]
        %v2534 = vld [vmem:[%s201 + $0x46a8] sm:$0xff]
        %v2535 = vld [vmem:[%s201 + $0x46b0] sm:$0xff]
        %v2536 = vld [vmem:[%s201 + $0x46b8] sm:$0xff]
        %v2537 = vld [vmem:[%s201 + $0x46c0] sm:$0xff]
        %v2538 = vld [vmem:[%s201 + $0x46c8] sm:$0xff]
        %v2539 = vld [vmem:[%s201 + $0x46d0] sm:$0xff]
        %v2540 = vld [vmem:[%s201 + $0x46d8] sm:$0xff]
        %v2541 = vld [vmem:[%s201 + $0x46e0] sm:$0xff]
        %v2542 = vld [vmem:[%s201 + $0x46e8] sm:$0xff]
        %v2543 = vld [vmem:[%s201 + $0x46f0] sm:$0xff]
        %v2544 = vld [vmem:[%s201 + $0x46f8] sm:$0xff]
        %v2545 = vld [vmem:[%s201 + $0x4700] sm:$0xff]
        %v2546 = vld [vmem:[%s201 + $0x4708] sm:$0xff]
        %v2547 = vld [vmem:[%s201 + $0x4710] sm:$0xff]
        %v2548 = vld [vmem:[%s201 + $0x4718] sm:$0xff]
        %v2549 = vld [vmem:[%s201 + $0x4720] sm:$0xff]
        %v2550 = vld [vmem:[%s201 + $0x4728] sm:$0xff]
        %v2551 = vld [vmem:[%s201 + $0x4730] sm:$0xff]
        %v2552 = vld [vmem:[%s201 + $0x4738] sm:$0xff]
        %v2553 = vld [vmem:[%s201 + $0x4740] sm:$0xff]
        %v2554 = vld [vmem:[%s201 + $0x4748] sm:$0xff]
        %v2555 = vld [vmem:[%s201 + $0x4750] sm:$0xff]
        %v2556 = vld [vmem:[%s201 + $0x4758] sm:$0xff]
        %v2557 = vld [vmem:[%s201 + $0x4760] sm:$0xff]
        %v2558 = vld [vmem:[%s201 + $0x4768] sm:$0xff]
        %v2559 = vld [vmem:[%s201 + $0x4770] sm:$0xff]
        %v2560 = vld [vmem:[%s201 + $0x4778] sm:$0xff]
        %v2561 = vld [vmem:[%s201 + $0x4780] sm:$0xff]
        %v2562 = vld [vmem:[%s201 + $0x4788] sm:$0xff]
        %v2563 = vld [vmem:[%s201 + $0x4790] sm:$0xff]
        %v2564 = vld [vmem:[%s201 + $0x4798] sm:$0xff]
        %v2565 = vld [vmem:[%s201 + $0x47a0] sm:$0xff]
        %v2566 = vld [vmem:[%s201 + $0x47a8] sm:$0xff]
        %v2567 = vld [vmem:[%s201 + $0x47b0] sm:$0xff]
        %v2568 = vld [vmem:[%s201 + $0x47b8] sm:$0xff]
        %v2569 = vld [vmem:[%s201 + $0x47c0] sm:$0xff]
        %v2570 = vld [vmem:[%s201 + $0x47c8] sm:$0xff]
        %v2571 = vld [vmem:[%s201 + $0x47d0] sm:$0xff]
        %v2572 = vld [vmem:[%s201 + $0x47d8] sm:$0xff]
        %v2573 = vld [vmem:[%s201 + $0x47e0] sm:$0xff]
        %v2574 = vld [vmem:[%s201 + $0x47e8] sm:$0xff]
        %v2575 = vld [vmem:[%s201 + $0x47f0] sm:$0xff]
        %v2576 = vld [vmem:[%s201 + $0x47f8] sm:$0xff]
        %v2577 = vld [vmem:[%s201 + $0x4800] sm:$0xff]
        %v2578 = vld [vmem:[%s201 + $0x4808] sm:$0xff]
        %v2579 = vld [vmem:[%s201 + $0x4810] sm:$0xff]
        %v2580 = vld [vmem:[%s201 + $0x4818] sm:$0xff]
        %v2581 = vld [vmem:[%s201 + $0x4820] sm:$0xff]
        %v2582 = vld [vmem:[%s201 + $0x4828] sm:$0xff]
        %v2583 = vld [vmem:[%s201 + $0x4830] sm:$0xff]
        %v2584 = vld [vmem:[%s201 + $0x4838] sm:$0xff]
        %v2585 = vld [vmem:[%s201 + $0x4840] sm:$0xff]
        %v2586 = vld [vmem:[%s201 + $0x4848] sm:$0xff]
        %v2587 = vld [vmem:[%s201 + $0x4850] sm:$0xff]
        %v2588 = vld [vmem:[%s201 + $0x4858] sm:$0xff]
        %v2589 = vld [vmem:[%s201 + $0x4860] sm:$0xff]
        %v2590 = vld [vmem:[%s201 + $0x4868] sm:$0xff]
        %v2591 = vld [vmem:[%s201 + $0x4870] sm:$0xff]
        %v2592 = vld [vmem:[%s201 + $0x4878] sm:$0xff]
        %v2593 = vld [vmem:[%s201 + $0x4880] sm:$0xff]
        %v2594 = vld [vmem:[%s201 + $0x4888] sm:$0xff]
        %v2595 = vld [vmem:[%s201 + $0x4890] sm:$0xff]
        %v2596 = vld [vmem:[%s201 + $0x4898] sm:$0xff]
        %v2597 = vld [vmem:[%s201 + $0x48a0] sm:$0xff]
        %v2598 = vld [vmem:[%s201 + $0x48a8] sm:$0xff]
        %v2599 = vld [vmem:[%s201 + $0x48b0] sm:$0xff]
        %v2600 = vld [vmem:[%s201 + $0x48b8] sm:$0xff]
        %v2601 = vld [vmem:[%s201 + $0x48c0] sm:$0xff]
        %v2602 = vld [vmem:[%s201 + $0x48c8] sm:$0xff]
        %v2603 = vld [vmem:[%s201 + $0x48d0] sm:$0xff]
        %v2604 = vld [vmem:[%s201 + $0x48d8] sm:$0xff]
        %v2605 = vld [vmem:[%s201 + $0x48e0] sm:$0xff]
        %v2606 = vld [vmem:[%s201 + $0x48e8] sm:$0xff]
        %v2607 = vld [vmem:[%s201 + $0x48f0] sm:$0xff]
        %v2608 = vld [vmem:[%s201 + $0x48f8] sm:$0xff]
        %v2609 = vld [vmem:[%s201 + $0x4900] sm:$0xff]
        %v2610 = vld [vmem:[%s201 + $0x4908] sm:$0xff]
        %v2611 = vld [vmem:[%s201 + $0x4910] sm:$0xff]
        %v2612 = vld [vmem:[%s201 + $0x4918] sm:$0xff]
        %v2613 = vld [vmem:[%s201 + $0x4920] sm:$0xff]
        %v2614 = vld [vmem:[%s201 + $0x4928] sm:$0xff]
        %v2615 = vld [vmem:[%s201 + $0x4930] sm:$0xff]
        %v2616 = vld [vmem:[%s201 + $0x4938] sm:$0xff]
        %v2617 = vld [vmem:[%s201 + $0x4940] sm:$0xff]
        %v2618 = vld [vmem:[%s201 + $0x4948] sm:$0xff]
        %v2619 = vld [vmem:[%s201 + $0x4950] sm:$0xff]
        %v2620 = vld [vmem:[%s201 + $0x4958] sm:$0xff]
        %v2621 = vld [vmem:[%s201 + $0x4960] sm:$0xff]
        %v2622 = vld [vmem:[%s201 + $0x4968] sm:$0xff]
        %v2623 = vld [vmem:[%s201 + $0x4970] sm:$0xff]
        %v2624 = vld [vmem:[%s201 + $0x4978] sm:$0xff]
        %v2625 = vld [vmem:[%s201 + $0x4980] sm:$0xff]
        %v2626 = vld [vmem:[%s201 + $0x4988] sm:$0xff]
        %v2627 = vld [vmem:[%s201 + $0x4990] sm:$0xff]
        %v2628 = vld [vmem:[%s201 + $0x4998] sm:$0xff]
        %v2629 = vld [vmem:[%s201 + $0x49a0] sm:$0xff]
        %v2630 = vld [vmem:[%s201 + $0x49a8] sm:$0xff]
        %v2631 = vld [vmem:[%s201 + $0x49b0] sm:$0xff]
        %v2632 = vld [vmem:[%s201 + $0x49b8] sm:$0xff]
        %v2633 = vld [vmem:[%s201 + $0x49c0] sm:$0xff]
        %v2634 = vld [vmem:[%s201 + $0x49c8] sm:$0xff]
        %v2635 = vld [vmem:[%s201 + $0x49d0] sm:$0xff]
        %v2636 = vld [vmem:[%s201 + $0x49d8] sm:$0xff]
        %v2637 = vld [vmem:[%s201 + $0x49e0] sm:$0xff]
        %v2638 = vld [vmem:[%s201 + $0x49e8] sm:$0xff]
        %v2639 = vld [vmem:[%s201 + $0x49f0] sm:$0xff]
        %v2640 = vld [vmem:[%s201 + $0x49f8] sm:$0xff]
        %v2641 = vld [vmem:[%s201 + $0x4a00] sm:$0xff]
        %v2642 = vld [vmem:[%s201 + $0x4a08] sm:$0xff]
        %v2643 = vld [vmem:[%s201 + $0x4a10] sm:$0xff]
        %v2644 = vld [vmem:[%s201 + $0x4a18] sm:$0xff]
        %v2645 = vld [vmem:[%s201 + $0x4a20] sm:$0xff]
        %v2646 = vld [vmem:[%s201 + $0x4a28] sm:$0xff]
        %v2647 = vld [vmem:[%s201 + $0x4a30] sm:$0xff]
        %v2648 = vld [vmem:[%s201 + $0x4a38] sm:$0xff]
        %v2649 = vld [vmem:[%s201 + $0x4a40] sm:$0xff]
        %v2650 = vld [vmem:[%s201 + $0x4a48] sm:$0xff]
        %v2651 = vld [vmem:[%s201 + $0x4a50] sm:$0xff]
        %v2652 = vld [vmem:[%s201 + $0x4a58] sm:$0xff]
        %v2653 = vld [vmem:[%s201 + $0x4a60] sm:$0xff]
        %v2654 = vld [vmem:[%s201 + $0x4a68] sm:$0xff]
        %v2655 = vld [vmem:[%s201 + $0x4a70] sm:$0xff]
        %v2656 = vld [vmem:[%s201 + $0x4a78] sm:$0xff]
        %v2657 = vld [vmem:[%s201 + $0x4a80] sm:$0xff]
        %v2658 = vld [vmem:[%s201 + $0x4a88] sm:$0xff]
        %v2659 = vld [vmem:[%s201 + $0x4a90] sm:$0xff]
        %v2660 = vld [vmem:[%s201 + $0x4a98] sm:$0xff]
        %v2661 = vld [vmem:[%s201 + $0x4aa0] sm:$0xff]
        %v2662 = vld [vmem:[%s201 + $0x4aa8] sm:$0xff]
        %v2663 = vld [vmem:[%s201 + $0x4ab0] sm:$0xff]
        %v2664 = vld [vmem:[%s201 + $0x4ab8] sm:$0xff]
        %v2665 = vld [vmem:[%s201 + $0x4ac0] sm:$0xff]
        %v2666 = vld [vmem:[%s201 + $0x4ac8] sm:$0xff]
        %v2667 = vld [vmem:[%s201 + $0x4ad0] sm:$0xff]
        %v2668 = vld [vmem:[%s201 + $0x4ad8] sm:$0xff]
        %v2669 = vld [vmem:[%s201 + $0x4ae0] sm:$0xff]
        %v2670 = vld [vmem:[%s201 + $0x4ae8] sm:$0xff]
        %v2671 = vld [vmem:[%s201 + $0x4af0] sm:$0xff]
        %v2672 = vld [vmem:[%s201 + $0x4af8] sm:$0xff]
        %v2673 = vld [vmem:[%s201 + $0x4b00] sm:$0xff]
        %v2674 = vld [vmem:[%s201 + $0x4b08] sm:$0xff]
        %v2675 = vld [vmem:[%s201 + $0x4b10] sm:$0xff]
        %v2676 = vld [vmem:[%s201 + $0x4b18] sm:$0xff]
        %v2677 = vld [vmem:[%s201 + $0x4b20] sm:$0xff]
        %v2678 = vld [vmem:[%s201 + $0x4b28] sm:$0xff]
        %v2679 = vld [vmem:[%s201 + $0x4b30] sm:$0xff]
        %v2680 = vld [vmem:[%s201 + $0x4b38] sm:$0xff]
        %v2681 = vld [vmem:[%s201 + $0x4b40] sm:$0xff]
        %v2682 = vld [vmem:[%s201 + $0x4b48] sm:$0xff]
        %v2683 = vld [vmem:[%s201 + $0x4b50] sm:$0xff]
        %v2684 = vld [vmem:[%s201 + $0x4b58] sm:$0xff]
        %v2685 = vld [vmem:[%s201 + $0x4b60] sm:$0xff]
        %v2686 = vld [vmem:[%s201 + $0x4b68] sm:$0xff]
        %v2687 = vld [vmem:[%s201 + $0x4b70] sm:$0xff]
        %v2688 = vld [vmem:[%s201 + $0x4b78] sm:$0xff]
        %v2689 = vld [vmem:[%s201 + $0x4b80] sm:$0xff]
        %v2690 = vld [vmem:[%s201 + $0x4b88] sm:$0xff]
        %v2691 = vld [vmem:[%s201 + $0x4b90] sm:$0xff]
        %v2692 = vld [vmem:[%s201 + $0x4b98] sm:$0xff]
        %v2693 = vld [vmem:[%s201 + $0x4ba0] sm:$0xff]
        %v2694 = vld [vmem:[%s201 + $0x4ba8] sm:$0xff]
        %v2695 = vld [vmem:[%s201 + $0x4bb0] sm:$0xff]
        %v2696 = vld [vmem:[%s201 + $0x4bb8] sm:$0xff]
        %v2697 = vld [vmem:[%s201 + $0x4bc0] sm:$0xff]
        %v2698 = vld [vmem:[%s201 + $0x4bc8] sm:$0xff]
        %v2699 = vld [vmem:[%s201 + $0x4bd0] sm:$0xff]
        %v2700 = vld [vmem:[%s201 + $0x4bd8] sm:$0xff]
        %v2701 = vld [vmem:[%s201 + $0x4be0] sm:$0xff]
        %v2702 = vld [vmem:[%s201 + $0x4be8] sm:$0xff]
        %v2703 = vld [vmem:[%s201 + $0x4bf0] sm:$0xff]
        %v2704 = vld [vmem:[%s201 + $0x4bf8] sm:$0xff]
        %v2705 = vld [vmem:[%s201 + $0x4c00] sm:$0xff]
        %v2706 = vld [vmem:[%s201 + $0x4c08] sm:$0xff]
        %v2707 = vld [vmem:[%s201 + $0x4c10] sm:$0xff]
        %v2708 = vld [vmem:[%s201 + $0x4c18] sm:$0xff]
        %v2709 = vld [vmem:[%s201 + $0x4c20] sm:$0xff]
        %v2710 = vld [vmem:[%s201 + $0x4c28] sm:$0xff]
        %v2711 = vld [vmem:[%s201 + $0x4c30] sm:$0xff]
        %v2712 = vld [vmem:[%s201 + $0x4c38] sm:$0xff]
        %v2713 = vld [vmem:[%s201 + $0x4c40] sm:$0xff]
        %v2714 = vld [vmem:[%s201 + $0x4c48] sm:$0xff]
        %v2715 = vld [vmem:[%s201 + $0x4c50] sm:$0xff]
        %v2716 = vld [vmem:[%s201 + $0x4c58] sm:$0xff]
        %v2717 = vld [vmem:[%s201 + $0x4c60] sm:$0xff]
        %v2718 = vld [vmem:[%s201 + $0x4c68] sm:$0xff]
        %v2719 = vld [vmem:[%s201 + $0x4c70] sm:$0xff]
        %v2720 = vld [vmem:[%s201 + $0x4c78] sm:$0xff]
        %v2721 = vld [vmem:[%s201 + $0x4c80] sm:$0xff]
        %v2722 = vld [vmem:[%s201 + $0x4c88] sm:$0xff]
        %v2723 = vld [vmem:[%s201 + $0x4c90] sm:$0xff]
        %v2724 = vld [vmem:[%s201 + $0x4c98] sm:$0xff]
        %v2725 = vld [vmem:[%s201 + $0x4ca0] sm:$0xff]
        %v2726 = vld [vmem:[%s201 + $0x4ca8] sm:$0xff]
        %v2727 = vld [vmem:[%s201 + $0x4cb0] sm:$0xff]
        %v2728 = vld [vmem:[%s201 + $0x4cb8] sm:$0xff]
        %v2729 = vld [vmem:[%s201 + $0x4cc0] sm:$0xff]
        %v2730 = vld [vmem:[%s201 + $0x4cc8] sm:$0xff]
        %v2731 = vld [vmem:[%s201 + $0x4cd0] sm:$0xff]
        %v2732 = vld [vmem:[%s201 + $0x4cd8] sm:$0xff]
        %v2733 = vld [vmem:[%s201 + $0x4ce0] sm:$0xff]
        %v2734 = vld [vmem:[%s201 + $0x4ce8] sm:$0xff]
        %v2735 = vld [vmem:[%s201 + $0x4cf0] sm:$0xff]
        %v2736 = vld [vmem:[%s201 + $0x4cf8] sm:$0xff]
        %v2737 = vld [vmem:[%s201 + $0x4d00] sm:$0xff]
        %v2738 = vld [vmem:[%s201 + $0x4d08] sm:$0xff]
        %v2739 = vld [vmem:[%s201 + $0x4d10] sm:$0xff]
        %v2740 = vld [vmem:[%s201 + $0x4d18] sm:$0xff]
        %v2741 = vld [vmem:[%s201 + $0x4d20] sm:$0xff]
        %v2742 = vld [vmem:[%s201 + $0x4d28] sm:$0xff]
        %v2743 = vld [vmem:[%s201 + $0x4d30] sm:$0xff]
        %v2744 = vld [vmem:[%s201 + $0x4d38] sm:$0xff]
        %v2745 = vld [vmem:[%s201 + $0x4d40] sm:$0xff]
        %v2746 = vld [vmem:[%s201 + $0x4d48] sm:$0xff]
        %v2747 = vld [vmem:[%s201 + $0x4d50] sm:$0xff]
        %v2748 = vld [vmem:[%s201 + $0x4d58] sm:$0xff]
        %v2749 = vld [vmem:[%s201 + $0x4d60] sm:$0xff]
        %v2750 = vld [vmem:[%s201 + $0x4d68] sm:$0xff]
        %v2751 = vld [vmem:[%s201 + $0x4d70] sm:$0xff]
        %v2752 = vld [vmem:[%s201 + $0x4d78] sm:$0xff]
        %v2753 = vld [vmem:[%s201 + $0x4d80] sm:$0xff]
        %v2754 = vld [vmem:[%s201 + $0x4d88] sm:$0xff]
        %v2755 = vld [vmem:[%s201 + $0x4d90] sm:$0xff]
        %v2756 = vld [vmem:[%s201 + $0x4d98] sm:$0xff]
        %v2757 = vld [vmem:[%s201 + $0x4da0] sm:$0xff]
        %v2758 = vld [vmem:[%s201 + $0x4da8] sm:$0xff]
        %v2759 = vld [vmem:[%s201 + $0x4db0] sm:$0xff]
        %v2760 = vld [vmem:[%s201 + $0x4db8] sm:$0xff]
        %v2761 = vld [vmem:[%s201 + $0x4dc0] sm:$0xff]
        %v2762 = vld [vmem:[%s201 + $0x4dc8] sm:$0xff]
        %v2763 = vld [vmem:[%s201 + $0x4dd0] sm:$0xff]
        %v2764 = vld [vmem:[%s201 + $0x4dd8] sm:$0xff]
        %v2765 = vld [vmem:[%s201 + $0x4de0] sm:$0xff]
        %v2766 = vld [vmem:[%s201 + $0x4de8] sm:$0xff]
        %v2767 = vld [vmem:[%s201 + $0x4df0] sm:$0xff]
        %v2768 = vld [vmem:[%s201 + $0x4df8] sm:$0xff]
        %v2769 = vld [vmem:[%s201 + $0x4e00] sm:$0xff]
        %v2770 = vld [vmem:[%s201 + $0x4e08] sm:$0xff]
        %v2771 = vld [vmem:[%s201 + $0x4e10] sm:$0xff]
        %v2772 = vld [vmem:[%s201 + $0x4e18] sm:$0xff]
        %v2773 = vld [vmem:[%s201 + $0x4e20] sm:$0xff]
        %v2774 = vld [vmem:[%s201 + $0x4e28] sm:$0xff]
        %v2775 = vld [vmem:[%s201 + $0x4e30] sm:$0xff]
        %v2776 = vld [vmem:[%s201 + $0x4e38] sm:$0xff]
        %v2777 = vld [vmem:[%s201 + $0x4e40] sm:$0xff]
        %v2778 = vld [vmem:[%s201 + $0x4e48] sm:$0xff]
        %v2779 = vld [vmem:[%s201 + $0x4e50] sm:$0xff]
        %v2780 = vld [vmem:[%s201 + $0x4e58] sm:$0xff]
        %v2781 = vld [vmem:[%s201 + $0x4e60] sm:$0xff]
        %v2782 = vld [vmem:[%s201 + $0x4e68] sm:$0xff]
        %v2783 = vld [vmem:[%s201 + $0x4e70] sm:$0xff]
        %v2784 = vld [vmem:[%s201 + $0x4e78] sm:$0xff]
        %v2785 = vld [vmem:[%s201 + $0x4e80] sm:$0xff]
        %v2786 = vld [vmem:[%s201 + $0x4e88] sm:$0xff]
        %v2787 = vld [vmem:[%s201 + $0x4e90] sm:$0xff]
        %v2788 = vld [vmem:[%s201 + $0x4e98] sm:$0xff]
        %v2789 = vld [vmem:[%s201 + $0x4ea0] sm:$0xff]
        %v2790 = vld [vmem:[%s201 + $0x4ea8] sm:$0xff]
        %v2791 = vld [vmem:[%s201 + $0x4eb0] sm:$0xff]
        %v2792 = vld [vmem:[%s201 + $0x4eb8] sm:$0xff]
        %v2793 = vld [vmem:[%s201 + $0x4ec0] sm:$0xff]
        %v2794 = vld [vmem:[%s201 + $0x4ec8] sm:$0xff]
        %v2795 = vld [vmem:[%s201 + $0x4ed0] sm:$0xff]
        %v2796 = vld [vmem:[%s201 + $0x4ed8] sm:$0xff]
        %v2797 = vld [vmem:[%s201 + $0x4ee0] sm:$0xff]
        %v2798 = vld [vmem:[%s201 + $0x4ee8] sm:$0xff]
        %v2799 = vld [vmem:[%s201 + $0x4ef0] sm:$0xff]
        %v2800 = vld [vmem:[%s201 + $0x4ef8] sm:$0xff]
        %v2801 = vld [vmem:[%s201 + $0x4f00] sm:$0xff]
        %v2802 = vld [vmem:[%s201 + $0x4f08] sm:$0xff]
        %v2803 = vld [vmem:[%s201 + $0x4f10] sm:$0xff]
        %v2804 = vld [vmem:[%s201 + $0x4f18] sm:$0xff]
        %v2805 = vld [vmem:[%s201 + $0x4f20] sm:$0xff]
        %v2806 = vld [vmem:[%s201 + $0x4f28] sm:$0xff]
        %v2807 = vld [vmem:[%s201 + $0x4f30] sm:$0xff]
        %v2808 = vld [vmem:[%s201 + $0x4f38] sm:$0xff]
        %v2809 = vld [vmem:[%s201 + $0x4f40] sm:$0xff]
        %v2810 = vld [vmem:[%s201 + $0x4f48] sm:$0xff]
        %v2811 = vld [vmem:[%s201 + $0x4f50] sm:$0xff]
        %v2812 = vld [vmem:[%s201 + $0x4f58] sm:$0xff]
        %v2813 = vld [vmem:[%s201 + $0x4f60] sm:$0xff]
        %v2814 = vld [vmem:[%s201 + $0x4f68] sm:$0xff]
        %v2815 = vld [vmem:[%s201 + $0x4f70] sm:$0xff]
        %v2816 = vld [vmem:[%s201 + $0x4f78] sm:$0xff]
        %v2817 = vld [vmem:[%s201 + $0x4f80] sm:$0xff]
        %v2818 = vld [vmem:[%s201 + $0x4f88] sm:$0xff]
        %v2819 = vld [vmem:[%s201 + $0x4f90] sm:$0xff]
        %v2820 = vld [vmem:[%s201 + $0x4f98] sm:$0xff]
        %v2821 = vld [vmem:[%s201 + $0x4fa0] sm:$0xff]
        %v2822 = vld [vmem:[%s201 + $0x4fa8] sm:$0xff]
        %v2823 = vld [vmem:[%s201 + $0x4fb0] sm:$0xff]
        %v2824 = vld [vmem:[%s201 + $0x4fb8] sm:$0xff]
        %v2825 = vld [vmem:[%s201 + $0x4fc0] sm:$0xff]
        %v2826 = vld [vmem:[%s201 + $0x4fc8] sm:$0xff]
        %v2827 = vld [vmem:[%s201 + $0x4fd0] sm:$0xff]
        %v2828 = vld [vmem:[%s201 + $0x4fd8] sm:$0xff]
        %v2829 = vld [vmem:[%s201 + $0x4fe0] sm:$0xff]
        %v2830 = vld [vmem:[%s201 + $0x4fe8] sm:$0xff]
        %v2831 = vld [vmem:[%s201 + $0x4ff0] sm:$0xff]
        %v2832 = vld [vmem:[%s201 + $0x4ff8] sm:$0xff]
        %v2833 = vld [vmem:[%s201 + $0x5000] sm:$0xff]
        %v2834 = vld [vmem:[%s201 + $0x5008] sm:$0xff]
        %v2835 = vld [vmem:[%s201 + $0x5010] sm:$0xff]
        %v2836 = vld [vmem:[%s201 + $0x5018] sm:$0xff]
        %v2837 = vld [vmem:[%s201 + $0x5020] sm:$0xff]
        %v2838 = vld [vmem:[%s201 + $0x5028] sm:$0xff]
        %v2839 = vld [vmem:[%s201 + $0x5030] sm:$0xff]
        %v2840 = vld [vmem:[%s201 + $0x5038] sm:$0xff]
        %v2841 = vld [vmem:[%s201 + $0x5040] sm:$0xff]
        %v2842 = vld [vmem:[%s201 + $0x5048] sm:$0xff]
        %v2843 = vld [vmem:[%s201 + $0x5050] sm:$0xff]
        %v2844 = vld [vmem:[%s201 + $0x5058] sm:$0xff]
        %v2845 = vld [vmem:[%s201 + $0x5060] sm:$0xff]
        %v2846 = vld [vmem:[%s201 + $0x5068] sm:$0xff]
        %v2847 = vld [vmem:[%s201 + $0x5070] sm:$0xff]
        %v2848 = vld [vmem:[%s201 + $0x5078] sm:$0xff]
        %v2849 = vld [vmem:[%s201 + $0x5080] sm:$0xff]
        %v2850 = vld [vmem:[%s201 + $0x5088] sm:$0xff]
        %v2851 = vld [vmem:[%s201 + $0x5090] sm:$0xff]
        %v2852 = vld [vmem:[%s201 + $0x5098] sm:$0xff]
        %v2853 = vld [vmem:[%s201 + $0x50a0] sm:$0xff]
        %v2854 = vld [vmem:[%s201 + $0x50a8] sm:$0xff]
        %v2855 = vld [vmem:[%s201 + $0x50b0] sm:$0xff]
        %v2856 = vld [vmem:[%s201 + $0x50b8] sm:$0xff]
        %v2857 = vld [vmem:[%s201 + $0x50c0] sm:$0xff]
        %v2858 = vld [vmem:[%s201 + $0x50c8] sm:$0xff]
        %v2859 = vld [vmem:[%s201 + $0x50d0] sm:$0xff]
        %v2860 = vld [vmem:[%s201 + $0x50d8] sm:$0xff]
        %v2861 = vld [vmem:[%s201 + $0x50e0] sm:$0xff]
        %v2862 = vld [vmem:[%s201 + $0x50e8] sm:$0xff]
        %v2863 = vld [vmem:[%s201 + $0x50f0] sm:$0xff]
        %v2864 = vld [vmem:[%s201 + $0x50f8] sm:$0xff]
        %v2865 = vld [vmem:[%s201 + $0x5100] sm:$0xff]
        %v2866 = vld [vmem:[%s201 + $0x5108] sm:$0xff]
        %v2867 = vld [vmem:[%s201 + $0x5110] sm:$0xff]
        %v2868 = vld [vmem:[%s201 + $0x5118] sm:$0xff]
        %v2869 = vld [vmem:[%s201 + $0x5120] sm:$0xff]
        %v2870 = vld [vmem:[%s201 + $0x5128] sm:$0xff]
        %v2871 = vld [vmem:[%s201 + $0x5130] sm:$0xff]
        %v2872 = vld [vmem:[%s201 + $0x5138] sm:$0xff]
        %v2873 = vld [vmem:[%s201 + $0x5140] sm:$0xff]
        %v2874 = vld [vmem:[%s201 + $0x5148] sm:$0xff]
        %v2875 = vld [vmem:[%s201 + $0x5150] sm:$0xff]
        %v2876 = vld [vmem:[%s201 + $0x5158] sm:$0xff]
        %v2877 = vld [vmem:[%s201 + $0x5160] sm:$0xff]
        %v2878 = vld [vmem:[%s201 + $0x5168] sm:$0xff]
        %v2879 = vld [vmem:[%s201 + $0x5170] sm:$0xff]
        %v2880 = vld [vmem:[%s201 + $0x5178] sm:$0xff]
        %v2881 = vld [vmem:[%s201 + $0x5180] sm:$0xff]
        %v2882 = vld [vmem:[%s201 + $0x5188] sm:$0xff]
        %v2883 = vld [vmem:[%s201 + $0x5190] sm:$0xff]
        %v2884 = vld [vmem:[%s201 + $0x5198] sm:$0xff]
        %v2885 = vld [vmem:[%s201 + $0x51a0] sm:$0xff]
        %v2886 = vld [vmem:[%s201 + $0x51a8] sm:$0xff]
        %v2887 = vld [vmem:[%s201 + $0x51b0] sm:$0xff]
        %v2888 = vld [vmem:[%s201 + $0x51b8] sm:$0xff]
        %v2889 = vld [vmem:[%s201 + $0x51c0] sm:$0xff]
        %v2890 = vld [vmem:[%s201 + $0x51c8] sm:$0xff]
        %v2891 = vld [vmem:[%s201 + $0x51d0] sm:$0xff]
        %v2892 = vld [vmem:[%s201 + $0x51d8] sm:$0xff]
        %v2893 = vld [vmem:[%s201 + $0x51e0] sm:$0xff]
        %v2894 = vld [vmem:[%s201 + $0x51e8] sm:$0xff]
        %v2895 = vld [vmem:[%s201 + $0x51f0] sm:$0xff]
        %v2896 = vld [vmem:[%s201 + $0x51f8] sm:$0xff]
        %v2897 = vld [vmem:[%s201 + $0x5200] sm:$0xff]
        %v2898 = vld [vmem:[%s201 + $0x5208] sm:$0xff]
        %v2899 = vld [vmem:[%s201 + $0x5210] sm:$0xff]
        %v2900 = vld [vmem:[%s201 + $0x5218] sm:$0xff]
        %v2901 = vld [vmem:[%s201 + $0x5220] sm:$0xff]
        %v2902 = vld [vmem:[%s201 + $0x5228] sm:$0xff]
        %v2903 = vld [vmem:[%s201 + $0x5230] sm:$0xff]
        %v2904 = vld [vmem:[%s201 + $0x5238] sm:$0xff]
        %v2905 = vld [vmem:[%s201 + $0x5240] sm:$0xff]
        %v2906 = vld [vmem:[%s201 + $0x5248] sm:$0xff]
        %v2907 = vld [vmem:[%s201 + $0x5250] sm:$0xff]
        %v2908 = vld [vmem:[%s201 + $0x5258] sm:$0xff]
        %v2909 = vld [vmem:[%s201 + $0x5260] sm:$0xff]
        %v2910 = vld [vmem:[%s201 + $0x5268] sm:$0xff]
        %v2911 = vld [vmem:[%s201 + $0x5270] sm:$0xff]
        %v2912 = vld [vmem:[%s201 + $0x5278] sm:$0xff]
        %v2913 = vld [vmem:[%s201 + $0x5280] sm:$0xff]
        %v2914 = vld [vmem:[%s201 + $0x5288] sm:$0xff]
        %v2915 = vld [vmem:[%s201 + $0x5290] sm:$0xff]
        %v2916 = vld [vmem:[%s201 + $0x5298] sm:$0xff]
        %v2917 = vld [vmem:[%s201 + $0x52a0] sm:$0xff]
        %v2918 = vld [vmem:[%s201 + $0x52a8] sm:$0xff]
        %v2919 = vld [vmem:[%s201 + $0x52b0] sm:$0xff]
        %v2920 = vld [vmem:[%s201 + $0x52b8] sm:$0xff]
        %v2921 = vld [vmem:[%s201 + $0x52c0] sm:$0xff]
        %v2922 = vld [vmem:[%s201 + $0x52c8] sm:$0xff]
        %v2923 = vld [vmem:[%s201 + $0x52d0] sm:$0xff]
        %v2924 = vld [vmem:[%s201 + $0x52d8] sm:$0xff]
        %v2925 = vld [vmem:[%s201 + $0x52e0] sm:$0xff]
        %v2926 = vld [vmem:[%s201 + $0x52e8] sm:$0xff]
        %v2927 = vld [vmem:[%s201 + $0x52f0] sm:$0xff]
        %v2928 = vld [vmem:[%s201 + $0x52f8] sm:$0xff]
        %v2929 = vld [vmem:[%s201 + $0x5300] sm:$0xff]
        %v2930 = vld [vmem:[%s201 + $0x5308] sm:$0xff]
        %v2931 = vld [vmem:[%s201 + $0x5310] sm:$0xff]
        %v2932 = vld [vmem:[%s201 + $0x5318] sm:$0xff]
        %v2933 = vld [vmem:[%s201 + $0x5320] sm:$0xff]
        %v2934 = vld [vmem:[%s201 + $0x5328] sm:$0xff]
        %v2935 = vld [vmem:[%s201 + $0x5330] sm:$0xff]
        %v2936 = vld [vmem:[%s201 + $0x5338] sm:$0xff]
        %v2937 = vld [vmem:[%s201 + $0x5340] sm:$0xff]
        %v2938 = vld [vmem:[%s201 + $0x5348] sm:$0xff]
        %v2939 = vld [vmem:[%s201 + $0x5350] sm:$0xff]
        %v2940 = vld [vmem:[%s201 + $0x5358] sm:$0xff]
        %v2941 = vld [vmem:[%s201 + $0x5360] sm:$0xff]
        %v2942 = vld [vmem:[%s201 + $0x5368] sm:$0xff]
        %v2943 = vld [vmem:[%s201 + $0x5370] sm:$0xff]
        %v2944 = vld [vmem:[%s201 + $0x5378] sm:$0xff]
        %v2945 = vld [vmem:[%s201 + $0x5380] sm:$0xff]
        %v2946 = vld [vmem:[%s201 + $0x5388] sm:$0xff]
        %v2947 = vld [vmem:[%s201 + $0x5390] sm:$0xff]
        %v2948 = vld [vmem:[%s201 + $0x5398] sm:$0xff]
        %v2949 = vld [vmem:[%s201 + $0x53a0] sm:$0xff]
        %v2950 = vld [vmem:[%s201 + $0x53a8] sm:$0xff]
        %v2951 = vld [vmem:[%s201 + $0x53b0] sm:$0xff]
        %v2952 = vld [vmem:[%s201 + $0x53b8] sm:$0xff]
        %v2953 = vld [vmem:[%s201 + $0x53c0] sm:$0xff]
        %v2954 = vld [vmem:[%s201 + $0x53c8] sm:$0xff]
        %v2955 = vld [vmem:[%s201 + $0x53d0] sm:$0xff]
        %v2956 = vld [vmem:[%s201 + $0x53d8] sm:$0xff]
        %v2957 = vld [vmem:[%s201 + $0x53e0] sm:$0xff]
        %v2958 = vld [vmem:[%s201 + $0x53e8] sm:$0xff]
        %v2959 = vld [vmem:[%s201 + $0x53f0] sm:$0xff]
        %v2960 = vld [vmem:[%s201 + $0x53f8] sm:$0xff]
        %v2961 = vld [vmem:[%s201 + $0x5400] sm:$0xff]
        %v2962 = vld [vmem:[%s201 + $0x5408] sm:$0xff]
        %v2963 = vld [vmem:[%s201 + $0x5410] sm:$0xff]
        %v2964 = vld [vmem:[%s201 + $0x5418] sm:$0xff]
        %v2965 = vld [vmem:[%s201 + $0x5420] sm:$0xff]
        %v2966 = vld [vmem:[%s201 + $0x5428] sm:$0xff]
        %v2967 = vld [vmem:[%s201 + $0x5430] sm:$0xff]
        %v2968 = vld [vmem:[%s201 + $0x5438] sm:$0xff]
        %v2969 = vld [vmem:[%s201 + $0x5440] sm:$0xff]
        %v2970 = vld [vmem:[%s201 + $0x5448] sm:$0xff]
        %v2971 = vld [vmem:[%s201 + $0x5450] sm:$0xff]
        %v2972 = vld [vmem:[%s201 + $0x5458] sm:$0xff]
        %v2973 = vld [vmem:[%s201 + $0x5460] sm:$0xff]
        %v2974 = vld [vmem:[%s201 + $0x5468] sm:$0xff]
        %v2975 = vld [vmem:[%s201 + $0x5470] sm:$0xff]
        %v2976 = vld [vmem:[%s201 + $0x5478] sm:$0xff]
        %v2977 = vld [vmem:[%s201 + $0x5480] sm:$0xff]
        %v2978 = vld [vmem:[%s201 + $0x5488] sm:$0xff]
        %v2979 = vld [vmem:[%s201 + $0x5490] sm:$0xff]
        %v2980 = vld [vmem:[%s201 + $0x5498] sm:$0xff]
        %v2981 = vld [vmem:[%s201 + $0x54a0] sm:$0xff]
        %v2982 = vld [vmem:[%s201 + $0x54a8] sm:$0xff]
        %v2983 = vld [vmem:[%s201 + $0x54b0] sm:$0xff]
        %v2984 = vld [vmem:[%s201 + $0x54b8] sm:$0xff]
        %v2985 = vld [vmem:[%s201 + $0x54c0] sm:$0xff]
        %v2986 = vld [vmem:[%s201 + $0x54c8] sm:$0xff]
        %v2987 = vld [vmem:[%s201 + $0x54d0] sm:$0xff]
        %v2988 = vld [vmem:[%s201 + $0x54d8] sm:$0xff]
        %v2989 = vld [vmem:[%s201 + $0x54e0] sm:$0xff]
        %v2990 = vld [vmem:[%s201 + $0x54e8] sm:$0xff]
        %v2991 = vld [vmem:[%s201 + $0x54f0] sm:$0xff]
        %v2992 = vld [vmem:[%s201 + $0x54f8] sm:$0xff]
        %v2993 = vld [vmem:[%s201 + $0x5500] sm:$0xff]
        %v2994 = vld [vmem:[%s201 + $0x5508] sm:$0xff]
        %v2995 = vld [vmem:[%s201 + $0x5510] sm:$0xff]
        %v2996 = vld [vmem:[%s201 + $0x5518] sm:$0xff]
        %v2997 = vld [vmem:[%s201 + $0x5520] sm:$0xff]
        %v2998 = vld [vmem:[%s201 + $0x5528] sm:$0xff]
        %v2999 = vld [vmem:[%s201 + $0x5530] sm:$0xff]
        %v3000 = vld [vmem:[%s201 + $0x5538] sm:$0xff]
        %v3001 = vld [vmem:[%s201 + $0x5540] sm:$0xff]
        %v3002 = vld [vmem:[%s201 + $0x5548] sm:$0xff]
        %v3003 = vld [vmem:[%s201 + $0x5550] sm:$0xff]
        %v3004 = vld [vmem:[%s201 + $0x5558] sm:$0xff]
        %v3005 = vld [vmem:[%s201 + $0x5560] sm:$0xff]
        %v3006 = vld [vmem:[%s201 + $0x5568] sm:$0xff]
        %v3007 = vld [vmem:[%s201 + $0x5570] sm:$0xff]
        %v3008 = vld [vmem:[%s201 + $0x5578] sm:$0xff]
        %v3009 = vld [vmem:[%s201 + $0x5580] sm:$0xff]
        %v3010 = vld [vmem:[%s201 + $0x5588] sm:$0xff]
        %v3011 = vld [vmem:[%s201 + $0x5590] sm:$0xff]
        %v3012 = vld [vmem:[%s201 + $0x5598] sm:$0xff]
        %v3013 = vld [vmem:[%s201 + $0x55a0] sm:$0xff]
        %v3014 = vld [vmem:[%s201 + $0x55a8] sm:$0xff]
        %v3015 = vld [vmem:[%s201 + $0x55b0] sm:$0xff]
        %v3016 = vld [vmem:[%s201 + $0x55b8] sm:$0xff]
        %v3017 = vld [vmem:[%s201 + $0x55c0] sm:$0xff]
        %v3018 = vld [vmem:[%s201 + $0x55c8] sm:$0xff]
        %v3019 = vld [vmem:[%s201 + $0x55d0] sm:$0xff]
        %v3020 = vld [vmem:[%s201 + $0x55d8] sm:$0xff]
        %v3021 = vld [vmem:[%s201 + $0x55e0] sm:$0xff]
        %v3022 = vld [vmem:[%s201 + $0x55e8] sm:$0xff]
        %v3023 = vld [vmem:[%s201 + $0x55f0] sm:$0xff]
        %v3024 = vld [vmem:[%s201 + $0x55f8] sm:$0xff]
        %v3025 = vld [vmem:[%s201 + $0x5600] sm:$0xff]
        %v3026 = vld [vmem:[%s201 + $0x5608] sm:$0xff]
        %v3027 = vld [vmem:[%s201 + $0x5610] sm:$0xff]
        %v3028 = vld [vmem:[%s201 + $0x5618] sm:$0xff]
        %v3029 = vld [vmem:[%s201 + $0x5620] sm:$0xff]
        %v3030 = vld [vmem:[%s201 + $0x5628] sm:$0xff]
        %v3031 = vld [vmem:[%s201 + $0x5630] sm:$0xff]
        %v3032 = vld [vmem:[%s201 + $0x5638] sm:$0xff]
        %v3033 = vld [vmem:[%s201 + $0x5640] sm:$0xff]
        %v3034 = vld [vmem:[%s201 + $0x5648] sm:$0xff]
        %v3035 = vld [vmem:[%s201 + $0x5650] sm:$0xff]
        %v3036 = vld [vmem:[%s201 + $0x5658] sm:$0xff]
        %v3037 = vld [vmem:[%s201 + $0x5660] sm:$0xff]
        %v3038 = vld [vmem:[%s201 + $0x5668] sm:$0xff]
        %v3039 = vld [vmem:[%s201 + $0x5670] sm:$0xff]
        %v3040 = vld [vmem:[%s201 + $0x5678] sm:$0xff]
        %v3041 = vld [vmem:[%s201 + $0x5680] sm:$0xff]
        %v3042 = vld [vmem:[%s201 + $0x5688] sm:$0xff]
        %v3043 = vld [vmem:[%s201 + $0x5690] sm:$0xff]
        %v3044 = vld [vmem:[%s201 + $0x5698] sm:$0xff]
        %v3045 = vld [vmem:[%s201 + $0x56a0] sm:$0xff]
        %v3046 = vld [vmem:[%s201 + $0x56a8] sm:$0xff]
        %v3047 = vld [vmem:[%s201 + $0x56b0] sm:$0xff]
        %v3048 = vld [vmem:[%s201 + $0x56b8] sm:$0xff]
        %v3049 = vld [vmem:[%s201 + $0x56c0] sm:$0xff]
        %v3050 = vld [vmem:[%s201 + $0x56c8] sm:$0xff]
        %v3051 = vld [vmem:[%s201 + $0x56d0] sm:$0xff]
        %v3052 = vld [vmem:[%s201 + $0x56d8] sm:$0xff]
        %v3053 = vld [vmem:[%s201 + $0x56e0] sm:$0xff]
        %v3054 = vld [vmem:[%s201 + $0x56e8] sm:$0xff]
        %v3055 = vld [vmem:[%s201 + $0x56f0] sm:$0xff]
        %v3056 = vld [vmem:[%s201 + $0x56f8] sm:$0xff]
        %v3057 = vld [vmem:[%s201 + $0x5700] sm:$0xff]
        %v3058 = vld [vmem:[%s201 + $0x5708] sm:$0xff]
        %v3059 = vld [vmem:[%s201 + $0x5710] sm:$0xff]
        %v3060 = vld [vmem:[%s201 + $0x5718] sm:$0xff]
        %v3061 = vld [vmem:[%s201 + $0x5720] sm:$0xff]
        %v3062 = vld [vmem:[%s201 + $0x5728] sm:$0xff]
        %v3063 = vld [vmem:[%s201 + $0x5730] sm:$0xff]
        %v3064 = vld [vmem:[%s201 + $0x5738] sm:$0xff]
        %v3065 = vld [vmem:[%s201 + $0x5740] sm:$0xff]
        %v3066 = vld [vmem:[%s201 + $0x5748] sm:$0xff]
        %v3067 = vld [vmem:[%s201 + $0x5750] sm:$0xff]
        %v3068 = vld [vmem:[%s201 + $0x5758] sm:$0xff]
        %v3069 = vld [vmem:[%s201 + $0x5760] sm:$0xff]
        %v3070 = vld [vmem:[%s201 + $0x5768] sm:$0xff]
        %v3071 = vld [vmem:[%s201 + $0x5770] sm:$0xff]
        %v3072 = vld [vmem:[%s201 + $0x5778] sm:$0xff]
        %v3073 = vld [vmem:[%s201 + $0x5780] sm:$0xff]
        %v3074 = vld [vmem:[%s201 + $0x5788] sm:$0xff]
        %v3075 = vld [vmem:[%s201 + $0x5790] sm:$0xff]
        %v3076 = vld [vmem:[%s201 + $0x5798] sm:$0xff]
        %v3077 = vld [vmem:[%s201 + $0x57a0] sm:$0xff]
        %v3078 = vld [vmem:[%s201 + $0x57a8] sm:$0xff]
        %v3079 = vld [vmem:[%s201 + $0x57b0] sm:$0xff]
        %v3080 = vld [vmem:[%s201 + $0x57b8] sm:$0xff]
        %v3081 = vld [vmem:[%s201 + $0x57c0] sm:$0xff]
        %v3082 = vld [vmem:[%s201 + $0x57c8] sm:$0xff]
        %v3083 = vld [vmem:[%s201 + $0x57d0] sm:$0xff]
        %v3084 = vld [vmem:[%s201 + $0x57d8] sm:$0xff]
        %v3085 = vld [vmem:[%s201 + $0x57e0] sm:$0xff]
        %v3086 = vld [vmem:[%s201 + $0x57e8] sm:$0xff]
        %v3087 = vld [vmem:[%s201 + $0x57f0] sm:$0xff]
        %v3088 = vld [vmem:[%s201 + $0x57f8] sm:$0xff]
        %v3089 = vld [vmem:[%s201 + $0x5800] sm:$0xff]
        %v3090 = vld [vmem:[%s201 + $0x5808] sm:$0xff]
        %v3091 = vld [vmem:[%s201 + $0x5810] sm:$0xff]
        %v3092 = vld [vmem:[%s201 + $0x5818] sm:$0xff]
        %v3093 = vld [vmem:[%s201 + $0x5820] sm:$0xff]
        %v3094 = vld [vmem:[%s201 + $0x5828] sm:$0xff]
        %v3095 = vld [vmem:[%s201 + $0x5830] sm:$0xff]
        %v3096 = vld [vmem:[%s201 + $0x5838] sm:$0xff]
        %v3097 = vld [vmem:[%s201 + $0x5840] sm:$0xff]
        %v3098 = vld [vmem:[%s201 + $0x5848] sm:$0xff]
        %v3099 = vld [vmem:[%s201 + $0x5850] sm:$0xff]
        %v3100 = vld [vmem:[%s201 + $0x5858] sm:$0xff]
        %v3101 = vld [vmem:[%s201 + $0x5860] sm:$0xff]
        %v3102 = vld [vmem:[%s201 + $0x5868] sm:$0xff]
        %v3103 = vld [vmem:[%s201 + $0x5870] sm:$0xff]
        %v3104 = vld [vmem:[%s201 + $0x5878] sm:$0xff]
        %v3105 = vld [vmem:[%s201 + $0x5880] sm:$0xff]
        %v3106 = vld [vmem:[%s201 + $0x5888] sm:$0xff]
        %v3107 = vld [vmem:[%s201 + $0x5890] sm:$0xff]
        %v3108 = vld [vmem:[%s201 + $0x5898] sm:$0xff]
        %v3109 = vld [vmem:[%s201 + $0x58a0] sm:$0xff]
        %v3110 = vld [vmem:[%s201 + $0x58a8] sm:$0xff]
        %v3111 = vld [vmem:[%s201 + $0x58b0] sm:$0xff]
        %v3112 = vld [vmem:[%s201 + $0x58b8] sm:$0xff]
        %v3113 = vld [vmem:[%s201 + $0x58c0] sm:$0xff]
        %v3114 = vld [vmem:[%s201 + $0x58c8] sm:$0xff]
        %v3115 = vld [vmem:[%s201 + $0x58d0] sm:$0xff]
        %v3116 = vld [vmem:[%s201 + $0x58d8] sm:$0xff]
        %v3117 = vld [vmem:[%s201 + $0x58e0] sm:$0xff]
        %v3118 = vld [vmem:[%s201 + $0x58e8] sm:$0xff]
        %v3119 = vld [vmem:[%s201 + $0x58f0] sm:$0xff]
        %v3120 = vld [vmem:[%s201 + $0x58f8] sm:$0xff]
        %v3121 = vld [vmem:[%s201 + $0x5900] sm:$0xff]
        %v3122 = vld [vmem:[%s201 + $0x5908] sm:$0xff]
        %v3123 = vld [vmem:[%s201 + $0x5910] sm:$0xff]
        %v3124 = vld [vmem:[%s201 + $0x5918] sm:$0xff]
        %v3125 = vld [vmem:[%s201 + $0x5920] sm:$0xff]
        %v3126 = vld [vmem:[%s201 + $0x5928] sm:$0xff]
        %v3127 = vld [vmem:[%s201 + $0x5930] sm:$0xff]
        %v3128 = vld [vmem:[%s201 + $0x5938] sm:$0xff]
        %v3129 = vld [vmem:[%s201 + $0x5940] sm:$0xff]
        %v3130 = vld [vmem:[%s201 + $0x5948] sm:$0xff]
        %v3131 = vld [vmem:[%s201 + $0x5950] sm:$0xff]
        %v3132 = vld [vmem:[%s201 + $0x5958] sm:$0xff]
        %v3133 = vld [vmem:[%s201 + $0x5960] sm:$0xff]
        %v3134 = vld [vmem:[%s201 + $0x5968] sm:$0xff]
        %v3135 = vld [vmem:[%s201 + $0x5970] sm:$0xff]
        %v3136 = vld [vmem:[%s201 + $0x5978] sm:$0xff]
        %v3137 = vld [vmem:[%s201 + $0x5980] sm:$0xff]
        %v3138 = vld [vmem:[%s201 + $0x5988] sm:$0xff]
        %v3139 = vld [vmem:[%s201 + $0x5990] sm:$0xff]
        %v3140 = vld [vmem:[%s201 + $0x5998] sm:$0xff]
        %v3141 = vld [vmem:[%s201 + $0x59a0] sm:$0xff]
        %v3142 = vld [vmem:[%s201 + $0x59a8] sm:$0xff]
        %v3143 = vld [vmem:[%s201 + $0x59b0] sm:$0xff]
        %v3144 = vld [vmem:[%s201 + $0x59b8] sm:$0xff]
        %v3145 = vld [vmem:[%s201 + $0x59c0] sm:$0xff]
        %v3146 = vld [vmem:[%s201 + $0x59c8] sm:$0xff]
        %v3147 = vld [vmem:[%s201 + $0x59d0] sm:$0xff]
        %v3148 = vld [vmem:[%s201 + $0x59d8] sm:$0xff]
        %v3149 = vld [vmem:[%s201 + $0x59e0] sm:$0xff]
        %v3150 = vld [vmem:[%s201 + $0x59e8] sm:$0xff]
        %v3151 = vld [vmem:[%s201 + $0x59f0] sm:$0xff]
        %v3152 = vld [vmem:[%s201 + $0x59f8] sm:$0xff]
        %v3153 = vld [vmem:[%s201 + $0x5a00] sm:$0xff]
        %v3154 = vld [vmem:[%s201 + $0x5a08] sm:$0xff]
        %v3155 = vld [vmem:[%s201 + $0x5a10] sm:$0xff]
        %v3156 = vld [vmem:[%s201 + $0x5a18] sm:$0xff]
        %v3157 = vld [vmem:[%s201 + $0x5a20] sm:$0xff]
        %v3158 = vld [vmem:[%s201 + $0x5a28] sm:$0xff]
        %v3159 = vld [vmem:[%s201 + $0x5a30] sm:$0xff]
        %v3160 = vld [vmem:[%s201 + $0x5a38] sm:$0xff]
        %v3161 = vld [vmem:[%s201 + $0x5a40] sm:$0xff]
        %v3162 = vld [vmem:[%s201 + $0x5a48] sm:$0xff]
        %v3163 = vld [vmem:[%s201 + $0x5a50] sm:$0xff]
        %v3164 = vld [vmem:[%s201 + $0x5a58] sm:$0xff]
        %v3165 = vld [vmem:[%s201 + $0x5a60] sm:$0xff]
        %v3166 = vld [vmem:[%s201 + $0x5a68] sm:$0xff]
        %v3167 = vld [vmem:[%s201 + $0x5a70] sm:$0xff]
        %v3168 = vld [vmem:[%s201 + $0x5a78] sm:$0xff]
        %v3169 = vld [vmem:[%s201 + $0x5a80] sm:$0xff]
        %v3170 = vld [vmem:[%s201 + $0x5a88] sm:$0xff]
        %v3171 = vld [vmem:[%s201 + $0x5a90] sm:$0xff]
        %v3172 = vld [vmem:[%s201 + $0x5a98] sm:$0xff]
        %v3173 = vld [vmem:[%s201 + $0x5aa0] sm:$0xff]
        %v3174 = vld [vmem:[%s201 + $0x5aa8] sm:$0xff]
        %v3175 = vld [vmem:[%s201 + $0x5ab0] sm:$0xff]
        %v3176 = vld [vmem:[%s201 + $0x5ab8] sm:$0xff]
        %v3177 = vld [vmem:[%s201 + $0x5ac0] sm:$0xff]
        %v3178 = vld [vmem:[%s201 + $0x5ac8] sm:$0xff]
        %v3179 = vld [vmem:[%s201 + $0x5ad0] sm:$0xff]
        %v3180 = vld [vmem:[%s201 + $0x5ad8] sm:$0xff]
        %v3181 = vld [vmem:[%s201 + $0x5ae0] sm:$0xff]
        %v3182 = vld [vmem:[%s201 + $0x5ae8] sm:$0xff]
        %v3183 = vld [vmem:[%s201 + $0x5af0] sm:$0xff]
        %v3184 = vld [vmem:[%s201 + $0x5af8] sm:$0xff]
        %v3185 = vld [vmem:[%s201 + $0x5b00] sm:$0xff]
        %v3186 = vld [vmem:[%s201 + $0x5b08] sm:$0xff]
        %v3187 = vld [vmem:[%s201 + $0x5b10] sm:$0xff]
        %v3188 = vld [vmem:[%s201 + $0x5b18] sm:$0xff]
        %v3189 = vld [vmem:[%s201 + $0x5b20] sm:$0xff]
        %v3190 = vld [vmem:[%s201 + $0x5b28] sm:$0xff]
        %v3191 = vld [vmem:[%s201 + $0x5b30] sm:$0xff]
        %v3192 = vld [vmem:[%s201 + $0x5b38] sm:$0xff]
        %v3193 = vld [vmem:[%s201 + $0x5b40] sm:$0xff]
        %v3194 = vld [vmem:[%s201 + $0x5b48] sm:$0xff]
        %v3195 = vld [vmem:[%s201 + $0x5b50] sm:$0xff]
        %v3196 = vld [vmem:[%s201 + $0x5b58] sm:$0xff]
        %v3197 = vld [vmem:[%s201 + $0x5b60] sm:$0xff]
        %v3198 = vld [vmem:[%s201 + $0x5b68] sm:$0xff]
        %v3199 = vld [vmem:[%s201 + $0x5b70] sm:$0xff]
        %v3200 = vld [vmem:[%s201 + $0x5b78] sm:$0xff]
        %v3201 = vld [vmem:[%s201 + $0x5b80] sm:$0xff]
        %v3202 = vld [vmem:[%s201 + $0x5b88] sm:$0xff]
        %v3203 = vld [vmem:[%s201 + $0x5b90] sm:$0xff]
        %v3204 = vld [vmem:[%s201 + $0x5b98] sm:$0xff]
        %v3205 = vld [vmem:[%s201 + $0x5ba0] sm:$0xff]
        %v3206 = vld [vmem:[%s201 + $0x5ba8] sm:$0xff]
        %v3207 = vld [vmem:[%s201 + $0x5bb0] sm:$0xff]
        %v3208 = vld [vmem:[%s201 + $0x5bb8] sm:$0xff]
        %v3209 = vld [vmem:[%s201 + $0x5bc0] sm:$0xff]
        %v3210 = vld [vmem:[%s201 + $0x5bc8] sm:$0xff]
        %v3211 = vld [vmem:[%s201 + $0x5bd0] sm:$0xff]
        %v3212 = vld [vmem:[%s201 + $0x5bd8] sm:$0xff]
        %v3213 = vld [vmem:[%s201 + $0x5be0] sm:$0xff]
        %v3214 = vld [vmem:[%s201 + $0x5be8] sm:$0xff]
        %v3215 = vld [vmem:[%s201 + $0x5bf0] sm:$0xff]
        %v3216 = vld [vmem:[%s201 + $0x5bf8] sm:$0xff]
        %v3217 = vld [vmem:[%s201 + $0x5c00] sm:$0xff]
        %v3218 = vld [vmem:[%s201 + $0x5c08] sm:$0xff]
        %v3219 = vld [vmem:[%s201 + $0x5c10] sm:$0xff]
        %v3220 = vld [vmem:[%s201 + $0x5c18] sm:$0xff]
        %v3221 = vld [vmem:[%s201 + $0x5c20] sm:$0xff]
        %v3222 = vld [vmem:[%s201 + $0x5c28] sm:$0xff]
        %v3223 = vld [vmem:[%s201 + $0x5c30] sm:$0xff]
        %v3224 = vld [vmem:[%s201 + $0x5c38] sm:$0xff]
        %v3225 = vld [vmem:[%s201 + $0x5c40] sm:$0xff]
        %v3226 = vld [vmem:[%s201 + $0x5c48] sm:$0xff]
        %v3227 = vld [vmem:[%s201 + $0x5c50] sm:$0xff]
        %v3228 = vld [vmem:[%s201 + $0x5c58] sm:$0xff]
        %v3229 = vld [vmem:[%s201 + $0x5c60] sm:$0xff]
        %v3230 = vld [vmem:[%s201 + $0x5c68] sm:$0xff]
        %v3231 = vld [vmem:[%s201 + $0x5c70] sm:$0xff]
        %v3232 = vld [vmem:[%s201 + $0x5c78] sm:$0xff]
        %v3233 = vld [vmem:[%s201 + $0x5c80] sm:$0xff]
        %v3234 = vld [vmem:[%s201 + $0x5c88] sm:$0xff]
        %v3235 = vld [vmem:[%s201 + $0x5c90] sm:$0xff]
        %v3236 = vld [vmem:[%s201 + $0x5c98] sm:$0xff]
        %v3237 = vld [vmem:[%s201 + $0x5ca0] sm:$0xff]
        %v3238 = vld [vmem:[%s201 + $0x5ca8] sm:$0xff]
        %v3239 = vld [vmem:[%s201 + $0x5cb0] sm:$0xff]
        %v3240 = vld [vmem:[%s201 + $0x5cb8] sm:$0xff]
        %v3241 = vld [vmem:[%s201 + $0x5cc0] sm:$0xff]
        %v3242 = vld [vmem:[%s201 + $0x5cc8] sm:$0xff]
        %v3243 = vld [vmem:[%s201 + $0x5cd0] sm:$0xff]
        %v3244 = vld [vmem:[%s201 + $0x5cd8] sm:$0xff]
        %v3245 = vld [vmem:[%s201 + $0x5ce0] sm:$0xff]
        %v3246 = vld [vmem:[%s201 + $0x5ce8] sm:$0xff]
        %v3247 = vld [vmem:[%s201 + $0x5cf0] sm:$0xff]
        %v3248 = vld [vmem:[%s201 + $0x5cf8] sm:$0xff]
        %v3249 = vld [vmem:[%s201 + $0x5d00] sm:$0xff]
        %v3250 = vld [vmem:[%s201 + $0x5d08] sm:$0xff]
        %v3251 = vld [vmem:[%s201 + $0x5d10] sm:$0xff]
        %v3252 = vld [vmem:[%s201 + $0x5d18] sm:$0xff]
        %v3253 = vld [vmem:[%s201 + $0x5d20] sm:$0xff]
        %v3254 = vld [vmem:[%s201 + $0x5d28] sm:$0xff]
        %v3255 = vld [vmem:[%s201 + $0x5d30] sm:$0xff]
        %v3256 = vld [vmem:[%s201 + $0x5d38] sm:$0xff]
        %v3257 = vld [vmem:[%s201 + $0x5d40] sm:$0xff]
        %v3258 = vld [vmem:[%s201 + $0x5d48] sm:$0xff]
        %v3259 = vld [vmem:[%s201 + $0x5d50] sm:$0xff]
        %v3260 = vld [vmem:[%s201 + $0x5d58] sm:$0xff]
        %v3261 = vld [vmem:[%s201 + $0x5d60] sm:$0xff]
        %v3262 = vld [vmem:[%s201 + $0x5d68] sm:$0xff]
        %v3263 = vld [vmem:[%s201 + $0x5d70] sm:$0xff]
        %v3264 = vld [vmem:[%s201 + $0x5d78] sm:$0xff]
        %v3265 = vld [vmem:[%s201 + $0x5d80] sm:$0xff]
        %v3266 = vld [vmem:[%s201 + $0x5d88] sm:$0xff]
        %v3267 = vld [vmem:[%s201 + $0x5d90] sm:$0xff]
        %v3268 = vld [vmem:[%s201 + $0x5d98] sm:$0xff]
        %v3269 = vld [vmem:[%s201 + $0x5da0] sm:$0xff]
        %v3270 = vld [vmem:[%s201 + $0x5da8] sm:$0xff]
        %v3271 = vld [vmem:[%s201 + $0x5db0] sm:$0xff]
        %v3272 = vld [vmem:[%s201 + $0x5db8] sm:$0xff]
        %v3273 = vld [vmem:[%s201 + $0x5dc0] sm:$0xff]
        %v3274 = vld [vmem:[%s201 + $0x5dc8] sm:$0xff]
        %v3275 = vld [vmem:[%s201 + $0x5dd0] sm:$0xff]
        %v3276 = vld [vmem:[%s201 + $0x5dd8] sm:$0xff]
        %v3277 = vld [vmem:[%s201 + $0x5de0] sm:$0xff]
        %v3278 = vld [vmem:[%s201 + $0x5de8] sm:$0xff]
        %v3279 = vld [vmem:[%s201 + $0x5df0] sm:$0xff]
        %v3280 = vld [vmem:[%s201 + $0x5df8] sm:$0xff]
        %v3281 = vld [vmem:[%s201 + $0x5e00] sm:$0xff]
        %v3282 = vld [vmem:[%s201 + $0x5e08] sm:$0xff]
        %v3283 = vld [vmem:[%s201 + $0x5e10] sm:$0xff]
        %v3284 = vld [vmem:[%s201 + $0x5e18] sm:$0xff]
        %v3285 = vld [vmem:[%s201 + $0x5e20] sm:$0xff]
        %v3286 = vld [vmem:[%s201 + $0x5e28] sm:$0xff]
        %v3287 = vld [vmem:[%s201 + $0x5e30] sm:$0xff]
        %v3288 = vld [vmem:[%s201 + $0x5e38] sm:$0xff]
        %v3289 = vld [vmem:[%s201 + $0x5e40] sm:$0xff]
        %v3290 = vld [vmem:[%s201 + $0x5e48] sm:$0xff]
        %v3291 = vld [vmem:[%s201 + $0x5e50] sm:$0xff]
        %v3292 = vld [vmem:[%s201 + $0x5e58] sm:$0xff]
        %v3293 = vld [vmem:[%s201 + $0x5e60] sm:$0xff]
        %v3294 = vld [vmem:[%s201 + $0x5e68] sm:$0xff]
        %v3295 = vld [vmem:[%s201 + $0x5e70] sm:$0xff]
        %v3296 = vld [vmem:[%s201 + $0x5e78] sm:$0xff]
        %v3297 = vld [vmem:[%s201 + $0x5e80] sm:$0xff]
        %v3298 = vld [vmem:[%s201 + $0x5e88] sm:$0xff]
        %v3299 = vld [vmem:[%s201 + $0x5e90] sm:$0xff]
        %v3300 = vld [vmem:[%s201 + $0x5e98] sm:$0xff]
        %v3301 = vld [vmem:[%s201 + $0x5ea0] sm:$0xff]
        %v3302 = vld [vmem:[%s201 + $0x5ea8] sm:$0xff]
        %v3303 = vld [vmem:[%s201 + $0x5eb0] sm:$0xff]
        %v3304 = vld [vmem:[%s201 + $0x5eb8] sm:$0xff]
        %v3305 = vld [vmem:[%s201 + $0x5ec0] sm:$0xff]
        %v3306 = vld [vmem:[%s201 + $0x5ec8] sm:$0xff]
        %v3307 = vld [vmem:[%s201 + $0x5ed0] sm:$0xff]
        %v3308 = vld [vmem:[%s201 + $0x5ed8] sm:$0xff]
        %v3309 = vld [vmem:[%s201 + $0x5ee0] sm:$0xff]
        %v3310 = vld [vmem:[%s201 + $0x5ee8] sm:$0xff]
        %v3311 = vld [vmem:[%s201 + $0x5ef0] sm:$0xff]
        %v3312 = vld [vmem:[%s201 + $0x5ef8] sm:$0xff]
        %v3313 = vld [vmem:[%s201 + $0x5f00] sm:$0xff]
        %v3314 = vld [vmem:[%s201 + $0x5f08] sm:$0xff]
        %v3315 = vld [vmem:[%s201 + $0x5f10] sm:$0xff]
        %v3316 = vld [vmem:[%s201 + $0x5f18] sm:$0xff]
        %v3317 = vld [vmem:[%s201 + $0x5f20] sm:$0xff]
        %v3318 = vld [vmem:[%s201 + $0x5f28] sm:$0xff]
        %v3319 = vld [vmem:[%s201 + $0x5f30] sm:$0xff]
        %v3320 = vld [vmem:[%s201 + $0x5f38] sm:$0xff]
        %v3321 = vld [vmem:[%s201 + $0x5f40] sm:$0xff]
        %v3322 = vld [vmem:[%s201 + $0x5f48] sm:$0xff]
        %v3323 = vld [vmem:[%s201 + $0x5f50] sm:$0xff]
        %v3324 = vld [vmem:[%s201 + $0x5f58] sm:$0xff]
        %v3325 = vld [vmem:[%s201 + $0x5f60] sm:$0xff]
        %v3326 = vld [vmem:[%s201 + $0x5f68] sm:$0xff]
        %v3327 = vld [vmem:[%s201 + $0x5f70] sm:$0xff]
        %v3328 = vld [vmem:[%s201 + $0x5f78] sm:$0xff]
        %v3329 = vld [vmem:[%s201 + $0x5f80] sm:$0xff]
        %v3330 = vld [vmem:[%s201 + $0x5f88] sm:$0xff]
        %v3331 = vld [vmem:[%s201 + $0x5f90] sm:$0xff]
        %v3332 = vld [vmem:[%s201 + $0x5f98] sm:$0xff]
        %v3333 = vld [vmem:[%s201 + $0x5fa0] sm:$0xff]
        %v3334 = vld [vmem:[%s201 + $0x5fa8] sm:$0xff]
        %v3335 = vld [vmem:[%s201 + $0x5fb0] sm:$0xff]
        %v3336 = vld [vmem:[%s201 + $0x5fb8] sm:$0xff]
        %v3337 = vld [vmem:[%s201 + $0x5fc0] sm:$0xff]
        %v3338 = vld [vmem:[%s201 + $0x5fc8] sm:$0xff]
        %v3339 = vld [vmem:[%s201 + $0x5fd0] sm:$0xff]
        %v3340 = vld [vmem:[%s201 + $0x5fd8] sm:$0xff]
        %v3341 = vld [vmem:[%s201 + $0x5fe0] sm:$0xff]
        %v3342 = vld [vmem:[%s201 + $0x5fe8] sm:$0xff]
        %v3343 = vld [vmem:[%s201 + $0x5ff0] sm:$0xff]
        %v3344 = vld [vmem:[%s201 + $0x5ff8] sm:$0xff]
        %v3345 = vld [vmem:[%s201 + $0x6000] sm:$0xff]
        %v3346 = vld [vmem:[%s201 + $0x6008] sm:$0xff]
        %v3347 = vld [vmem:[%s201 + $0x6010] sm:$0xff]
        %v3348 = vld [vmem:[%s201 + $0x6018] sm:$0xff]
        %v3349 = vld [vmem:[%s201 + $0x6020] sm:$0xff]
        %v3350 = vld [vmem:[%s201 + $0x6028] sm:$0xff]
        %v3351 = vld [vmem:[%s201 + $0x6030] sm:$0xff]
        %v3352 = vld [vmem:[%s201 + $0x6038] sm:$0xff]
        %v3353 = vld [vmem:[%s201 + $0x6040] sm:$0xff]
        %v3354 = vld [vmem:[%s201 + $0x6048] sm:$0xff]
        %v3355 = vld [vmem:[%s201 + $0x6050] sm:$0xff]
        %v3356 = vld [vmem:[%s201 + $0x6058] sm:$0xff]
        %v3357 = vld [vmem:[%s201 + $0x6060] sm:$0xff]
        %v3358 = vld [vmem:[%s201 + $0x6068] sm:$0xff]
        %v3359 = vld [vmem:[%s201 + $0x6070] sm:$0xff]
        %v3360 = vld [vmem:[%s201 + $0x6078] sm:$0xff]
        %v3361 = vld [vmem:[%s201 + $0x6080] sm:$0xff]
        %v3362 = vld [vmem:[%s201 + $0x6088] sm:$0xff]
        %v3363 = vld [vmem:[%s201 + $0x6090] sm:$0xff]
        %v3364 = vld [vmem:[%s201 + $0x6098] sm:$0xff]
        %v3365 = vld [vmem:[%s201 + $0x60a0] sm:$0xff]
        %v3366 = vld [vmem:[%s201 + $0x60a8] sm:$0xff]
        %v3367 = vld [vmem:[%s201 + $0x60b0] sm:$0xff]
        %v3368 = vld [vmem:[%s201 + $0x60b8] sm:$0xff]
        %v3369 = vld [vmem:[%s201 + $0x60c0] sm:$0xff]
        %v3370 = vld [vmem:[%s201 + $0x60c8] sm:$0xff]
        %v3371 = vld [vmem:[%s201 + $0x60d0] sm:$0xff]
        %v3372 = vld [vmem:[%s201 + $0x60d8] sm:$0xff]
        %v3373 = vld [vmem:[%s201 + $0x60e0] sm:$0xff]
        %v3374 = vld [vmem:[%s201 + $0x60e8] sm:$0xff]
        %v3375 = vld [vmem:[%s201 + $0x60f0] sm:$0xff]
        %v3376 = vld [vmem:[%s201 + $0x60f8] sm:$0xff]
        %v3377 = vld [vmem:[%s201 + $0x6100] sm:$0xff]
        %v3378 = vld [vmem:[%s201 + $0x6108] sm:$0xff]
        %v3379 = vld [vmem:[%s201 + $0x6110] sm:$0xff]
        %v3380 = vld [vmem:[%s201 + $0x6118] sm:$0xff]
        %v3381 = vld [vmem:[%s201 + $0x6120] sm:$0xff]
        %v3382 = vld [vmem:[%s201 + $0x6128] sm:$0xff]
        %v3383 = vld [vmem:[%s201 + $0x6130] sm:$0xff]
        %v3384 = vld [vmem:[%s201 + $0x6138] sm:$0xff]
        %v3385 = vld [vmem:[%s201 + $0x6140] sm:$0xff]
        %v3386 = vld [vmem:[%s201 + $0x6148] sm:$0xff]
        %v3387 = vld [vmem:[%s201 + $0x6150] sm:$0xff]
        %v3388 = vld [vmem:[%s201 + $0x6158] sm:$0xff]
        %v3389 = vld [vmem:[%s201 + $0x6160] sm:$0xff]
        %v3390 = vld [vmem:[%s201 + $0x6168] sm:$0xff]
        %v3391 = vld [vmem:[%s201 + $0x6170] sm:$0xff]
        %v3392 = vld [vmem:[%s201 + $0x6178] sm:$0xff]
        %v3393 = vld [vmem:[%s201 + $0x6180] sm:$0xff]
        %v3394 = vld [vmem:[%s201 + $0x6188] sm:$0xff]
        %v3395 = vld [vmem:[%s201 + $0x6190] sm:$0xff]
        %v3396 = vld [vmem:[%s201 + $0x6198] sm:$0xff]
        %v3397 = vld [vmem:[%s201 + $0x61a0] sm:$0xff]
        %v3398 = vld [vmem:[%s201 + $0x61a8] sm:$0xff]
        %v3399 = vld [vmem:[%s201 + $0x61b0] sm:$0xff]
        %v3400 = vld [vmem:[%s201 + $0x61b8] sm:$0xff]
        %v3401 = vld [vmem:[%s201 + $0x61c0] sm:$0xff]
        %v3402 = vld [vmem:[%s201 + $0x61c8] sm:$0xff]
        %v3403 = vld [vmem:[%s201 + $0x61d0] sm:$0xff]
        %v3404 = vld [vmem:[%s201 + $0x61d8] sm:$0xff]
        %v3405 = vld [vmem:[%s201 + $0x61e0] sm:$0xff]
        %v3406 = vld [vmem:[%s201 + $0x61e8] sm:$0xff]
        %v3407 = vld [vmem:[%s201 + $0x61f0] sm:$0xff]
        %v3408 = vld [vmem:[%s201 + $0x61f8] sm:$0xff]
        %v3409 = vld [vmem:[%s201 + $0x6200] sm:$0xff]
        %v3410 = vld [vmem:[%s201 + $0x6208] sm:$0xff]
        %v3411 = vld [vmem:[%s201 + $0x6210] sm:$0xff]
        %v3412 = vld [vmem:[%s201 + $0x6218] sm:$0xff]
        %v3413 = vld [vmem:[%s201 + $0x6220] sm:$0xff]
        %v3414 = vld [vmem:[%s201 + $0x6228] sm:$0xff]
        %v3415 = vld [vmem:[%s201 + $0x6230] sm:$0xff]
        %v3416 = vld [vmem:[%s201 + $0x6238] sm:$0xff]
        %v3417 = vld [vmem:[%s201 + $0x6240] sm:$0xff]
        %v3418 = vld [vmem:[%s201 + $0x6248] sm:$0xff]
        %v3419 = vld [vmem:[%s201 + $0x6250] sm:$0xff]
        %v3420 = vld [vmem:[%s201 + $0x6258] sm:$0xff]
        %v3421 = vld [vmem:[%s201 + $0x6260] sm:$0xff]
        %v3422 = vld [vmem:[%s201 + $0x6268] sm:$0xff]
        %v3423 = vld [vmem:[%s201 + $0x6270] sm:$0xff]
        %v3424 = vld [vmem:[%s201 + $0x6278] sm:$0xff]
        %v3425 = vld [vmem:[%s201 + $0x6280] sm:$0xff]
        %v3426 = vld [vmem:[%s201 + $0x6288] sm:$0xff]
        %v3427 = vld [vmem:[%s201 + $0x6290] sm:$0xff]
        %v3428 = vld [vmem:[%s201 + $0x6298] sm:$0xff]
        %v3429 = vld [vmem:[%s201 + $0x62a0] sm:$0xff]
        %v3430 = vld [vmem:[%s201 + $0x62a8] sm:$0xff]
        %v3431 = vld [vmem:[%s201 + $0x62b0] sm:$0xff]
        %v3432 = vld [vmem:[%s201 + $0x62b8] sm:$0xff]
        %v3433 = vld [vmem:[%s201 + $0x62c0] sm:$0xff]
        %v3434 = vld [vmem:[%s201 + $0x62c8] sm:$0xff]
        %v3435 = vld [vmem:[%s201 + $0x62d0] sm:$0xff]
        %v3436 = vld [vmem:[%s201 + $0x62d8] sm:$0xff]
        %v3437 = vld [vmem:[%s201 + $0x62e0] sm:$0xff]
        %v3438 = vld [vmem:[%s201 + $0x62e8] sm:$0xff]
        %v3439 = vld [vmem:[%s201 + $0x62f0] sm:$0xff]
        %v3440 = vld [vmem:[%s201 + $0x62f8] sm:$0xff]
        %v3441 = vld [vmem:[%s201 + $0x6300] sm:$0xff]
        %v3442 = vld [vmem:[%s201 + $0x6308] sm:$0xff]
        %v3443 = vld [vmem:[%s201 + $0x6310] sm:$0xff]
        %v3444 = vld [vmem:[%s201 + $0x6318] sm:$0xff]
        %v3445 = vld [vmem:[%s201 + $0x6320] sm:$0xff]
        %v3446 = vld [vmem:[%s201 + $0x6328] sm:$0xff]
        %v3447 = vld [vmem:[%s201 + $0x6330] sm:$0xff]
        %v3448 = vld [vmem:[%s201 + $0x6338] sm:$0xff]
        %v3449 = vld [vmem:[%s201 + $0x6340] sm:$0xff]
        %v3450 = vld [vmem:[%s201 + $0x6348] sm:$0xff]
        %v3451 = vld [vmem:[%s201 + $0x6350] sm:$0xff]
        %v3452 = vld [vmem:[%s201 + $0x6358] sm:$0xff]
        %v3453 = vld [vmem:[%s201 + $0x6360] sm:$0xff]
        %v3454 = vld [vmem:[%s201 + $0x6368] sm:$0xff]
        %v3455 = vld [vmem:[%s201 + $0x6370] sm:$0xff]
        %v3456 = vld [vmem:[%s201 + $0x6378] sm:$0xff]
        %v3457 = vld [vmem:[%s201 + $0x6380] sm:$0xff]
        %v3458 = vld [vmem:[%s201 + $0x6388] sm:$0xff]
        %v3459 = vld [vmem:[%s201 + $0x6390] sm:$0xff]
        %v3460 = vld [vmem:[%s201 + $0x6398] sm:$0xff]
        %v3461 = vld [vmem:[%s201 + $0x63a0] sm:$0xff]
        %v3462 = vld [vmem:[%s201 + $0x63a8] sm:$0xff]
        %v3463 = vld [vmem:[%s201 + $0x63b0] sm:$0xff]
        %v3464 = vld [vmem:[%s201 + $0x63b8] sm:$0xff]
        %v3465 = vld [vmem:[%s201 + $0x63c0] sm:$0xff]
        %v3466 = vld [vmem:[%s201 + $0x63c8] sm:$0xff]
        %v3467 = vld [vmem:[%s201 + $0x63d0] sm:$0xff]
        %v3468 = vld [vmem:[%s201 + $0x63d8] sm:$0xff]
        %v3469 = vld [vmem:[%s201 + $0x63e0] sm:$0xff]
        %v3470 = vld [vmem:[%s201 + $0x63e8] sm:$0xff]
        %v3471 = vld [vmem:[%s201 + $0x63f0] sm:$0xff]
        %v3472 = vld [vmem:[%s201 + $0x63f8] sm:$0xff]
        %v3473 = vld [vmem:[%s201 + $0x6400] sm:$0xff]
        %v3474 = vld [vmem:[%s201 + $0x6408] sm:$0xff]
        %v3475 = vld [vmem:[%s201 + $0x6410] sm:$0xff]
        %v3476 = vld [vmem:[%s201 + $0x6418] sm:$0xff]
        %v3477 = vld [vmem:[%s201 + $0x6420] sm:$0xff]
        %v3478 = vld [vmem:[%s201 + $0x6428] sm:$0xff]
        %v3479 = vld [vmem:[%s201 + $0x6430] sm:$0xff]
        %v3480 = vld [vmem:[%s201 + $0x6438] sm:$0xff]
        %v3481 = vld [vmem:[%s201 + $0x6440] sm:$0xff]
        %v3482 = vld [vmem:[%s201 + $0x6448] sm:$0xff]
        %v3483 = vld [vmem:[%s201 + $0x6450] sm:$0xff]
        %v3484 = vld [vmem:[%s201 + $0x6458] sm:$0xff]
        %v3485 = vld [vmem:[%s201 + $0x6460] sm:$0xff]
        %v3486 = vld [vmem:[%s201 + $0x6468] sm:$0xff]
        %v3487 = vld [vmem:[%s201 + $0x6470] sm:$0xff]
        %v3488 = vld [vmem:[%s201 + $0x6478] sm:$0xff]
        %v3489 = vld [vmem:[%s201 + $0x6480] sm:$0xff]
        %v3490 = vld [vmem:[%s201 + $0x6488] sm:$0xff]
        %v3491 = vld [vmem:[%s201 + $0x6490] sm:$0xff]
        %v3492 = vld [vmem:[%s201 + $0x6498] sm:$0xff]
        %v3493 = vld [vmem:[%s201 + $0x64a0] sm:$0xff]
        %v3494 = vld [vmem:[%s201 + $0x64a8] sm:$0xff]
        %v3495 = vld [vmem:[%s201 + $0x64b0] sm:$0xff]
        %v3496 = vld [vmem:[%s201 + $0x64b8] sm:$0xff]
        %v3497 = vld [vmem:[%s201 + $0x64c0] sm:$0xff]
        %v3498 = vld [vmem:[%s201 + $0x64c8] sm:$0xff]
        %v3499 = vld [vmem:[%s201 + $0x64d0] sm:$0xff]
        %v3500 = vld [vmem:[%s201 + $0x64d8] sm:$0xff]
        %v3501 = vld [vmem:[%s201 + $0x64e0] sm:$0xff]
        %v3502 = vld [vmem:[%s201 + $0x64e8] sm:$0xff]
        %v3503 = vld [vmem:[%s201 + $0x64f0] sm:$0xff]
        %v3504 = vld [vmem:[%s201 + $0x64f8] sm:$0xff]
        %v3505 = vld [vmem:[%s201 + $0x6500] sm:$0xff]
        %v3506 = vld [vmem:[%s201 + $0x6508] sm:$0xff]
        %v3507 = vld [vmem:[%s201 + $0x6510] sm:$0xff]
        %v3508 = vld [vmem:[%s201 + $0x6518] sm:$0xff]
        %v3509 = vld [vmem:[%s201 + $0x6520] sm:$0xff]
        %v3510 = vld [vmem:[%s201 + $0x6528] sm:$0xff]
        %v3511 = vld [vmem:[%s201 + $0x6530] sm:$0xff]
        %v3512 = vld [vmem:[%s201 + $0x6538] sm:$0xff]
        %v3513 = vld [vmem:[%s201 + $0x6540] sm:$0xff]
        %v3514 = vld [vmem:[%s201 + $0x6548] sm:$0xff]
        %v3515 = vld [vmem:[%s201 + $0x6550] sm:$0xff]
        %v3516 = vld [vmem:[%s201 + $0x6558] sm:$0xff]
        %v3517 = vld [vmem:[%s201 + $0x6560] sm:$0xff]
        %v3518 = vld [vmem:[%s201 + $0x6568] sm:$0xff]
        %v3519 = vld [vmem:[%s201 + $0x6570] sm:$0xff]
        %v3520 = vld [vmem:[%s201 + $0x6578] sm:$0xff]
        %v3521 = vld [vmem:[%s201 + $0x6580] sm:$0xff]
        %v3522 = vld [vmem:[%s201 + $0x6588] sm:$0xff]
        %v3523 = vld [vmem:[%s201 + $0x6590] sm:$0xff]
        %v3524 = vld [vmem:[%s201 + $0x6598] sm:$0xff]
        %v3525 = vld [vmem:[%s201 + $0x65a0] sm:$0xff]
        %v3526 = vld [vmem:[%s201 + $0x65a8] sm:$0xff]
        %v3527 = vld [vmem:[%s201 + $0x65b0] sm:$0xff]
        %v3528 = vld [vmem:[%s201 + $0x65b8] sm:$0xff]
        %v3529 = vld [vmem:[%s201 + $0x65c0] sm:$0xff]
        %v3530 = vld [vmem:[%s201 + $0x65c8] sm:$0xff]
        %v3531 = vld [vmem:[%s201 + $0x65d0] sm:$0xff]
        %v3532 = vld [vmem:[%s201 + $0x65d8] sm:$0xff]
        %v3533 = vld [vmem:[%s201 + $0x65e0] sm:$0xff]
        %v3534 = vld [vmem:[%s201 + $0x65e8] sm:$0xff]
        %v3535 = vld [vmem:[%s201 + $0x65f0] sm:$0xff]
        %v3536 = vld [vmem:[%s201 + $0x65f8] sm:$0xff]
        %v3537 = vld [vmem:[%s201 + $0x6600] sm:$0xff]
        %v3538 = vld [vmem:[%s201 + $0x6608] sm:$0xff]
        %v3539 = vld [vmem:[%s201 + $0x6610] sm:$0xff]
        %v3540 = vld [vmem:[%s201 + $0x6618] sm:$0xff]
        %v3541 = vld [vmem:[%s201 + $0x6620] sm:$0xff]
        %v3542 = vld [vmem:[%s201 + $0x6628] sm:$0xff]
        %v3543 = vld [vmem:[%s201 + $0x6630] sm:$0xff]
        %v3544 = vld [vmem:[%s201 + $0x6638] sm:$0xff]
        %v3545 = vld [vmem:[%s201 + $0x6640] sm:$0xff]
        %v3546 = vld [vmem:[%s201 + $0x6648] sm:$0xff]
        %v3547 = vld [vmem:[%s201 + $0x6650] sm:$0xff]
        %v3548 = vld [vmem:[%s201 + $0x6658] sm:$0xff]
        %v3549 = vld [vmem:[%s201 + $0x6660] sm:$0xff]
        %v3550 = vld [vmem:[%s201 + $0x6668] sm:$0xff]
        %v3551 = vld [vmem:[%s201 + $0x6670] sm:$0xff]
        %v3552 = vld [vmem:[%s201 + $0x6678] sm:$0xff]
        %v3553 = vld [vmem:[%s201 + $0x6680] sm:$0xff]
        %v3554 = vld [vmem:[%s201 + $0x6688] sm:$0xff]
        %v3555 = vld [vmem:[%s201 + $0x6690] sm:$0xff]
        %v3556 = vld [vmem:[%s201 + $0x6698] sm:$0xff]
        %v3557 = vld [vmem:[%s201 + $0x66a0] sm:$0xff]
        %v3558 = vld [vmem:[%s201 + $0x66a8] sm:$0xff]
        %v3559 = vld [vmem:[%s201 + $0x66b0] sm:$0xff]
        %v3560 = vld [vmem:[%s201 + $0x66b8] sm:$0xff]
        %v3561 = vld [vmem:[%s201 + $0x66c0] sm:$0xff]
        %v3562 = vld [vmem:[%s201 + $0x66c8] sm:$0xff]
        %v3563 = vld [vmem:[%s201 + $0x66d0] sm:$0xff]
        %v3564 = vld [vmem:[%s201 + $0x66d8] sm:$0xff]
        %v3565 = vld [vmem:[%s201 + $0x66e0] sm:$0xff]
        %v3566 = vld [vmem:[%s201 + $0x66e8] sm:$0xff]
        %v3567 = vld [vmem:[%s201 + $0x66f0] sm:$0xff]
        %v3568 = vld [vmem:[%s201 + $0x66f8] sm:$0xff]
        %v3569 = vld [vmem:[%s201 + $0x6700] sm:$0xff]
        %v3570 = vld [vmem:[%s201 + $0x6708] sm:$0xff]
        %v3571 = vld [vmem:[%s201 + $0x6710] sm:$0xff]
        %v3572 = vld [vmem:[%s201 + $0x6718] sm:$0xff]
        %v3573 = vld [vmem:[%s201 + $0x6720] sm:$0xff]
        %v3574 = vld [vmem:[%s201 + $0x6728] sm:$0xff]
        %v3575 = vld [vmem:[%s201 + $0x6730] sm:$0xff]
        %v3576 = vld [vmem:[%s201 + $0x6738] sm:$0xff]
        %v3577 = vld [vmem:[%s201 + $0x6740] sm:$0xff]
        %v3578 = vld [vmem:[%s201 + $0x6748] sm:$0xff]
        %v3579 = vld [vmem:[%s201 + $0x6750] sm:$0xff]
        %v3580 = vld [vmem:[%s201 + $0x6758] sm:$0xff]
        %v3581 = vld [vmem:[%s201 + $0x6760] sm:$0xff]
        %v3582 = vld [vmem:[%s201 + $0x6768] sm:$0xff]
        %v3583 = vld [vmem:[%s201 + $0x6770] sm:$0xff]
        %v3584 = vld [vmem:[%s201 + $0x6778] sm:$0xff]
        %v3585 = vld [vmem:[%s201 + $0x6780] sm:$0xff]
        %v3586 = vld [vmem:[%s201 + $0x6788] sm:$0xff]
        %v3587 = vld [vmem:[%s201 + $0x6790] sm:$0xff]
        %v3588 = vld [vmem:[%s201 + $0x6798] sm:$0xff]
        %v3589 = vld [vmem:[%s201 + $0x67a0] sm:$0xff]
        %v3590 = vld [vmem:[%s201 + $0x67a8] sm:$0xff]
        %v3591 = vld [vmem:[%s201 + $0x67b0] sm:$0xff]
        %v3592 = vld [vmem:[%s201 + $0x67b8] sm:$0xff]
        %v3593 = vld [vmem:[%s201 + $0x67c0] sm:$0xff]
        %v3594 = vld [vmem:[%s201 + $0x67c8] sm:$0xff]
        %v3595 = vld [vmem:[%s201 + $0x67d0] sm:$0xff]
        %v3596 = vld [vmem:[%s201 + $0x67d8] sm:$0xff]
        %v3597 = vld [vmem:[%s201 + $0x67e0] sm:$0xff]
        %v3598 = vld [vmem:[%s201 + $0x67e8] sm:$0xff]
        %v3599 = vld [vmem:[%s201 + $0x67f0] sm:$0xff]
        %v3600 = vld [vmem:[%s201 + $0x67f8] sm:$0xff]
        %v3601 = vld [vmem:[%s201 + $0x6800] sm:$0xff]
        %v3602 = vld [vmem:[%s201 + $0x6808] sm:$0xff]
        %v3603 = vld [vmem:[%s201 + $0x6810] sm:$0xff]
        %v3604 = vld [vmem:[%s201 + $0x6818] sm:$0xff]
        %v3605 = vld [vmem:[%s201 + $0x6820] sm:$0xff]
        %v3606 = vld [vmem:[%s201 + $0x6828] sm:$0xff]
        %v3607 = vld [vmem:[%s201 + $0x6830] sm:$0xff]
        %v3608 = vld [vmem:[%s201 + $0x6838] sm:$0xff]
        %v3609 = vld [vmem:[%s201 + $0x6840] sm:$0xff]
        %v3610 = vld [vmem:[%s201 + $0x6848] sm:$0xff]
        %v3611 = vld [vmem:[%s201 + $0x6850] sm:$0xff]
        %v3612 = vld [vmem:[%s201 + $0x6858] sm:$0xff]
        %v3613 = vld [vmem:[%s201 + $0x6860] sm:$0xff]
        %v3614 = vld [vmem:[%s201 + $0x6868] sm:$0xff]
        %v3615 = vld [vmem:[%s201 + $0x6870] sm:$0xff]
        %v3616 = vld [vmem:[%s201 + $0x6878] sm:$0xff]
        %v3617 = vld [vmem:[%s201 + $0x6880] sm:$0xff]
        %v3618 = vld [vmem:[%s201 + $0x6888] sm:$0xff]
        %v3619 = vld [vmem:[%s201 + $0x6890] sm:$0xff]
        %v3620 = vld [vmem:[%s201 + $0x6898] sm:$0xff]
        %v3621 = vld [vmem:[%s201 + $0x68a0] sm:$0xff]
        %v3622 = vld [vmem:[%s201 + $0x68a8] sm:$0xff]
        %v3623 = vld [vmem:[%s201 + $0x68b0] sm:$0xff]
        %v3624 = vld [vmem:[%s201 + $0x68b8] sm:$0xff]
        %v3625 = vld [vmem:[%s201 + $0x68c0] sm:$0xff]
        %v3626 = vld [vmem:[%s201 + $0x68c8] sm:$0xff]
        %v3627 = vld [vmem:[%s201 + $0x68d0] sm:$0xff]
        %v3628 = vld [vmem:[%s201 + $0x68d8] sm:$0xff]
        %v3629 = vld [vmem:[%s201 + $0x68e0] sm:$0xff]
        %v3630 = vld [vmem:[%s201 + $0x68e8] sm:$0xff]
        %v3631 = vld [vmem:[%s201 + $0x68f0] sm:$0xff]
        %v3632 = vld [vmem:[%s201 + $0x68f8] sm:$0xff]
        %v3633 = vld [vmem:[%s201 + $0x6900] sm:$0xff]
        %v3634 = vld [vmem:[%s201 + $0x6908] sm:$0xff]
        %v3635 = vld [vmem:[%s201 + $0x6910] sm:$0xff]
        %v3636 = vld [vmem:[%s201 + $0x6918] sm:$0xff]
        %v3637 = vld [vmem:[%s201 + $0x6920] sm:$0xff]
        %v3638 = vld [vmem:[%s201 + $0x6928] sm:$0xff]
        %v3639 = vld [vmem:[%s201 + $0x6930] sm:$0xff]
        %v3640 = vld [vmem:[%s201 + $0x6938] sm:$0xff]
        %v3641 = vld [vmem:[%s201 + $0x6940] sm:$0xff]
        %v3642 = vld [vmem:[%s201 + $0x6948] sm:$0xff]
        %v3643 = vld [vmem:[%s201 + $0x6950] sm:$0xff]
        %v3644 = vld [vmem:[%s201 + $0x6958] sm:$0xff]
        %v3645 = vld [vmem:[%s201 + $0x6960] sm:$0xff]
        %v3646 = vld [vmem:[%s201 + $0x6968] sm:$0xff]
        %v3647 = vld [vmem:[%s201 + $0x6970] sm:$0xff]
        %v3648 = vld [vmem:[%s201 + $0x6978] sm:$0xff]
        %v3649 = vld [vmem:[%s201 + $0x6980] sm:$0xff]
        %v3650 = vld [vmem:[%s201 + $0x6988] sm:$0xff]
        %v3651 = vld [vmem:[%s201 + $0x6990] sm:$0xff]
        %v3652 = vld [vmem:[%s201 + $0x6998] sm:$0xff]
        %v3653 = vld [vmem:[%s201 + $0x69a0] sm:$0xff]
        %v3654 = vld [vmem:[%s201 + $0x69a8] sm:$0xff]
        %v3655 = vld [vmem:[%s201 + $0x69b0] sm:$0xff]
        %v3656 = vld [vmem:[%s201 + $0x69b8] sm:$0xff]
        %v3657 = vld [vmem:[%s201 + $0x69c0] sm:$0xff]
        %v3658 = vld [vmem:[%s201 + $0x69c8] sm:$0xff]
        %v3659 = vld [vmem:[%s201 + $0x69d0] sm:$0xff]
        %v3660 = vld [vmem:[%s201 + $0x69d8] sm:$0xff]
        %v3661 = vld [vmem:[%s201 + $0x69e0] sm:$0xff]
        %v3662 = vld [vmem:[%s201 + $0x69e8] sm:$0xff]
        %v3663 = vld [vmem:[%s201 + $0x69f0] sm:$0xff]
        %v3664 = vld [vmem:[%s201 + $0x69f8] sm:$0xff]
        %v3665 = vld [vmem:[%s201 + $0x6a00] sm:$0xff]
        %v3666 = vld [vmem:[%s201 + $0x6a08] sm:$0xff]
        %v3667 = vld [vmem:[%s201 + $0x6a10] sm:$0xff]
        %v3668 = vld [vmem:[%s201 + $0x6a18] sm:$0xff]
        %v3669 = vld [vmem:[%s201 + $0x6a20] sm:$0xff]
        %v3670 = vld [vmem:[%s201 + $0x6a28] sm:$0xff]
        %v3671 = vld [vmem:[%s201 + $0x6a30] sm:$0xff]
        %v3672 = vld [vmem:[%s201 + $0x6a38] sm:$0xff]
        %v3673 = vld [vmem:[%s201 + $0x6a40] sm:$0xff]
        %v3674 = vld [vmem:[%s201 + $0x6a48] sm:$0xff]
        %v3675 = vld [vmem:[%s201 + $0x6a50] sm:$0xff]
        %v3676 = vld [vmem:[%s201 + $0x6a58] sm:$0xff]
        %v3677 = vld [vmem:[%s201 + $0x6a60] sm:$0xff]
        %v3678 = vld [vmem:[%s201 + $0x6a68] sm:$0xff]
        %v3679 = vld [vmem:[%s201 + $0x6a70] sm:$0xff]
        %v3680 = vld [vmem:[%s201 + $0x6a78] sm:$0xff]
        %v3681 = vld [vmem:[%s201 + $0x6a80] sm:$0xff]
        %v3682 = vld [vmem:[%s201 + $0x6a88] sm:$0xff]
        %v3683 = vld [vmem:[%s201 + $0x6a90] sm:$0xff]
        %v3684 = vld [vmem:[%s201 + $0x6a98] sm:$0xff]
        %v3685 = vld [vmem:[%s201 + $0x6aa0] sm:$0xff]
        %v3686 = vld [vmem:[%s201 + $0x6aa8] sm:$0xff]
        %v3687 = vld [vmem:[%s201 + $0x6ab0] sm:$0xff]
        %v3688 = vld [vmem:[%s201 + $0x6ab8] sm:$0xff]
        %v3689 = vld [vmem:[%s201 + $0x6ac0] sm:$0xff]
        %v3690 = vld [vmem:[%s201 + $0x6ac8] sm:$0xff]
        %v3691 = vld [vmem:[%s201 + $0x6ad0] sm:$0xff]
        %v3692 = vld [vmem:[%s201 + $0x6ad8] sm:$0xff]
        %v3693 = vld [vmem:[%s201 + $0x6ae0] sm:$0xff]
        %v3694 = vld [vmem:[%s201 + $0x6ae8] sm:$0xff]
        %v3695 = vld [vmem:[%s201 + $0x6af0] sm:$0xff]
        %v3696 = vld [vmem:[%s201 + $0x6af8] sm:$0xff]
        %v3697 = vld [vmem:[%s201 + $0x6b00] sm:$0xff]
        %v3698 = vld [vmem:[%s201 + $0x6b08] sm:$0xff]
        %v3699 = vld [vmem:[%s201 + $0x6b10] sm:$0xff]
        %v3700 = vld [vmem:[%s201 + $0x6b18] sm:$0xff]
        %v3701 = vld [vmem:[%s201 + $0x6b20] sm:$0xff]
        %v3702 = vld [vmem:[%s201 + $0x6b28] sm:$0xff]
        %v3703 = vld [vmem:[%s201 + $0x6b30] sm:$0xff]
        %v3704 = vld [vmem:[%s201 + $0x6b38] sm:$0xff]
        %v3705 = vld [vmem:[%s201 + $0x6b40] sm:$0xff]
        %v3706 = vld [vmem:[%s201 + $0x6b48] sm:$0xff]
        %v3707 = vld [vmem:[%s201 + $0x6b50] sm:$0xff]
        %v3708 = vld [vmem:[%s201 + $0x6b58] sm:$0xff]
        %v3709 = vld [vmem:[%s201 + $0x6b60] sm:$0xff]
        %v3710 = vld [vmem:[%s201 + $0x6b68] sm:$0xff]
        %v3711 = vld [vmem:[%s201 + $0x6b70] sm:$0xff]
        %v3712 = vld [vmem:[%s201 + $0x6b78] sm:$0xff]
        %v3713 = vld [vmem:[%s201 + $0x6b80] sm:$0xff]
        %v3714 = vld [vmem:[%s201 + $0x6b88] sm:$0xff]
        %v3715 = vld [vmem:[%s201 + $0x6b90] sm:$0xff]
        %v3716 = vld [vmem:[%s201 + $0x6b98] sm:$0xff]
        %v3717 = vld [vmem:[%s201 + $0x6ba0] sm:$0xff]
        %v3718 = vld [vmem:[%s201 + $0x6ba8] sm:$0xff]
        %v3719 = vld [vmem:[%s201 + $0x6bb0] sm:$0xff]
        %v3720 = vld [vmem:[%s201 + $0x6bb8] sm:$0xff]
        %v3721 = vld [vmem:[%s201 + $0x6bc0] sm:$0xff]
        %v3722 = vld [vmem:[%s201 + $0x6bc8] sm:$0xff]
        %v3723 = vld [vmem:[%s201 + $0x6bd0] sm:$0xff]
        %v3724 = vld [vmem:[%s201 + $0x6bd8] sm:$0xff]
        %v3725 = vld [vmem:[%s201 + $0x6be0] sm:$0xff]
        %v3726 = vld [vmem:[%s201 + $0x6be8] sm:$0xff]
        %v3727 = vld [vmem:[%s201 + $0x6bf0] sm:$0xff]
        %v3728 = vld [vmem:[%s201 + $0x6bf8] sm:$0xff]
        %v3729 = vld [vmem:[%s201 + $0x6c00] sm:$0xff]
        %v3730 = vld [vmem:[%s201 + $0x6c08] sm:$0xff]
        %v3731 = vld [vmem:[%s201 + $0x6c10] sm:$0xff]
        %v3732 = vld [vmem:[%s201 + $0x6c18] sm:$0xff]
        %v3733 = vld [vmem:[%s201 + $0x6c20] sm:$0xff]
        %v3734 = vld [vmem:[%s201 + $0x6c28] sm:$0xff]
        %v3735 = vld [vmem:[%s201 + $0x6c30] sm:$0xff]
        %v3736 = vld [vmem:[%s201 + $0x6c38] sm:$0xff]
        %v3737 = vld [vmem:[%s201 + $0x6c40] sm:$0xff]
        %v3738 = vld [vmem:[%s201 + $0x6c48] sm:$0xff]
        %v3739 = vld [vmem:[%s201 + $0x6c50] sm:$0xff]
        %v3740 = vld [vmem:[%s201 + $0x6c58] sm:$0xff]
        %v3741 = vld [vmem:[%s201 + $0x6c60] sm:$0xff]
        %v3742 = vld [vmem:[%s201 + $0x6c68] sm:$0xff]
        %v3743 = vld [vmem:[%s201 + $0x6c70] sm:$0xff]
        %v3744 = vld [vmem:[%s201 + $0x6c78] sm:$0xff]
        %v3745 = vld [vmem:[%s201 + $0x6c80] sm:$0xff]
        %v3746 = vld [vmem:[%s201 + $0x6c88] sm:$0xff]
        %v3747 = vld [vmem:[%s201 + $0x6c90] sm:$0xff]
        %v3748 = vld [vmem:[%s201 + $0x6c98] sm:$0xff]
        %v3749 = vld [vmem:[%s201 + $0x6ca0] sm:$0xff]
        %v3750 = vld [vmem:[%s201 + $0x6ca8] sm:$0xff]
        %v3751 = vld [vmem:[%s201 + $0x6cb0] sm:$0xff]
        %v3752 = vld [vmem:[%s201 + $0x6cb8] sm:$0xff]
        %v3753 = vld [vmem:[%s201 + $0x6cc0] sm:$0xff]
        %v3754 = vld [vmem:[%s201 + $0x6cc8] sm:$0xff]
        %v3755 = vld [vmem:[%s201 + $0x6cd0] sm:$0xff]
        %v3756 = vld [vmem:[%s201 + $0x6cd8] sm:$0xff]
        %v3757 = vld [vmem:[%s201 + $0x6ce0] sm:$0xff]
        %v3758 = vld [vmem:[%s201 + $0x6ce8] sm:$0xff]
        %v3759 = vld [vmem:[%s201 + $0x6cf0] sm:$0xff]
        %v3760 = vld [vmem:[%s201 + $0x6cf8] sm:$0xff]
        %v3761 = vld [vmem:[%s201 + $0x6d00] sm:$0xff]
        %v3762 = vld [vmem:[%s201 + $0x6d08] sm:$0xff]
        %v3763 = vld [vmem:[%s201 + $0x6d10] sm:$0xff]
        %v3764 = vld [vmem:[%s201 + $0x6d18] sm:$0xff]
        %v3765 = vld [vmem:[%s201 + $0x6d20] sm:$0xff]
        %v3766 = vld [vmem:[%s201 + $0x6d28] sm:$0xff]
        %v3767 = vld [vmem:[%s201 + $0x6d30] sm:$0xff]
        %v3768 = vld [vmem:[%s201 + $0x6d38] sm:$0xff]
        %v3769 = vld [vmem:[%s201 + $0x6d40] sm:$0xff]
        %v3770 = vld [vmem:[%s201 + $0x6d48] sm:$0xff]
        %v3771 = vld [vmem:[%s201 + $0x6d50] sm:$0xff]
        %v3772 = vld [vmem:[%s201 + $0x6d58] sm:$0xff]
        %v3773 = vld [vmem:[%s201 + $0x6d60] sm:$0xff]
        %v3774 = vld [vmem:[%s201 + $0x6d68] sm:$0xff]
        %v3775 = vld [vmem:[%s201 + $0x6d70] sm:$0xff]
        %v3776 = vld [vmem:[%s201 + $0x6d78] sm:$0xff]
        %v3777 = vld [vmem:[%s201 + $0x6d80] sm:$0xff]
        %v3778 = vld [vmem:[%s201 + $0x6d88] sm:$0xff]
        %v3779 = vld [vmem:[%s201 + $0x6d90] sm:$0xff]
        %v3780 = vld [vmem:[%s201 + $0x6d98] sm:$0xff]
        %v3781 = vld [vmem:[%s201 + $0x6da0] sm:$0xff]
        %v3782 = vld [vmem:[%s201 + $0x6da8] sm:$0xff]
        %v3783 = vld [vmem:[%s201 + $0x6db0] sm:$0xff]
        %v3784 = vld [vmem:[%s201 + $0x6db8] sm:$0xff]
        %v3785 = vld [vmem:[%s201 + $0x6dc0] sm:$0xff]
        %v3786 = vld [vmem:[%s201 + $0x6dc8] sm:$0xff]
        %v3787 = vld [vmem:[%s201 + $0x6dd0] sm:$0xff]
        %v3788 = vld [vmem:[%s201 + $0x6dd8] sm:$0xff]
        %v3789 = vld [vmem:[%s201 + $0x6de0] sm:$0xff]
        %v3790 = vld [vmem:[%s201 + $0x6de8] sm:$0xff]
        %v3791 = vld [vmem:[%s201 + $0x6df0] sm:$0xff]
        %v3792 = vld [vmem:[%s201 + $0x6df8] sm:$0xff]
        %v3793 = vld [vmem:[%s201 + $0x6e00] sm:$0xff]
        %v3794 = vld [vmem:[%s201 + $0x6e08] sm:$0xff]
        %v3795 = vld [vmem:[%s201 + $0x6e10] sm:$0xff]
        %v3796 = vld [vmem:[%s201 + $0x6e18] sm:$0xff]
        %v3797 = vld [vmem:[%s201 + $0x6e20] sm:$0xff]
        %v3798 = vld [vmem:[%s201 + $0x6e28] sm:$0xff]
        %v3799 = vld [vmem:[%s201 + $0x6e30] sm:$0xff]
        %v3800 = vld [vmem:[%s201 + $0x6e38] sm:$0xff]
        %v3801 = vld [vmem:[%s201 + $0x6e40] sm:$0xff]
        %v3802 = vld [vmem:[%s201 + $0x6e48] sm:$0xff]
        %v3803 = vld [vmem:[%s201 + $0x6e50] sm:$0xff]
        %v3804 = vld [vmem:[%s201 + $0x6e58] sm:$0xff]
        %v3805 = vld [vmem:[%s201 + $0x6e60] sm:$0xff]
        %v3806 = vld [vmem:[%s201 + $0x6e68] sm:$0xff]
        %v3807 = vld [vmem:[%s201 + $0x6e70] sm:$0xff]
        %v3808 = vld [vmem:[%s201 + $0x6e78] sm:$0xff]
        %v3809 = vld [vmem:[%s201 + $0x6e80] sm:$0xff]
        %v3810 = vld [vmem:[%s201 + $0x6e88] sm:$0xff]
        %v3811 = vld [vmem:[%s201 + $0x6e90] sm:$0xff]
        %v3812 = vld [vmem:[%s201 + $0x6e98] sm:$0xff]
        %v3813 = vld [vmem:[%s201 + $0x6ea0] sm:$0xff]
        %v3814 = vld [vmem:[%s201 + $0x6ea8] sm:$0xff]
        %v3815 = vld [vmem:[%s201 + $0x6eb0] sm:$0xff]
        %v3816 = vld [vmem:[%s201 + $0x6eb8] sm:$0xff]
        %v3817 = vld [vmem:[%s201 + $0x6ec0] sm:$0xff]
        %v3818 = vld [vmem:[%s201 + $0x6ec8] sm:$0xff]
        %v3819 = vld [vmem:[%s201 + $0x6ed0] sm:$0xff]
        %v3820 = vld [vmem:[%s201 + $0x6ed8] sm:$0xff]
        %v3821 = vld [vmem:[%s201 + $0x6ee0] sm:$0xff]
        %v3822 = vld [vmem:[%s201 + $0x6ee8] sm:$0xff]
        %v3823 = vld [vmem:[%s201 + $0x6ef0] sm:$0xff]
        %v3824 = vld [vmem:[%s201 + $0x6ef8] sm:$0xff]
        %v3825 = vld [vmem:[%s201 + $0x6f00] sm:$0xff]
        %v3826 = vld [vmem:[%s201 + $0x6f08] sm:$0xff]
        %v3827 = vld [vmem:[%s201 + $0x6f10] sm:$0xff]
        %v3828 = vld [vmem:[%s201 + $0x6f18] sm:$0xff]
        %v3829 = vld [vmem:[%s201 + $0x6f20] sm:$0xff]
        %v3830 = vld [vmem:[%s201 + $0x6f28] sm:$0xff]
        %v3831 = vld [vmem:[%s201 + $0x6f30] sm:$0xff]
        %v3832 = vld [vmem:[%s201 + $0x6f38] sm:$0xff]
        %v3833 = vld [vmem:[%s201 + $0x6f40] sm:$0xff]
        %v3834 = vld [vmem:[%s201 + $0x6f48] sm:$0xff]
        %v3835 = vld [vmem:[%s201 + $0x6f50] sm:$0xff]
        %v3836 = vld [vmem:[%s201 + $0x6f58] sm:$0xff]
        %v3837 = vld [vmem:[%s201 + $0x6f60] sm:$0xff]
        %v3838 = vld [vmem:[%s201 + $0x6f68] sm:$0xff]
        %v3839 = vld [vmem:[%s201 + $0x6f70] sm:$0xff]
        %v3840 = vld [vmem:[%s201 + $0x6f78] sm:$0xff]
        %v3841 = vld [vmem:[%s201 + $0x6f80] sm:$0xff]
        %v3842 = vld [vmem:[%s201 + $0x6f88] sm:$0xff]
        %v3843 = vld [vmem:[%s201 + $0x6f90] sm:$0xff]
        %v3844 = vld [vmem:[%s201 + $0x6f98] sm:$0xff]
        %v3845 = vld [vmem:[%s201 + $0x6fa0] sm:$0xff]
        %v3846 = vld [vmem:[%s201 + $0x6fa8] sm:$0xff]
        %v3847 = vld [vmem:[%s201 + $0x6fb0] sm:$0xff]
        %v3848 = vld [vmem:[%s201 + $0x6fb8] sm:$0xff]
        %v3849 = vld [vmem:[%s201 + $0x6fc0] sm:$0xff]
        %v3850 = vld [vmem:[%s201 + $0x6fc8] sm:$0xff]
        %v3851 = vld [vmem:[%s201 + $0x6fd0] sm:$0xff]
        %v3852 = vld [vmem:[%s201 + $0x6fd8] sm:$0xff]
        %v3853 = vld [vmem:[%s201 + $0x6fe0] sm:$0xff]
        %v3854 = vld [vmem:[%s201 + $0x6fe8] sm:$0xff]
        %v3855 = vld [vmem:[%s201 + $0x6ff0] sm:$0xff]
        %v3856 = vld [vmem:[%s201 + $0x6ff8] sm:$0xff]
        %v3857 = vld [vmem:[%s201 + $0x7000] sm:$0xff]
        %v3858 = vld [vmem:[%s201 + $0x7008] sm:$0xff]
        %v3859 = vld [vmem:[%s201 + $0x7010] sm:$0xff]
        %v3860 = vld [vmem:[%s201 + $0x7018] sm:$0xff]
        %v3861 = vld [vmem:[%s201 + $0x7020] sm:$0xff]
        %v3862 = vld [vmem:[%s201 + $0x7028] sm:$0xff]
        %v3863 = vld [vmem:[%s201 + $0x7030] sm:$0xff]
        %v3864 = vld [vmem:[%s201 + $0x7038] sm:$0xff]
        %v3865 = vld [vmem:[%s201 + $0x7040] sm:$0xff]
        %v3866 = vld [vmem:[%s201 + $0x7048] sm:$0xff]
        %v3867 = vld [vmem:[%s201 + $0x7050] sm:$0xff]
        %v3868 = vld [vmem:[%s201 + $0x7058] sm:$0xff]
        %v3869 = vld [vmem:[%s201 + $0x7060] sm:$0xff]
        %v3870 = vld [vmem:[%s201 + $0x7068] sm:$0xff]
        %v3871 = vld [vmem:[%s201 + $0x7070] sm:$0xff]
        %v3872 = vld [vmem:[%s201 + $0x7078] sm:$0xff]
        %v3873 = vld [vmem:[%s201 + $0x7080] sm:$0xff]
        %v3874 = vld [vmem:[%s201 + $0x7088] sm:$0xff]
        %v3875 = vld [vmem:[%s201 + $0x7090] sm:$0xff]
        %v3876 = vld [vmem:[%s201 + $0x7098] sm:$0xff]
        %v3877 = vld [vmem:[%s201 + $0x70a0] sm:$0xff]
        %v3878 = vld [vmem:[%s201 + $0x70a8] sm:$0xff]
        %v3879 = vld [vmem:[%s201 + $0x70b0] sm:$0xff]
        %v3880 = vld [vmem:[%s201 + $0x70b8] sm:$0xff]
        %v3881 = vld [vmem:[%s201 + $0x70c0] sm:$0xff]
        %v3882 = vld [vmem:[%s201 + $0x70c8] sm:$0xff]
        %v3883 = vld [vmem:[%s201 + $0x70d0] sm:$0xff]
        %v3884 = vld [vmem:[%s201 + $0x70d8] sm:$0xff]
        %v3885 = vld [vmem:[%s201 + $0x70e0] sm:$0xff]
        %v3886 = vld [vmem:[%s201 + $0x70e8] sm:$0xff]
        %v3887 = vld [vmem:[%s201 + $0x70f0] sm:$0xff]
        %v3888 = vld [vmem:[%s201 + $0x70f8] sm:$0xff]
        %v3889 = vld [vmem:[%s201 + $0x7100] sm:$0xff]
        %v3890 = vld [vmem:[%s201 + $0x7108] sm:$0xff]
        %v3891 = vld [vmem:[%s201 + $0x7110] sm:$0xff]
        %v3892 = vld [vmem:[%s201 + $0x7118] sm:$0xff]
        %v3893 = vld [vmem:[%s201 + $0x7120] sm:$0xff]
        %v3894 = vld [vmem:[%s201 + $0x7128] sm:$0xff]
        %v3895 = vld [vmem:[%s201 + $0x7130] sm:$0xff]
        %v3896 = vld [vmem:[%s201 + $0x7138] sm:$0xff]
        %v3897 = vld [vmem:[%s201 + $0x7140] sm:$0xff]
        %v3898 = vld [vmem:[%s201 + $0x7148] sm:$0xff]
        %v3899 = vld [vmem:[%s201 + $0x7150] sm:$0xff]
        %v3900 = vld [vmem:[%s201 + $0x7158] sm:$0xff]
        %v3901 = vld [vmem:[%s201 + $0x7160] sm:$0xff]
        %v3902 = vld [vmem:[%s201 + $0x7168] sm:$0xff]
        %v3903 = vld [vmem:[%s201 + $0x7170] sm:$0xff]
        %v3904 = vld [vmem:[%s201 + $0x7178] sm:$0xff]
        %v3905 = vld [vmem:[%s201 + $0x7180] sm:$0xff]
        %v3906 = vld [vmem:[%s201 + $0x7188] sm:$0xff]
        %v3907 = vld [vmem:[%s201 + $0x7190] sm:$0xff]
        %v3908 = vld [vmem:[%s201 + $0x7198] sm:$0xff]
        %v3909 = vld [vmem:[%s201 + $0x71a0] sm:$0xff]
        %v3910 = vld [vmem:[%s201 + $0x71a8] sm:$0xff]
        %v3911 = vld [vmem:[%s201 + $0x71b0] sm:$0xff]
        %v3912 = vld [vmem:[%s201 + $0x71b8] sm:$0xff]
        %v3913 = vld [vmem:[%s201 + $0x71c0] sm:$0xff]
        %v3914 = vld [vmem:[%s201 + $0x71c8] sm:$0xff]
        %v3915 = vld [vmem:[%s201 + $0x71d0] sm:$0xff]
        %v3916 = vld [vmem:[%s201 + $0x71d8] sm:$0xff]
        %v3917 = vld [vmem:[%s201 + $0x71e0] sm:$0xff]
        %v3918 = vld [vmem:[%s201 + $0x71e8] sm:$0xff]
        %v3919 = vld [vmem:[%s201 + $0x71f0] sm:$0xff]
        %v3920 = vld [vmem:[%s201 + $0x71f8] sm:$0xff]
        %v3921 = vld [vmem:[%s201 + $0x7200] sm:$0xff]
        %v3922 = vld [vmem:[%s201 + $0x7208] sm:$0xff]
        %v3923 = vld [vmem:[%s201 + $0x7210] sm:$0xff]
        %v3924 = vld [vmem:[%s201 + $0x7218] sm:$0xff]
        %v3925 = vld [vmem:[%s201 + $0x7220] sm:$0xff]
        %v3926 = vld [vmem:[%s201 + $0x7228] sm:$0xff]
        %v3927 = vld [vmem:[%s201 + $0x7230] sm:$0xff]
        %v3928 = vld [vmem:[%s201 + $0x7238] sm:$0xff]
        %v3929 = vld [vmem:[%s201 + $0x7240] sm:$0xff]
        %v3930 = vld [vmem:[%s201 + $0x7248] sm:$0xff]
        %v3931 = vld [vmem:[%s201 + $0x7250] sm:$0xff]
        %v3932 = vld [vmem:[%s201 + $0x7258] sm:$0xff]
        %v3933 = vld [vmem:[%s201 + $0x7260] sm:$0xff]
        %v3934 = vld [vmem:[%s201 + $0x7268] sm:$0xff]
        %v3935 = vld [vmem:[%s201 + $0x7270] sm:$0xff]
        %v3936 = vld [vmem:[%s201 + $0x7278] sm:$0xff]
        %v3937 = vld [vmem:[%s201 + $0x7280] sm:$0xff]
        %v3938 = vld [vmem:[%s201 + $0x7288] sm:$0xff]
        %v3939 = vld [vmem:[%s201 + $0x7290] sm:$0xff]
        %v3940 = vld [vmem:[%s201 + $0x7298] sm:$0xff]
        %v3941 = vld [vmem:[%s201 + $0x72a0] sm:$0xff]
        %v3942 = vld [vmem:[%s201 + $0x72a8] sm:$0xff]
        %v3943 = vld [vmem:[%s201 + $0x72b0] sm:$0xff]
        %v3944 = vld [vmem:[%s201 + $0x72b8] sm:$0xff]
        %v3945 = vld [vmem:[%s201 + $0x72c0] sm:$0xff]
        %v3946 = vld [vmem:[%s201 + $0x72c8] sm:$0xff]
        %v3947 = vld [vmem:[%s201 + $0x72d0] sm:$0xff]
        %v3948 = vld [vmem:[%s201 + $0x72d8] sm:$0xff]
        %v3949 = vld [vmem:[%s201 + $0x72e0] sm:$0xff]
        %v3950 = vld [vmem:[%s201 + $0x72e8] sm:$0xff]
        %v3951 = vld [vmem:[%s201 + $0x72f0] sm:$0xff]
        %v3952 = vld [vmem:[%s201 + $0x72f8] sm:$0xff]
        %v3953 = vld [vmem:[%s201 + $0x7300] sm:$0xff]
        %v3954 = vld [vmem:[%s201 + $0x7308] sm:$0xff]
        %v3955 = vld [vmem:[%s201 + $0x7310] sm:$0xff]
        %v3956 = vld [vmem:[%s201 + $0x7318] sm:$0xff]
        %v3957 = vld [vmem:[%s201 + $0x7320] sm:$0xff]
        %v3958 = vld [vmem:[%s201 + $0x7328] sm:$0xff]
        %v3959 = vld [vmem:[%s201 + $0x7330] sm:$0xff]
        %v3960 = vld [vmem:[%s201 + $0x7338] sm:$0xff]
        %v3961 = vld [vmem:[%s201 + $0x7340] sm:$0xff]
        %v3962 = vld [vmem:[%s201 + $0x7348] sm:$0xff]
        %v3963 = vld [vmem:[%s201 + $0x7350] sm:$0xff]
        %v3964 = vld [vmem:[%s201 + $0x7358] sm:$0xff]
        %v3965 = vld [vmem:[%s201 + $0x7360] sm:$0xff]
        %v3966 = vld [vmem:[%s201 + $0x7368] sm:$0xff]
        %v3967 = vld [vmem:[%s201 + $0x7370] sm:$0xff]
        %v3968 = vld [vmem:[%s201 + $0x7378] sm:$0xff]
        %v3969 = vld [vmem:[%s201 + $0x7380] sm:$0xff]
        %v3970 = vld [vmem:[%s201 + $0x7388] sm:$0xff]
        %v3971 = vld [vmem:[%s201 + $0x7390] sm:$0xff]
        %v3972 = vld [vmem:[%s201 + $0x7398] sm:$0xff]
        %v3973 = vld [vmem:[%s201 + $0x73a0] sm:$0xff]
        %v3974 = vld [vmem:[%s201 + $0x73a8] sm:$0xff]
        %v3975 = vld [vmem:[%s201 + $0x73b0] sm:$0xff]
        %v3976 = vld [vmem:[%s201 + $0x73b8] sm:$0xff]
        %v3977 = vld [vmem:[%s201 + $0x73c0] sm:$0xff]
        %v3978 = vld [vmem:[%s201 + $0x73c8] sm:$0xff]
        %v3979 = vld [vmem:[%s201 + $0x73d0] sm:$0xff]
        %v3980 = vld [vmem:[%s201 + $0x73d8] sm:$0xff]
        %v3981 = vld [vmem:[%s201 + $0x73e0] sm:$0xff]
        %v3982 = vld [vmem:[%s201 + $0x73e8] sm:$0xff]
        %v3983 = vld [vmem:[%s201 + $0x73f0] sm:$0xff]
        %v3984 = vld [vmem:[%s201 + $0x73f8] sm:$0xff]
        %v3985 = vld [vmem:[%s201 + $0x7400] sm:$0xff]
        %v3986 = vld [vmem:[%s201 + $0x7408] sm:$0xff]
        %v3987 = vld [vmem:[%s201 + $0x7410] sm:$0xff]
        %v3988 = vld [vmem:[%s201 + $0x7418] sm:$0xff]
        %v3989 = vld [vmem:[%s201 + $0x7420] sm:$0xff]
        %v3990 = vld [vmem:[%s201 + $0x7428] sm:$0xff]
        %v3991 = vld [vmem:[%s201 + $0x7430] sm:$0xff]
        %v3992 = vld [vmem:[%s201 + $0x7438] sm:$0xff]
        %v3993 = vld [vmem:[%s201 + $0x7440] sm:$0xff]
        %v3994 = vld [vmem:[%s201 + $0x7448] sm:$0xff]
        %v3995 = vld [vmem:[%s201 + $0x7450] sm:$0xff]
        %v3996 = vld [vmem:[%s201 + $0x7458] sm:$0xff]
        %v3997 = vld [vmem:[%s201 + $0x7460] sm:$0xff]
        %v3998 = vld [vmem:[%s201 + $0x7468] sm:$0xff]
        %v3999 = vld [vmem:[%s201 + $0x7470] sm:$0xff]
        %v4000 = vld [vmem:[%s201 + $0x7478] sm:$0xff]
        %v4001 = vld [vmem:[%s201 + $0x7480] sm:$0xff]
        %v4002 = vld [vmem:[%s201 + $0x7488] sm:$0xff]
        %v4003 = vld [vmem:[%s201 + $0x7490] sm:$0xff]
        %v4004 = vld [vmem:[%s201 + $0x7498] sm:$0xff]
        %v4005 = vld [vmem:[%s201 + $0x74a0] sm:$0xff]
        %v4006 = vld [vmem:[%s201 + $0x74a8] sm:$0xff]
        %v4007 = vld [vmem:[%s201 + $0x74b0] sm:$0xff]
        %v4008 = vld [vmem:[%s201 + $0x74b8] sm:$0xff]
        %v4009 = vld [vmem:[%s201 + $0x74c0] sm:$0xff]
        %v4010 = vld [vmem:[%s201 + $0x74c8] sm:$0xff]
        %v4011 = vld [vmem:[%s201 + $0x74d0] sm:$0xff]
        %v4012 = vld [vmem:[%s201 + $0x74d8] sm:$0xff]
        %v4013 = vld [vmem:[%s201 + $0x74e0] sm:$0xff]
        %v4014 = vld [vmem:[%s201 + $0x74e8] sm:$0xff]
        %v4015 = vld [vmem:[%s201 + $0x74f0] sm:$0xff]
        %v4016 = vld [vmem:[%s201 + $0x74f8] sm:$0xff]
        %v4017 = vld [vmem:[%s201 + $0x7500] sm:$0xff]
        %v4018 = vld [vmem:[%s201 + $0x7508] sm:$0xff]
        %v4019 = vld [vmem:[%s201 + $0x7510] sm:$0xff]
        %v4020 = vld [vmem:[%s201 + $0x7518] sm:$0xff]
        %v4021 = vld [vmem:[%s201 + $0x7520] sm:$0xff]
        %v4022 = vld [vmem:[%s201 + $0x7528] sm:$0xff]
        %v4023 = vld [vmem:[%s201 + $0x7530] sm:$0xff]
        %v4024 = vld [vmem:[%s201 + $0x7538] sm:$0xff]
        %v4025 = vld [vmem:[%s201 + $0x7540] sm:$0xff]
        %v4026 = vld [vmem:[%s201 + $0x7548] sm:$0xff]
        %v4027 = vld [vmem:[%s201 + $0x7550] sm:$0xff]
        %v4028 = vld [vmem:[%s201 + $0x7558] sm:$0xff]
        %v4029 = vld [vmem:[%s201 + $0x7560] sm:$0xff]
        %v4030 = vld [vmem:[%s201 + $0x7568] sm:$0xff]
        %v4031 = vld [vmem:[%s201 + $0x7570] sm:$0xff]
        %v4032 = vld [vmem:[%s201 + $0x7578] sm:$0xff]
        %v4033 = vld [vmem:[%s201 + $0x7580] sm:$0xff]
        %v4034 = vld [vmem:[%s201 + $0x7588] sm:$0xff]
        %v4035 = vld [vmem:[%s201 + $0x7590] sm:$0xff]
        %v4036 = vld [vmem:[%s201 + $0x7598] sm:$0xff]
        %v4037 = vld [vmem:[%s201 + $0x75a0] sm:$0xff]
        %v4038 = vld [vmem:[%s201 + $0x75a8] sm:$0xff]
        %v4039 = vld [vmem:[%s201 + $0x75b0] sm:$0xff]
        %v4040 = vld [vmem:[%s201 + $0x75b8] sm:$0xff]
        %v4041 = vld [vmem:[%s201 + $0x75c0] sm:$0xff]
        %v4042 = vld [vmem:[%s201 + $0x75c8] sm:$0xff]
        %v4043 = vld [vmem:[%s201 + $0x75d0] sm:$0xff]
        %v4044 = vld [vmem:[%s201 + $0x75d8] sm:$0xff]
        %v4045 = vld [vmem:[%s201 + $0x75e0] sm:$0xff]
        %v4046 = vld [vmem:[%s201 + $0x75e8] sm:$0xff]
        %v4047 = vld [vmem:[%s201 + $0x75f0] sm:$0xff]
        %v4048 = vld [vmem:[%s201 + $0x75f8] sm:$0xff]
        %v4049 = vld [vmem:[%s201 + $0x7600] sm:$0xff]
        %v4050 = vld [vmem:[%s201 + $0x7608] sm:$0xff]
        %v4051 = vld [vmem:[%s201 + $0x7610] sm:$0xff]
        %v4052 = vld [vmem:[%s201 + $0x7618] sm:$0xff]
        %v4053 = vld [vmem:[%s201 + $0x7620] sm:$0xff]
        %v4054 = vld [vmem:[%s201 + $0x7628] sm:$0xff]
        %v4055 = vld [vmem:[%s201 + $0x7630] sm:$0xff]
        %v4056 = vld [vmem:[%s201 + $0x7638] sm:$0xff]
        %v4057 = vld [vmem:[%s201 + $0x7640] sm:$0xff]
        %v4058 = vld [vmem:[%s201 + $0x7648] sm:$0xff]
        %v4059 = vld [vmem:[%s201 + $0x7650] sm:$0xff]
        %v4060 = vld [vmem:[%s201 + $0x7658] sm:$0xff]
        %v4061 = vld [vmem:[%s201 + $0x7660] sm:$0xff]
        %v4062 = vld [vmem:[%s201 + $0x7668] sm:$0xff]
        %v4063 = vld [vmem:[%s201 + $0x7670] sm:$0xff]
        %v4064 = vld [vmem:[%s201 + $0x7678] sm:$0xff]
        %v4065 = vld [vmem:[%s201 + $0x7680] sm:$0xff]
        %v4066 = vld [vmem:[%s201 + $0x7688] sm:$0xff]
        %v4067 = vld [vmem:[%s201 + $0x7690] sm:$0xff]
        %v4068 = vld [vmem:[%s201 + $0x7698] sm:$0xff]
        %v4069 = vld [vmem:[%s201 + $0x76a0] sm:$0xff]
        %v4070 = vld [vmem:[%s201 + $0x76a8] sm:$0xff]
        %v4071 = vld [vmem:[%s201 + $0x76b0] sm:$0xff]
        %v4072 = vld [vmem:[%s201 + $0x76b8] sm:$0xff]
        %v4073 = vld [vmem:[%s201 + $0x76c0] sm:$0xff]
        %v4074 = vld [vmem:[%s201 + $0x76c8] sm:$0xff]
        %v4075 = vld [vmem:[%s201 + $0x76d0] sm:$0xff]
        %v4076 = vld [vmem:[%s201 + $0x76d8] sm:$0xff]
        %v4077 = vld [vmem:[%s201 + $0x76e0] sm:$0xff]
        %v4078 = vld [vmem:[%s201 + $0x76e8] sm:$0xff]
        %v4079 = vld [vmem:[%s201 + $0x76f0] sm:$0xff]
        %v4080 = vld [vmem:[%s201 + $0x76f8] sm:$0xff]
        %v4081 = vld [vmem:[%s201 + $0x7700] sm:$0xff]
        %v4082 = vld [vmem:[%s201 + $0x7708] sm:$0xff]
        %v4083 = vld [vmem:[%s201 + $0x7710] sm:$0xff]
        %v4084 = vld [vmem:[%s201 + $0x7718] sm:$0xff]
        %v4085 = vld [vmem:[%s201 + $0x7720] sm:$0xff]
        %v4086 = vld [vmem:[%s201 + $0x7728] sm:$0xff]
        %v4087 = vld [vmem:[%s201 + $0x7730] sm:$0xff]
        %v4088 = vld [vmem:[%s201 + $0x7738] sm:$0xff]
        %v4089 = vld [vmem:[%s201 + $0x7740] sm:$0xff]
        %v4090 = vld [vmem:[%s201 + $0x7748] sm:$0xff]
        %v4091 = vld [vmem:[%s201 + $0x7750] sm:$0xff]
        %v4092 = vld [vmem:[%s201 + $0x7758] sm:$0xff]
        %v4093 = vld [vmem:[%s201 + $0x7760] sm:$0xff]
        %v4094 = vld [vmem:[%s201 + $0x7768] sm:$0xff]
        %v4095 = vld [vmem:[%s201 + $0x7770] sm:$0xff]
        %v4096 = vld [vmem:[%s201 + $0x7778] sm:$0xff]
        %v4097 = vld [vmem:[%s201 + $0x7780] sm:$0xff]
        %v4098 = vld [vmem:[%s201 + $0x7788] sm:$0xff]
        %v4099 = vld [vmem:[%s201 + $0x7790] sm:$0xff]
        %v4100 = vld [vmem:[%s201 + $0x7798] sm:$0xff]
        %v4101 = vld [vmem:[%s201 + $0x77a0] sm:$0xff]
        %v4102 = vld [vmem:[%s201 + $0x77a8] sm:$0xff]
        %v4103 = vld [vmem:[%s201 + $0x77b0] sm:$0xff]
        %v4104 = vld [vmem:[%s201 + $0x77b8] sm:$0xff]
        %v4105 = vld [vmem:[%s201 + $0x77c0] sm:$0xff]
        %v4106 = vld [vmem:[%s201 + $0x77c8] sm:$0xff]
        %v4107 = vld [vmem:[%s201 + $0x77d0] sm:$0xff]
        %v4108 = vld [vmem:[%s201 + $0x77d8] sm:$0xff]
        %v4109 = vld [vmem:[%s201 + $0x77e0] sm:$0xff]
        %v4110 = vld [vmem:[%s201 + $0x77e8] sm:$0xff]
        %v4111 = vld [vmem:[%s201 + $0x77f0] sm:$0xff]
        %v4112 = vld [vmem:[%s201 + $0x77f8] sm:$0xff]
        %v4113 = vld [vmem:[%s201 + $0x7800] sm:$0xff]
        %v4114 = vld [vmem:[%s201 + $0x7808] sm:$0xff]
        %v4115 = vld [vmem:[%s201 + $0x7810] sm:$0xff]
        %v4116 = vld [vmem:[%s201 + $0x7818] sm:$0xff]
        %v4117 = vld [vmem:[%s201 + $0x7820] sm:$0xff]
        %v4118 = vld [vmem:[%s201 + $0x7828] sm:$0xff]
        %v4119 = vld [vmem:[%s201 + $0x7830] sm:$0xff]
        %v4120 = vld [vmem:[%s201 + $0x7838] sm:$0xff]
        %v4121 = vld [vmem:[%s201 + $0x7840] sm:$0xff]
        %v4122 = vld [vmem:[%s201 + $0x7848] sm:$0xff]
        %v4123 = vld [vmem:[%s201 + $0x7850] sm:$0xff]
        %v4124 = vld [vmem:[%s201 + $0x7858] sm:$0xff]
        %v4125 = vld [vmem:[%s201 + $0x7860] sm:$0xff]
        %v4126 = vld [vmem:[%s201 + $0x7868] sm:$0xff]
        %v4127 = vld [vmem:[%s201 + $0x7870] sm:$0xff]
        %v4128 = vld [vmem:[%s201 + $0x7878] sm:$0xff]
        %v4129 = vld [vmem:[%s201 + $0x7880] sm:$0xff]
        %v4130 = vld [vmem:[%s201 + $0x7888] sm:$0xff]
        %v4131 = vld [vmem:[%s201 + $0x7890] sm:$0xff]
        %v4132 = vld [vmem:[%s201 + $0x7898] sm:$0xff]
        %v4133 = vld [vmem:[%s201 + $0x78a0] sm:$0xff]
        %v4134 = vld [vmem:[%s201 + $0x78a8] sm:$0xff]
        %v4135 = vld [vmem:[%s201 + $0x78b0] sm:$0xff]
        %v4136 = vld [vmem:[%s201 + $0x78b8] sm:$0xff]
        %v4137 = vld [vmem:[%s201 + $0x78c0] sm:$0xff]
        %v4138 = vld [vmem:[%s201 + $0x78c8] sm:$0xff]
        %v4139 = vld [vmem:[%s201 + $0x78d0] sm:$0xff]
        %v4140 = vld [vmem:[%s201 + $0x78d8] sm:$0xff]
        %v4141 = vld [vmem:[%s201 + $0x78e0] sm:$0xff]
        %v4142 = vld [vmem:[%s201 + $0x78e8] sm:$0xff]
        %v4143 = vld [vmem:[%s201 + $0x78f0] sm:$0xff]
        %v4144 = vld [vmem:[%s201 + $0x78f8] sm:$0xff]
        %v4145 = vld [vmem:[%s201 + $0x7900] sm:$0xff]
        %v4146 = vld [vmem:[%s201 + $0x7908] sm:$0xff]
        %v4147 = vld [vmem:[%s201 + $0x7910] sm:$0xff]
        %v4148 = vld [vmem:[%s201 + $0x7918] sm:$0xff]
        %v4149 = vld [vmem:[%s201 + $0x7920] sm:$0xff]
        %v4150 = vld [vmem:[%s201 + $0x7928] sm:$0xff]
        %v4151 = vld [vmem:[%s201 + $0x7930] sm:$0xff]
        %v4152 = vld [vmem:[%s201 + $0x7938] sm:$0xff]
        %v4153 = vld [vmem:[%s201 + $0x7940] sm:$0xff]
        %v4154 = vld [vmem:[%s201 + $0x7948] sm:$0xff]
        %v4155 = vld [vmem:[%s201 + $0x7950] sm:$0xff]
        %v4156 = vld [vmem:[%s201 + $0x7958] sm:$0xff]
        %v4157 = vld [vmem:[%s201 + $0x7960] sm:$0xff]
        %v4158 = vld [vmem:[%s201 + $0x7968] sm:$0xff]
        %v4159 = vld [vmem:[%s201 + $0x7970] sm:$0xff]
        %v4160 = vld [vmem:[%s201 + $0x7978] sm:$0xff]
        %v4161 = vld [vmem:[%s201 + $0x7980] sm:$0xff]
        %v4162 = vld [vmem:[%s201 + $0x7988] sm:$0xff]
        %v4163 = vld [vmem:[%s201 + $0x7990] sm:$0xff]
        %v4164 = vld [vmem:[%s201 + $0x7998] sm:$0xff]
        %v4165 = vld [vmem:[%s201 + $0x79a0] sm:$0xff]
        %v4166 = vld [vmem:[%s201 + $0x79a8] sm:$0xff]
        %v4167 = vld [vmem:[%s201 + $0x79b0] sm:$0xff]
        %v4168 = vld [vmem:[%s201 + $0x79b8] sm:$0xff]
        %v4169 = vld [vmem:[%s201 + $0x79c0] sm:$0xff]
        %v4170 = vld [vmem:[%s201 + $0x79c8] sm:$0xff]
        %v4171 = vld [vmem:[%s201 + $0x79d0] sm:$0xff]
        %v4172 = vld [vmem:[%s201 + $0x79d8] sm:$0xff]
        %v4173 = vld [vmem:[%s201 + $0x79e0] sm:$0xff]
        %v4174 = vld [vmem:[%s201 + $0x79e8] sm:$0xff]
        %v4175 = vld [vmem:[%s201 + $0x79f0] sm:$0xff]
        %v4176 = vld [vmem:[%s201 + $0x79f8] sm:$0xff]
        %v4177 = vld [vmem:[%s201 + $0x7a00] sm:$0xff]
        %v4178 = vld [vmem:[%s201 + $0x7a08] sm:$0xff]
        %v4179 = vld [vmem:[%s201 + $0x7a10] sm:$0xff]
        %v4180 = vld [vmem:[%s201 + $0x7a18] sm:$0xff]
        %v4181 = vld [vmem:[%s201 + $0x7a20] sm:$0xff]
        %v4182 = vld [vmem:[%s201 + $0x7a28] sm:$0xff]
        %v4183 = vld [vmem:[%s201 + $0x7a30] sm:$0xff]
        %v4184 = vld [vmem:[%s201 + $0x7a38] sm:$0xff]
        %v4185 = vld [vmem:[%s201 + $0x7a40] sm:$0xff]
        %v4186 = vld [vmem:[%s201 + $0x7a48] sm:$0xff]
        %v4187 = vld [vmem:[%s201 + $0x7a50] sm:$0xff]
        %v4188 = vld [vmem:[%s201 + $0x7a58] sm:$0xff]
        %v4189 = vld [vmem:[%s201 + $0x7a60] sm:$0xff]
        %v4190 = vld [vmem:[%s201 + $0x7a68] sm:$0xff]
        %v4191 = vld [vmem:[%s201 + $0x7a70] sm:$0xff]
        %v4192 = vld [vmem:[%s201 + $0x7a78] sm:$0xff]
        %v4193 = vld [vmem:[%s201 + $0x7a80] sm:$0xff]
        %v4194 = vld [vmem:[%s201 + $0x7a88] sm:$0xff]
        %v4195 = vld [vmem:[%s201 + $0x7a90] sm:$0xff]
        %v4196 = vld [vmem:[%s201 + $0x7a98] sm:$0xff]
        %v4197 = vld [vmem:[%s201 + $0x7aa0] sm:$0xff]
        %v4198 = vld [vmem:[%s201 + $0x7aa8] sm:$0xff]
        %v4199 = vld [vmem:[%s201 + $0x7ab0] sm:$0xff]
        %v4200 = vld [vmem:[%s201 + $0x7ab8] sm:$0xff]
        %v4201 = vld [vmem:[%s201 + $0x7ac0] sm:$0xff]
        %v4202 = vld [vmem:[%s201 + $0x7ac8] sm:$0xff]
        %v4203 = vld [vmem:[%s201 + $0x7ad0] sm:$0xff]
        %v4204 = vld [vmem:[%s201 + $0x7ad8] sm:$0xff]
        %v4205 = vld [vmem:[%s201 + $0x7ae0] sm:$0xff]
        %v4206 = vld [vmem:[%s201 + $0x7ae8] sm:$0xff]
        %v4207 = vld [vmem:[%s201 + $0x7af0] sm:$0xff]
        %v4208 = vld [vmem:[%s201 + $0x7af8] sm:$0xff]
        %v4209 = vld [vmem:[%s201 + $0x7b00] sm:$0xff]
        %v4210 = vld [vmem:[%s201 + $0x7b08] sm:$0xff]
        %v4211 = vld [vmem:[%s201 + $0x7b10] sm:$0xff]
        %v4212 = vld [vmem:[%s201 + $0x7b18] sm:$0xff]
        %v4213 = vld [vmem:[%s201 + $0x7b20] sm:$0xff]
        %v4214 = vld [vmem:[%s201 + $0x7b28] sm:$0xff]
        %v4215 = vld [vmem:[%s201 + $0x7b30] sm:$0xff]
        %v4216 = vld [vmem:[%s201 + $0x7b38] sm:$0xff]
        %v4217 = vld [vmem:[%s201 + $0x7b40] sm:$0xff]
        %v4218 = vld [vmem:[%s201 + $0x7b48] sm:$0xff]
        %v4219 = vld [vmem:[%s201 + $0x7b50] sm:$0xff]
        %v4220 = vld [vmem:[%s201 + $0x7b58] sm:$0xff]
        %v4221 = vld [vmem:[%s201 + $0x7b60] sm:$0xff]
        %v4222 = vld [vmem:[%s201 + $0x7b68] sm:$0xff]
        %v4223 = vld [vmem:[%s201 + $0x7b70] sm:$0xff]
        %v4224 = vld [vmem:[%s201 + $0x7b78] sm:$0xff]
        %v4225 = vld [vmem:[%s201 + $0x7b80] sm:$0xff]
        %v4226 = vld [vmem:[%s201 + $0x7b88] sm:$0xff]
        %v4227 = vld [vmem:[%s201 + $0x7b90] sm:$0xff]
        %v4228 = vld [vmem:[%s201 + $0x7b98] sm:$0xff]
        %v4229 = vld [vmem:[%s201 + $0x7ba0] sm:$0xff]
        %v4230 = vld [vmem:[%s201 + $0x7ba8] sm:$0xff]
        %v4231 = vld [vmem:[%s201 + $0x7bb0] sm:$0xff]
        %v4232 = vld [vmem:[%s201 + $0x7bb8] sm:$0xff]
        %v4233 = vld [vmem:[%s201 + $0x7bc0] sm:$0xff]
        %v4234 = vld [vmem:[%s201 + $0x7bc8] sm:$0xff]
        %v4235 = vld [vmem:[%s201 + $0x7bd0] sm:$0xff]
        %v4236 = vld [vmem:[%s201 + $0x7bd8] sm:$0xff]
        %v4237 = vld [vmem:[%s201 + $0x7be0] sm:$0xff]
        %v4238 = vld [vmem:[%s201 + $0x7be8] sm:$0xff]
        %v4239 = vld [vmem:[%s201 + $0x7bf0] sm:$0xff]
        %v4240 = vld [vmem:[%s201 + $0x7bf8] sm:$0xff]
        %v4241 = vld [vmem:[%s201 + $0x7c00] sm:$0xff]
        %v4242 = vld [vmem:[%s201 + $0x7c08] sm:$0xff]
        %v4243 = vld [vmem:[%s201 + $0x7c10] sm:$0xff]
        %v4244 = vld [vmem:[%s201 + $0x7c18] sm:$0xff]
        %v4245 = vld [vmem:[%s201 + $0x7c20] sm:$0xff]
        %v4246 = vld [vmem:[%s201 + $0x7c28] sm:$0xff]
        %v4247 = vld [vmem:[%s201 + $0x7c30] sm:$0xff]
        %v4248 = vld [vmem:[%s201 + $0x7c38] sm:$0xff]
        %v4249 = vld [vmem:[%s201 + $0x7c40] sm:$0xff]
        %v4250 = vld [vmem:[%s201 + $0x7c48] sm:$0xff]
        %v4251 = vld [vmem:[%s201 + $0x7c50] sm:$0xff]
        %v4252 = vld [vmem:[%s201 + $0x7c58] sm:$0xff]
        %v4253 = vld [vmem:[%s201 + $0x7c60] sm:$0xff]
        %v4254 = vld [vmem:[%s201 + $0x7c68] sm:$0xff]
        %v4255 = vld [vmem:[%s201 + $0x7c70] sm:$0xff]
        %v4256 = vld [vmem:[%s201 + $0x7c78] sm:$0xff]
        %v4257 = vld [vmem:[%s201 + $0x7c80] sm:$0xff]
        %v4258 = vld [vmem:[%s201 + $0x7c88] sm:$0xff]
        %v4259 = vld [vmem:[%s201 + $0x7c90] sm:$0xff]
        %v4260 = vld [vmem:[%s201 + $0x7c98] sm:$0xff]
        %v4261 = vld [vmem:[%s201 + $0x7ca0] sm:$0xff]
        %v4262 = vld [vmem:[%s201 + $0x7ca8] sm:$0xff]
        %v4263 = vld [vmem:[%s201 + $0x7cb0] sm:$0xff]
        %v4264 = vld [vmem:[%s201 + $0x7cb8] sm:$0xff]
        %v4265 = vld [vmem:[%s201 + $0x7cc0] sm:$0xff]
        %v4266 = vld [vmem:[%s201 + $0x7cc8] sm:$0xff]
        %v4267 = vld [vmem:[%s201 + $0x7cd0] sm:$0xff]
        %v4268 = vld [vmem:[%s201 + $0x7cd8] sm:$0xff]
        %v4269 = vld [vmem:[%s201 + $0x7ce0] sm:$0xff]
        %v4270 = vld [vmem:[%s201 + $0x7ce8] sm:$0xff]
        %v4271 = vld [vmem:[%s201 + $0x7cf0] sm:$0xff]
        %v4272 = vld [vmem:[%s201 + $0x7cf8] sm:$0xff]
        %v4273 = vld [vmem:[%s201 + $0x7d00] sm:$0xff]
        %v4274 = vld [vmem:[%s201 + $0x7d08] sm:$0xff]
        %v4275 = vld [vmem:[%s201 + $0x7d10] sm:$0xff]
        %v4276 = vld [vmem:[%s201 + $0x7d18] sm:$0xff]
        %v4277 = vld [vmem:[%s201 + $0x7d20] sm:$0xff]
        %v4278 = vld [vmem:[%s201 + $0x7d28] sm:$0xff]
        %v4279 = vld [vmem:[%s201 + $0x7d30] sm:$0xff]
        %v4280 = vld [vmem:[%s201 + $0x7d38] sm:$0xff]
        %v4281 = vld [vmem:[%s201 + $0x7d40] sm:$0xff]
        %v4282 = vld [vmem:[%s201 + $0x7d48] sm:$0xff]
        %v4283 = vld [vmem:[%s201 + $0x7d50] sm:$0xff]
        %v4284 = vld [vmem:[%s201 + $0x7d58] sm:$0xff]
        %v4285 = vld [vmem:[%s201 + $0x7d60] sm:$0xff]
        %v4286 = vld [vmem:[%s201 + $0x7d68] sm:$0xff]
        %v4287 = vld [vmem:[%s201 + $0x7d70] sm:$0xff]
        %v4288 = vld [vmem:[%s201 + $0x7d78] sm:$0xff]
        %v4289 = vld [vmem:[%s201 + $0x7d80] sm:$0xff]
        %v4290 = vld [vmem:[%s201 + $0x7d88] sm:$0xff]
        %v4291 = vld [vmem:[%s201 + $0x7d90] sm:$0xff]
        %v4292 = vld [vmem:[%s201 + $0x7d98] sm:$0xff]
        %v4293 = vld [vmem:[%s201 + $0x7da0] sm:$0xff]
        %v4294 = vld [vmem:[%s201 + $0x7da8] sm:$0xff]
        %v4295 = vld [vmem:[%s201 + $0x7db0] sm:$0xff]
        %v4296 = vld [vmem:[%s201 + $0x7db8] sm:$0xff]
        %v4297 = vld [vmem:[%s201 + $0x7dc0] sm:$0xff]
        %v4298 = vld [vmem:[%s201 + $0x7dc8] sm:$0xff]
        %v4299 = vld [vmem:[%s201 + $0x7dd0] sm:$0xff]
        %v4300 = vld [vmem:[%s201 + $0x7dd8] sm:$0xff]
        %v4301 = vld [vmem:[%s201 + $0x7de0] sm:$0xff]
        %v4302 = vld [vmem:[%s201 + $0x7de8] sm:$0xff]
        %v4303 = vld [vmem:[%s201 + $0x7df0] sm:$0xff]
        %v4304 = vld [vmem:[%s201 + $0x7df8] sm:$0xff]
        %v4305 = vld [vmem:[%s201 + $0x7e00] sm:$0xff]
        %v4306 = vld [vmem:[%s201 + $0x7e08] sm:$0xff]
        %v4307 = vld [vmem:[%s201 + $0x7e10] sm:$0xff]
        %v4308 = vld [vmem:[%s201 + $0x7e18] sm:$0xff]
        %v4309 = vld [vmem:[%s201 + $0x7e20] sm:$0xff]
        %v4310 = vld [vmem:[%s201 + $0x7e28] sm:$0xff]
        %v4311 = vld [vmem:[%s201 + $0x7e30] sm:$0xff]
        %v4312 = vld [vmem:[%s201 + $0x7e38] sm:$0xff]
        %v4313 = vld [vmem:[%s201 + $0x7e40] sm:$0xff]
        %v4314 = vld [vmem:[%s201 + $0x7e48] sm:$0xff]
        %v4315 = vld [vmem:[%s201 + $0x7e50] sm:$0xff]
        %v4316 = vld [vmem:[%s201 + $0x7e58] sm:$0xff]
        %v4317 = vld [vmem:[%s201 + $0x7e60] sm:$0xff]
        %v4318 = vld [vmem:[%s201 + $0x7e68] sm:$0xff]
        %v4319 = vld [vmem:[%s201 + $0x7e70] sm:$0xff]
        %v4320 = vld [vmem:[%s201 + $0x7e78] sm:$0xff]
        %v4321 = vld [vmem:[%s201 + $0x7e80] sm:$0xff]
        %v4322 = vld [vmem:[%s201 + $0x7e88] sm:$0xff]
        %v4323 = vld [vmem:[%s201 + $0x7e90] sm:$0xff]
        %v4324 = vld [vmem:[%s201 + $0x7e98] sm:$0xff]
        %v4325 = vld [vmem:[%s201 + $0x7ea0] sm:$0xff]
        %v4326 = vld [vmem:[%s201 + $0x7ea8] sm:$0xff]
        %v4327 = vld [vmem:[%s201 + $0x7eb0] sm:$0xff]
        %v4328 = vld [vmem:[%s201 + $0x7eb8] sm:$0xff]
        %v4329 = vld [vmem:[%s201 + $0x7ec0] sm:$0xff]
        %v4330 = vld [vmem:[%s201 + $0x7ec8] sm:$0xff]
        %v4331 = vld [vmem:[%s201 + $0x7ed0] sm:$0xff]
        %v4332 = vld [vmem:[%s201 + $0x7ed8] sm:$0xff]
        %v4333 = vld [vmem:[%s201 + $0x7ee0] sm:$0xff]
        %v4334 = vld [vmem:[%s201 + $0x7ee8] sm:$0xff]
        %v4335 = vld [vmem:[%s201 + $0x7ef0] sm:$0xff]
        %v4336 = vld [vmem:[%s201 + $0x7ef8] sm:$0xff]
        %v4337 = vld [vmem:[%s201 + $0x7f00] sm:$0xff]
        %v4338 = vld [vmem:[%s201 + $0x7f08] sm:$0xff]
        %v4339 = vld [vmem:[%s201 + $0x7f10] sm:$0xff]
        %v4340 = vld [vmem:[%s201 + $0x7f18] sm:$0xff]
        %v4341 = vld [vmem:[%s201 + $0x7f20] sm:$0xff]
        %v4342 = vld [vmem:[%s201 + $0x7f28] sm:$0xff]
        %v4343 = vld [vmem:[%s201 + $0x7f30] sm:$0xff]
        %v4344 = vld [vmem:[%s201 + $0x7f38] sm:$0xff]
        %v4345 = vld [vmem:[%s201 + $0x7f40] sm:$0xff]
        %v4346 = vld [vmem:[%s201 + $0x7f48] sm:$0xff]
        %v4347 = vld [vmem:[%s201 + $0x7f50] sm:$0xff]
        %v4348 = vld [vmem:[%s201 + $0x7f58] sm:$0xff]
        %v4349 = vld [vmem:[%s201 + $0x7f60] sm:$0xff]
        %v4350 = vld [vmem:[%s201 + $0x7f68] sm:$0xff]
        %v4351 = vld [vmem:[%s201 + $0x7f70] sm:$0xff]
        %v4352 = vld [vmem:[%s201 + $0x7f78] sm:$0xff]
        %v4353 = vld [vmem:[%s201 + $0x7f80] sm:$0xff]
        %v4354 = vld [vmem:[%s201 + $0x7f88] sm:$0xff]
        %v4355 = vld [vmem:[%s201 + $0x7f90] sm:$0xff]
        %v4356 = vld [vmem:[%s201 + $0x7f98] sm:$0xff]
        %v4357 = vld [vmem:[%s201 + $0x7fa0] sm:$0xff]
        %v4358 = vld [vmem:[%s201 + $0x7fa8] sm:$0xff]
        %v4359 = vld [vmem:[%s201 + $0x7fb0] sm:$0xff]
        %v4360 = vld [vmem:[%s201 + $0x7fb8] sm:$0xff]
        %v4361 = vld [vmem:[%s201 + $0x7fc0] sm:$0xff]
        %v4362 = vld [vmem:[%s201 + $0x7fc8] sm:$0xff]
        %v4363 = vld [vmem:[%s201 + $0x7fd0] sm:$0xff]
        %v4364 = vld [vmem:[%s201 + $0x7fd8] sm:$0xff]
        %v4365 = vld [vmem:[%s201 + $0x7fe0] sm:$0xff]
        %v4366 = vld [vmem:[%s201 + $0x7fe8] sm:$0xff]
        %v4367 = vld [vmem:[%s201 + $0x7ff0] sm:$0xff]
        %v4368 = vld [vmem:[%s201 + $0x7ff8] sm:$0xff]
        %v4369 = vld [vmem:[%s210] sm:$0xff]
        %v4371 = vlaneseq
        %v4372 = vshrl.u32 %v4371, 7
        %v4373 = vsub.s32 0, %v4372
        %v4374 = vrot.slane %v4369, %v4373
        %v4375 = vlaneseq
        %v4376 = vshrl.u32 %v4375, 7
        %v4377 = vsub.s32 1, %v4376
        %v4378 = vrot.slane %v4369, %v4377
        %v4379 = vlaneseq
        %v4380 = vshrl.u32 %v4379, 7
        %v4381 = vsub.s32 2, %v4380
        %v4382 = vrot.slane %v4369, %v4381
        %v4383 = vlaneseq
        %v4384 = vshrl.u32 %v4383, 7
        %v4385 = vsub.s32 3, %v4384
        %v4386 = vrot.slane %v4369, %v4385
        %v4387 = vlaneseq
        %v4388 = vshrl.u32 %v4387, 7
        %v4389 = vsub.s32 4, %v4388
        %v4390 = vrot.slane %v4369, %v4389
        %v4391 = vlaneseq
        %v4392 = vshrl.u32 %v4391, 7
        %v4393 = vsub.s32 5, %v4392
        %v4394 = vrot.slane %v4369, %v4393
        %v4395 = vlaneseq
        %v4396 = vshrl.u32 %v4395, 7
        %v4397 = vsub.s32 6, %v4396
        %v4398 = vrot.slane %v4369, %v4397
        %v4399 = vlaneseq
        %v4400 = vshrl.u32 %v4399, 7
        %v4401 = vsub.s32 7, %v4400
        %v4402 = vrot.slane %v4369, %v4401
        %4411 = vmatprep.subr.mxu0 %v754
        %4412 = vmatpush1.xpose.msra.mxu0 %v753
        %4413 = vmatprep.subr.mxu0 %v722
        %4414 = vmatpush1.xpose.msra.mxu0 %v721
        %4415 = vmatprep.subr.mxu0 %v690
        %4416 = vmatpush1.xpose.msra.mxu0 %v689
        %4417 = vmatprep.subr.mxu0 %v658
        %4418 = vmatpush1.xpose.msra.mxu0 %v657
        %4419 = vmatprep.subr.mxu0 %v626
        %4420 = vmatpush1.xpose.msra.mxu0 %v625
        %4421 = vmatprep.subr.mxu0 %v594
        %4422 = vmatpush1.xpose.msra.mxu0 %v593
        %4423 = vmatprep.subr.mxu0 %v562
        %4424 = vmatpush1.xpose.msra.mxu0 %v561
        %4425 = vmatprep.subr.mxu0 %v530
        %4426 = vmatpush1.xpose.msra.mxu0 %v529
        %4427 = vmatprep.subr.mxu0 %v498
        %4428 = vmatpush1.xpose.msra.mxu0 %v497
        %4429 = vmatprep.subr.mxu0 %v466
        %4430 = vmatpush1.xpose.msra.mxu0 %v465
        %4431 = vmatprep.subr.mxu0 %v434
        %4432 = vmatpush1.xpose.msra.mxu0 %v433
        %4433 = vmatprep.subr.mxu0 %v402
        %4434 = vmatpush1.xpose.msra.mxu0 %v401
        %4435 = vmatprep.subr.mxu0 %v370
        %4436 = vmatpush1.xpose.msra.mxu0 %v369
        %4437 = vmatprep.subr.mxu0 %v338
        %4438 = vmatpush1.xpose.msra.mxu0 %v337
        %4439 = vmatprep.subr.mxu0 %v306
        %4440 = vmatpush1.xpose.msra.mxu0 %v305
        %4441 = vmatprep.subr.mxu0 %v274
        %4442 = vmatpush1.xpose.msra.mxu0 %v273
        %4443 = vmatprep.subr.mxu0 %v1266
        %4444 = vmatpush2.xpose.msra.mxu0 %v1265
        %4445 = vmatprep.subr.mxu0 %v1234
        %4446 = vmatpush2.xpose.msra.mxu0 %v1233
        %4447 = vmatprep.subr.mxu0 %v1202
        %4448 = vmatpush2.xpose.msra.mxu0 %v1201
        %4449 = vmatprep.subr.mxu0 %v1170
        %4450 = vmatpush2.xpose.msra.mxu0 %v1169
        %4451 = vmatprep.subr.mxu0 %v1138
        %4452 = vmatpush2.xpose.msra.mxu0 %v1137
        %4453 = vmatprep.subr.mxu0 %v1106
        %4454 = vmatpush2.xpose.msra.mxu0 %v1105
        %4455 = vmatprep.subr.mxu0 %v1074
        %4456 = vmatpush2.xpose.msra.mxu0 %v1073
        %4457 = vmatprep.subr.mxu0 %v1042
        %4458 = vmatpush2.xpose.msra.mxu0 %v1041
        %4459 = vmatprep.subr.mxu0 %v1010
        %4460 = vmatpush2.xpose.msra.mxu0 %v1009
        %4461 = vmatprep.subr.mxu0 %v978
        %4462 = vmatpush2.xpose.msra.mxu0 %v977
        %4463 = vmatprep.subr.mxu0 %v946
        %4464 = vmatpush2.xpose.msra.mxu0 %v945
        %4465 = vmatprep.subr.mxu0 %v914
        %4466 = vmatpush2.xpose.msra.mxu0 %v913
        %4467 = vmatprep.subr.mxu0 %v882
        %4468 = vmatpush2.xpose.msra.mxu0 %v881
        %4469 = vmatprep.subr.mxu0 %v850
        %4470 = vmatpush2.xpose.msra.mxu0 %v849
        %4471 = vmatprep.subr.mxu0 %v818
        %4472 = vmatpush2.xpose.msra.mxu0 %v817
        %4473 = vmatprep.subr.mxu0 %v786
        %4474 = vmatpush2.xpose.msra.mxu0 %v785
        %4475 = vmatprep.mubr.f32.mxu0 %v242
        %4476 = vmatmul.mubr.f32.gmra.mxu0 %v241
        %v4477 = vpop.f32.mrf.mxu0
        %v4478 = vadd.f32 %v4374, %v4477
        %v4479 = vpop.f32.mrf.mxu0
        %v4480 = vadd.f32 %v4378, %v4479
        %4481 = vdwg.mxu0
        %4482 = vmatprep.subr.mxu0 %v756
        %4483 = vmatpush1.xpose.msra.mxu0 %v755
        %4484 = vmatprep.subr.mxu0 %v724
        %4485 = vmatpush1.xpose.msra.mxu0 %v723
        %4486 = vmatprep.subr.mxu0 %v692
        %4487 = vmatpush1.xpose.msra.mxu0 %v691
        %4488 = vmatprep.subr.mxu0 %v660
        %4489 = vmatpush1.xpose.msra.mxu0 %v659
        %4490 = vmatprep.subr.mxu0 %v628
        %4491 = vmatpush1.xpose.msra.mxu0 %v627
        %4492 = vmatprep.subr.mxu0 %v596
        %4493 = vmatpush1.xpose.msra.mxu0 %v595
        %4494 = vmatprep.subr.mxu0 %v564
        %4495 = vmatpush1.xpose.msra.mxu0 %v563
        %4496 = vmatprep.subr.mxu0 %v532
        %4497 = vmatpush1.xpose.msra.mxu0 %v531
        %4498 = vmatprep.subr.mxu0 %v500
        %4499 = vmatpush1.xpose.msra.mxu0 %v499
        %4500 = vmatprep.subr.mxu0 %v468
        %4501 = vmatpush1.xpose.msra.mxu0 %v467
        %4502 = vmatprep.subr.mxu0 %v436
        %4503 = vmatpush1.xpose.msra.mxu0 %v435
        %4504 = vmatprep.subr.mxu0 %v404
        %4505 = vmatpush1.xpose.msra.mxu0 %v403
        %4506 = vmatprep.subr.mxu0 %v372
        %4507 = vmatpush1.xpose.msra.mxu0 %v371
        %4508 = vmatprep.subr.mxu0 %v340
        %4509 = vmatpush1.xpose.msra.mxu0 %v339
        %4510 = vmatprep.subr.mxu0 %v308
        %4511 = vmatpush1.xpose.msra.mxu0 %v307
        %4512 = vmatprep.subr.mxu0 %v276
        %4513 = vmatpush1.xpose.msra.mxu0 %v275
        %4514 = vmatprep.subr.mxu0 %v1268
        %4515 = vmatpush2.xpose.msra.mxu0 %v1267
        %4516 = vmatprep.subr.mxu0 %v1236
        %4517 = vmatpush2.xpose.msra.mxu0 %v1235
        %4518 = vmatprep.subr.mxu0 %v1204
        %4519 = vmatpush2.xpose.msra.mxu0 %v1203
        %4520 = vmatprep.subr.mxu0 %v1172
        %4521 = vmatpush2.xpose.msra.mxu0 %v1171
        %4522 = vmatprep.subr.mxu0 %v1140
        %4523 = vmatpush2.xpose.msra.mxu0 %v1139
        %4524 = vmatprep.subr.mxu0 %v1108
        %4525 = vmatpush2.xpose.msra.mxu0 %v1107
        %4526 = vmatprep.subr.mxu0 %v1076
        %4527 = vmatpush2.xpose.msra.mxu0 %v1075
        %4528 = vmatprep.subr.mxu0 %v1044
        %4529 = vmatpush2.xpose.msra.mxu0 %v1043
        %4530 = vmatprep.subr.mxu0 %v1012
        %4531 = vmatpush2.xpose.msra.mxu0 %v1011
        %4532 = vmatprep.subr.mxu0 %v980
        %4533 = vmatpush2.xpose.msra.mxu0 %v979
        %4534 = vmatprep.subr.mxu0 %v948
        %4535 = vmatpush2.xpose.msra.mxu0 %v947
        %4536 = vmatprep.subr.mxu0 %v916
        %4537 = vmatpush2.xpose.msra.mxu0 %v915
        %4538 = vmatprep.subr.mxu0 %v884
        %4539 = vmatpush2.xpose.msra.mxu0 %v883
        %4540 = vmatprep.subr.mxu0 %v852
        %4541 = vmatpush2.xpose.msra.mxu0 %v851
        %4542 = vmatprep.subr.mxu0 %v820
        %4543 = vmatpush2.xpose.msra.mxu0 %v819
        %4544 = vmatprep.subr.mxu0 %v788
        %4545 = vmatpush2.xpose.msra.mxu0 %v787
        %4546 = vmatprep.mubr.f32.mxu0 %v244
        %4547 = vmatmul.mubr.f32.gmra.mxu0 %v243
        %v4548 = vpop.f32.mrf.mxu0
        %v4549 = vadd.f32 %v4478, %v4548
        %v4550 = vpop.f32.mrf.mxu0
        %v4551 = vadd.f32 %v4480, %v4550
        %4552 = vdwg.mxu0
        %4553 = vmatprep.subr.mxu0 %v758
        %4554 = vmatpush1.xpose.msra.mxu0 %v757
        %4555 = vmatprep.subr.mxu0 %v726
        %4556 = vmatpush1.xpose.msra.mxu0 %v725
        %4557 = vmatprep.subr.mxu0 %v694
        %4558 = vmatpush1.xpose.msra.mxu0 %v693
        %4559 = vmatprep.subr.mxu0 %v662
        %4560 = vmatpush1.xpose.msra.mxu0 %v661
        %4561 = vmatprep.subr.mxu0 %v630
        %4562 = vmatpush1.xpose.msra.mxu0 %v629
        %4563 = vmatprep.subr.mxu0 %v598
        %4564 = vmatpush1.xpose.msra.mxu0 %v597
        %4565 = vmatprep.subr.mxu0 %v566
        %4566 = vmatpush1.xpose.msra.mxu0 %v565
        %4567 = vmatprep.subr.mxu0 %v534
        %4568 = vmatpush1.xpose.msra.mxu0 %v533
        %4569 = vmatprep.subr.mxu0 %v502
        %4570 = vmatpush1.xpose.msra.mxu0 %v501
        %4571 = vmatprep.subr.mxu0 %v470
        %4572 = vmatpush1.xpose.msra.mxu0 %v469
        %4573 = vmatprep.subr.mxu0 %v438
        %4574 = vmatpush1.xpose.msra.mxu0 %v437
        %4575 = vmatprep.subr.mxu0 %v406
        %4576 = vmatpush1.xpose.msra.mxu0 %v405
        %4577 = vmatprep.subr.mxu0 %v374
        %4578 = vmatpush1.xpose.msra.mxu0 %v373
        %4579 = vmatprep.subr.mxu0 %v342
        %4580 = vmatpush1.xpose.msra.mxu0 %v341
        %4581 = vmatprep.subr.mxu0 %v310
        %4582 = vmatpush1.xpose.msra.mxu0 %v309
        %4583 = vmatprep.subr.mxu0 %v278
        %4584 = vmatpush1.xpose.msra.mxu0 %v277
        %4585 = vmatprep.subr.mxu0 %v1270
        %4586 = vmatpush2.xpose.msra.mxu0 %v1269
        %4587 = vmatprep.subr.mxu0 %v1238
        %4588 = vmatpush2.xpose.msra.mxu0 %v1237
        %4589 = vmatprep.subr.mxu0 %v1206
        %4590 = vmatpush2.xpose.msra.mxu0 %v1205
        %4591 = vmatprep.subr.mxu0 %v1174
        %4592 = vmatpush2.xpose.msra.mxu0 %v1173
        %4593 = vmatprep.subr.mxu0 %v1142
        %4594 = vmatpush2.xpose.msra.mxu0 %v1141
        %4595 = vmatprep.subr.mxu0 %v1110
        %4596 = vmatpush2.xpose.msra.mxu0 %v1109
        %4597 = vmatprep.subr.mxu0 %v1078
        %4598 = vmatpush2.xpose.msra.mxu0 %v1077
        %4599 = vmatprep.subr.mxu0 %v1046
        %4600 = vmatpush2.xpose.msra.mxu0 %v1045
        %4601 = vmatprep.subr.mxu0 %v1014
        %4602 = vmatpush2.xpose.msra.mxu0 %v1013
        %4603 = vmatprep.subr.mxu0 %v982
        %4604 = vmatpush2.xpose.msra.mxu0 %v981
        %4605 = vmatprep.subr.mxu0 %v950
        %4606 = vmatpush2.xpose.msra.mxu0 %v949
        %4607 = vmatprep.subr.mxu0 %v918
        %4608 = vmatpush2.xpose.msra.mxu0 %v917
        %4609 = vmatprep.subr.mxu0 %v886
        %4610 = vmatpush2.xpose.msra.mxu0 %v885
        %4611 = vmatprep.subr.mxu0 %v854
        %4612 = vmatpush2.xpose.msra.mxu0 %v853
        %4613 = vmatprep.subr.mxu0 %v822
        %4614 = vmatpush2.xpose.msra.mxu0 %v821
        %4615 = vmatprep.subr.mxu0 %v790
        %4616 = vmatpush2.xpose.msra.mxu0 %v789
        %4617 = vmatprep.mubr.f32.mxu0 %v246
        %4618 = vmatmul.mubr.f32.gmra.mxu0 %v245
        %v4619 = vpop.f32.mrf.mxu0
        %v4620 = vadd.f32 %v4549, %v4619
        %v4621 = vpop.f32.mrf.mxu0
        %v4622 = vadd.f32 %v4551, %v4621
        %4623 = vdwg.mxu0
        %4624 = vmatprep.subr.mxu0 %v760
        %4625 = vmatpush1.xpose.msra.mxu0 %v759
        %4626 = vmatprep.subr.mxu0 %v728
        %4627 = vmatpush1.xpose.msra.mxu0 %v727
        %4628 = vmatprep.subr.mxu0 %v696
        %4629 = vmatpush1.xpose.msra.mxu0 %v695
        %4630 = vmatprep.subr.mxu0 %v664
        %4631 = vmatpush1.xpose.msra.mxu0 %v663
        %4632 = vmatprep.subr.mxu0 %v632
        %4633 = vmatpush1.xpose.msra.mxu0 %v631
        %4634 = vmatprep.subr.mxu0 %v600
        %4635 = vmatpush1.xpose.msra.mxu0 %v599
        %4636 = vmatprep.subr.mxu0 %v568
        %4637 = vmatpush1.xpose.msra.mxu0 %v567
        %4638 = vmatprep.subr.mxu0 %v536
        %4639 = vmatpush1.xpose.msra.mxu0 %v535
        %4640 = vmatprep.subr.mxu0 %v504
        %4641 = vmatpush1.xpose.msra.mxu0 %v503
        %4642 = vmatprep.subr.mxu0 %v472
        %4643 = vmatpush1.xpose.msra.mxu0 %v471
        %4644 = vmatprep.subr.mxu0 %v440
        %4645 = vmatpush1.xpose.msra.mxu0 %v439
        %4646 = vmatprep.subr.mxu0 %v408
        %4647 = vmatpush1.xpose.msra.mxu0 %v407
        %4648 = vmatprep.subr.mxu0 %v376
        %4649 = vmatpush1.xpose.msra.mxu0 %v375
        %4650 = vmatprep.subr.mxu0 %v344
        %4651 = vmatpush1.xpose.msra.mxu0 %v343
        %4652 = vmatprep.subr.mxu0 %v312
        %4653 = vmatpush1.xpose.msra.mxu0 %v311
        %4654 = vmatprep.subr.mxu0 %v280
        %4655 = vmatpush1.xpose.msra.mxu0 %v279
        %4656 = vmatprep.subr.mxu0 %v1272
        %4657 = vmatpush2.xpose.msra.mxu0 %v1271
        %4658 = vmatprep.subr.mxu0 %v1240
        %4659 = vmatpush2.xpose.msra.mxu0 %v1239
        %4660 = vmatprep.subr.mxu0 %v1208
        %4661 = vmatpush2.xpose.msra.mxu0 %v1207
        %4662 = vmatprep.subr.mxu0 %v1176
        %4663 = vmatpush2.xpose.msra.mxu0 %v1175
        %4664 = vmatprep.subr.mxu0 %v1144
        %4665 = vmatpush2.xpose.msra.mxu0 %v1143
        %4666 = vmatprep.subr.mxu0 %v1112
        %4667 = vmatpush2.xpose.msra.mxu0 %v1111
        %4668 = vmatprep.subr.mxu0 %v1080
        %4669 = vmatpush2.xpose.msra.mxu0 %v1079
        %4670 = vmatprep.subr.mxu0 %v1048
        %4671 = vmatpush2.xpose.msra.mxu0 %v1047
        %4672 = vmatprep.subr.mxu0 %v1016
        %4673 = vmatpush2.xpose.msra.mxu0 %v1015
        %4674 = vmatprep.subr.mxu0 %v984
        %4675 = vmatpush2.xpose.msra.mxu0 %v983
        %4676 = vmatprep.subr.mxu0 %v952
        %4677 = vmatpush2.xpose.msra.mxu0 %v951
        %4678 = vmatprep.subr.mxu0 %v920
        %4679 = vmatpush2.xpose.msra.mxu0 %v919
        %4680 = vmatprep.subr.mxu0 %v888
        %4681 = vmatpush2.xpose.msra.mxu0 %v887
        %4682 = vmatprep.subr.mxu0 %v856
        %4683 = vmatpush2.xpose.msra.mxu0 %v855
        %4684 = vmatprep.subr.mxu0 %v824
        %4685 = vmatpush2.xpose.msra.mxu0 %v823
        %4686 = vmatprep.subr.mxu0 %v792
        %4687 = vmatpush2.xpose.msra.mxu0 %v791
        %4688 = vmatprep.mubr.f32.mxu0 %v248
        %4689 = vmatmul.mubr.f32.gmra.mxu0 %v247
        %v4690 = vpop.f32.mrf.mxu0
        %v4691 = vadd.f32 %v4620, %v4690
        %v4692 = vpop.f32.mrf.mxu0
        %v4693 = vadd.f32 %v4622, %v4692
        %4694 = vdwg.mxu0
        %4695 = vmatprep.subr.mxu0 %v762
        %4696 = vmatpush1.xpose.msra.mxu0 %v761
        %4697 = vmatprep.subr.mxu0 %v730
        %4698 = vmatpush1.xpose.msra.mxu0 %v729
        %4699 = vmatprep.subr.mxu0 %v698
        %4700 = vmatpush1.xpose.msra.mxu0 %v697
        %4701 = vmatprep.subr.mxu0 %v666
        %4702 = vmatpush1.xpose.msra.mxu0 %v665
        %4703 = vmatprep.subr.mxu0 %v634
        %4704 = vmatpush1.xpose.msra.mxu0 %v633
        %4705 = vmatprep.subr.mxu0 %v602
        %4706 = vmatpush1.xpose.msra.mxu0 %v601
        %4707 = vmatprep.subr.mxu0 %v570
        %4708 = vmatpush1.xpose.msra.mxu0 %v569
        %4709 = vmatprep.subr.mxu0 %v538
        %4710 = vmatpush1.xpose.msra.mxu0 %v537
        %4711 = vmatprep.subr.mxu0 %v506
        %4712 = vmatpush1.xpose.msra.mxu0 %v505
        %4713 = vmatprep.subr.mxu0 %v474
        %4714 = vmatpush1.xpose.msra.mxu0 %v473
        %4715 = vmatprep.subr.mxu0 %v442
        %4716 = vmatpush1.xpose.msra.mxu0 %v441
        %4717 = vmatprep.subr.mxu0 %v410
        %4718 = vmatpush1.xpose.msra.mxu0 %v409
        %4719 = vmatprep.subr.mxu0 %v378
        %4720 = vmatpush1.xpose.msra.mxu0 %v377
        %4721 = vmatprep.subr.mxu0 %v346
        %4722 = vmatpush1.xpose.msra.mxu0 %v345
        %4723 = vmatprep.subr.mxu0 %v314
        %4724 = vmatpush1.xpose.msra.mxu0 %v313
        %4725 = vmatprep.subr.mxu0 %v282
        %4726 = vmatpush1.xpose.msra.mxu0 %v281
        %4727 = vmatprep.subr.mxu0 %v1274
        %4728 = vmatpush2.xpose.msra.mxu0 %v1273
        %4729 = vmatprep.subr.mxu0 %v1242
        %4730 = vmatpush2.xpose.msra.mxu0 %v1241
        %4731 = vmatprep.subr.mxu0 %v1210
        %4732 = vmatpush2.xpose.msra.mxu0 %v1209
        %4733 = vmatprep.subr.mxu0 %v1178
        %4734 = vmatpush2.xpose.msra.mxu0 %v1177
        %4735 = vmatprep.subr.mxu0 %v1146
        %4736 = vmatpush2.xpose.msra.mxu0 %v1145
        %4737 = vmatprep.subr.mxu0 %v1114
        %4738 = vmatpush2.xpose.msra.mxu0 %v1113
        %4739 = vmatprep.subr.mxu0 %v1082
        %4740 = vmatpush2.xpose.msra.mxu0 %v1081
        %4741 = vmatprep.subr.mxu0 %v1050
        %4742 = vmatpush2.xpose.msra.mxu0 %v1049
        %4743 = vmatprep.subr.mxu0 %v1018
        %4744 = vmatpush2.xpose.msra.mxu0 %v1017
        %4745 = vmatprep.subr.mxu0 %v986
        %4746 = vmatpush2.xpose.msra.mxu0 %v985
        %4747 = vmatprep.subr.mxu0 %v954
        %4748 = vmatpush2.xpose.msra.mxu0 %v953
        %4749 = vmatprep.subr.mxu0 %v922
        %4750 = vmatpush2.xpose.msra.mxu0 %v921
        %4751 = vmatprep.subr.mxu0 %v890
        %4752 = vmatpush2.xpose.msra.mxu0 %v889
        %4753 = vmatprep.subr.mxu0 %v858
        %4754 = vmatpush2.xpose.msra.mxu0 %v857
        %4755 = vmatprep.subr.mxu0 %v826
        %4756 = vmatpush2.xpose.msra.mxu0 %v825
        %4757 = vmatprep.subr.mxu0 %v794
        %4758 = vmatpush2.xpose.msra.mxu0 %v793
        %4759 = vmatprep.mubr.f32.mxu0 %v250
        %4760 = vmatmul.mubr.f32.gmra.mxu0 %v249
        %v4761 = vpop.f32.mrf.mxu0
        %v4762 = vadd.f32 %v4691, %v4761
        %v4763 = vpop.f32.mrf.mxu0
        %v4764 = vadd.f32 %v4693, %v4763
        %4765 = vdwg.mxu0
        %4766 = vmatprep.subr.mxu0 %v764
        %4767 = vmatpush1.xpose.msra.mxu0 %v763
        %4768 = vmatprep.subr.mxu0 %v732
        %4769 = vmatpush1.xpose.msra.mxu0 %v731
        %4770 = vmatprep.subr.mxu0 %v700
        %4771 = vmatpush1.xpose.msra.mxu0 %v699
        %4772 = vmatprep.subr.mxu0 %v668
        %4773 = vmatpush1.xpose.msra.mxu0 %v667
        %4774 = vmatprep.subr.mxu0 %v636
        %4775 = vmatpush1.xpose.msra.mxu0 %v635
        %4776 = vmatprep.subr.mxu0 %v604
        %4777 = vmatpush1.xpose.msra.mxu0 %v603
        %4778 = vmatprep.subr.mxu0 %v572
        %4779 = vmatpush1.xpose.msra.mxu0 %v571
        %4780 = vmatprep.subr.mxu0 %v540
        %4781 = vmatpush1.xpose.msra.mxu0 %v539
        %4782 = vmatprep.subr.mxu0 %v508
        %4783 = vmatpush1.xpose.msra.mxu0 %v507
        %4784 = vmatprep.subr.mxu0 %v476
        %4785 = vmatpush1.xpose.msra.mxu0 %v475
        %4786 = vmatprep.subr.mxu0 %v444
        %4787 = vmatpush1.xpose.msra.mxu0 %v443
        %4788 = vmatprep.subr.mxu0 %v412
        %4789 = vmatpush1.xpose.msra.mxu0 %v411
        %4790 = vmatprep.subr.mxu0 %v380
        %4791 = vmatpush1.xpose.msra.mxu0 %v379
        %4792 = vmatprep.subr.mxu0 %v348
        %4793 = vmatpush1.xpose.msra.mxu0 %v347
        %4794 = vmatprep.subr.mxu0 %v316
        %4795 = vmatpush1.xpose.msra.mxu0 %v315
        %4796 = vmatprep.subr.mxu0 %v284
        %4797 = vmatpush1.xpose.msra.mxu0 %v283
        %4798 = vmatprep.subr.mxu0 %v1276
        %4799 = vmatpush2.xpose.msra.mxu0 %v1275
        %4800 = vmatprep.subr.mxu0 %v1244
        %4801 = vmatpush2.xpose.msra.mxu0 %v1243
        %4802 = vmatprep.subr.mxu0 %v1212
        %4803 = vmatpush2.xpose.msra.mxu0 %v1211
        %4804 = vmatprep.subr.mxu0 %v1180
        %4805 = vmatpush2.xpose.msra.mxu0 %v1179
        %4806 = vmatprep.subr.mxu0 %v1148
        %4807 = vmatpush2.xpose.msra.mxu0 %v1147
        %4808 = vmatprep.subr.mxu0 %v1116
        %4809 = vmatpush2.xpose.msra.mxu0 %v1115
        %4810 = vmatprep.subr.mxu0 %v1084
        %4811 = vmatpush2.xpose.msra.mxu0 %v1083
        %4812 = vmatprep.subr.mxu0 %v1052
        %4813 = vmatpush2.xpose.msra.mxu0 %v1051
        %4814 = vmatprep.subr.mxu0 %v1020
        %4815 = vmatpush2.xpose.msra.mxu0 %v1019
        %4816 = vmatprep.subr.mxu0 %v988
        %4817 = vmatpush2.xpose.msra.mxu0 %v987
        %4818 = vmatprep.subr.mxu0 %v956
        %4819 = vmatpush2.xpose.msra.mxu0 %v955
        %4820 = vmatprep.subr.mxu0 %v924
        %4821 = vmatpush2.xpose.msra.mxu0 %v923
        %4822 = vmatprep.subr.mxu0 %v892
        %4823 = vmatpush2.xpose.msra.mxu0 %v891
        %4824 = vmatprep.subr.mxu0 %v860
        %4825 = vmatpush2.xpose.msra.mxu0 %v859
        %4826 = vmatprep.subr.mxu0 %v828
        %4827 = vmatpush2.xpose.msra.mxu0 %v827
        %4828 = vmatprep.subr.mxu0 %v796
        %4829 = vmatpush2.xpose.msra.mxu0 %v795
        %4830 = vmatprep.mubr.f32.mxu0 %v252
        %4831 = vmatmul.mubr.f32.gmra.mxu0 %v251
        %v4832 = vpop.f32.mrf.mxu0
        %v4833 = vadd.f32 %v4762, %v4832
        %v4834 = vpop.f32.mrf.mxu0
        %v4835 = vadd.f32 %v4764, %v4834
        %4836 = vdwg.mxu0
        %4837 = vmatprep.subr.mxu0 %v766
        %4838 = vmatpush1.xpose.msra.mxu0 %v765
        %4839 = vmatprep.subr.mxu0 %v734
        %4840 = vmatpush1.xpose.msra.mxu0 %v733
        %4841 = vmatprep.subr.mxu0 %v702
        %4842 = vmatpush1.xpose.msra.mxu0 %v701
        %4843 = vmatprep.subr.mxu0 %v670
        %4844 = vmatpush1.xpose.msra.mxu0 %v669
        %4845 = vmatprep.subr.mxu0 %v638
        %4846 = vmatpush1.xpose.msra.mxu0 %v637
        %4847 = vmatprep.subr.mxu0 %v606
        %4848 = vmatpush1.xpose.msra.mxu0 %v605
        %4849 = vmatprep.subr.mxu0 %v574
        %4850 = vmatpush1.xpose.msra.mxu0 %v573
        %4851 = vmatprep.subr.mxu0 %v542
        %4852 = vmatpush1.xpose.msra.mxu0 %v541
        %4853 = vmatprep.subr.mxu0 %v510
        %4854 = vmatpush1.xpose.msra.mxu0 %v509
        %4855 = vmatprep.subr.mxu0 %v478
        %4856 = vmatpush1.xpose.msra.mxu0 %v477
        %4857 = vmatprep.subr.mxu0 %v446
        %4858 = vmatpush1.xpose.msra.mxu0 %v445
        %4859 = vmatprep.subr.mxu0 %v414
        %4860 = vmatpush1.xpose.msra.mxu0 %v413
        %4861 = vmatprep.subr.mxu0 %v382
        %4862 = vmatpush1.xpose.msra.mxu0 %v381
        %4863 = vmatprep.subr.mxu0 %v350
        %4864 = vmatpush1.xpose.msra.mxu0 %v349
        %4865 = vmatprep.subr.mxu0 %v318
        %4866 = vmatpush1.xpose.msra.mxu0 %v317
        %4867 = vmatprep.subr.mxu0 %v286
        %4868 = vmatpush1.xpose.msra.mxu0 %v285
        %4869 = vmatprep.subr.mxu0 %v1278
        %4870 = vmatpush2.xpose.msra.mxu0 %v1277
        %4871 = vmatprep.subr.mxu0 %v1246
        %4872 = vmatpush2.xpose.msra.mxu0 %v1245
        %4873 = vmatprep.subr.mxu0 %v1214
        %4874 = vmatpush2.xpose.msra.mxu0 %v1213
        %4875 = vmatprep.subr.mxu0 %v1182
        %4876 = vmatpush2.xpose.msra.mxu0 %v1181
        %4877 = vmatprep.subr.mxu0 %v1150
        %4878 = vmatpush2.xpose.msra.mxu0 %v1149
        %4879 = vmatprep.subr.mxu0 %v1118
        %4880 = vmatpush2.xpose.msra.mxu0 %v1117
        %4881 = vmatprep.subr.mxu0 %v1086
        %4882 = vmatpush2.xpose.msra.mxu0 %v1085
        %4883 = vmatprep.subr.mxu0 %v1054
        %4884 = vmatpush2.xpose.msra.mxu0 %v1053
        %4885 = vmatprep.subr.mxu0 %v1022
        %4886 = vmatpush2.xpose.msra.mxu0 %v1021
        %4887 = vmatprep.subr.mxu0 %v990
        %4888 = vmatpush2.xpose.msra.mxu0 %v989
        %4889 = vmatprep.subr.mxu0 %v958
        %4890 = vmatpush2.xpose.msra.mxu0 %v957
        %4891 = vmatprep.subr.mxu0 %v926
        %4892 = vmatpush2.xpose.msra.mxu0 %v925
        %4893 = vmatprep.subr.mxu0 %v894
        %4894 = vmatpush2.xpose.msra.mxu0 %v893
        %4895 = vmatprep.subr.mxu0 %v862
        %4896 = vmatpush2.xpose.msra.mxu0 %v861
        %4897 = vmatprep.subr.mxu0 %v830
        %4898 = vmatpush2.xpose.msra.mxu0 %v829
        %4899 = vmatprep.subr.mxu0 %v798
        %4900 = vmatpush2.xpose.msra.mxu0 %v797
        %4901 = vmatprep.mubr.f32.mxu0 %v254
        %4902 = vmatmul.mubr.f32.gmra.mxu0 %v253
        %v4903 = vpop.f32.mrf.mxu0
        %v4904 = vadd.f32 %v4833, %v4903
        %v4905 = vpop.f32.mrf.mxu0
        %v4906 = vadd.f32 %v4835, %v4905
        %4907 = vdwg.mxu0
        %4908 = vmatprep.subr.mxu0 %v768
        %4909 = vmatpush1.xpose.msra.mxu0 %v767
        %4910 = vmatprep.subr.mxu0 %v736
        %4911 = vmatpush1.xpose.msra.mxu0 %v735
        %4912 = vmatprep.subr.mxu0 %v704
        %4913 = vmatpush1.xpose.msra.mxu0 %v703
        %4914 = vmatprep.subr.mxu0 %v672
        %4915 = vmatpush1.xpose.msra.mxu0 %v671
        %4916 = vmatprep.subr.mxu0 %v640
        %4917 = vmatpush1.xpose.msra.mxu0 %v639
        %4918 = vmatprep.subr.mxu0 %v608
        %4919 = vmatpush1.xpose.msra.mxu0 %v607
        %4920 = vmatprep.subr.mxu0 %v576
        %4921 = vmatpush1.xpose.msra.mxu0 %v575
        %4922 = vmatprep.subr.mxu0 %v544
        %4923 = vmatpush1.xpose.msra.mxu0 %v543
        %4924 = vmatprep.subr.mxu0 %v512
        %4925 = vmatpush1.xpose.msra.mxu0 %v511
        %4926 = vmatprep.subr.mxu0 %v480
        %4927 = vmatpush1.xpose.msra.mxu0 %v479
        %4928 = vmatprep.subr.mxu0 %v448
        %4929 = vmatpush1.xpose.msra.mxu0 %v447
        %4930 = vmatprep.subr.mxu0 %v416
        %4931 = vmatpush1.xpose.msra.mxu0 %v415
        %4932 = vmatprep.subr.mxu0 %v384
        %4933 = vmatpush1.xpose.msra.mxu0 %v383
        %4934 = vmatprep.subr.mxu0 %v352
        %4935 = vmatpush1.xpose.msra.mxu0 %v351
        %4936 = vmatprep.subr.mxu0 %v320
        %4937 = vmatpush1.xpose.msra.mxu0 %v319
        %4938 = vmatprep.subr.mxu0 %v288
        %4939 = vmatpush1.xpose.msra.mxu0 %v287
        %4940 = vmatprep.subr.mxu0 %v1280
        %4941 = vmatpush2.xpose.msra.mxu0 %v1279
        %4942 = vmatprep.subr.mxu0 %v1248
        %4943 = vmatpush2.xpose.msra.mxu0 %v1247
        %4944 = vmatprep.subr.mxu0 %v1216
        %4945 = vmatpush2.xpose.msra.mxu0 %v1215
        %4946 = vmatprep.subr.mxu0 %v1184
        %4947 = vmatpush2.xpose.msra.mxu0 %v1183
        %4948 = vmatprep.subr.mxu0 %v1152
        %4949 = vmatpush2.xpose.msra.mxu0 %v1151
        %4950 = vmatprep.subr.mxu0 %v1120
        %4951 = vmatpush2.xpose.msra.mxu0 %v1119
        %4952 = vmatprep.subr.mxu0 %v1088
        %4953 = vmatpush2.xpose.msra.mxu0 %v1087
        %4954 = vmatprep.subr.mxu0 %v1056
        %4955 = vmatpush2.xpose.msra.mxu0 %v1055
        %4956 = vmatprep.subr.mxu0 %v1024
        %4957 = vmatpush2.xpose.msra.mxu0 %v1023
        %4958 = vmatprep.subr.mxu0 %v992
        %4959 = vmatpush2.xpose.msra.mxu0 %v991
        %4960 = vmatprep.subr.mxu0 %v960
        %4961 = vmatpush2.xpose.msra.mxu0 %v959
        %4962 = vmatprep.subr.mxu0 %v928
        %4963 = vmatpush2.xpose.msra.mxu0 %v927
        %4964 = vmatprep.subr.mxu0 %v896
        %4965 = vmatpush2.xpose.msra.mxu0 %v895
        %4966 = vmatprep.subr.mxu0 %v864
        %4967 = vmatpush2.xpose.msra.mxu0 %v863
        %4968 = vmatprep.subr.mxu0 %v832
        %4969 = vmatpush2.xpose.msra.mxu0 %v831
        %4970 = vmatprep.subr.mxu0 %v800
        %4971 = vmatpush2.xpose.msra.mxu0 %v799
        %4972 = vmatprep.mubr.f32.mxu0 %v256
        %4973 = vmatmul.mubr.f32.gmra.mxu0 %v255
        %v4974 = vpop.f32.mrf.mxu0
        %v4975 = vadd.f32 %v4904, %v4974
        %v4976 = vpop.f32.mrf.mxu0
        %v4977 = vadd.f32 %v4906, %v4976
        %4978 = vdwg.mxu0
        %4979 = vmatprep.subr.mxu0 %v770
        %4980 = vmatpush1.xpose.msra.mxu0 %v769
        %4981 = vmatprep.subr.mxu0 %v738
        %4982 = vmatpush1.xpose.msra.mxu0 %v737
        %4983 = vmatprep.subr.mxu0 %v706
        %4984 = vmatpush1.xpose.msra.mxu0 %v705
        %4985 = vmatprep.subr.mxu0 %v674
        %4986 = vmatpush1.xpose.msra.mxu0 %v673
        %4987 = vmatprep.subr.mxu0 %v642
        %4988 = vmatpush1.xpose.msra.mxu0 %v641
        %4989 = vmatprep.subr.mxu0 %v610
        %4990 = vmatpush1.xpose.msra.mxu0 %v609
        %4991 = vmatprep.subr.mxu0 %v578
        %4992 = vmatpush1.xpose.msra.mxu0 %v577
        %4993 = vmatprep.subr.mxu0 %v546
        %4994 = vmatpush1.xpose.msra.mxu0 %v545
        %4995 = vmatprep.subr.mxu0 %v514
        %4996 = vmatpush1.xpose.msra.mxu0 %v513
        %4997 = vmatprep.subr.mxu0 %v482
        %4998 = vmatpush1.xpose.msra.mxu0 %v481
        %4999 = vmatprep.subr.mxu0 %v450
        %5000 = vmatpush1.xpose.msra.mxu0 %v449
        %5001 = vmatprep.subr.mxu0 %v418
        %5002 = vmatpush1.xpose.msra.mxu0 %v417
        %5003 = vmatprep.subr.mxu0 %v386
        %5004 = vmatpush1.xpose.msra.mxu0 %v385
        %5005 = vmatprep.subr.mxu0 %v354
        %5006 = vmatpush1.xpose.msra.mxu0 %v353
        %5007 = vmatprep.subr.mxu0 %v322
        %5008 = vmatpush1.xpose.msra.mxu0 %v321
        %5009 = vmatprep.subr.mxu0 %v290
        %5010 = vmatpush1.xpose.msra.mxu0 %v289
        %5011 = vmatprep.subr.mxu0 %v1282
        %5012 = vmatpush2.xpose.msra.mxu0 %v1281
        %5013 = vmatprep.subr.mxu0 %v1250
        %5014 = vmatpush2.xpose.msra.mxu0 %v1249
        %5015 = vmatprep.subr.mxu0 %v1218
        %5016 = vmatpush2.xpose.msra.mxu0 %v1217
        %5017 = vmatprep.subr.mxu0 %v1186
        %5018 = vmatpush2.xpose.msra.mxu0 %v1185
        %5019 = vmatprep.subr.mxu0 %v1154
        %5020 = vmatpush2.xpose.msra.mxu0 %v1153
        %5021 = vmatprep.subr.mxu0 %v1122
        %5022 = vmatpush2.xpose.msra.mxu0 %v1121
        %5023 = vmatprep.subr.mxu0 %v1090
        %5024 = vmatpush2.xpose.msra.mxu0 %v1089
        %5025 = vmatprep.subr.mxu0 %v1058
        %5026 = vmatpush2.xpose.msra.mxu0 %v1057
        %5027 = vmatprep.subr.mxu0 %v1026
        %5028 = vmatpush2.xpose.msra.mxu0 %v1025
        %5029 = vmatprep.subr.mxu0 %v994
        %5030 = vmatpush2.xpose.msra.mxu0 %v993
        %5031 = vmatprep.subr.mxu0 %v962
        %5032 = vmatpush2.xpose.msra.mxu0 %v961
        %5033 = vmatprep.subr.mxu0 %v930
        %5034 = vmatpush2.xpose.msra.mxu0 %v929
        %5035 = vmatprep.subr.mxu0 %v898
        %5036 = vmatpush2.xpose.msra.mxu0 %v897
        %5037 = vmatprep.subr.mxu0 %v866
        %5038 = vmatpush2.xpose.msra.mxu0 %v865
        %5039 = vmatprep.subr.mxu0 %v834
        %5040 = vmatpush2.xpose.msra.mxu0 %v833
        %5041 = vmatprep.subr.mxu0 %v802
        %5042 = vmatpush2.xpose.msra.mxu0 %v801
        %5043 = vmatprep.mubr.f32.mxu0 %v258
        %5044 = vmatmul.mubr.f32.gmra.mxu0 %v257
        %v5045 = vpop.f32.mrf.mxu0
        %v5046 = vadd.f32 %v4975, %v5045
        %v5047 = vpop.f32.mrf.mxu0
        %v5048 = vadd.f32 %v4977, %v5047
        %5049 = vdwg.mxu0
        %5050 = vmatprep.subr.mxu0 %v772
        %5051 = vmatpush1.xpose.msra.mxu0 %v771
        %5052 = vmatprep.subr.mxu0 %v740
        %5053 = vmatpush1.xpose.msra.mxu0 %v739
        %5054 = vmatprep.subr.mxu0 %v708
        %5055 = vmatpush1.xpose.msra.mxu0 %v707
        %5056 = vmatprep.subr.mxu0 %v676
        %5057 = vmatpush1.xpose.msra.mxu0 %v675
        %5058 = vmatprep.subr.mxu0 %v644
        %5059 = vmatpush1.xpose.msra.mxu0 %v643
        %5060 = vmatprep.subr.mxu0 %v612
        %5061 = vmatpush1.xpose.msra.mxu0 %v611
        %5062 = vmatprep.subr.mxu0 %v580
        %5063 = vmatpush1.xpose.msra.mxu0 %v579
        %5064 = vmatprep.subr.mxu0 %v548
        %5065 = vmatpush1.xpose.msra.mxu0 %v547
        %5066 = vmatprep.subr.mxu0 %v516
        %5067 = vmatpush1.xpose.msra.mxu0 %v515
        %5068 = vmatprep.subr.mxu0 %v484
        %5069 = vmatpush1.xpose.msra.mxu0 %v483
        %5070 = vmatprep.subr.mxu0 %v452
        %5071 = vmatpush1.xpose.msra.mxu0 %v451
        %5072 = vmatprep.subr.mxu0 %v420
        %5073 = vmatpush1.xpose.msra.mxu0 %v419
        %5074 = vmatprep.subr.mxu0 %v388
        %5075 = vmatpush1.xpose.msra.mxu0 %v387
        %5076 = vmatprep.subr.mxu0 %v356
        %5077 = vmatpush1.xpose.msra.mxu0 %v355
        %5078 = vmatprep.subr.mxu0 %v324
        %5079 = vmatpush1.xpose.msra.mxu0 %v323
        %5080 = vmatprep.subr.mxu0 %v292
        %5081 = vmatpush1.xpose.msra.mxu0 %v291
        %5082 = vmatprep.subr.mxu0 %v1284
        %5083 = vmatpush2.xpose.msra.mxu0 %v1283
        %5084 = vmatprep.subr.mxu0 %v1252
        %5085 = vmatpush2.xpose.msra.mxu0 %v1251
        %5086 = vmatprep.subr.mxu0 %v1220
        %5087 = vmatpush2.xpose.msra.mxu0 %v1219
        %5088 = vmatprep.subr.mxu0 %v1188
        %5089 = vmatpush2.xpose.msra.mxu0 %v1187
        %5090 = vmatprep.subr.mxu0 %v1156
        %5091 = vmatpush2.xpose.msra.mxu0 %v1155
        %5092 = vmatprep.subr.mxu0 %v1124
        %5093 = vmatpush2.xpose.msra.mxu0 %v1123
        %5094 = vmatprep.subr.mxu0 %v1092
        %5095 = vmatpush2.xpose.msra.mxu0 %v1091
        %5096 = vmatprep.subr.mxu0 %v1060
        %5097 = vmatpush2.xpose.msra.mxu0 %v1059
        %5098 = vmatprep.subr.mxu0 %v1028
        %5099 = vmatpush2.xpose.msra.mxu0 %v1027
        %5100 = vmatprep.subr.mxu0 %v996
        %5101 = vmatpush2.xpose.msra.mxu0 %v995
        %5102 = vmatprep.subr.mxu0 %v964
        %5103 = vmatpush2.xpose.msra.mxu0 %v963
        %5104 = vmatprep.subr.mxu0 %v932
        %5105 = vmatpush2.xpose.msra.mxu0 %v931
        %5106 = vmatprep.subr.mxu0 %v900
        %5107 = vmatpush2.xpose.msra.mxu0 %v899
        %5108 = vmatprep.subr.mxu0 %v868
        %5109 = vmatpush2.xpose.msra.mxu0 %v867
        %5110 = vmatprep.subr.mxu0 %v836
        %5111 = vmatpush2.xpose.msra.mxu0 %v835
        %5112 = vmatprep.subr.mxu0 %v804
        %5113 = vmatpush2.xpose.msra.mxu0 %v803
        %5114 = vmatprep.mubr.f32.mxu0 %v260
        %5115 = vmatmul.mubr.f32.gmra.mxu0 %v259
        %v5116 = vpop.f32.mrf.mxu0
        %v5117 = vadd.f32 %v5046, %v5116
        %v5118 = vpop.f32.mrf.mxu0
        %v5119 = vadd.f32 %v5048, %v5118
        %5120 = vdwg.mxu0
        %5121 = vmatprep.subr.mxu0 %v774
        %5122 = vmatpush1.xpose.msra.mxu0 %v773
        %5123 = vmatprep.subr.mxu0 %v742
        %5124 = vmatpush1.xpose.msra.mxu0 %v741
        %5125 = vmatprep.subr.mxu0 %v710
        %5126 = vmatpush1.xpose.msra.mxu0 %v709
        %5127 = vmatprep.subr.mxu0 %v678
        %5128 = vmatpush1.xpose.msra.mxu0 %v677
        %5129 = vmatprep.subr.mxu0 %v646
        %5130 = vmatpush1.xpose.msra.mxu0 %v645
        %5131 = vmatprep.subr.mxu0 %v614
        %5132 = vmatpush1.xpose.msra.mxu0 %v613
        %5133 = vmatprep.subr.mxu0 %v582
        %5134 = vmatpush1.xpose.msra.mxu0 %v581
        %5135 = vmatprep.subr.mxu0 %v550
        %5136 = vmatpush1.xpose.msra.mxu0 %v549
        %5137 = vmatprep.subr.mxu0 %v518
        %5138 = vmatpush1.xpose.msra.mxu0 %v517
        %5139 = vmatprep.subr.mxu0 %v486
        %5140 = vmatpush1.xpose.msra.mxu0 %v485
        %5141 = vmatprep.subr.mxu0 %v454
        %5142 = vmatpush1.xpose.msra.mxu0 %v453
        %5143 = vmatprep.subr.mxu0 %v422
        %5144 = vmatpush1.xpose.msra.mxu0 %v421
        %5145 = vmatprep.subr.mxu0 %v390
        %5146 = vmatpush1.xpose.msra.mxu0 %v389
        %5147 = vmatprep.subr.mxu0 %v358
        %5148 = vmatpush1.xpose.msra.mxu0 %v357
        %5149 = vmatprep.subr.mxu0 %v326
        %5150 = vmatpush1.xpose.msra.mxu0 %v325
        %5151 = vmatprep.subr.mxu0 %v294
        %5152 = vmatpush1.xpose.msra.mxu0 %v293
        %5153 = vmatprep.subr.mxu0 %v1286
        %5154 = vmatpush2.xpose.msra.mxu0 %v1285
        %5155 = vmatprep.subr.mxu0 %v1254
        %5156 = vmatpush2.xpose.msra.mxu0 %v1253
        %5157 = vmatprep.subr.mxu0 %v1222
        %5158 = vmatpush2.xpose.msra.mxu0 %v1221
        %5159 = vmatprep.subr.mxu0 %v1190
        %5160 = vmatpush2.xpose.msra.mxu0 %v1189
        %5161 = vmatprep.subr.mxu0 %v1158
        %5162 = vmatpush2.xpose.msra.mxu0 %v1157
        %5163 = vmatprep.subr.mxu0 %v1126
        %5164 = vmatpush2.xpose.msra.mxu0 %v1125
        %5165 = vmatprep.subr.mxu0 %v1094
        %5166 = vmatpush2.xpose.msra.mxu0 %v1093
        %5167 = vmatprep.subr.mxu0 %v1062
        %5168 = vmatpush2.xpose.msra.mxu0 %v1061
        %5169 = vmatprep.subr.mxu0 %v1030
        %5170 = vmatpush2.xpose.msra.mxu0 %v1029
        %5171 = vmatprep.subr.mxu0 %v998
        %5172 = vmatpush2.xpose.msra.mxu0 %v997
        %5173 = vmatprep.subr.mxu0 %v966
        %5174 = vmatpush2.xpose.msra.mxu0 %v965
        %5175 = vmatprep.subr.mxu0 %v934
        %5176 = vmatpush2.xpose.msra.mxu0 %v933
        %5177 = vmatprep.subr.mxu0 %v902
        %5178 = vmatpush2.xpose.msra.mxu0 %v901
        %5179 = vmatprep.subr.mxu0 %v870
        %5180 = vmatpush2.xpose.msra.mxu0 %v869
        %5181 = vmatprep.subr.mxu0 %v838
        %5182 = vmatpush2.xpose.msra.mxu0 %v837
        %5183 = vmatprep.subr.mxu0 %v806
        %5184 = vmatpush2.xpose.msra.mxu0 %v805
        %5185 = vmatprep.mubr.f32.mxu0 %v262
        %5186 = vmatmul.mubr.f32.gmra.mxu0 %v261
        %v5187 = vpop.f32.mrf.mxu0
        %v5188 = vadd.f32 %v5117, %v5187
        %v5189 = vpop.f32.mrf.mxu0
        %v5190 = vadd.f32 %v5119, %v5189
        %5191 = vdwg.mxu0
        %5192 = vmatprep.subr.mxu0 %v776
        %5193 = vmatpush1.xpose.msra.mxu0 %v775
        %5194 = vmatprep.subr.mxu0 %v744
        %5195 = vmatpush1.xpose.msra.mxu0 %v743
        %5196 = vmatprep.subr.mxu0 %v712
        %5197 = vmatpush1.xpose.msra.mxu0 %v711
        %5198 = vmatprep.subr.mxu0 %v680
        %5199 = vmatpush1.xpose.msra.mxu0 %v679
        %5200 = vmatprep.subr.mxu0 %v648
        %5201 = vmatpush1.xpose.msra.mxu0 %v647
        %5202 = vmatprep.subr.mxu0 %v616
        %5203 = vmatpush1.xpose.msra.mxu0 %v615
        %5204 = vmatprep.subr.mxu0 %v584
        %5205 = vmatpush1.xpose.msra.mxu0 %v583
        %5206 = vmatprep.subr.mxu0 %v552
        %5207 = vmatpush1.xpose.msra.mxu0 %v551
        %5208 = vmatprep.subr.mxu0 %v520
        %5209 = vmatpush1.xpose.msra.mxu0 %v519
        %5210 = vmatprep.subr.mxu0 %v488
        %5211 = vmatpush1.xpose.msra.mxu0 %v487
        %5212 = vmatprep.subr.mxu0 %v456
        %5213 = vmatpush1.xpose.msra.mxu0 %v455
        %5214 = vmatprep.subr.mxu0 %v424
        %5215 = vmatpush1.xpose.msra.mxu0 %v423
        %5216 = vmatprep.subr.mxu0 %v392
        %5217 = vmatpush1.xpose.msra.mxu0 %v391
        %5218 = vmatprep.subr.mxu0 %v360
        %5219 = vmatpush1.xpose.msra.mxu0 %v359
        %5220 = vmatprep.subr.mxu0 %v328
        %5221 = vmatpush1.xpose.msra.mxu0 %v327
        %5222 = vmatprep.subr.mxu0 %v296
        %5223 = vmatpush1.xpose.msra.mxu0 %v295
        %5224 = vmatprep.subr.mxu0 %v1288
        %5225 = vmatpush2.xpose.msra.mxu0 %v1287
        %5226 = vmatprep.subr.mxu0 %v1256
        %5227 = vmatpush2.xpose.msra.mxu0 %v1255
        %5228 = vmatprep.subr.mxu0 %v1224
        %5229 = vmatpush2.xpose.msra.mxu0 %v1223
        %5230 = vmatprep.subr.mxu0 %v1192
        %5231 = vmatpush2.xpose.msra.mxu0 %v1191
        %5232 = vmatprep.subr.mxu0 %v1160
        %5233 = vmatpush2.xpose.msra.mxu0 %v1159
        %5234 = vmatprep.subr.mxu0 %v1128
        %5235 = vmatpush2.xpose.msra.mxu0 %v1127
        %5236 = vmatprep.subr.mxu0 %v1096
        %5237 = vmatpush2.xpose.msra.mxu0 %v1095
        %5238 = vmatprep.subr.mxu0 %v1064
        %5239 = vmatpush2.xpose.msra.mxu0 %v1063
        %5240 = vmatprep.subr.mxu0 %v1032
        %5241 = vmatpush2.xpose.msra.mxu0 %v1031
        %5242 = vmatprep.subr.mxu0 %v1000
        %5243 = vmatpush2.xpose.msra.mxu0 %v999
        %5244 = vmatprep.subr.mxu0 %v968
        %5245 = vmatpush2.xpose.msra.mxu0 %v967
        %5246 = vmatprep.subr.mxu0 %v936
        %5247 = vmatpush2.xpose.msra.mxu0 %v935
        %5248 = vmatprep.subr.mxu0 %v904
        %5249 = vmatpush2.xpose.msra.mxu0 %v903
        %5250 = vmatprep.subr.mxu0 %v872
        %5251 = vmatpush2.xpose.msra.mxu0 %v871
        %5252 = vmatprep.subr.mxu0 %v840
        %5253 = vmatpush2.xpose.msra.mxu0 %v839
        %5254 = vmatprep.subr.mxu0 %v808
        %5255 = vmatpush2.xpose.msra.mxu0 %v807
        %5256 = vmatprep.mubr.f32.mxu0 %v264
        %5257 = vmatmul.mubr.f32.gmra.mxu0 %v263
        %v5258 = vpop.f32.mrf.mxu0
        %v5259 = vadd.f32 %v5188, %v5258
        %v5260 = vpop.f32.mrf.mxu0
        %v5261 = vadd.f32 %v5190, %v5260
        %5262 = vdwg.mxu0
        %5263 = vmatprep.subr.mxu0 %v778
        %5264 = vmatpush1.xpose.msra.mxu0 %v777
        %5265 = vmatprep.subr.mxu0 %v746
        %5266 = vmatpush1.xpose.msra.mxu0 %v745
        %5267 = vmatprep.subr.mxu0 %v714
        %5268 = vmatpush1.xpose.msra.mxu0 %v713
        %5269 = vmatprep.subr.mxu0 %v682
        %5270 = vmatpush1.xpose.msra.mxu0 %v681
        %5271 = vmatprep.subr.mxu0 %v650
        %5272 = vmatpush1.xpose.msra.mxu0 %v649
        %5273 = vmatprep.subr.mxu0 %v618
        %5274 = vmatpush1.xpose.msra.mxu0 %v617
        %5275 = vmatprep.subr.mxu0 %v586
        %5276 = vmatpush1.xpose.msra.mxu0 %v585
        %5277 = vmatprep.subr.mxu0 %v554
        %5278 = vmatpush1.xpose.msra.mxu0 %v553
        %5279 = vmatprep.subr.mxu0 %v522
        %5280 = vmatpush1.xpose.msra.mxu0 %v521
        %5281 = vmatprep.subr.mxu0 %v490
        %5282 = vmatpush1.xpose.msra.mxu0 %v489
        %5283 = vmatprep.subr.mxu0 %v458
        %5284 = vmatpush1.xpose.msra.mxu0 %v457
        %5285 = vmatprep.subr.mxu0 %v426
        %5286 = vmatpush1.xpose.msra.mxu0 %v425
        %5287 = vmatprep.subr.mxu0 %v394
        %5288 = vmatpush1.xpose.msra.mxu0 %v393
        %5289 = vmatprep.subr.mxu0 %v362
        %5290 = vmatpush1.xpose.msra.mxu0 %v361
        %5291 = vmatprep.subr.mxu0 %v330
        %5292 = vmatpush1.xpose.msra.mxu0 %v329
        %5293 = vmatprep.subr.mxu0 %v298
        %5294 = vmatpush1.xpose.msra.mxu0 %v297
        %5295 = vmatprep.subr.mxu0 %v1290
        %5296 = vmatpush2.xpose.msra.mxu0 %v1289
        %5297 = vmatprep.subr.mxu0 %v1258
        %5298 = vmatpush2.xpose.msra.mxu0 %v1257
        %5299 = vmatprep.subr.mxu0 %v1226
        %5300 = vmatpush2.xpose.msra.mxu0 %v1225
        %5301 = vmatprep.subr.mxu0 %v1194
        %5302 = vmatpush2.xpose.msra.mxu0 %v1193
        %5303 = vmatprep.subr.mxu0 %v1162
        %5304 = vmatpush2.xpose.msra.mxu0 %v1161
        %5305 = vmatprep.subr.mxu0 %v1130
        %5306 = vmatpush2.xpose.msra.mxu0 %v1129
        %5307 = vmatprep.subr.mxu0 %v1098
        %5308 = vmatpush2.xpose.msra.mxu0 %v1097
        %5309 = vmatprep.subr.mxu0 %v1066
        %5310 = vmatpush2.xpose.msra.mxu0 %v1065
        %5311 = vmatprep.subr.mxu0 %v1034
        %5312 = vmatpush2.xpose.msra.mxu0 %v1033
        %5313 = vmatprep.subr.mxu0 %v1002
        %5314 = vmatpush2.xpose.msra.mxu0 %v1001
        %5315 = vmatprep.subr.mxu0 %v970
        %5316 = vmatpush2.xpose.msra.mxu0 %v969
        %5317 = vmatprep.subr.mxu0 %v938
        %5318 = vmatpush2.xpose.msra.mxu0 %v937
        %5319 = vmatprep.subr.mxu0 %v906
        %5320 = vmatpush2.xpose.msra.mxu0 %v905
        %5321 = vmatprep.subr.mxu0 %v874
        %5322 = vmatpush2.xpose.msra.mxu0 %v873
        %5323 = vmatprep.subr.mxu0 %v842
        %5324 = vmatpush2.xpose.msra.mxu0 %v841
        %5325 = vmatprep.subr.mxu0 %v810
        %5326 = vmatpush2.xpose.msra.mxu0 %v809
        %5327 = vmatprep.mubr.f32.mxu0 %v266
        %5328 = vmatmul.mubr.f32.gmra.mxu0 %v265
        %v5329 = vpop.f32.mrf.mxu0
        %v5330 = vadd.f32 %v5259, %v5329
        %v5331 = vpop.f32.mrf.mxu0
        %v5332 = vadd.f32 %v5261, %v5331
        %5333 = vdwg.mxu0
        %5334 = vmatprep.subr.mxu0 %v780
        %5335 = vmatpush1.xpose.msra.mxu0 %v779
        %5336 = vmatprep.subr.mxu0 %v748
        %5337 = vmatpush1.xpose.msra.mxu0 %v747
        %5338 = vmatprep.subr.mxu0 %v716
        %5339 = vmatpush1.xpose.msra.mxu0 %v715
        %5340 = vmatprep.subr.mxu0 %v684
        %5341 = vmatpush1.xpose.msra.mxu0 %v683
        %5342 = vmatprep.subr.mxu0 %v652
        %5343 = vmatpush1.xpose.msra.mxu0 %v651
        %5344 = vmatprep.subr.mxu0 %v620
        %5345 = vmatpush1.xpose.msra.mxu0 %v619
        %5346 = vmatprep.subr.mxu0 %v588
        %5347 = vmatpush1.xpose.msra.mxu0 %v587
        %5348 = vmatprep.subr.mxu0 %v556
        %5349 = vmatpush1.xpose.msra.mxu0 %v555
        %5350 = vmatprep.subr.mxu0 %v524
        %5351 = vmatpush1.xpose.msra.mxu0 %v523
        %5352 = vmatprep.subr.mxu0 %v492
        %5353 = vmatpush1.xpose.msra.mxu0 %v491
        %5354 = vmatprep.subr.mxu0 %v460
        %5355 = vmatpush1.xpose.msra.mxu0 %v459
        %5356 = vmatprep.subr.mxu0 %v428
        %5357 = vmatpush1.xpose.msra.mxu0 %v427
        %5358 = vmatprep.subr.mxu0 %v396
        %5359 = vmatpush1.xpose.msra.mxu0 %v395
        %5360 = vmatprep.subr.mxu0 %v364
        %5361 = vmatpush1.xpose.msra.mxu0 %v363
        %5362 = vmatprep.subr.mxu0 %v332
        %5363 = vmatpush1.xpose.msra.mxu0 %v331
        %5364 = vmatprep.subr.mxu0 %v300
        %5365 = vmatpush1.xpose.msra.mxu0 %v299
        %5366 = vmatprep.subr.mxu0 %v1292
        %5367 = vmatpush2.xpose.msra.mxu0 %v1291
        %5368 = vmatprep.subr.mxu0 %v1260
        %5369 = vmatpush2.xpose.msra.mxu0 %v1259
        %5370 = vmatprep.subr.mxu0 %v1228
        %5371 = vmatpush2.xpose.msra.mxu0 %v1227
        %5372 = vmatprep.subr.mxu0 %v1196
        %5373 = vmatpush2.xpose.msra.mxu0 %v1195
        %5374 = vmatprep.subr.mxu0 %v1164
        %5375 = vmatpush2.xpose.msra.mxu0 %v1163
        %5376 = vmatprep.subr.mxu0 %v1132
        %5377 = vmatpush2.xpose.msra.mxu0 %v1131
        %5378 = vmatprep.subr.mxu0 %v1100
        %5379 = vmatpush2.xpose.msra.mxu0 %v1099
        %5380 = vmatprep.subr.mxu0 %v1068
        %5381 = vmatpush2.xpose.msra.mxu0 %v1067
        %5382 = vmatprep.subr.mxu0 %v1036
        %5383 = vmatpush2.xpose.msra.mxu0 %v1035
        %5384 = vmatprep.subr.mxu0 %v1004
        %5385 = vmatpush2.xpose.msra.mxu0 %v1003
        %5386 = vmatprep.subr.mxu0 %v972
        %5387 = vmatpush2.xpose.msra.mxu0 %v971
        %5388 = vmatprep.subr.mxu0 %v940
        %5389 = vmatpush2.xpose.msra.mxu0 %v939
        %5390 = vmatprep.subr.mxu0 %v908
        %5391 = vmatpush2.xpose.msra.mxu0 %v907
        %5392 = vmatprep.subr.mxu0 %v876
        %5393 = vmatpush2.xpose.msra.mxu0 %v875
        %5394 = vmatprep.subr.mxu0 %v844
        %5395 = vmatpush2.xpose.msra.mxu0 %v843
        %5396 = vmatprep.subr.mxu0 %v812
        %5397 = vmatpush2.xpose.msra.mxu0 %v811
        %5398 = vmatprep.mubr.f32.mxu0 %v268
        %5399 = vmatmul.mubr.f32.gmra.mxu0 %v267
        %v5400 = vpop.f32.mrf.mxu0
        %v5401 = vadd.f32 %v5330, %v5400
        %v5402 = vpop.f32.mrf.mxu0
        %v5403 = vadd.f32 %v5332, %v5402
        %5404 = vdwg.mxu0
        %5405 = vmatprep.subr.mxu0 %v782
        %5406 = vmatpush1.xpose.msra.mxu0 %v781
        %5407 = vmatprep.subr.mxu0 %v750
        %5408 = vmatpush1.xpose.msra.mxu0 %v749
        %5409 = vmatprep.subr.mxu0 %v718
        %5410 = vmatpush1.xpose.msra.mxu0 %v717
        %5411 = vmatprep.subr.mxu0 %v686
        %5412 = vmatpush1.xpose.msra.mxu0 %v685
        %5413 = vmatprep.subr.mxu0 %v654
        %5414 = vmatpush1.xpose.msra.mxu0 %v653
        %5415 = vmatprep.subr.mxu0 %v622
        %5416 = vmatpush1.xpose.msra.mxu0 %v621
        %5417 = vmatprep.subr.mxu0 %v590
        %5418 = vmatpush1.xpose.msra.mxu0 %v589
        %5419 = vmatprep.subr.mxu0 %v558
        %5420 = vmatpush1.xpose.msra.mxu0 %v557
        %5421 = vmatprep.subr.mxu0 %v526
        %5422 = vmatpush1.xpose.msra.mxu0 %v525
        %5423 = vmatprep.subr.mxu0 %v494
        %5424 = vmatpush1.xpose.msra.mxu0 %v493
        %5425 = vmatprep.subr.mxu0 %v462
        %5426 = vmatpush1.xpose.msra.mxu0 %v461
        %5427 = vmatprep.subr.mxu0 %v430
        %5428 = vmatpush1.xpose.msra.mxu0 %v429
        %5429 = vmatprep.subr.mxu0 %v398
        %5430 = vmatpush1.xpose.msra.mxu0 %v397
        %5431 = vmatprep.subr.mxu0 %v366
        %5432 = vmatpush1.xpose.msra.mxu0 %v365
        %5433 = vmatprep.subr.mxu0 %v334
        %5434 = vmatpush1.xpose.msra.mxu0 %v333
        %5435 = vmatprep.subr.mxu0 %v302
        %5436 = vmatpush1.xpose.msra.mxu0 %v301
        %5437 = vmatprep.subr.mxu0 %v1294
        %5438 = vmatpush2.xpose.msra.mxu0 %v1293
        %5439 = vmatprep.subr.mxu0 %v1262
        %5440 = vmatpush2.xpose.msra.mxu0 %v1261
        %5441 = vmatprep.subr.mxu0 %v1230
        %5442 = vmatpush2.xpose.msra.mxu0 %v1229
        %5443 = vmatprep.subr.mxu0 %v1198
        %5444 = vmatpush2.xpose.msra.mxu0 %v1197
        %5445 = vmatprep.subr.mxu0 %v1166
        %5446 = vmatpush2.xpose.msra.mxu0 %v1165
        %5447 = vmatprep.subr.mxu0 %v1134
        %5448 = vmatpush2.xpose.msra.mxu0 %v1133
        %5449 = vmatprep.subr.mxu0 %v1102
        %5450 = vmatpush2.xpose.msra.mxu0 %v1101
        %5451 = vmatprep.subr.mxu0 %v1070
        %5452 = vmatpush2.xpose.msra.mxu0 %v1069
        %5453 = vmatprep.subr.mxu0 %v1038
        %5454 = vmatpush2.xpose.msra.mxu0 %v1037
        %5455 = vmatprep.subr.mxu0 %v1006
        %5456 = vmatpush2.xpose.msra.mxu0 %v1005
        %5457 = vmatprep.subr.mxu0 %v974
        %5458 = vmatpush2.xpose.msra.mxu0 %v973
        %5459 = vmatprep.subr.mxu0 %v942
        %5460 = vmatpush2.xpose.msra.mxu0 %v941
        %5461 = vmatprep.subr.mxu0 %v910
        %5462 = vmatpush2.xpose.msra.mxu0 %v909
        %5463 = vmatprep.subr.mxu0 %v878
        %5464 = vmatpush2.xpose.msra.mxu0 %v877
        %5465 = vmatprep.subr.mxu0 %v846
        %5466 = vmatpush2.xpose.msra.mxu0 %v845
        %5467 = vmatprep.subr.mxu0 %v814
        %5468 = vmatpush2.xpose.msra.mxu0 %v813
        %5469 = vmatprep.mubr.f32.mxu0 %v270
        %5470 = vmatmul.mubr.f32.gmra.mxu0 %v269
        %v5471 = vpop.f32.mrf.mxu0
        %v5472 = vadd.f32 %v5401, %v5471
        %v5473 = vpop.f32.mrf.mxu0
        %v5474 = vadd.f32 %v5403, %v5473
        %5475 = vdwg.mxu0
        %5476 = vmatprep.subr.mxu0 %v784
        %5477 = vmatpush1.xpose.msra.mxu0 %v783
        %5478 = vmatprep.subr.mxu0 %v752
        %5479 = vmatpush1.xpose.msra.mxu0 %v751
        %5480 = vmatprep.subr.mxu0 %v720
        %5481 = vmatpush1.xpose.msra.mxu0 %v719
        %5482 = vmatprep.subr.mxu0 %v688
        %5483 = vmatpush1.xpose.msra.mxu0 %v687
        %5484 = vmatprep.subr.mxu0 %v656
        %5485 = vmatpush1.xpose.msra.mxu0 %v655
        %5486 = vmatprep.subr.mxu0 %v624
        %5487 = vmatpush1.xpose.msra.mxu0 %v623
        %5488 = vmatprep.subr.mxu0 %v592
        %5489 = vmatpush1.xpose.msra.mxu0 %v591
        %5490 = vmatprep.subr.mxu0 %v560
        %5491 = vmatpush1.xpose.msra.mxu0 %v559
        %5492 = vmatprep.subr.mxu0 %v528
        %5493 = vmatpush1.xpose.msra.mxu0 %v527
        %5494 = vmatprep.subr.mxu0 %v496
        %5495 = vmatpush1.xpose.msra.mxu0 %v495
        %5496 = vmatprep.subr.mxu0 %v464
        %5497 = vmatpush1.xpose.msra.mxu0 %v463
        %5498 = vmatprep.subr.mxu0 %v432
        %5499 = vmatpush1.xpose.msra.mxu0 %v431
        %5500 = vmatprep.subr.mxu0 %v400
        %5501 = vmatpush1.xpose.msra.mxu0 %v399
        %5502 = vmatprep.subr.mxu0 %v368
        %5503 = vmatpush1.xpose.msra.mxu0 %v367
        %5504 = vmatprep.subr.mxu0 %v336
        %5505 = vmatpush1.xpose.msra.mxu0 %v335
        %5506 = vmatprep.subr.mxu0 %v304
        %5507 = vmatpush1.xpose.msra.mxu0 %v303
        %5508 = vmatprep.subr.mxu0 %v1296
        %5509 = vmatpush2.xpose.msra.mxu0 %v1295
        %5510 = vmatprep.subr.mxu0 %v1264
        %5511 = vmatpush2.xpose.msra.mxu0 %v1263
        %5512 = vmatprep.subr.mxu0 %v1232
        %5513 = vmatpush2.xpose.msra.mxu0 %v1231
        %5514 = vmatprep.subr.mxu0 %v1200
        %5515 = vmatpush2.xpose.msra.mxu0 %v1199
        %5516 = vmatprep.subr.mxu0 %v1168
        %5517 = vmatpush2.xpose.msra.mxu0 %v1167
        %5518 = vmatprep.subr.mxu0 %v1136
        %5519 = vmatpush2.xpose.msra.mxu0 %v1135
        %5520 = vmatprep.subr.mxu0 %v1104
        %5521 = vmatpush2.xpose.msra.mxu0 %v1103
        %5522 = vmatprep.subr.mxu0 %v1072
        %5523 = vmatpush2.xpose.msra.mxu0 %v1071
        %5524 = vmatprep.subr.mxu0 %v1040
        %5525 = vmatpush2.xpose.msra.mxu0 %v1039
        %5526 = vmatprep.subr.mxu0 %v1008
        %5527 = vmatpush2.xpose.msra.mxu0 %v1007
        %5528 = vmatprep.subr.mxu0 %v976
        %5529 = vmatpush2.xpose.msra.mxu0 %v975
        %5530 = vmatprep.subr.mxu0 %v944
        %5531 = vmatpush2.xpose.msra.mxu0 %v943
        %5532 = vmatprep.subr.mxu0 %v912
        %5533 = vmatpush2.xpose.msra.mxu0 %v911
        %5534 = vmatprep.subr.mxu0 %v880
        %5535 = vmatpush2.xpose.msra.mxu0 %v879
        %5536 = vmatprep.subr.mxu0 %v848
        %5537 = vmatpush2.xpose.msra.mxu0 %v847
        %5538 = vmatprep.subr.mxu0 %v816
        %5539 = vmatpush2.xpose.msra.mxu0 %v815
        %5540 = vmatprep.mubr.f32.mxu0 %v272
        %5541 = vmatmul.mubr.f32.gmra.mxu0 %v271
        %v5542 = vpop.f32.mrf.mxu0
        %v5543 = vadd.f32 %v5472, %v5542
        %v5544 = vpop.f32.mrf.mxu0
        %v5545 = vadd.f32 %v5474, %v5544
        %5546 = vdwg.mxu0
        %5547 = vmatprep.subr.mxu0 %v1778
        %5548 = vmatpush1.xpose.msra.mxu0 %v1777
        %5549 = vmatprep.subr.mxu0 %v1746
        %5550 = vmatpush1.xpose.msra.mxu0 %v1745
        %5551 = vmatprep.subr.mxu0 %v1714
        %5552 = vmatpush1.xpose.msra.mxu0 %v1713
        %5553 = vmatprep.subr.mxu0 %v1682
        %5554 = vmatpush1.xpose.msra.mxu0 %v1681
        %5555 = vmatprep.subr.mxu0 %v1650
        %5556 = vmatpush1.xpose.msra.mxu0 %v1649
        %5557 = vmatprep.subr.mxu0 %v1618
        %5558 = vmatpush1.xpose.msra.mxu0 %v1617
        %5559 = vmatprep.subr.mxu0 %v1586
        %5560 = vmatpush1.xpose.msra.mxu0 %v1585
        %5561 = vmatprep.subr.mxu0 %v1554
        %5562 = vmatpush1.xpose.msra.mxu0 %v1553
        %5563 = vmatprep.subr.mxu0 %v1522
        %5564 = vmatpush1.xpose.msra.mxu0 %v1521
        %5565 = vmatprep.subr.mxu0 %v1490
        %5566 = vmatpush1.xpose.msra.mxu0 %v1489
        %5567 = vmatprep.subr.mxu0 %v1458
        %5568 = vmatpush1.xpose.msra.mxu0 %v1457
        %5569 = vmatprep.subr.mxu0 %v1426
        %5570 = vmatpush1.xpose.msra.mxu0 %v1425
        %5571 = vmatprep.subr.mxu0 %v1394
        %5572 = vmatpush1.xpose.msra.mxu0 %v1393
        %5573 = vmatprep.subr.mxu0 %v1362
        %5574 = vmatpush1.xpose.msra.mxu0 %v1361
        %5575 = vmatprep.subr.mxu0 %v1330
        %5576 = vmatpush1.xpose.msra.mxu0 %v1329
        %5577 = vmatprep.subr.mxu0 %v1298
        %5578 = vmatpush1.xpose.msra.mxu0 %v1297
        %5579 = vmatprep.subr.mxu0 %v2290
        %5580 = vmatpush2.xpose.msra.mxu0 %v2289
        %5581 = vmatprep.subr.mxu0 %v2258
        %5582 = vmatpush2.xpose.msra.mxu0 %v2257
        %5583 = vmatprep.subr.mxu0 %v2226
        %5584 = vmatpush2.xpose.msra.mxu0 %v2225
        %5585 = vmatprep.subr.mxu0 %v2194
        %5586 = vmatpush2.xpose.msra.mxu0 %v2193
        %5587 = vmatprep.subr.mxu0 %v2162
        %5588 = vmatpush2.xpose.msra.mxu0 %v2161
        %5589 = vmatprep.subr.mxu0 %v2130
        %5590 = vmatpush2.xpose.msra.mxu0 %v2129
        %5591 = vmatprep.subr.mxu0 %v2098
        %5592 = vmatpush2.xpose.msra.mxu0 %v2097
        %5593 = vmatprep.subr.mxu0 %v2066
        %5594 = vmatpush2.xpose.msra.mxu0 %v2065
        %5595 = vmatprep.subr.mxu0 %v2034
        %5596 = vmatpush2.xpose.msra.mxu0 %v2033
        %5597 = vmatprep.subr.mxu0 %v2002
        %5598 = vmatpush2.xpose.msra.mxu0 %v2001
        %5599 = vmatprep.subr.mxu0 %v1970
        %5600 = vmatpush2.xpose.msra.mxu0 %v1969
        %5601 = vmatprep.subr.mxu0 %v1938
        %5602 = vmatpush2.xpose.msra.mxu0 %v1937
        %5603 = vmatprep.subr.mxu0 %v1906
        %5604 = vmatpush2.xpose.msra.mxu0 %v1905
        %5605 = vmatprep.subr.mxu0 %v1874
        %5606 = vmatpush2.xpose.msra.mxu0 %v1873
        %5607 = vmatprep.subr.mxu0 %v1842
        %5608 = vmatpush2.xpose.msra.mxu0 %v1841
        %5609 = vmatprep.subr.mxu0 %v1810
        %5610 = vmatpush2.xpose.msra.mxu0 %v1809
        %5611 = vmatprep.mubr.f32.mxu0 %v242
        %5612 = vmatmul.mubr.f32.gmra.mxu0 %v241
        %v5613 = vpop.f32.mrf.mxu0
        %v5614 = vadd.f32 %v4382, %v5613
        %v5615 = vpop.f32.mrf.mxu0
        %v5616 = vadd.f32 %v4386, %v5615
        %5617 = vdwg.mxu0
        %5618 = vmatprep.subr.mxu0 %v1780
        %5619 = vmatpush1.xpose.msra.mxu0 %v1779
        %5620 = vmatprep.subr.mxu0 %v1748
        %5621 = vmatpush1.xpose.msra.mxu0 %v1747
        %5622 = vmatprep.subr.mxu0 %v1716
        %5623 = vmatpush1.xpose.msra.mxu0 %v1715
        %5624 = vmatprep.subr.mxu0 %v1684
        %5625 = vmatpush1.xpose.msra.mxu0 %v1683
        %5626 = vmatprep.subr.mxu0 %v1652
        %5627 = vmatpush1.xpose.msra.mxu0 %v1651
        %5628 = vmatprep.subr.mxu0 %v1620
        %5629 = vmatpush1.xpose.msra.mxu0 %v1619
        %5630 = vmatprep.subr.mxu0 %v1588
        %5631 = vmatpush1.xpose.msra.mxu0 %v1587
        %5632 = vmatprep.subr.mxu0 %v1556
        %5633 = vmatpush1.xpose.msra.mxu0 %v1555
        %5634 = vmatprep.subr.mxu0 %v1524
        %5635 = vmatpush1.xpose.msra.mxu0 %v1523
        %5636 = vmatprep.subr.mxu0 %v1492
        %5637 = vmatpush1.xpose.msra.mxu0 %v1491
        %5638 = vmatprep.subr.mxu0 %v1460
        %5639 = vmatpush1.xpose.msra.mxu0 %v1459
        %5640 = vmatprep.subr.mxu0 %v1428
        %5641 = vmatpush1.xpose.msra.mxu0 %v1427
        %5642 = vmatprep.subr.mxu0 %v1396
        %5643 = vmatpush1.xpose.msra.mxu0 %v1395
        %5644 = vmatprep.subr.mxu0 %v1364
        %5645 = vmatpush1.xpose.msra.mxu0 %v1363
        %5646 = vmatprep.subr.mxu0 %v1332
        %5647 = vmatpush1.xpose.msra.mxu0 %v1331
        %5648 = vmatprep.subr.mxu0 %v1300
        %5649 = vmatpush1.xpose.msra.mxu0 %v1299
        %5650 = vmatprep.subr.mxu0 %v2292
        %5651 = vmatpush2.xpose.msra.mxu0 %v2291
        %5652 = vmatprep.subr.mxu0 %v2260
        %5653 = vmatpush2.xpose.msra.mxu0 %v2259
        %5654 = vmatprep.subr.mxu0 %v2228
        %5655 = vmatpush2.xpose.msra.mxu0 %v2227
        %5656 = vmatprep.subr.mxu0 %v2196
        %5657 = vmatpush2.xpose.msra.mxu0 %v2195
        %5658 = vmatprep.subr.mxu0 %v2164
        %5659 = vmatpush2.xpose.msra.mxu0 %v2163
        %5660 = vmatprep.subr.mxu0 %v2132
        %5661 = vmatpush2.xpose.msra.mxu0 %v2131
        %5662 = vmatprep.subr.mxu0 %v2100
        %5663 = vmatpush2.xpose.msra.mxu0 %v2099
        %5664 = vmatprep.subr.mxu0 %v2068
        %5665 = vmatpush2.xpose.msra.mxu0 %v2067
        %5666 = vmatprep.subr.mxu0 %v2036
        %5667 = vmatpush2.xpose.msra.mxu0 %v2035
        %5668 = vmatprep.subr.mxu0 %v2004
        %5669 = vmatpush2.xpose.msra.mxu0 %v2003
        %5670 = vmatprep.subr.mxu0 %v1972
        %5671 = vmatpush2.xpose.msra.mxu0 %v1971
        %5672 = vmatprep.subr.mxu0 %v1940
        %5673 = vmatpush2.xpose.msra.mxu0 %v1939
        %5674 = vmatprep.subr.mxu0 %v1908
        %5675 = vmatpush2.xpose.msra.mxu0 %v1907
        %5676 = vmatprep.subr.mxu0 %v1876
        %5677 = vmatpush2.xpose.msra.mxu0 %v1875
        %5678 = vmatprep.subr.mxu0 %v1844
        %5679 = vmatpush2.xpose.msra.mxu0 %v1843
        %5680 = vmatprep.subr.mxu0 %v1812
        %5681 = vmatpush2.xpose.msra.mxu0 %v1811
        %5682 = vmatprep.mubr.f32.mxu0 %v244
        %5683 = vmatmul.mubr.f32.gmra.mxu0 %v243
        %v5684 = vpop.f32.mrf.mxu0
        %v5685 = vadd.f32 %v5614, %v5684
        %v5686 = vpop.f32.mrf.mxu0
        %v5687 = vadd.f32 %v5616, %v5686
        %5688 = vdwg.mxu0
        %5689 = vmatprep.subr.mxu0 %v1782
        %5690 = vmatpush1.xpose.msra.mxu0 %v1781
        %5691 = vmatprep.subr.mxu0 %v1750
        %5692 = vmatpush1.xpose.msra.mxu0 %v1749
        %5693 = vmatprep.subr.mxu0 %v1718
        %5694 = vmatpush1.xpose.msra.mxu0 %v1717
        %5695 = vmatprep.subr.mxu0 %v1686
        %5696 = vmatpush1.xpose.msra.mxu0 %v1685
        %5697 = vmatprep.subr.mxu0 %v1654
        %5698 = vmatpush1.xpose.msra.mxu0 %v1653
        %5699 = vmatprep.subr.mxu0 %v1622
        %5700 = vmatpush1.xpose.msra.mxu0 %v1621
        %5701 = vmatprep.subr.mxu0 %v1590
        %5702 = vmatpush1.xpose.msra.mxu0 %v1589
        %5703 = vmatprep.subr.mxu0 %v1558
        %5704 = vmatpush1.xpose.msra.mxu0 %v1557
        %5705 = vmatprep.subr.mxu0 %v1526
        %5706 = vmatpush1.xpose.msra.mxu0 %v1525
        %5707 = vmatprep.subr.mxu0 %v1494
        %5708 = vmatpush1.xpose.msra.mxu0 %v1493
        %5709 = vmatprep.subr.mxu0 %v1462
        %5710 = vmatpush1.xpose.msra.mxu0 %v1461
        %5711 = vmatprep.subr.mxu0 %v1430
        %5712 = vmatpush1.xpose.msra.mxu0 %v1429
        %5713 = vmatprep.subr.mxu0 %v1398
        %5714 = vmatpush1.xpose.msra.mxu0 %v1397
        %5715 = vmatprep.subr.mxu0 %v1366
        %5716 = vmatpush1.xpose.msra.mxu0 %v1365
        %5717 = vmatprep.subr.mxu0 %v1334
        %5718 = vmatpush1.xpose.msra.mxu0 %v1333
        %5719 = vmatprep.subr.mxu0 %v1302
        %5720 = vmatpush1.xpose.msra.mxu0 %v1301
        %5721 = vmatprep.subr.mxu0 %v2294
        %5722 = vmatpush2.xpose.msra.mxu0 %v2293
        %5723 = vmatprep.subr.mxu0 %v2262
        %5724 = vmatpush2.xpose.msra.mxu0 %v2261
        %5725 = vmatprep.subr.mxu0 %v2230
        %5726 = vmatpush2.xpose.msra.mxu0 %v2229
        %5727 = vmatprep.subr.mxu0 %v2198
        %5728 = vmatpush2.xpose.msra.mxu0 %v2197
        %5729 = vmatprep.subr.mxu0 %v2166
        %5730 = vmatpush2.xpose.msra.mxu0 %v2165
        %5731 = vmatprep.subr.mxu0 %v2134
        %5732 = vmatpush2.xpose.msra.mxu0 %v2133
        %5733 = vmatprep.subr.mxu0 %v2102
        %5734 = vmatpush2.xpose.msra.mxu0 %v2101
        %5735 = vmatprep.subr.mxu0 %v2070
        %5736 = vmatpush2.xpose.msra.mxu0 %v2069
        %5737 = vmatprep.subr.mxu0 %v2038
        %5738 = vmatpush2.xpose.msra.mxu0 %v2037
        %5739 = vmatprep.subr.mxu0 %v2006
        %5740 = vmatpush2.xpose.msra.mxu0 %v2005
        %5741 = vmatprep.subr.mxu0 %v1974
        %5742 = vmatpush2.xpose.msra.mxu0 %v1973
        %5743 = vmatprep.subr.mxu0 %v1942
        %5744 = vmatpush2.xpose.msra.mxu0 %v1941
        %5745 = vmatprep.subr.mxu0 %v1910
        %5746 = vmatpush2.xpose.msra.mxu0 %v1909
        %5747 = vmatprep.subr.mxu0 %v1878
        %5748 = vmatpush2.xpose.msra.mxu0 %v1877
        %5749 = vmatprep.subr.mxu0 %v1846
        %5750 = vmatpush2.xpose.msra.mxu0 %v1845
        %5751 = vmatprep.subr.mxu0 %v1814
        %5752 = vmatpush2.xpose.msra.mxu0 %v1813
        %5753 = vmatprep.mubr.f32.mxu0 %v246
        %5754 = vmatmul.mubr.f32.gmra.mxu0 %v245
        %v5755 = vpop.f32.mrf.mxu0
        %v5756 = vadd.f32 %v5685, %v5755
        %v5757 = vpop.f32.mrf.mxu0
        %v5758 = vadd.f32 %v5687, %v5757
        %5759 = vdwg.mxu0
        %5760 = vmatprep.subr.mxu0 %v1784
        %5761 = vmatpush1.xpose.msra.mxu0 %v1783
        %5762 = vmatprep.subr.mxu0 %v1752
        %5763 = vmatpush1.xpose.msra.mxu0 %v1751
        %5764 = vmatprep.subr.mxu0 %v1720
        %5765 = vmatpush1.xpose.msra.mxu0 %v1719
        %5766 = vmatprep.subr.mxu0 %v1688
        %5767 = vmatpush1.xpose.msra.mxu0 %v1687
        %5768 = vmatprep.subr.mxu0 %v1656
        %5769 = vmatpush1.xpose.msra.mxu0 %v1655
        %5770 = vmatprep.subr.mxu0 %v1624
        %5771 = vmatpush1.xpose.msra.mxu0 %v1623
        %5772 = vmatprep.subr.mxu0 %v1592
        %5773 = vmatpush1.xpose.msra.mxu0 %v1591
        %5774 = vmatprep.subr.mxu0 %v1560
        %5775 = vmatpush1.xpose.msra.mxu0 %v1559
        %5776 = vmatprep.subr.mxu0 %v1528
        %5777 = vmatpush1.xpose.msra.mxu0 %v1527
        %5778 = vmatprep.subr.mxu0 %v1496
        %5779 = vmatpush1.xpose.msra.mxu0 %v1495
        %5780 = vmatprep.subr.mxu0 %v1464
        %5781 = vmatpush1.xpose.msra.mxu0 %v1463
        %5782 = vmatprep.subr.mxu0 %v1432
        %5783 = vmatpush1.xpose.msra.mxu0 %v1431
        %5784 = vmatprep.subr.mxu0 %v1400
        %5785 = vmatpush1.xpose.msra.mxu0 %v1399
        %5786 = vmatprep.subr.mxu0 %v1368
        %5787 = vmatpush1.xpose.msra.mxu0 %v1367
        %5788 = vmatprep.subr.mxu0 %v1336
        %5789 = vmatpush1.xpose.msra.mxu0 %v1335
        %5790 = vmatprep.subr.mxu0 %v1304
        %5791 = vmatpush1.xpose.msra.mxu0 %v1303
        %5792 = vmatprep.subr.mxu0 %v2296
        %5793 = vmatpush2.xpose.msra.mxu0 %v2295
        %5794 = vmatprep.subr.mxu0 %v2264
        %5795 = vmatpush2.xpose.msra.mxu0 %v2263
        %5796 = vmatprep.subr.mxu0 %v2232
        %5797 = vmatpush2.xpose.msra.mxu0 %v2231
        %5798 = vmatprep.subr.mxu0 %v2200
        %5799 = vmatpush2.xpose.msra.mxu0 %v2199
        %5800 = vmatprep.subr.mxu0 %v2168
        %5801 = vmatpush2.xpose.msra.mxu0 %v2167
        %5802 = vmatprep.subr.mxu0 %v2136
        %5803 = vmatpush2.xpose.msra.mxu0 %v2135
        %5804 = vmatprep.subr.mxu0 %v2104
        %5805 = vmatpush2.xpose.msra.mxu0 %v2103
        %5806 = vmatprep.subr.mxu0 %v2072
        %5807 = vmatpush2.xpose.msra.mxu0 %v2071
        %5808 = vmatprep.subr.mxu0 %v2040
        %5809 = vmatpush2.xpose.msra.mxu0 %v2039
        %5810 = vmatprep.subr.mxu0 %v2008
        %5811 = vmatpush2.xpose.msra.mxu0 %v2007
        %5812 = vmatprep.subr.mxu0 %v1976
        %5813 = vmatpush2.xpose.msra.mxu0 %v1975
        %5814 = vmatprep.subr.mxu0 %v1944
        %5815 = vmatpush2.xpose.msra.mxu0 %v1943
        %5816 = vmatprep.subr.mxu0 %v1912
        %5817 = vmatpush2.xpose.msra.mxu0 %v1911
        %5818 = vmatprep.subr.mxu0 %v1880
        %5819 = vmatpush2.xpose.msra.mxu0 %v1879
        %5820 = vmatprep.subr.mxu0 %v1848
        %5821 = vmatpush2.xpose.msra.mxu0 %v1847
        %5822 = vmatprep.subr.mxu0 %v1816
        %5823 = vmatpush2.xpose.msra.mxu0 %v1815
        %5824 = vmatprep.mubr.f32.mxu0 %v248
        %5825 = vmatmul.mubr.f32.gmra.mxu0 %v247
        %v5826 = vpop.f32.mrf.mxu0
        %v5827 = vadd.f32 %v5756, %v5826
        %v5828 = vpop.f32.mrf.mxu0
        %v5829 = vadd.f32 %v5758, %v5828
        %5830 = vdwg.mxu0
        %5831 = vmatprep.subr.mxu0 %v1786
        %5832 = vmatpush1.xpose.msra.mxu0 %v1785
        %5833 = vmatprep.subr.mxu0 %v1754
        %5834 = vmatpush1.xpose.msra.mxu0 %v1753
        %5835 = vmatprep.subr.mxu0 %v1722
        %5836 = vmatpush1.xpose.msra.mxu0 %v1721
        %5837 = vmatprep.subr.mxu0 %v1690
        %5838 = vmatpush1.xpose.msra.mxu0 %v1689
        %5839 = vmatprep.subr.mxu0 %v1658
        %5840 = vmatpush1.xpose.msra.mxu0 %v1657
        %5841 = vmatprep.subr.mxu0 %v1626
        %5842 = vmatpush1.xpose.msra.mxu0 %v1625
        %5843 = vmatprep.subr.mxu0 %v1594
        %5844 = vmatpush1.xpose.msra.mxu0 %v1593
        %5845 = vmatprep.subr.mxu0 %v1562
        %5846 = vmatpush1.xpose.msra.mxu0 %v1561
        %5847 = vmatprep.subr.mxu0 %v1530
        %5848 = vmatpush1.xpose.msra.mxu0 %v1529
        %5849 = vmatprep.subr.mxu0 %v1498
        %5850 = vmatpush1.xpose.msra.mxu0 %v1497
        %5851 = vmatprep.subr.mxu0 %v1466
        %5852 = vmatpush1.xpose.msra.mxu0 %v1465
        %5853 = vmatprep.subr.mxu0 %v1434
        %5854 = vmatpush1.xpose.msra.mxu0 %v1433
        %5855 = vmatprep.subr.mxu0 %v1402
        %5856 = vmatpush1.xpose.msra.mxu0 %v1401
        %5857 = vmatprep.subr.mxu0 %v1370
        %5858 = vmatpush1.xpose.msra.mxu0 %v1369
        %5859 = vmatprep.subr.mxu0 %v1338
        %5860 = vmatpush1.xpose.msra.mxu0 %v1337
        %5861 = vmatprep.subr.mxu0 %v1306
        %5862 = vmatpush1.xpose.msra.mxu0 %v1305
        %5863 = vmatprep.subr.mxu0 %v2298
        %5864 = vmatpush2.xpose.msra.mxu0 %v2297
        %5865 = vmatprep.subr.mxu0 %v2266
        %5866 = vmatpush2.xpose.msra.mxu0 %v2265
        %5867 = vmatprep.subr.mxu0 %v2234
        %5868 = vmatpush2.xpose.msra.mxu0 %v2233
        %5869 = vmatprep.subr.mxu0 %v2202
        %5870 = vmatpush2.xpose.msra.mxu0 %v2201
        %5871 = vmatprep.subr.mxu0 %v2170
        %5872 = vmatpush2.xpose.msra.mxu0 %v2169
        %5873 = vmatprep.subr.mxu0 %v2138
        %5874 = vmatpush2.xpose.msra.mxu0 %v2137
        %5875 = vmatprep.subr.mxu0 %v2106
        %5876 = vmatpush2.xpose.msra.mxu0 %v2105
        %5877 = vmatprep.subr.mxu0 %v2074
        %5878 = vmatpush2.xpose.msra.mxu0 %v2073
        %5879 = vmatprep.subr.mxu0 %v2042
        %5880 = vmatpush2.xpose.msra.mxu0 %v2041
        %5881 = vmatprep.subr.mxu0 %v2010
        %5882 = vmatpush2.xpose.msra.mxu0 %v2009
        %5883 = vmatprep.subr.mxu0 %v1978
        %5884 = vmatpush2.xpose.msra.mxu0 %v1977
        %5885 = vmatprep.subr.mxu0 %v1946
        %5886 = vmatpush2.xpose.msra.mxu0 %v1945
        %5887 = vmatprep.subr.mxu0 %v1914
        %5888 = vmatpush2.xpose.msra.mxu0 %v1913
        %5889 = vmatprep.subr.mxu0 %v1882
        %5890 = vmatpush2.xpose.msra.mxu0 %v1881
        %5891 = vmatprep.subr.mxu0 %v1850
        %5892 = vmatpush2.xpose.msra.mxu0 %v1849
        %5893 = vmatprep.subr.mxu0 %v1818
        %5894 = vmatpush2.xpose.msra.mxu0 %v1817
        %5895 = vmatprep.mubr.f32.mxu0 %v250
        %5896 = vmatmul.mubr.f32.gmra.mxu0 %v249
        %v5897 = vpop.f32.mrf.mxu0
        %v5898 = vadd.f32 %v5827, %v5897
        %v5899 = vpop.f32.mrf.mxu0
        %v5900 = vadd.f32 %v5829, %v5899
        %5901 = vdwg.mxu0
        %5902 = vmatprep.subr.mxu0 %v1788
        %5903 = vmatpush1.xpose.msra.mxu0 %v1787
        %5904 = vmatprep.subr.mxu0 %v1756
        %5905 = vmatpush1.xpose.msra.mxu0 %v1755
        %5906 = vmatprep.subr.mxu0 %v1724
        %5907 = vmatpush1.xpose.msra.mxu0 %v1723
        %5908 = vmatprep.subr.mxu0 %v1692
        %5909 = vmatpush1.xpose.msra.mxu0 %v1691
        %5910 = vmatprep.subr.mxu0 %v1660
        %5911 = vmatpush1.xpose.msra.mxu0 %v1659
        %5912 = vmatprep.subr.mxu0 %v1628
        %5913 = vmatpush1.xpose.msra.mxu0 %v1627
        %5914 = vmatprep.subr.mxu0 %v1596
        %5915 = vmatpush1.xpose.msra.mxu0 %v1595
        %5916 = vmatprep.subr.mxu0 %v1564
        %5917 = vmatpush1.xpose.msra.mxu0 %v1563
        %5918 = vmatprep.subr.mxu0 %v1532
        %5919 = vmatpush1.xpose.msra.mxu0 %v1531
        %5920 = vmatprep.subr.mxu0 %v1500
        %5921 = vmatpush1.xpose.msra.mxu0 %v1499
        %5922 = vmatprep.subr.mxu0 %v1468
        %5923 = vmatpush1.xpose.msra.mxu0 %v1467
        %5924 = vmatprep.subr.mxu0 %v1436
        %5925 = vmatpush1.xpose.msra.mxu0 %v1435
        %5926 = vmatprep.subr.mxu0 %v1404
        %5927 = vmatpush1.xpose.msra.mxu0 %v1403
        %5928 = vmatprep.subr.mxu0 %v1372
        %5929 = vmatpush1.xpose.msra.mxu0 %v1371
        %5930 = vmatprep.subr.mxu0 %v1340
        %5931 = vmatpush1.xpose.msra.mxu0 %v1339
        %5932 = vmatprep.subr.mxu0 %v1308
        %5933 = vmatpush1.xpose.msra.mxu0 %v1307
        %5934 = vmatprep.subr.mxu0 %v2300
        %5935 = vmatpush2.xpose.msra.mxu0 %v2299
        %5936 = vmatprep.subr.mxu0 %v2268
        %5937 = vmatpush2.xpose.msra.mxu0 %v2267
        %5938 = vmatprep.subr.mxu0 %v2236
        %5939 = vmatpush2.xpose.msra.mxu0 %v2235
        %5940 = vmatprep.subr.mxu0 %v2204
        %5941 = vmatpush2.xpose.msra.mxu0 %v2203
        %5942 = vmatprep.subr.mxu0 %v2172
        %5943 = vmatpush2.xpose.msra.mxu0 %v2171
        %5944 = vmatprep.subr.mxu0 %v2140
        %5945 = vmatpush2.xpose.msra.mxu0 %v2139
        %5946 = vmatprep.subr.mxu0 %v2108
        %5947 = vmatpush2.xpose.msra.mxu0 %v2107
        %5948 = vmatprep.subr.mxu0 %v2076
        %5949 = vmatpush2.xpose.msra.mxu0 %v2075
        %5950 = vmatprep.subr.mxu0 %v2044
        %5951 = vmatpush2.xpose.msra.mxu0 %v2043
        %5952 = vmatprep.subr.mxu0 %v2012
        %5953 = vmatpush2.xpose.msra.mxu0 %v2011
        %5954 = vmatprep.subr.mxu0 %v1980
        %5955 = vmatpush2.xpose.msra.mxu0 %v1979
        %5956 = vmatprep.subr.mxu0 %v1948
        %5957 = vmatpush2.xpose.msra.mxu0 %v1947
        %5958 = vmatprep.subr.mxu0 %v1916
        %5959 = vmatpush2.xpose.msra.mxu0 %v1915
        %5960 = vmatprep.subr.mxu0 %v1884
        %5961 = vmatpush2.xpose.msra.mxu0 %v1883
        %5962 = vmatprep.subr.mxu0 %v1852
        %5963 = vmatpush2.xpose.msra.mxu0 %v1851
        %5964 = vmatprep.subr.mxu0 %v1820
        %5965 = vmatpush2.xpose.msra.mxu0 %v1819
        %5966 = vmatprep.mubr.f32.mxu0 %v252
        %5967 = vmatmul.mubr.f32.gmra.mxu0 %v251
        %v5968 = vpop.f32.mrf.mxu0
        %v5969 = vadd.f32 %v5898, %v5968
        %v5970 = vpop.f32.mrf.mxu0
        %v5971 = vadd.f32 %v5900, %v5970
        %5972 = vdwg.mxu0
        %5973 = vmatprep.subr.mxu0 %v1790
        %5974 = vmatpush1.xpose.msra.mxu0 %v1789
        %5975 = vmatprep.subr.mxu0 %v1758
        %5976 = vmatpush1.xpose.msra.mxu0 %v1757
        %5977 = vmatprep.subr.mxu0 %v1726
        %5978 = vmatpush1.xpose.msra.mxu0 %v1725
        %5979 = vmatprep.subr.mxu0 %v1694
        %5980 = vmatpush1.xpose.msra.mxu0 %v1693
        %5981 = vmatprep.subr.mxu0 %v1662
        %5982 = vmatpush1.xpose.msra.mxu0 %v1661
        %5983 = vmatprep.subr.mxu0 %v1630
        %5984 = vmatpush1.xpose.msra.mxu0 %v1629
        %5985 = vmatprep.subr.mxu0 %v1598
        %5986 = vmatpush1.xpose.msra.mxu0 %v1597
        %5987 = vmatprep.subr.mxu0 %v1566
        %5988 = vmatpush1.xpose.msra.mxu0 %v1565
        %5989 = vmatprep.subr.mxu0 %v1534
        %5990 = vmatpush1.xpose.msra.mxu0 %v1533
        %5991 = vmatprep.subr.mxu0 %v1502
        %5992 = vmatpush1.xpose.msra.mxu0 %v1501
        %5993 = vmatprep.subr.mxu0 %v1470
        %5994 = vmatpush1.xpose.msra.mxu0 %v1469
        %5995 = vmatprep.subr.mxu0 %v1438
        %5996 = vmatpush1.xpose.msra.mxu0 %v1437
        %5997 = vmatprep.subr.mxu0 %v1406
        %5998 = vmatpush1.xpose.msra.mxu0 %v1405
        %5999 = vmatprep.subr.mxu0 %v1374
        %6000 = vmatpush1.xpose.msra.mxu0 %v1373
        %6001 = vmatprep.subr.mxu0 %v1342
        %6002 = vmatpush1.xpose.msra.mxu0 %v1341
        %6003 = vmatprep.subr.mxu0 %v1310
        %6004 = vmatpush1.xpose.msra.mxu0 %v1309
        %6005 = vmatprep.subr.mxu0 %v2302
        %6006 = vmatpush2.xpose.msra.mxu0 %v2301
        %6007 = vmatprep.subr.mxu0 %v2270
        %6008 = vmatpush2.xpose.msra.mxu0 %v2269
        %6009 = vmatprep.subr.mxu0 %v2238
        %6010 = vmatpush2.xpose.msra.mxu0 %v2237
        %6011 = vmatprep.subr.mxu0 %v2206
        %6012 = vmatpush2.xpose.msra.mxu0 %v2205
        %6013 = vmatprep.subr.mxu0 %v2174
        %6014 = vmatpush2.xpose.msra.mxu0 %v2173
        %6015 = vmatprep.subr.mxu0 %v2142
        %6016 = vmatpush2.xpose.msra.mxu0 %v2141
        %6017 = vmatprep.subr.mxu0 %v2110
        %6018 = vmatpush2.xpose.msra.mxu0 %v2109
        %6019 = vmatprep.subr.mxu0 %v2078
        %6020 = vmatpush2.xpose.msra.mxu0 %v2077
        %6021 = vmatprep.subr.mxu0 %v2046
        %6022 = vmatpush2.xpose.msra.mxu0 %v2045
        %6023 = vmatprep.subr.mxu0 %v2014
        %6024 = vmatpush2.xpose.msra.mxu0 %v2013
        %6025 = vmatprep.subr.mxu0 %v1982
        %6026 = vmatpush2.xpose.msra.mxu0 %v1981
        %6027 = vmatprep.subr.mxu0 %v1950
        %6028 = vmatpush2.xpose.msra.mxu0 %v1949
        %6029 = vmatprep.subr.mxu0 %v1918
        %6030 = vmatpush2.xpose.msra.mxu0 %v1917
        %6031 = vmatprep.subr.mxu0 %v1886
        %6032 = vmatpush2.xpose.msra.mxu0 %v1885
        %6033 = vmatprep.subr.mxu0 %v1854
        %6034 = vmatpush2.xpose.msra.mxu0 %v1853
        %6035 = vmatprep.subr.mxu0 %v1822
        %6036 = vmatpush2.xpose.msra.mxu0 %v1821
        %6037 = vmatprep.mubr.f32.mxu0 %v254
        %6038 = vmatmul.mubr.f32.gmra.mxu0 %v253
        %v6039 = vpop.f32.mrf.mxu0
        %v6040 = vadd.f32 %v5969, %v6039
        %v6041 = vpop.f32.mrf.mxu0
        %v6042 = vadd.f32 %v5971, %v6041
        %6043 = vdwg.mxu0
        %6044 = vmatprep.subr.mxu0 %v1792
        %6045 = vmatpush1.xpose.msra.mxu0 %v1791
        %6046 = vmatprep.subr.mxu0 %v1760
        %6047 = vmatpush1.xpose.msra.mxu0 %v1759
        %6048 = vmatprep.subr.mxu0 %v1728
        %6049 = vmatpush1.xpose.msra.mxu0 %v1727
        %6050 = vmatprep.subr.mxu0 %v1696
        %6051 = vmatpush1.xpose.msra.mxu0 %v1695
        %6052 = vmatprep.subr.mxu0 %v1664
        %6053 = vmatpush1.xpose.msra.mxu0 %v1663
        %6054 = vmatprep.subr.mxu0 %v1632
        %6055 = vmatpush1.xpose.msra.mxu0 %v1631
        %6056 = vmatprep.subr.mxu0 %v1600
        %6057 = vmatpush1.xpose.msra.mxu0 %v1599
        %6058 = vmatprep.subr.mxu0 %v1568
        %6059 = vmatpush1.xpose.msra.mxu0 %v1567
        %6060 = vmatprep.subr.mxu0 %v1536
        %6061 = vmatpush1.xpose.msra.mxu0 %v1535
        %6062 = vmatprep.subr.mxu0 %v1504
        %6063 = vmatpush1.xpose.msra.mxu0 %v1503
        %6064 = vmatprep.subr.mxu0 %v1472
        %6065 = vmatpush1.xpose.msra.mxu0 %v1471
        %6066 = vmatprep.subr.mxu0 %v1440
        %6067 = vmatpush1.xpose.msra.mxu0 %v1439
        %6068 = vmatprep.subr.mxu0 %v1408
        %6069 = vmatpush1.xpose.msra.mxu0 %v1407
        %6070 = vmatprep.subr.mxu0 %v1376
        %6071 = vmatpush1.xpose.msra.mxu0 %v1375
        %6072 = vmatprep.subr.mxu0 %v1344
        %6073 = vmatpush1.xpose.msra.mxu0 %v1343
        %6074 = vmatprep.subr.mxu0 %v1312
        %6075 = vmatpush1.xpose.msra.mxu0 %v1311
        %6076 = vmatprep.subr.mxu0 %v2304
        %6077 = vmatpush2.xpose.msra.mxu0 %v2303
        %6078 = vmatprep.subr.mxu0 %v2272
        %6079 = vmatpush2.xpose.msra.mxu0 %v2271
        %6080 = vmatprep.subr.mxu0 %v2240
        %6081 = vmatpush2.xpose.msra.mxu0 %v2239
        %6082 = vmatprep.subr.mxu0 %v2208
        %6083 = vmatpush2.xpose.msra.mxu0 %v2207
        %6084 = vmatprep.subr.mxu0 %v2176
        %6085 = vmatpush2.xpose.msra.mxu0 %v2175
        %6086 = vmatprep.subr.mxu0 %v2144
        %6087 = vmatpush2.xpose.msra.mxu0 %v2143
        %6088 = vmatprep.subr.mxu0 %v2112
        %6089 = vmatpush2.xpose.msra.mxu0 %v2111
        %6090 = vmatprep.subr.mxu0 %v2080
        %6091 = vmatpush2.xpose.msra.mxu0 %v2079
        %6092 = vmatprep.subr.mxu0 %v2048
        %6093 = vmatpush2.xpose.msra.mxu0 %v2047
        %6094 = vmatprep.subr.mxu0 %v2016
        %6095 = vmatpush2.xpose.msra.mxu0 %v2015
        %6096 = vmatprep.subr.mxu0 %v1984
        %6097 = vmatpush2.xpose.msra.mxu0 %v1983
        %6098 = vmatprep.subr.mxu0 %v1952
        %6099 = vmatpush2.xpose.msra.mxu0 %v1951
        %6100 = vmatprep.subr.mxu0 %v1920
        %6101 = vmatpush2.xpose.msra.mxu0 %v1919
        %6102 = vmatprep.subr.mxu0 %v1888
        %6103 = vmatpush2.xpose.msra.mxu0 %v1887
        %6104 = vmatprep.subr.mxu0 %v1856
        %6105 = vmatpush2.xpose.msra.mxu0 %v1855
        %6106 = vmatprep.subr.mxu0 %v1824
        %6107 = vmatpush2.xpose.msra.mxu0 %v1823
        %6108 = vmatprep.mubr.f32.mxu0 %v256
        %6109 = vmatmul.mubr.f32.gmra.mxu0 %v255
        %v6110 = vpop.f32.mrf.mxu0
        %v6111 = vadd.f32 %v6040, %v6110
        %v6112 = vpop.f32.mrf.mxu0
        %v6113 = vadd.f32 %v6042, %v6112
        %6114 = vdwg.mxu0
        %6115 = vmatprep.subr.mxu0 %v1794
        %6116 = vmatpush1.xpose.msra.mxu0 %v1793
        %6117 = vmatprep.subr.mxu0 %v1762
        %6118 = vmatpush1.xpose.msra.mxu0 %v1761
        %6119 = vmatprep.subr.mxu0 %v1730
        %6120 = vmatpush1.xpose.msra.mxu0 %v1729
        %6121 = vmatprep.subr.mxu0 %v1698
        %6122 = vmatpush1.xpose.msra.mxu0 %v1697
        %6123 = vmatprep.subr.mxu0 %v1666
        %6124 = vmatpush1.xpose.msra.mxu0 %v1665
        %6125 = vmatprep.subr.mxu0 %v1634
        %6126 = vmatpush1.xpose.msra.mxu0 %v1633
        %6127 = vmatprep.subr.mxu0 %v1602
        %6128 = vmatpush1.xpose.msra.mxu0 %v1601
        %6129 = vmatprep.subr.mxu0 %v1570
        %6130 = vmatpush1.xpose.msra.mxu0 %v1569
        %6131 = vmatprep.subr.mxu0 %v1538
        %6132 = vmatpush1.xpose.msra.mxu0 %v1537
        %6133 = vmatprep.subr.mxu0 %v1506
        %6134 = vmatpush1.xpose.msra.mxu0 %v1505
        %6135 = vmatprep.subr.mxu0 %v1474
        %6136 = vmatpush1.xpose.msra.mxu0 %v1473
        %6137 = vmatprep.subr.mxu0 %v1442
        %6138 = vmatpush1.xpose.msra.mxu0 %v1441
        %6139 = vmatprep.subr.mxu0 %v1410
        %6140 = vmatpush1.xpose.msra.mxu0 %v1409
        %6141 = vmatprep.subr.mxu0 %v1378
        %6142 = vmatpush1.xpose.msra.mxu0 %v1377
        %6143 = vmatprep.subr.mxu0 %v1346
        %6144 = vmatpush1.xpose.msra.mxu0 %v1345
        %6145 = vmatprep.subr.mxu0 %v1314
        %6146 = vmatpush1.xpose.msra.mxu0 %v1313
        %6147 = vmatprep.subr.mxu0 %v2306
        %6148 = vmatpush2.xpose.msra.mxu0 %v2305
        %6149 = vmatprep.subr.mxu0 %v2274
        %6150 = vmatpush2.xpose.msra.mxu0 %v2273
        %6151 = vmatprep.subr.mxu0 %v2242
        %6152 = vmatpush2.xpose.msra.mxu0 %v2241
        %6153 = vmatprep.subr.mxu0 %v2210
        %6154 = vmatpush2.xpose.msra.mxu0 %v2209
        %6155 = vmatprep.subr.mxu0 %v2178
        %6156 = vmatpush2.xpose.msra.mxu0 %v2177
        %6157 = vmatprep.subr.mxu0 %v2146
        %6158 = vmatpush2.xpose.msra.mxu0 %v2145
        %6159 = vmatprep.subr.mxu0 %v2114
        %6160 = vmatpush2.xpose.msra.mxu0 %v2113
        %6161 = vmatprep.subr.mxu0 %v2082
        %6162 = vmatpush2.xpose.msra.mxu0 %v2081
        %6163 = vmatprep.subr.mxu0 %v2050
        %6164 = vmatpush2.xpose.msra.mxu0 %v2049
        %6165 = vmatprep.subr.mxu0 %v2018
        %6166 = vmatpush2.xpose.msra.mxu0 %v2017
        %6167 = vmatprep.subr.mxu0 %v1986
        %6168 = vmatpush2.xpose.msra.mxu0 %v1985
        %6169 = vmatprep.subr.mxu0 %v1954
        %6170 = vmatpush2.xpose.msra.mxu0 %v1953
        %6171 = vmatprep.subr.mxu0 %v1922
        %6172 = vmatpush2.xpose.msra.mxu0 %v1921
        %6173 = vmatprep.subr.mxu0 %v1890
        %6174 = vmatpush2.xpose.msra.mxu0 %v1889
        %6175 = vmatprep.subr.mxu0 %v1858
        %6176 = vmatpush2.xpose.msra.mxu0 %v1857
        %6177 = vmatprep.subr.mxu0 %v1826
        %6178 = vmatpush2.xpose.msra.mxu0 %v1825
        %6179 = vmatprep.mubr.f32.mxu0 %v258
        %6180 = vmatmul.mubr.f32.gmra.mxu0 %v257
        %v6181 = vpop.f32.mrf.mxu0
        %v6182 = vadd.f32 %v6111, %v6181
        %v6183 = vpop.f32.mrf.mxu0
        %v6184 = vadd.f32 %v6113, %v6183
        %6185 = vdwg.mxu0
        %6186 = vmatprep.subr.mxu0 %v1796
        %6187 = vmatpush1.xpose.msra.mxu0 %v1795
        %6188 = vmatprep.subr.mxu0 %v1764
        %6189 = vmatpush1.xpose.msra.mxu0 %v1763
        %6190 = vmatprep.subr.mxu0 %v1732
        %6191 = vmatpush1.xpose.msra.mxu0 %v1731
        %6192 = vmatprep.subr.mxu0 %v1700
        %6193 = vmatpush1.xpose.msra.mxu0 %v1699
        %6194 = vmatprep.subr.mxu0 %v1668
        %6195 = vmatpush1.xpose.msra.mxu0 %v1667
        %6196 = vmatprep.subr.mxu0 %v1636
        %6197 = vmatpush1.xpose.msra.mxu0 %v1635
        %6198 = vmatprep.subr.mxu0 %v1604
        %6199 = vmatpush1.xpose.msra.mxu0 %v1603
        %6200 = vmatprep.subr.mxu0 %v1572
        %6201 = vmatpush1.xpose.msra.mxu0 %v1571
        %6202 = vmatprep.subr.mxu0 %v1540
        %6203 = vmatpush1.xpose.msra.mxu0 %v1539
        %6204 = vmatprep.subr.mxu0 %v1508
        %6205 = vmatpush1.xpose.msra.mxu0 %v1507
        %6206 = vmatprep.subr.mxu0 %v1476
        %6207 = vmatpush1.xpose.msra.mxu0 %v1475
        %6208 = vmatprep.subr.mxu0 %v1444
        %6209 = vmatpush1.xpose.msra.mxu0 %v1443
        %6210 = vmatprep.subr.mxu0 %v1412
        %6211 = vmatpush1.xpose.msra.mxu0 %v1411
        %6212 = vmatprep.subr.mxu0 %v1380
        %6213 = vmatpush1.xpose.msra.mxu0 %v1379
        %6214 = vmatprep.subr.mxu0 %v1348
        %6215 = vmatpush1.xpose.msra.mxu0 %v1347
        %6216 = vmatprep.subr.mxu0 %v1316
        %6217 = vmatpush1.xpose.msra.mxu0 %v1315
        %6218 = vmatprep.subr.mxu0 %v2308
        %6219 = vmatpush2.xpose.msra.mxu0 %v2307
        %6220 = vmatprep.subr.mxu0 %v2276
        %6221 = vmatpush2.xpose.msra.mxu0 %v2275
        %6222 = vmatprep.subr.mxu0 %v2244
        %6223 = vmatpush2.xpose.msra.mxu0 %v2243
        %6224 = vmatprep.subr.mxu0 %v2212
        %6225 = vmatpush2.xpose.msra.mxu0 %v2211
        %6226 = vmatprep.subr.mxu0 %v2180
        %6227 = vmatpush2.xpose.msra.mxu0 %v2179
        %6228 = vmatprep.subr.mxu0 %v2148
        %6229 = vmatpush2.xpose.msra.mxu0 %v2147
        %6230 = vmatprep.subr.mxu0 %v2116
        %6231 = vmatpush2.xpose.msra.mxu0 %v2115
        %6232 = vmatprep.subr.mxu0 %v2084
        %6233 = vmatpush2.xpose.msra.mxu0 %v2083
        %6234 = vmatprep.subr.mxu0 %v2052
        %6235 = vmatpush2.xpose.msra.mxu0 %v2051
        %6236 = vmatprep.subr.mxu0 %v2020
        %6237 = vmatpush2.xpose.msra.mxu0 %v2019
        %6238 = vmatprep.subr.mxu0 %v1988
        %6239 = vmatpush2.xpose.msra.mxu0 %v1987
        %6240 = vmatprep.subr.mxu0 %v1956
        %6241 = vmatpush2.xpose.msra.mxu0 %v1955
        %6242 = vmatprep.subr.mxu0 %v1924
        %6243 = vmatpush2.xpose.msra.mxu0 %v1923
        %6244 = vmatprep.subr.mxu0 %v1892
        %6245 = vmatpush2.xpose.msra.mxu0 %v1891
        %6246 = vmatprep.subr.mxu0 %v1860
        %6247 = vmatpush2.xpose.msra.mxu0 %v1859
        %6248 = vmatprep.subr.mxu0 %v1828
        %6249 = vmatpush2.xpose.msra.mxu0 %v1827
        %6250 = vmatprep.mubr.f32.mxu0 %v260
        %6251 = vmatmul.mubr.f32.gmra.mxu0 %v259
        %v6252 = vpop.f32.mrf.mxu0
        %v6253 = vadd.f32 %v6182, %v6252
        %v6254 = vpop.f32.mrf.mxu0
        %v6255 = vadd.f32 %v6184, %v6254
        %6256 = vdwg.mxu0
        %6257 = vmatprep.subr.mxu0 %v1798
        %6258 = vmatpush1.xpose.msra.mxu0 %v1797
        %6259 = vmatprep.subr.mxu0 %v1766
        %6260 = vmatpush1.xpose.msra.mxu0 %v1765
        %6261 = vmatprep.subr.mxu0 %v1734
        %6262 = vmatpush1.xpose.msra.mxu0 %v1733
        %6263 = vmatprep.subr.mxu0 %v1702
        %6264 = vmatpush1.xpose.msra.mxu0 %v1701
        %6265 = vmatprep.subr.mxu0 %v1670
        %6266 = vmatpush1.xpose.msra.mxu0 %v1669
        %6267 = vmatprep.subr.mxu0 %v1638
        %6268 = vmatpush1.xpose.msra.mxu0 %v1637
        %6269 = vmatprep.subr.mxu0 %v1606
        %6270 = vmatpush1.xpose.msra.mxu0 %v1605
        %6271 = vmatprep.subr.mxu0 %v1574
        %6272 = vmatpush1.xpose.msra.mxu0 %v1573
        %6273 = vmatprep.subr.mxu0 %v1542
        %6274 = vmatpush1.xpose.msra.mxu0 %v1541
        %6275 = vmatprep.subr.mxu0 %v1510
        %6276 = vmatpush1.xpose.msra.mxu0 %v1509
        %6277 = vmatprep.subr.mxu0 %v1478
        %6278 = vmatpush1.xpose.msra.mxu0 %v1477
        %6279 = vmatprep.subr.mxu0 %v1446
        %6280 = vmatpush1.xpose.msra.mxu0 %v1445
        %6281 = vmatprep.subr.mxu0 %v1414
        %6282 = vmatpush1.xpose.msra.mxu0 %v1413
        %6283 = vmatprep.subr.mxu0 %v1382
        %6284 = vmatpush1.xpose.msra.mxu0 %v1381
        %6285 = vmatprep.subr.mxu0 %v1350
        %6286 = vmatpush1.xpose.msra.mxu0 %v1349
        %6287 = vmatprep.subr.mxu0 %v1318
        %6288 = vmatpush1.xpose.msra.mxu0 %v1317
        %6289 = vmatprep.subr.mxu0 %v2310
        %6290 = vmatpush2.xpose.msra.mxu0 %v2309
        %6291 = vmatprep.subr.mxu0 %v2278
        %6292 = vmatpush2.xpose.msra.mxu0 %v2277
        %6293 = vmatprep.subr.mxu0 %v2246
        %6294 = vmatpush2.xpose.msra.mxu0 %v2245
        %6295 = vmatprep.subr.mxu0 %v2214
        %6296 = vmatpush2.xpose.msra.mxu0 %v2213
        %6297 = vmatprep.subr.mxu0 %v2182
        %6298 = vmatpush2.xpose.msra.mxu0 %v2181
        %6299 = vmatprep.subr.mxu0 %v2150
        %6300 = vmatpush2.xpose.msra.mxu0 %v2149
        %6301 = vmatprep.subr.mxu0 %v2118
        %6302 = vmatpush2.xpose.msra.mxu0 %v2117
        %6303 = vmatprep.subr.mxu0 %v2086
        %6304 = vmatpush2.xpose.msra.mxu0 %v2085
        %6305 = vmatprep.subr.mxu0 %v2054
        %6306 = vmatpush2.xpose.msra.mxu0 %v2053
        %6307 = vmatprep.subr.mxu0 %v2022
        %6308 = vmatpush2.xpose.msra.mxu0 %v2021
        %6309 = vmatprep.subr.mxu0 %v1990
        %6310 = vmatpush2.xpose.msra.mxu0 %v1989
        %6311 = vmatprep.subr.mxu0 %v1958
        %6312 = vmatpush2.xpose.msra.mxu0 %v1957
        %6313 = vmatprep.subr.mxu0 %v1926
        %6314 = vmatpush2.xpose.msra.mxu0 %v1925
        %6315 = vmatprep.subr.mxu0 %v1894
        %6316 = vmatpush2.xpose.msra.mxu0 %v1893
        %6317 = vmatprep.subr.mxu0 %v1862
        %6318 = vmatpush2.xpose.msra.mxu0 %v1861
        %6319 = vmatprep.subr.mxu0 %v1830
        %6320 = vmatpush2.xpose.msra.mxu0 %v1829
        %6321 = vmatprep.mubr.f32.mxu0 %v262
        %6322 = vmatmul.mubr.f32.gmra.mxu0 %v261
        %v6323 = vpop.f32.mrf.mxu0
        %v6324 = vadd.f32 %v6253, %v6323
        %v6325 = vpop.f32.mrf.mxu0
        %v6326 = vadd.f32 %v6255, %v6325
        %6327 = vdwg.mxu0
        %6328 = vmatprep.subr.mxu0 %v1800
        %6329 = vmatpush1.xpose.msra.mxu0 %v1799
        %6330 = vmatprep.subr.mxu0 %v1768
        %6331 = vmatpush1.xpose.msra.mxu0 %v1767
        %6332 = vmatprep.subr.mxu0 %v1736
        %6333 = vmatpush1.xpose.msra.mxu0 %v1735
        %6334 = vmatprep.subr.mxu0 %v1704
        %6335 = vmatpush1.xpose.msra.mxu0 %v1703
        %6336 = vmatprep.subr.mxu0 %v1672
        %6337 = vmatpush1.xpose.msra.mxu0 %v1671
        %6338 = vmatprep.subr.mxu0 %v1640
        %6339 = vmatpush1.xpose.msra.mxu0 %v1639
        %6340 = vmatprep.subr.mxu0 %v1608
        %6341 = vmatpush1.xpose.msra.mxu0 %v1607
        %6342 = vmatprep.subr.mxu0 %v1576
        %6343 = vmatpush1.xpose.msra.mxu0 %v1575
        %6344 = vmatprep.subr.mxu0 %v1544
        %6345 = vmatpush1.xpose.msra.mxu0 %v1543
        %6346 = vmatprep.subr.mxu0 %v1512
        %6347 = vmatpush1.xpose.msra.mxu0 %v1511
        %6348 = vmatprep.subr.mxu0 %v1480
        %6349 = vmatpush1.xpose.msra.mxu0 %v1479
        %6350 = vmatprep.subr.mxu0 %v1448
        %6351 = vmatpush1.xpose.msra.mxu0 %v1447
        %6352 = vmatprep.subr.mxu0 %v1416
        %6353 = vmatpush1.xpose.msra.mxu0 %v1415
        %6354 = vmatprep.subr.mxu0 %v1384
        %6355 = vmatpush1.xpose.msra.mxu0 %v1383
        %6356 = vmatprep.subr.mxu0 %v1352
        %6357 = vmatpush1.xpose.msra.mxu0 %v1351
        %6358 = vmatprep.subr.mxu0 %v1320
        %6359 = vmatpush1.xpose.msra.mxu0 %v1319
        %6360 = vmatprep.subr.mxu0 %v2312
        %6361 = vmatpush2.xpose.msra.mxu0 %v2311
        %6362 = vmatprep.subr.mxu0 %v2280
        %6363 = vmatpush2.xpose.msra.mxu0 %v2279
        %6364 = vmatprep.subr.mxu0 %v2248
        %6365 = vmatpush2.xpose.msra.mxu0 %v2247
        %6366 = vmatprep.subr.mxu0 %v2216
        %6367 = vmatpush2.xpose.msra.mxu0 %v2215
        %6368 = vmatprep.subr.mxu0 %v2184
        %6369 = vmatpush2.xpose.msra.mxu0 %v2183
        %6370 = vmatprep.subr.mxu0 %v2152
        %6371 = vmatpush2.xpose.msra.mxu0 %v2151
        %6372 = vmatprep.subr.mxu0 %v2120
        %6373 = vmatpush2.xpose.msra.mxu0 %v2119
        %6374 = vmatprep.subr.mxu0 %v2088
        %6375 = vmatpush2.xpose.msra.mxu0 %v2087
        %6376 = vmatprep.subr.mxu0 %v2056
        %6377 = vmatpush2.xpose.msra.mxu0 %v2055
        %6378 = vmatprep.subr.mxu0 %v2024
        %6379 = vmatpush2.xpose.msra.mxu0 %v2023
        %6380 = vmatprep.subr.mxu0 %v1992
        %6381 = vmatpush2.xpose.msra.mxu0 %v1991
        %6382 = vmatprep.subr.mxu0 %v1960
        %6383 = vmatpush2.xpose.msra.mxu0 %v1959
        %6384 = vmatprep.subr.mxu0 %v1928
        %6385 = vmatpush2.xpose.msra.mxu0 %v1927
        %6386 = vmatprep.subr.mxu0 %v1896
        %6387 = vmatpush2.xpose.msra.mxu0 %v1895
        %6388 = vmatprep.subr.mxu0 %v1864
        %6389 = vmatpush2.xpose.msra.mxu0 %v1863
        %6390 = vmatprep.subr.mxu0 %v1832
        %6391 = vmatpush2.xpose.msra.mxu0 %v1831
        %6392 = vmatprep.mubr.f32.mxu0 %v264
        %6393 = vmatmul.mubr.f32.gmra.mxu0 %v263
        %v6394 = vpop.f32.mrf.mxu0
        %v6395 = vadd.f32 %v6324, %v6394
        %v6396 = vpop.f32.mrf.mxu0
        %v6397 = vadd.f32 %v6326, %v6396
        %6398 = vdwg.mxu0
        %6399 = vmatprep.subr.mxu0 %v1802
        %6400 = vmatpush1.xpose.msra.mxu0 %v1801
        %6401 = vmatprep.subr.mxu0 %v1770
        %6402 = vmatpush1.xpose.msra.mxu0 %v1769
        %6403 = vmatprep.subr.mxu0 %v1738
        %6404 = vmatpush1.xpose.msra.mxu0 %v1737
        %6405 = vmatprep.subr.mxu0 %v1706
        %6406 = vmatpush1.xpose.msra.mxu0 %v1705
        %6407 = vmatprep.subr.mxu0 %v1674
        %6408 = vmatpush1.xpose.msra.mxu0 %v1673
        %6409 = vmatprep.subr.mxu0 %v1642
        %6410 = vmatpush1.xpose.msra.mxu0 %v1641
        %6411 = vmatprep.subr.mxu0 %v1610
        %6412 = vmatpush1.xpose.msra.mxu0 %v1609
        %6413 = vmatprep.subr.mxu0 %v1578
        %6414 = vmatpush1.xpose.msra.mxu0 %v1577
        %6415 = vmatprep.subr.mxu0 %v1546
        %6416 = vmatpush1.xpose.msra.mxu0 %v1545
        %6417 = vmatprep.subr.mxu0 %v1514
        %6418 = vmatpush1.xpose.msra.mxu0 %v1513
        %6419 = vmatprep.subr.mxu0 %v1482
        %6420 = vmatpush1.xpose.msra.mxu0 %v1481
        %6421 = vmatprep.subr.mxu0 %v1450
        %6422 = vmatpush1.xpose.msra.mxu0 %v1449
        %6423 = vmatprep.subr.mxu0 %v1418
        %6424 = vmatpush1.xpose.msra.mxu0 %v1417
        %6425 = vmatprep.subr.mxu0 %v1386
        %6426 = vmatpush1.xpose.msra.mxu0 %v1385
        %6427 = vmatprep.subr.mxu0 %v1354
        %6428 = vmatpush1.xpose.msra.mxu0 %v1353
        %6429 = vmatprep.subr.mxu0 %v1322
        %6430 = vmatpush1.xpose.msra.mxu0 %v1321
        %6431 = vmatprep.subr.mxu0 %v2314
        %6432 = vmatpush2.xpose.msra.mxu0 %v2313
        %6433 = vmatprep.subr.mxu0 %v2282
        %6434 = vmatpush2.xpose.msra.mxu0 %v2281
        %6435 = vmatprep.subr.mxu0 %v2250
        %6436 = vmatpush2.xpose.msra.mxu0 %v2249
        %6437 = vmatprep.subr.mxu0 %v2218
        %6438 = vmatpush2.xpose.msra.mxu0 %v2217
        %6439 = vmatprep.subr.mxu0 %v2186
        %6440 = vmatpush2.xpose.msra.mxu0 %v2185
        %6441 = vmatprep.subr.mxu0 %v2154
        %6442 = vmatpush2.xpose.msra.mxu0 %v2153
        %6443 = vmatprep.subr.mxu0 %v2122
        %6444 = vmatpush2.xpose.msra.mxu0 %v2121
        %6445 = vmatprep.subr.mxu0 %v2090
        %6446 = vmatpush2.xpose.msra.mxu0 %v2089
        %6447 = vmatprep.subr.mxu0 %v2058
        %6448 = vmatpush2.xpose.msra.mxu0 %v2057
        %6449 = vmatprep.subr.mxu0 %v2026
        %6450 = vmatpush2.xpose.msra.mxu0 %v2025
        %6451 = vmatprep.subr.mxu0 %v1994
        %6452 = vmatpush2.xpose.msra.mxu0 %v1993
        %6453 = vmatprep.subr.mxu0 %v1962
        %6454 = vmatpush2.xpose.msra.mxu0 %v1961
        %6455 = vmatprep.subr.mxu0 %v1930
        %6456 = vmatpush2.xpose.msra.mxu0 %v1929
        %6457 = vmatprep.subr.mxu0 %v1898
        %6458 = vmatpush2.xpose.msra.mxu0 %v1897
        %6459 = vmatprep.subr.mxu0 %v1866
        %6460 = vmatpush2.xpose.msra.mxu0 %v1865
        %6461 = vmatprep.subr.mxu0 %v1834
        %6462 = vmatpush2.xpose.msra.mxu0 %v1833
        %6463 = vmatprep.mubr.f32.mxu0 %v266
        %6464 = vmatmul.mubr.f32.gmra.mxu0 %v265
        %v6465 = vpop.f32.mrf.mxu0
        %v6466 = vadd.f32 %v6395, %v6465
        %v6467 = vpop.f32.mrf.mxu0
        %v6468 = vadd.f32 %v6397, %v6467
        %6469 = vdwg.mxu0
        %6470 = vmatprep.subr.mxu0 %v1804
        %6471 = vmatpush1.xpose.msra.mxu0 %v1803
        %6472 = vmatprep.subr.mxu0 %v1772
        %6473 = vmatpush1.xpose.msra.mxu0 %v1771
        %6474 = vmatprep.subr.mxu0 %v1740
        %6475 = vmatpush1.xpose.msra.mxu0 %v1739
        %6476 = vmatprep.subr.mxu0 %v1708
        %6477 = vmatpush1.xpose.msra.mxu0 %v1707
        %6478 = vmatprep.subr.mxu0 %v1676
        %6479 = vmatpush1.xpose.msra.mxu0 %v1675
        %6480 = vmatprep.subr.mxu0 %v1644
        %6481 = vmatpush1.xpose.msra.mxu0 %v1643
        %6482 = vmatprep.subr.mxu0 %v1612
        %6483 = vmatpush1.xpose.msra.mxu0 %v1611
        %6484 = vmatprep.subr.mxu0 %v1580
        %6485 = vmatpush1.xpose.msra.mxu0 %v1579
        %6486 = vmatprep.subr.mxu0 %v1548
        %6487 = vmatpush1.xpose.msra.mxu0 %v1547
        %6488 = vmatprep.subr.mxu0 %v1516
        %6489 = vmatpush1.xpose.msra.mxu0 %v1515
        %6490 = vmatprep.subr.mxu0 %v1484
        %6491 = vmatpush1.xpose.msra.mxu0 %v1483
        %6492 = vmatprep.subr.mxu0 %v1452
        %6493 = vmatpush1.xpose.msra.mxu0 %v1451
        %6494 = vmatprep.subr.mxu0 %v1420
        %6495 = vmatpush1.xpose.msra.mxu0 %v1419
        %6496 = vmatprep.subr.mxu0 %v1388
        %6497 = vmatpush1.xpose.msra.mxu0 %v1387
        %6498 = vmatprep.subr.mxu0 %v1356
        %6499 = vmatpush1.xpose.msra.mxu0 %v1355
        %6500 = vmatprep.subr.mxu0 %v1324
        %6501 = vmatpush1.xpose.msra.mxu0 %v1323
        %6502 = vmatprep.subr.mxu0 %v2316
        %6503 = vmatpush2.xpose.msra.mxu0 %v2315
        %6504 = vmatprep.subr.mxu0 %v2284
        %6505 = vmatpush2.xpose.msra.mxu0 %v2283
        %6506 = vmatprep.subr.mxu0 %v2252
        %6507 = vmatpush2.xpose.msra.mxu0 %v2251
        %6508 = vmatprep.subr.mxu0 %v2220
        %6509 = vmatpush2.xpose.msra.mxu0 %v2219
        %6510 = vmatprep.subr.mxu0 %v2188
        %6511 = vmatpush2.xpose.msra.mxu0 %v2187
        %6512 = vmatprep.subr.mxu0 %v2156
        %6513 = vmatpush2.xpose.msra.mxu0 %v2155
        %6514 = vmatprep.subr.mxu0 %v2124
        %6515 = vmatpush2.xpose.msra.mxu0 %v2123
        %6516 = vmatprep.subr.mxu0 %v2092
        %6517 = vmatpush2.xpose.msra.mxu0 %v2091
        %6518 = vmatprep.subr.mxu0 %v2060
        %6519 = vmatpush2.xpose.msra.mxu0 %v2059
        %6520 = vmatprep.subr.mxu0 %v2028
        %6521 = vmatpush2.xpose.msra.mxu0 %v2027
        %6522 = vmatprep.subr.mxu0 %v1996
        %6523 = vmatpush2.xpose.msra.mxu0 %v1995
        %6524 = vmatprep.subr.mxu0 %v1964
        %6525 = vmatpush2.xpose.msra.mxu0 %v1963
        %6526 = vmatprep.subr.mxu0 %v1932
        %6527 = vmatpush2.xpose.msra.mxu0 %v1931
        %6528 = vmatprep.subr.mxu0 %v1900
        %6529 = vmatpush2.xpose.msra.mxu0 %v1899
        %6530 = vmatprep.subr.mxu0 %v1868
        %6531 = vmatpush2.xpose.msra.mxu0 %v1867
        %6532 = vmatprep.subr.mxu0 %v1836
        %6533 = vmatpush2.xpose.msra.mxu0 %v1835
        %6534 = vmatprep.mubr.f32.mxu0 %v268
        %6535 = vmatmul.mubr.f32.gmra.mxu0 %v267
        %v6536 = vpop.f32.mrf.mxu0
        %v6537 = vadd.f32 %v6466, %v6536
        %v6538 = vpop.f32.mrf.mxu0
        %v6539 = vadd.f32 %v6468, %v6538
        %6540 = vdwg.mxu0
        %6541 = vmatprep.subr.mxu0 %v1806
        %6542 = vmatpush1.xpose.msra.mxu0 %v1805
        %6543 = vmatprep.subr.mxu0 %v1774
        %6544 = vmatpush1.xpose.msra.mxu0 %v1773
        %6545 = vmatprep.subr.mxu0 %v1742
        %6546 = vmatpush1.xpose.msra.mxu0 %v1741
        %6547 = vmatprep.subr.mxu0 %v1710
        %6548 = vmatpush1.xpose.msra.mxu0 %v1709
        %6549 = vmatprep.subr.mxu0 %v1678
        %6550 = vmatpush1.xpose.msra.mxu0 %v1677
        %6551 = vmatprep.subr.mxu0 %v1646
        %6552 = vmatpush1.xpose.msra.mxu0 %v1645
        %6553 = vmatprep.subr.mxu0 %v1614
        %6554 = vmatpush1.xpose.msra.mxu0 %v1613
        %6555 = vmatprep.subr.mxu0 %v1582
        %6556 = vmatpush1.xpose.msra.mxu0 %v1581
        %6557 = vmatprep.subr.mxu0 %v1550
        %6558 = vmatpush1.xpose.msra.mxu0 %v1549
        %6559 = vmatprep.subr.mxu0 %v1518
        %6560 = vmatpush1.xpose.msra.mxu0 %v1517
        %6561 = vmatprep.subr.mxu0 %v1486
        %6562 = vmatpush1.xpose.msra.mxu0 %v1485
        %6563 = vmatprep.subr.mxu0 %v1454
        %6564 = vmatpush1.xpose.msra.mxu0 %v1453
        %6565 = vmatprep.subr.mxu0 %v1422
        %6566 = vmatpush1.xpose.msra.mxu0 %v1421
        %6567 = vmatprep.subr.mxu0 %v1390
        %6568 = vmatpush1.xpose.msra.mxu0 %v1389
        %6569 = vmatprep.subr.mxu0 %v1358
        %6570 = vmatpush1.xpose.msra.mxu0 %v1357
        %6571 = vmatprep.subr.mxu0 %v1326
        %6572 = vmatpush1.xpose.msra.mxu0 %v1325
        %6573 = vmatprep.subr.mxu0 %v2318
        %6574 = vmatpush2.xpose.msra.mxu0 %v2317
        %6575 = vmatprep.subr.mxu0 %v2286
        %6576 = vmatpush2.xpose.msra.mxu0 %v2285
        %6577 = vmatprep.subr.mxu0 %v2254
        %6578 = vmatpush2.xpose.msra.mxu0 %v2253
        %6579 = vmatprep.subr.mxu0 %v2222
        %6580 = vmatpush2.xpose.msra.mxu0 %v2221
        %6581 = vmatprep.subr.mxu0 %v2190
        %6582 = vmatpush2.xpose.msra.mxu0 %v2189
        %6583 = vmatprep.subr.mxu0 %v2158
        %6584 = vmatpush2.xpose.msra.mxu0 %v2157
        %6585 = vmatprep.subr.mxu0 %v2126
        %6586 = vmatpush2.xpose.msra.mxu0 %v2125
        %6587 = vmatprep.subr.mxu0 %v2094
        %6588 = vmatpush2.xpose.msra.mxu0 %v2093
        %6589 = vmatprep.subr.mxu0 %v2062
        %6590 = vmatpush2.xpose.msra.mxu0 %v2061
        %6591 = vmatprep.subr.mxu0 %v2030
        %6592 = vmatpush2.xpose.msra.mxu0 %v2029
        %6593 = vmatprep.subr.mxu0 %v1998
        %6594 = vmatpush2.xpose.msra.mxu0 %v1997
        %6595 = vmatprep.subr.mxu0 %v1966
        %6596 = vmatpush2.xpose.msra.mxu0 %v1965
        %6597 = vmatprep.subr.mxu0 %v1934
        %6598 = vmatpush2.xpose.msra.mxu0 %v1933
        %6599 = vmatprep.subr.mxu0 %v1902
        %6600 = vmatpush2.xpose.msra.mxu0 %v1901
        %6601 = vmatprep.subr.mxu0 %v1870
        %6602 = vmatpush2.xpose.msra.mxu0 %v1869
        %6603 = vmatprep.subr.mxu0 %v1838
        %6604 = vmatpush2.xpose.msra.mxu0 %v1837
        %6605 = vmatprep.mubr.f32.mxu0 %v270
        %6606 = vmatmul.mubr.f32.gmra.mxu0 %v269
        %v6607 = vpop.f32.mrf.mxu0
        %v6608 = vadd.f32 %v6537, %v6607
        %v6609 = vpop.f32.mrf.mxu0
        %v6610 = vadd.f32 %v6539, %v6609
        %6611 = vdwg.mxu0
        %6612 = vmatprep.subr.mxu0 %v1808
        %6613 = vmatpush1.xpose.msra.mxu0 %v1807
        %6614 = vmatprep.subr.mxu0 %v1776
        %6615 = vmatpush1.xpose.msra.mxu0 %v1775
        %6616 = vmatprep.subr.mxu0 %v1744
        %6617 = vmatpush1.xpose.msra.mxu0 %v1743
        %6618 = vmatprep.subr.mxu0 %v1712
        %6619 = vmatpush1.xpose.msra.mxu0 %v1711
        %6620 = vmatprep.subr.mxu0 %v1680
        %6621 = vmatpush1.xpose.msra.mxu0 %v1679
        %6622 = vmatprep.subr.mxu0 %v1648
        %6623 = vmatpush1.xpose.msra.mxu0 %v1647
        %6624 = vmatprep.subr.mxu0 %v1616
        %6625 = vmatpush1.xpose.msra.mxu0 %v1615
        %6626 = vmatprep.subr.mxu0 %v1584
        %6627 = vmatpush1.xpose.msra.mxu0 %v1583
        %6628 = vmatprep.subr.mxu0 %v1552
        %6629 = vmatpush1.xpose.msra.mxu0 %v1551
        %6630 = vmatprep.subr.mxu0 %v1520
        %6631 = vmatpush1.xpose.msra.mxu0 %v1519
        %6632 = vmatprep.subr.mxu0 %v1488
        %6633 = vmatpush1.xpose.msra.mxu0 %v1487
        %6634 = vmatprep.subr.mxu0 %v1456
        %6635 = vmatpush1.xpose.msra.mxu0 %v1455
        %6636 = vmatprep.subr.mxu0 %v1424
        %6637 = vmatpush1.xpose.msra.mxu0 %v1423
        %6638 = vmatprep.subr.mxu0 %v1392
        %6639 = vmatpush1.xpose.msra.mxu0 %v1391
        %6640 = vmatprep.subr.mxu0 %v1360
        %6641 = vmatpush1.xpose.msra.mxu0 %v1359
        %6642 = vmatprep.subr.mxu0 %v1328
        %6643 = vmatpush1.xpose.msra.mxu0 %v1327
        %6644 = vmatprep.subr.mxu0 %v2320
        %6645 = vmatpush2.xpose.msra.mxu0 %v2319
        %6646 = vmatprep.subr.mxu0 %v2288
        %6647 = vmatpush2.xpose.msra.mxu0 %v2287
        %6648 = vmatprep.subr.mxu0 %v2256
        %6649 = vmatpush2.xpose.msra.mxu0 %v2255
        %6650 = vmatprep.subr.mxu0 %v2224
        %6651 = vmatpush2.xpose.msra.mxu0 %v2223
        %6652 = vmatprep.subr.mxu0 %v2192
        %6653 = vmatpush2.xpose.msra.mxu0 %v2191
        %6654 = vmatprep.subr.mxu0 %v2160
        %6655 = vmatpush2.xpose.msra.mxu0 %v2159
        %6656 = vmatprep.subr.mxu0 %v2128
        %6657 = vmatpush2.xpose.msra.mxu0 %v2127
        %6658 = vmatprep.subr.mxu0 %v2096
        %6659 = vmatpush2.xpose.msra.mxu0 %v2095
        %6660 = vmatprep.subr.mxu0 %v2064
        %6661 = vmatpush2.xpose.msra.mxu0 %v2063
        %6662 = vmatprep.subr.mxu0 %v2032
        %6663 = vmatpush2.xpose.msra.mxu0 %v2031
        %6664 = vmatprep.subr.mxu0 %v2000
        %6665 = vmatpush2.xpose.msra.mxu0 %v1999
        %6666 = vmatprep.subr.mxu0 %v1968
        %6667 = vmatpush2.xpose.msra.mxu0 %v1967
        %6668 = vmatprep.subr.mxu0 %v1936
        %6669 = vmatpush2.xpose.msra.mxu0 %v1935
        %6670 = vmatprep.subr.mxu0 %v1904
        %6671 = vmatpush2.xpose.msra.mxu0 %v1903
        %6672 = vmatprep.subr.mxu0 %v1872
        %6673 = vmatpush2.xpose.msra.mxu0 %v1871
        %6674 = vmatprep.subr.mxu0 %v1840
        %6675 = vmatpush2.xpose.msra.mxu0 %v1839
        %6676 = vmatprep.mubr.f32.mxu0 %v272
        %6677 = vmatmul.mubr.f32.gmra.mxu0 %v271
        %v6678 = vpop.f32.mrf.mxu0
        %v6679 = vadd.f32 %v6608, %v6678
        %v6680 = vpop.f32.mrf.mxu0
        %v6681 = vadd.f32 %v6610, %v6680
        %6682 = vdwg.mxu0
        %6683 = vmatprep.subr.mxu0 %v2802
        %6684 = vmatpush1.xpose.msra.mxu0 %v2801
        %6685 = vmatprep.subr.mxu0 %v2770
        %6686 = vmatpush1.xpose.msra.mxu0 %v2769
        %6687 = vmatprep.subr.mxu0 %v2738
        %6688 = vmatpush1.xpose.msra.mxu0 %v2737
        %6689 = vmatprep.subr.mxu0 %v2706
        %6690 = vmatpush1.xpose.msra.mxu0 %v2705
        %6691 = vmatprep.subr.mxu0 %v2674
        %6692 = vmatpush1.xpose.msra.mxu0 %v2673
        %6693 = vmatprep.subr.mxu0 %v2642
        %6694 = vmatpush1.xpose.msra.mxu0 %v2641
        %6695 = vmatprep.subr.mxu0 %v2610
        %6696 = vmatpush1.xpose.msra.mxu0 %v2609
        %6697 = vmatprep.subr.mxu0 %v2578
        %6698 = vmatpush1.xpose.msra.mxu0 %v2577
        %6699 = vmatprep.subr.mxu0 %v2546
        %6700 = vmatpush1.xpose.msra.mxu0 %v2545
        %6701 = vmatprep.subr.mxu0 %v2514
        %6702 = vmatpush1.xpose.msra.mxu0 %v2513
        %6703 = vmatprep.subr.mxu0 %v2482
        %6704 = vmatpush1.xpose.msra.mxu0 %v2481
        %6705 = vmatprep.subr.mxu0 %v2450
        %6706 = vmatpush1.xpose.msra.mxu0 %v2449
        %6707 = vmatprep.subr.mxu0 %v2418
        %6708 = vmatpush1.xpose.msra.mxu0 %v2417
        %6709 = vmatprep.subr.mxu0 %v2386
        %6710 = vmatpush1.xpose.msra.mxu0 %v2385
        %6711 = vmatprep.subr.mxu0 %v2354
        %6712 = vmatpush1.xpose.msra.mxu0 %v2353
        %6713 = vmatprep.subr.mxu0 %v2322
        %6714 = vmatpush1.xpose.msra.mxu0 %v2321
        %6715 = vmatprep.subr.mxu0 %v3314
        %6716 = vmatpush2.xpose.msra.mxu0 %v3313
        %6717 = vmatprep.subr.mxu0 %v3282
        %6718 = vmatpush2.xpose.msra.mxu0 %v3281
        %6719 = vmatprep.subr.mxu0 %v3250
        %6720 = vmatpush2.xpose.msra.mxu0 %v3249
        %6721 = vmatprep.subr.mxu0 %v3218
        %6722 = vmatpush2.xpose.msra.mxu0 %v3217
        %6723 = vmatprep.subr.mxu0 %v3186
        %6724 = vmatpush2.xpose.msra.mxu0 %v3185
        %6725 = vmatprep.subr.mxu0 %v3154
        %6726 = vmatpush2.xpose.msra.mxu0 %v3153
        %6727 = vmatprep.subr.mxu0 %v3122
        %6728 = vmatpush2.xpose.msra.mxu0 %v3121
        %6729 = vmatprep.subr.mxu0 %v3090
        %6730 = vmatpush2.xpose.msra.mxu0 %v3089
        %6731 = vmatprep.subr.mxu0 %v3058
        %6732 = vmatpush2.xpose.msra.mxu0 %v3057
        %6733 = vmatprep.subr.mxu0 %v3026
        %6734 = vmatpush2.xpose.msra.mxu0 %v3025
        %6735 = vmatprep.subr.mxu0 %v2994
        %6736 = vmatpush2.xpose.msra.mxu0 %v2993
        %6737 = vmatprep.subr.mxu0 %v2962
        %6738 = vmatpush2.xpose.msra.mxu0 %v2961
        %6739 = vmatprep.subr.mxu0 %v2930
        %6740 = vmatpush2.xpose.msra.mxu0 %v2929
        %6741 = vmatprep.subr.mxu0 %v2898
        %6742 = vmatpush2.xpose.msra.mxu0 %v2897
        %6743 = vmatprep.subr.mxu0 %v2866
        %6744 = vmatpush2.xpose.msra.mxu0 %v2865
        %6745 = vmatprep.subr.mxu0 %v2834
        %6746 = vmatpush2.xpose.msra.mxu0 %v2833
        %6747 = vmatprep.mubr.f32.mxu0 %v242
        %6748 = vmatmul.mubr.f32.gmra.mxu0 %v241
        %v6749 = vpop.f32.mrf.mxu0
        %v6750 = vadd.f32 %v4390, %v6749
        %v6751 = vpop.f32.mrf.mxu0
        %v6752 = vadd.f32 %v4394, %v6751
        %6753 = vdwg.mxu0
        %6754 = vmatprep.subr.mxu0 %v2804
        %6755 = vmatpush1.xpose.msra.mxu0 %v2803
        %6756 = vmatprep.subr.mxu0 %v2772
        %6757 = vmatpush1.xpose.msra.mxu0 %v2771
        %6758 = vmatprep.subr.mxu0 %v2740
        %6759 = vmatpush1.xpose.msra.mxu0 %v2739
        %6760 = vmatprep.subr.mxu0 %v2708
        %6761 = vmatpush1.xpose.msra.mxu0 %v2707
        %6762 = vmatprep.subr.mxu0 %v2676
        %6763 = vmatpush1.xpose.msra.mxu0 %v2675
        %6764 = vmatprep.subr.mxu0 %v2644
        %6765 = vmatpush1.xpose.msra.mxu0 %v2643
        %6766 = vmatprep.subr.mxu0 %v2612
        %6767 = vmatpush1.xpose.msra.mxu0 %v2611
        %6768 = vmatprep.subr.mxu0 %v2580
        %6769 = vmatpush1.xpose.msra.mxu0 %v2579
        %6770 = vmatprep.subr.mxu0 %v2548
        %6771 = vmatpush1.xpose.msra.mxu0 %v2547
        %6772 = vmatprep.subr.mxu0 %v2516
        %6773 = vmatpush1.xpose.msra.mxu0 %v2515
        %6774 = vmatprep.subr.mxu0 %v2484
        %6775 = vmatpush1.xpose.msra.mxu0 %v2483
        %6776 = vmatprep.subr.mxu0 %v2452
        %6777 = vmatpush1.xpose.msra.mxu0 %v2451
        %6778 = vmatprep.subr.mxu0 %v2420
        %6779 = vmatpush1.xpose.msra.mxu0 %v2419
        %6780 = vmatprep.subr.mxu0 %v2388
        %6781 = vmatpush1.xpose.msra.mxu0 %v2387
        %6782 = vmatprep.subr.mxu0 %v2356
        %6783 = vmatpush1.xpose.msra.mxu0 %v2355
        %6784 = vmatprep.subr.mxu0 %v2324
        %6785 = vmatpush1.xpose.msra.mxu0 %v2323
        %6786 = vmatprep.subr.mxu0 %v3316
        %6787 = vmatpush2.xpose.msra.mxu0 %v3315
        %6788 = vmatprep.subr.mxu0 %v3284
        %6789 = vmatpush2.xpose.msra.mxu0 %v3283
        %6790 = vmatprep.subr.mxu0 %v3252
        %6791 = vmatpush2.xpose.msra.mxu0 %v3251
        %6792 = vmatprep.subr.mxu0 %v3220
        %6793 = vmatpush2.xpose.msra.mxu0 %v3219
        %6794 = vmatprep.subr.mxu0 %v3188
        %6795 = vmatpush2.xpose.msra.mxu0 %v3187
        %6796 = vmatprep.subr.mxu0 %v3156
        %6797 = vmatpush2.xpose.msra.mxu0 %v3155
        %6798 = vmatprep.subr.mxu0 %v3124
        %6799 = vmatpush2.xpose.msra.mxu0 %v3123
        %6800 = vmatprep.subr.mxu0 %v3092
        %6801 = vmatpush2.xpose.msra.mxu0 %v3091
        %6802 = vmatprep.subr.mxu0 %v3060
        %6803 = vmatpush2.xpose.msra.mxu0 %v3059
        %6804 = vmatprep.subr.mxu0 %v3028
        %6805 = vmatpush2.xpose.msra.mxu0 %v3027
        %6806 = vmatprep.subr.mxu0 %v2996
        %6807 = vmatpush2.xpose.msra.mxu0 %v2995
        %6808 = vmatprep.subr.mxu0 %v2964
        %6809 = vmatpush2.xpose.msra.mxu0 %v2963
        %6810 = vmatprep.subr.mxu0 %v2932
        %6811 = vmatpush2.xpose.msra.mxu0 %v2931
        %6812 = vmatprep.subr.mxu0 %v2900
        %6813 = vmatpush2.xpose.msra.mxu0 %v2899
        %6814 = vmatprep.subr.mxu0 %v2868
        %6815 = vmatpush2.xpose.msra.mxu0 %v2867
        %6816 = vmatprep.subr.mxu0 %v2836
        %6817 = vmatpush2.xpose.msra.mxu0 %v2835
        %6818 = vmatprep.mubr.f32.mxu0 %v244
        %6819 = vmatmul.mubr.f32.gmra.mxu0 %v243
        %v6820 = vpop.f32.mrf.mxu0
        %v6821 = vadd.f32 %v6750, %v6820
        %v6822 = vpop.f32.mrf.mxu0
        %v6823 = vadd.f32 %v6752, %v6822
        %6824 = vdwg.mxu0
        %6825 = vmatprep.subr.mxu0 %v2806
        %6826 = vmatpush1.xpose.msra.mxu0 %v2805
        %6827 = vmatprep.subr.mxu0 %v2774
        %6828 = vmatpush1.xpose.msra.mxu0 %v2773
        %6829 = vmatprep.subr.mxu0 %v2742
        %6830 = vmatpush1.xpose.msra.mxu0 %v2741
        %6831 = vmatprep.subr.mxu0 %v2710
        %6832 = vmatpush1.xpose.msra.mxu0 %v2709
        %6833 = vmatprep.subr.mxu0 %v2678
        %6834 = vmatpush1.xpose.msra.mxu0 %v2677
        %6835 = vmatprep.subr.mxu0 %v2646
        %6836 = vmatpush1.xpose.msra.mxu0 %v2645
        %6837 = vmatprep.subr.mxu0 %v2614
        %6838 = vmatpush1.xpose.msra.mxu0 %v2613
        %6839 = vmatprep.subr.mxu0 %v2582
        %6840 = vmatpush1.xpose.msra.mxu0 %v2581
        %6841 = vmatprep.subr.mxu0 %v2550
        %6842 = vmatpush1.xpose.msra.mxu0 %v2549
        %6843 = vmatprep.subr.mxu0 %v2518
        %6844 = vmatpush1.xpose.msra.mxu0 %v2517
        %6845 = vmatprep.subr.mxu0 %v2486
        %6846 = vmatpush1.xpose.msra.mxu0 %v2485
        %6847 = vmatprep.subr.mxu0 %v2454
        %6848 = vmatpush1.xpose.msra.mxu0 %v2453
        %6849 = vmatprep.subr.mxu0 %v2422
        %6850 = vmatpush1.xpose.msra.mxu0 %v2421
        %6851 = vmatprep.subr.mxu0 %v2390
        %6852 = vmatpush1.xpose.msra.mxu0 %v2389
        %6853 = vmatprep.subr.mxu0 %v2358
        %6854 = vmatpush1.xpose.msra.mxu0 %v2357
        %6855 = vmatprep.subr.mxu0 %v2326
        %6856 = vmatpush1.xpose.msra.mxu0 %v2325
        %6857 = vmatprep.subr.mxu0 %v3318
        %6858 = vmatpush2.xpose.msra.mxu0 %v3317
        %6859 = vmatprep.subr.mxu0 %v3286
        %6860 = vmatpush2.xpose.msra.mxu0 %v3285
        %6861 = vmatprep.subr.mxu0 %v3254
        %6862 = vmatpush2.xpose.msra.mxu0 %v3253
        %6863 = vmatprep.subr.mxu0 %v3222
        %6864 = vmatpush2.xpose.msra.mxu0 %v3221
        %6865 = vmatprep.subr.mxu0 %v3190
        %6866 = vmatpush2.xpose.msra.mxu0 %v3189
        %6867 = vmatprep.subr.mxu0 %v3158
        %6868 = vmatpush2.xpose.msra.mxu0 %v3157
        %6869 = vmatprep.subr.mxu0 %v3126
        %6870 = vmatpush2.xpose.msra.mxu0 %v3125
        %6871 = vmatprep.subr.mxu0 %v3094
        %6872 = vmatpush2.xpose.msra.mxu0 %v3093
        %6873 = vmatprep.subr.mxu0 %v3062
        %6874 = vmatpush2.xpose.msra.mxu0 %v3061
        %6875 = vmatprep.subr.mxu0 %v3030
        %6876 = vmatpush2.xpose.msra.mxu0 %v3029
        %6877 = vmatprep.subr.mxu0 %v2998
        %6878 = vmatpush2.xpose.msra.mxu0 %v2997
        %6879 = vmatprep.subr.mxu0 %v2966
        %6880 = vmatpush2.xpose.msra.mxu0 %v2965
        %6881 = vmatprep.subr.mxu0 %v2934
        %6882 = vmatpush2.xpose.msra.mxu0 %v2933
        %6883 = vmatprep.subr.mxu0 %v2902
        %6884 = vmatpush2.xpose.msra.mxu0 %v2901
        %6885 = vmatprep.subr.mxu0 %v2870
        %6886 = vmatpush2.xpose.msra.mxu0 %v2869
        %6887 = vmatprep.subr.mxu0 %v2838
        %6888 = vmatpush2.xpose.msra.mxu0 %v2837
        %6889 = vmatprep.mubr.f32.mxu0 %v246
        %6890 = vmatmul.mubr.f32.gmra.mxu0 %v245
        %v6891 = vpop.f32.mrf.mxu0
        %v6892 = vadd.f32 %v6821, %v6891
        %v6893 = vpop.f32.mrf.mxu0
        %v6894 = vadd.f32 %v6823, %v6893
        %6895 = vdwg.mxu0
        %6896 = vmatprep.subr.mxu0 %v2808
        %6897 = vmatpush1.xpose.msra.mxu0 %v2807
        %6898 = vmatprep.subr.mxu0 %v2776
        %6899 = vmatpush1.xpose.msra.mxu0 %v2775
        %6900 = vmatprep.subr.mxu0 %v2744
        %6901 = vmatpush1.xpose.msra.mxu0 %v2743
        %6902 = vmatprep.subr.mxu0 %v2712
        %6903 = vmatpush1.xpose.msra.mxu0 %v2711
        %6904 = vmatprep.subr.mxu0 %v2680
        %6905 = vmatpush1.xpose.msra.mxu0 %v2679
        %6906 = vmatprep.subr.mxu0 %v2648
        %6907 = vmatpush1.xpose.msra.mxu0 %v2647
        %6908 = vmatprep.subr.mxu0 %v2616
        %6909 = vmatpush1.xpose.msra.mxu0 %v2615
        %6910 = vmatprep.subr.mxu0 %v2584
        %6911 = vmatpush1.xpose.msra.mxu0 %v2583
        %6912 = vmatprep.subr.mxu0 %v2552
        %6913 = vmatpush1.xpose.msra.mxu0 %v2551
        %6914 = vmatprep.subr.mxu0 %v2520
        %6915 = vmatpush1.xpose.msra.mxu0 %v2519
        %6916 = vmatprep.subr.mxu0 %v2488
        %6917 = vmatpush1.xpose.msra.mxu0 %v2487
        %6918 = vmatprep.subr.mxu0 %v2456
        %6919 = vmatpush1.xpose.msra.mxu0 %v2455
        %6920 = vmatprep.subr.mxu0 %v2424
        %6921 = vmatpush1.xpose.msra.mxu0 %v2423
        %6922 = vmatprep.subr.mxu0 %v2392
        %6923 = vmatpush1.xpose.msra.mxu0 %v2391
        %6924 = vmatprep.subr.mxu0 %v2360
        %6925 = vmatpush1.xpose.msra.mxu0 %v2359
        %6926 = vmatprep.subr.mxu0 %v2328
        %6927 = vmatpush1.xpose.msra.mxu0 %v2327
        %6928 = vmatprep.subr.mxu0 %v3320
        %6929 = vmatpush2.xpose.msra.mxu0 %v3319
        %6930 = vmatprep.subr.mxu0 %v3288
        %6931 = vmatpush2.xpose.msra.mxu0 %v3287
        %6932 = vmatprep.subr.mxu0 %v3256
        %6933 = vmatpush2.xpose.msra.mxu0 %v3255
        %6934 = vmatprep.subr.mxu0 %v3224
        %6935 = vmatpush2.xpose.msra.mxu0 %v3223
        %6936 = vmatprep.subr.mxu0 %v3192
        %6937 = vmatpush2.xpose.msra.mxu0 %v3191
        %6938 = vmatprep.subr.mxu0 %v3160
        %6939 = vmatpush2.xpose.msra.mxu0 %v3159
        %6940 = vmatprep.subr.mxu0 %v3128
        %6941 = vmatpush2.xpose.msra.mxu0 %v3127
        %6942 = vmatprep.subr.mxu0 %v3096
        %6943 = vmatpush2.xpose.msra.mxu0 %v3095
        %6944 = vmatprep.subr.mxu0 %v3064
        %6945 = vmatpush2.xpose.msra.mxu0 %v3063
        %6946 = vmatprep.subr.mxu0 %v3032
        %6947 = vmatpush2.xpose.msra.mxu0 %v3031
        %6948 = vmatprep.subr.mxu0 %v3000
        %6949 = vmatpush2.xpose.msra.mxu0 %v2999
        %6950 = vmatprep.subr.mxu0 %v2968
        %6951 = vmatpush2.xpose.msra.mxu0 %v2967
        %6952 = vmatprep.subr.mxu0 %v2936
        %6953 = vmatpush2.xpose.msra.mxu0 %v2935
        %6954 = vmatprep.subr.mxu0 %v2904
        %6955 = vmatpush2.xpose.msra.mxu0 %v2903
        %6956 = vmatprep.subr.mxu0 %v2872
        %6957 = vmatpush2.xpose.msra.mxu0 %v2871
        %6958 = vmatprep.subr.mxu0 %v2840
        %6959 = vmatpush2.xpose.msra.mxu0 %v2839
        %6960 = vmatprep.mubr.f32.mxu0 %v248
        %6961 = vmatmul.mubr.f32.gmra.mxu0 %v247
        %v6962 = vpop.f32.mrf.mxu0
        %v6963 = vadd.f32 %v6892, %v6962
        %v6964 = vpop.f32.mrf.mxu0
        %v6965 = vadd.f32 %v6894, %v6964
        %6966 = vdwg.mxu0
        %6967 = vmatprep.subr.mxu0 %v2810
        %6968 = vmatpush1.xpose.msra.mxu0 %v2809
        %6969 = vmatprep.subr.mxu0 %v2778
        %6970 = vmatpush1.xpose.msra.mxu0 %v2777
        %6971 = vmatprep.subr.mxu0 %v2746
        %6972 = vmatpush1.xpose.msra.mxu0 %v2745
        %6973 = vmatprep.subr.mxu0 %v2714
        %6974 = vmatpush1.xpose.msra.mxu0 %v2713
        %6975 = vmatprep.subr.mxu0 %v2682
        %6976 = vmatpush1.xpose.msra.mxu0 %v2681
        %6977 = vmatprep.subr.mxu0 %v2650
        %6978 = vmatpush1.xpose.msra.mxu0 %v2649
        %6979 = vmatprep.subr.mxu0 %v2618
        %6980 = vmatpush1.xpose.msra.mxu0 %v2617
        %6981 = vmatprep.subr.mxu0 %v2586
        %6982 = vmatpush1.xpose.msra.mxu0 %v2585
        %6983 = vmatprep.subr.mxu0 %v2554
        %6984 = vmatpush1.xpose.msra.mxu0 %v2553
        %6985 = vmatprep.subr.mxu0 %v2522
        %6986 = vmatpush1.xpose.msra.mxu0 %v2521
        %6987 = vmatprep.subr.mxu0 %v2490
        %6988 = vmatpush1.xpose.msra.mxu0 %v2489
        %6989 = vmatprep.subr.mxu0 %v2458
        %6990 = vmatpush1.xpose.msra.mxu0 %v2457
        %6991 = vmatprep.subr.mxu0 %v2426
        %6992 = vmatpush1.xpose.msra.mxu0 %v2425
        %6993 = vmatprep.subr.mxu0 %v2394
        %6994 = vmatpush1.xpose.msra.mxu0 %v2393
        %6995 = vmatprep.subr.mxu0 %v2362
        %6996 = vmatpush1.xpose.msra.mxu0 %v2361
        %6997 = vmatprep.subr.mxu0 %v2330
        %6998 = vmatpush1.xpose.msra.mxu0 %v2329
        %6999 = vmatprep.subr.mxu0 %v3322
        %7000 = vmatpush2.xpose.msra.mxu0 %v3321
        %7001 = vmatprep.subr.mxu0 %v3290
        %7002 = vmatpush2.xpose.msra.mxu0 %v3289
        %7003 = vmatprep.subr.mxu0 %v3258
        %7004 = vmatpush2.xpose.msra.mxu0 %v3257
        %7005 = vmatprep.subr.mxu0 %v3226
        %7006 = vmatpush2.xpose.msra.mxu0 %v3225
        %7007 = vmatprep.subr.mxu0 %v3194
        %7008 = vmatpush2.xpose.msra.mxu0 %v3193
        %7009 = vmatprep.subr.mxu0 %v3162
        %7010 = vmatpush2.xpose.msra.mxu0 %v3161
        %7011 = vmatprep.subr.mxu0 %v3130
        %7012 = vmatpush2.xpose.msra.mxu0 %v3129
        %7013 = vmatprep.subr.mxu0 %v3098
        %7014 = vmatpush2.xpose.msra.mxu0 %v3097
        %7015 = vmatprep.subr.mxu0 %v3066
        %7016 = vmatpush2.xpose.msra.mxu0 %v3065
        %7017 = vmatprep.subr.mxu0 %v3034
        %7018 = vmatpush2.xpose.msra.mxu0 %v3033
        %7019 = vmatprep.subr.mxu0 %v3002
        %7020 = vmatpush2.xpose.msra.mxu0 %v3001
        %7021 = vmatprep.subr.mxu0 %v2970
        %7022 = vmatpush2.xpose.msra.mxu0 %v2969
        %7023 = vmatprep.subr.mxu0 %v2938
        %7024 = vmatpush2.xpose.msra.mxu0 %v2937
        %7025 = vmatprep.subr.mxu0 %v2906
        %7026 = vmatpush2.xpose.msra.mxu0 %v2905
        %7027 = vmatprep.subr.mxu0 %v2874
        %7028 = vmatpush2.xpose.msra.mxu0 %v2873
        %7029 = vmatprep.subr.mxu0 %v2842
        %7030 = vmatpush2.xpose.msra.mxu0 %v2841
        %7031 = vmatprep.mubr.f32.mxu0 %v250
        %7032 = vmatmul.mubr.f32.gmra.mxu0 %v249
        %v7033 = vpop.f32.mrf.mxu0
        %v7034 = vadd.f32 %v6963, %v7033
        %v7035 = vpop.f32.mrf.mxu0
        %v7036 = vadd.f32 %v6965, %v7035
        %7037 = vdwg.mxu0
        %7038 = vmatprep.subr.mxu0 %v2812
        %7039 = vmatpush1.xpose.msra.mxu0 %v2811
        %7040 = vmatprep.subr.mxu0 %v2780
        %7041 = vmatpush1.xpose.msra.mxu0 %v2779
        %7042 = vmatprep.subr.mxu0 %v2748
        %7043 = vmatpush1.xpose.msra.mxu0 %v2747
        %7044 = vmatprep.subr.mxu0 %v2716
        %7045 = vmatpush1.xpose.msra.mxu0 %v2715
        %7046 = vmatprep.subr.mxu0 %v2684
        %7047 = vmatpush1.xpose.msra.mxu0 %v2683
        %7048 = vmatprep.subr.mxu0 %v2652
        %7049 = vmatpush1.xpose.msra.mxu0 %v2651
        %7050 = vmatprep.subr.mxu0 %v2620
        %7051 = vmatpush1.xpose.msra.mxu0 %v2619
        %7052 = vmatprep.subr.mxu0 %v2588
        %7053 = vmatpush1.xpose.msra.mxu0 %v2587
        %7054 = vmatprep.subr.mxu0 %v2556
        %7055 = vmatpush1.xpose.msra.mxu0 %v2555
        %7056 = vmatprep.subr.mxu0 %v2524
        %7057 = vmatpush1.xpose.msra.mxu0 %v2523
        %7058 = vmatprep.subr.mxu0 %v2492
        %7059 = vmatpush1.xpose.msra.mxu0 %v2491
        %7060 = vmatprep.subr.mxu0 %v2460
        %7061 = vmatpush1.xpose.msra.mxu0 %v2459
        %7062 = vmatprep.subr.mxu0 %v2428
        %7063 = vmatpush1.xpose.msra.mxu0 %v2427
        %7064 = vmatprep.subr.mxu0 %v2396
        %7065 = vmatpush1.xpose.msra.mxu0 %v2395
        %7066 = vmatprep.subr.mxu0 %v2364
        %7067 = vmatpush1.xpose.msra.mxu0 %v2363
        %7068 = vmatprep.subr.mxu0 %v2332
        %7069 = vmatpush1.xpose.msra.mxu0 %v2331
        %7070 = vmatprep.subr.mxu0 %v3324
        %7071 = vmatpush2.xpose.msra.mxu0 %v3323
        %7072 = vmatprep.subr.mxu0 %v3292
        %7073 = vmatpush2.xpose.msra.mxu0 %v3291
        %7074 = vmatprep.subr.mxu0 %v3260
        %7075 = vmatpush2.xpose.msra.mxu0 %v3259
        %7076 = vmatprep.subr.mxu0 %v3228
        %7077 = vmatpush2.xpose.msra.mxu0 %v3227
        %7078 = vmatprep.subr.mxu0 %v3196
        %7079 = vmatpush2.xpose.msra.mxu0 %v3195
        %7080 = vmatprep.subr.mxu0 %v3164
        %7081 = vmatpush2.xpose.msra.mxu0 %v3163
        %7082 = vmatprep.subr.mxu0 %v3132
        %7083 = vmatpush2.xpose.msra.mxu0 %v3131
        %7084 = vmatprep.subr.mxu0 %v3100
        %7085 = vmatpush2.xpose.msra.mxu0 %v3099
        %7086 = vmatprep.subr.mxu0 %v3068
        %7087 = vmatpush2.xpose.msra.mxu0 %v3067
        %7088 = vmatprep.subr.mxu0 %v3036
        %7089 = vmatpush2.xpose.msra.mxu0 %v3035
        %7090 = vmatprep.subr.mxu0 %v3004
        %7091 = vmatpush2.xpose.msra.mxu0 %v3003
        %7092 = vmatprep.subr.mxu0 %v2972
        %7093 = vmatpush2.xpose.msra.mxu0 %v2971
        %7094 = vmatprep.subr.mxu0 %v2940
        %7095 = vmatpush2.xpose.msra.mxu0 %v2939
        %7096 = vmatprep.subr.mxu0 %v2908
        %7097 = vmatpush2.xpose.msra.mxu0 %v2907
        %7098 = vmatprep.subr.mxu0 %v2876
        %7099 = vmatpush2.xpose.msra.mxu0 %v2875
        %7100 = vmatprep.subr.mxu0 %v2844
        %7101 = vmatpush2.xpose.msra.mxu0 %v2843
        %7102 = vmatprep.mubr.f32.mxu0 %v252
        %7103 = vmatmul.mubr.f32.gmra.mxu0 %v251
        %v7104 = vpop.f32.mrf.mxu0
        %v7105 = vadd.f32 %v7034, %v7104
        %v7106 = vpop.f32.mrf.mxu0
        %v7107 = vadd.f32 %v7036, %v7106
        %7108 = vdwg.mxu0
        %7109 = vmatprep.subr.mxu0 %v2814
        %7110 = vmatpush1.xpose.msra.mxu0 %v2813
        %7111 = vmatprep.subr.mxu0 %v2782
        %7112 = vmatpush1.xpose.msra.mxu0 %v2781
        %7113 = vmatprep.subr.mxu0 %v2750
        %7114 = vmatpush1.xpose.msra.mxu0 %v2749
        %7115 = vmatprep.subr.mxu0 %v2718
        %7116 = vmatpush1.xpose.msra.mxu0 %v2717
        %7117 = vmatprep.subr.mxu0 %v2686
        %7118 = vmatpush1.xpose.msra.mxu0 %v2685
        %7119 = vmatprep.subr.mxu0 %v2654
        %7120 = vmatpush1.xpose.msra.mxu0 %v2653
        %7121 = vmatprep.subr.mxu0 %v2622
        %7122 = vmatpush1.xpose.msra.mxu0 %v2621
        %7123 = vmatprep.subr.mxu0 %v2590
        %7124 = vmatpush1.xpose.msra.mxu0 %v2589
        %7125 = vmatprep.subr.mxu0 %v2558
        %7126 = vmatpush1.xpose.msra.mxu0 %v2557
        %7127 = vmatprep.subr.mxu0 %v2526
        %7128 = vmatpush1.xpose.msra.mxu0 %v2525
        %7129 = vmatprep.subr.mxu0 %v2494
        %7130 = vmatpush1.xpose.msra.mxu0 %v2493
        %7131 = vmatprep.subr.mxu0 %v2462
        %7132 = vmatpush1.xpose.msra.mxu0 %v2461
        %7133 = vmatprep.subr.mxu0 %v2430
        %7134 = vmatpush1.xpose.msra.mxu0 %v2429
        %7135 = vmatprep.subr.mxu0 %v2398
        %7136 = vmatpush1.xpose.msra.mxu0 %v2397
        %7137 = vmatprep.subr.mxu0 %v2366
        %7138 = vmatpush1.xpose.msra.mxu0 %v2365
        %7139 = vmatprep.subr.mxu0 %v2334
        %7140 = vmatpush1.xpose.msra.mxu0 %v2333
        %7141 = vmatprep.subr.mxu0 %v3326
        %7142 = vmatpush2.xpose.msra.mxu0 %v3325
        %7143 = vmatprep.subr.mxu0 %v3294
        %7144 = vmatpush2.xpose.msra.mxu0 %v3293
        %7145 = vmatprep.subr.mxu0 %v3262
        %7146 = vmatpush2.xpose.msra.mxu0 %v3261
        %7147 = vmatprep.subr.mxu0 %v3230
        %7148 = vmatpush2.xpose.msra.mxu0 %v3229
        %7149 = vmatprep.subr.mxu0 %v3198
        %7150 = vmatpush2.xpose.msra.mxu0 %v3197
        %7151 = vmatprep.subr.mxu0 %v3166
        %7152 = vmatpush2.xpose.msra.mxu0 %v3165
        %7153 = vmatprep.subr.mxu0 %v3134
        %7154 = vmatpush2.xpose.msra.mxu0 %v3133
        %7155 = vmatprep.subr.mxu0 %v3102
        %7156 = vmatpush2.xpose.msra.mxu0 %v3101
        %7157 = vmatprep.subr.mxu0 %v3070
        %7158 = vmatpush2.xpose.msra.mxu0 %v3069
        %7159 = vmatprep.subr.mxu0 %v3038
        %7160 = vmatpush2.xpose.msra.mxu0 %v3037
        %7161 = vmatprep.subr.mxu0 %v3006
        %7162 = vmatpush2.xpose.msra.mxu0 %v3005
        %7163 = vmatprep.subr.mxu0 %v2974
        %7164 = vmatpush2.xpose.msra.mxu0 %v2973
        %7165 = vmatprep.subr.mxu0 %v2942
        %7166 = vmatpush2.xpose.msra.mxu0 %v2941
        %7167 = vmatprep.subr.mxu0 %v2910
        %7168 = vmatpush2.xpose.msra.mxu0 %v2909
        %7169 = vmatprep.subr.mxu0 %v2878
        %7170 = vmatpush2.xpose.msra.mxu0 %v2877
        %7171 = vmatprep.subr.mxu0 %v2846
        %7172 = vmatpush2.xpose.msra.mxu0 %v2845
        %7173 = vmatprep.mubr.f32.mxu0 %v254
        %7174 = vmatmul.mubr.f32.gmra.mxu0 %v253
        %v7175 = vpop.f32.mrf.mxu0
        %v7176 = vadd.f32 %v7105, %v7175
        %v7177 = vpop.f32.mrf.mxu0
        %v7178 = vadd.f32 %v7107, %v7177
        %7179 = vdwg.mxu0
        %7180 = vmatprep.subr.mxu0 %v2816
        %7181 = vmatpush1.xpose.msra.mxu0 %v2815
        %7182 = vmatprep.subr.mxu0 %v2784
        %7183 = vmatpush1.xpose.msra.mxu0 %v2783
        %7184 = vmatprep.subr.mxu0 %v2752
        %7185 = vmatpush1.xpose.msra.mxu0 %v2751
        %7186 = vmatprep.subr.mxu0 %v2720
        %7187 = vmatpush1.xpose.msra.mxu0 %v2719
        %7188 = vmatprep.subr.mxu0 %v2688
        %7189 = vmatpush1.xpose.msra.mxu0 %v2687
        %7190 = vmatprep.subr.mxu0 %v2656
        %7191 = vmatpush1.xpose.msra.mxu0 %v2655
        %7192 = vmatprep.subr.mxu0 %v2624
        %7193 = vmatpush1.xpose.msra.mxu0 %v2623
        %7194 = vmatprep.subr.mxu0 %v2592
        %7195 = vmatpush1.xpose.msra.mxu0 %v2591
        %7196 = vmatprep.subr.mxu0 %v2560
        %7197 = vmatpush1.xpose.msra.mxu0 %v2559
        %7198 = vmatprep.subr.mxu0 %v2528
        %7199 = vmatpush1.xpose.msra.mxu0 %v2527
        %7200 = vmatprep.subr.mxu0 %v2496
        %7201 = vmatpush1.xpose.msra.mxu0 %v2495
        %7202 = vmatprep.subr.mxu0 %v2464
        %7203 = vmatpush1.xpose.msra.mxu0 %v2463
        %7204 = vmatprep.subr.mxu0 %v2432
        %7205 = vmatpush1.xpose.msra.mxu0 %v2431
        %7206 = vmatprep.subr.mxu0 %v2400
        %7207 = vmatpush1.xpose.msra.mxu0 %v2399
        %7208 = vmatprep.subr.mxu0 %v2368
        %7209 = vmatpush1.xpose.msra.mxu0 %v2367
        %7210 = vmatprep.subr.mxu0 %v2336
        %7211 = vmatpush1.xpose.msra.mxu0 %v2335
        %7212 = vmatprep.subr.mxu0 %v3328
        %7213 = vmatpush2.xpose.msra.mxu0 %v3327
        %7214 = vmatprep.subr.mxu0 %v3296
        %7215 = vmatpush2.xpose.msra.mxu0 %v3295
        %7216 = vmatprep.subr.mxu0 %v3264
        %7217 = vmatpush2.xpose.msra.mxu0 %v3263
        %7218 = vmatprep.subr.mxu0 %v3232
        %7219 = vmatpush2.xpose.msra.mxu0 %v3231
        %7220 = vmatprep.subr.mxu0 %v3200
        %7221 = vmatpush2.xpose.msra.mxu0 %v3199
        %7222 = vmatprep.subr.mxu0 %v3168
        %7223 = vmatpush2.xpose.msra.mxu0 %v3167
        %7224 = vmatprep.subr.mxu0 %v3136
        %7225 = vmatpush2.xpose.msra.mxu0 %v3135
        %7226 = vmatprep.subr.mxu0 %v3104
        %7227 = vmatpush2.xpose.msra.mxu0 %v3103
        %7228 = vmatprep.subr.mxu0 %v3072
        %7229 = vmatpush2.xpose.msra.mxu0 %v3071
        %7230 = vmatprep.subr.mxu0 %v3040
        %7231 = vmatpush2.xpose.msra.mxu0 %v3039
        %7232 = vmatprep.subr.mxu0 %v3008
        %7233 = vmatpush2.xpose.msra.mxu0 %v3007
        %7234 = vmatprep.subr.mxu0 %v2976
        %7235 = vmatpush2.xpose.msra.mxu0 %v2975
        %7236 = vmatprep.subr.mxu0 %v2944
        %7237 = vmatpush2.xpose.msra.mxu0 %v2943
        %7238 = vmatprep.subr.mxu0 %v2912
        %7239 = vmatpush2.xpose.msra.mxu0 %v2911
        %7240 = vmatprep.subr.mxu0 %v2880
        %7241 = vmatpush2.xpose.msra.mxu0 %v2879
        %7242 = vmatprep.subr.mxu0 %v2848
        %7243 = vmatpush2.xpose.msra.mxu0 %v2847
        %7244 = vmatprep.mubr.f32.mxu0 %v256
        %7245 = vmatmul.mubr.f32.gmra.mxu0 %v255
        %v7246 = vpop.f32.mrf.mxu0
        %v7247 = vadd.f32 %v7176, %v7246
        %v7248 = vpop.f32.mrf.mxu0
        %v7249 = vadd.f32 %v7178, %v7248
        %7250 = vdwg.mxu0
        %7251 = vmatprep.subr.mxu0 %v2818
        %7252 = vmatpush1.xpose.msra.mxu0 %v2817
        %7253 = vmatprep.subr.mxu0 %v2786
        %7254 = vmatpush1.xpose.msra.mxu0 %v2785
        %7255 = vmatprep.subr.mxu0 %v2754
        %7256 = vmatpush1.xpose.msra.mxu0 %v2753
        %7257 = vmatprep.subr.mxu0 %v2722
        %7258 = vmatpush1.xpose.msra.mxu0 %v2721
        %7259 = vmatprep.subr.mxu0 %v2690
        %7260 = vmatpush1.xpose.msra.mxu0 %v2689
        %7261 = vmatprep.subr.mxu0 %v2658
        %7262 = vmatpush1.xpose.msra.mxu0 %v2657
        %7263 = vmatprep.subr.mxu0 %v2626
        %7264 = vmatpush1.xpose.msra.mxu0 %v2625
        %7265 = vmatprep.subr.mxu0 %v2594
        %7266 = vmatpush1.xpose.msra.mxu0 %v2593
        %7267 = vmatprep.subr.mxu0 %v2562
        %7268 = vmatpush1.xpose.msra.mxu0 %v2561
        %7269 = vmatprep.subr.mxu0 %v2530
        %7270 = vmatpush1.xpose.msra.mxu0 %v2529
        %7271 = vmatprep.subr.mxu0 %v2498
        %7272 = vmatpush1.xpose.msra.mxu0 %v2497
        %7273 = vmatprep.subr.mxu0 %v2466
        %7274 = vmatpush1.xpose.msra.mxu0 %v2465
        %7275 = vmatprep.subr.mxu0 %v2434
        %7276 = vmatpush1.xpose.msra.mxu0 %v2433
        %7277 = vmatprep.subr.mxu0 %v2402
        %7278 = vmatpush1.xpose.msra.mxu0 %v2401
        %7279 = vmatprep.subr.mxu0 %v2370
        %7280 = vmatpush1.xpose.msra.mxu0 %v2369
        %7281 = vmatprep.subr.mxu0 %v2338
        %7282 = vmatpush1.xpose.msra.mxu0 %v2337
        %7283 = vmatprep.subr.mxu0 %v3330
        %7284 = vmatpush2.xpose.msra.mxu0 %v3329
        %7285 = vmatprep.subr.mxu0 %v3298
        %7286 = vmatpush2.xpose.msra.mxu0 %v3297
        %7287 = vmatprep.subr.mxu0 %v3266
        %7288 = vmatpush2.xpose.msra.mxu0 %v3265
        %7289 = vmatprep.subr.mxu0 %v3234
        %7290 = vmatpush2.xpose.msra.mxu0 %v3233
        %7291 = vmatprep.subr.mxu0 %v3202
        %7292 = vmatpush2.xpose.msra.mxu0 %v3201
        %7293 = vmatprep.subr.mxu0 %v3170
        %7294 = vmatpush2.xpose.msra.mxu0 %v3169
        %7295 = vmatprep.subr.mxu0 %v3138
        %7296 = vmatpush2.xpose.msra.mxu0 %v3137
        %7297 = vmatprep.subr.mxu0 %v3106
        %7298 = vmatpush2.xpose.msra.mxu0 %v3105
        %7299 = vmatprep.subr.mxu0 %v3074
        %7300 = vmatpush2.xpose.msra.mxu0 %v3073
        %7301 = vmatprep.subr.mxu0 %v3042
        %7302 = vmatpush2.xpose.msra.mxu0 %v3041
        %7303 = vmatprep.subr.mxu0 %v3010
        %7304 = vmatpush2.xpose.msra.mxu0 %v3009
        %7305 = vmatprep.subr.mxu0 %v2978
        %7306 = vmatpush2.xpose.msra.mxu0 %v2977
        %7307 = vmatprep.subr.mxu0 %v2946
        %7308 = vmatpush2.xpose.msra.mxu0 %v2945
        %7309 = vmatprep.subr.mxu0 %v2914
        %7310 = vmatpush2.xpose.msra.mxu0 %v2913
        %7311 = vmatprep.subr.mxu0 %v2882
        %7312 = vmatpush2.xpose.msra.mxu0 %v2881
        %7313 = vmatprep.subr.mxu0 %v2850
        %7314 = vmatpush2.xpose.msra.mxu0 %v2849
        %7315 = vmatprep.mubr.f32.mxu0 %v258
        %7316 = vmatmul.mubr.f32.gmra.mxu0 %v257
        %v7317 = vpop.f32.mrf.mxu0
        %v7318 = vadd.f32 %v7247, %v7317
        %v7319 = vpop.f32.mrf.mxu0
        %v7320 = vadd.f32 %v7249, %v7319
        %7321 = vdwg.mxu0
        %7322 = vmatprep.subr.mxu0 %v2820
        %7323 = vmatpush1.xpose.msra.mxu0 %v2819
        %7324 = vmatprep.subr.mxu0 %v2788
        %7325 = vmatpush1.xpose.msra.mxu0 %v2787
        %7326 = vmatprep.subr.mxu0 %v2756
        %7327 = vmatpush1.xpose.msra.mxu0 %v2755
        %7328 = vmatprep.subr.mxu0 %v2724
        %7329 = vmatpush1.xpose.msra.mxu0 %v2723
        %7330 = vmatprep.subr.mxu0 %v2692
        %7331 = vmatpush1.xpose.msra.mxu0 %v2691
        %7332 = vmatprep.subr.mxu0 %v2660
        %7333 = vmatpush1.xpose.msra.mxu0 %v2659
        %7334 = vmatprep.subr.mxu0 %v2628
        %7335 = vmatpush1.xpose.msra.mxu0 %v2627
        %7336 = vmatprep.subr.mxu0 %v2596
        %7337 = vmatpush1.xpose.msra.mxu0 %v2595
        %7338 = vmatprep.subr.mxu0 %v2564
        %7339 = vmatpush1.xpose.msra.mxu0 %v2563
        %7340 = vmatprep.subr.mxu0 %v2532
        %7341 = vmatpush1.xpose.msra.mxu0 %v2531
        %7342 = vmatprep.subr.mxu0 %v2500
        %7343 = vmatpush1.xpose.msra.mxu0 %v2499
        %7344 = vmatprep.subr.mxu0 %v2468
        %7345 = vmatpush1.xpose.msra.mxu0 %v2467
        %7346 = vmatprep.subr.mxu0 %v2436
        %7347 = vmatpush1.xpose.msra.mxu0 %v2435
        %7348 = vmatprep.subr.mxu0 %v2404
        %7349 = vmatpush1.xpose.msra.mxu0 %v2403
        %7350 = vmatprep.subr.mxu0 %v2372
        %7351 = vmatpush1.xpose.msra.mxu0 %v2371
        %7352 = vmatprep.subr.mxu0 %v2340
        %7353 = vmatpush1.xpose.msra.mxu0 %v2339
        %7354 = vmatprep.subr.mxu0 %v3332
        %7355 = vmatpush2.xpose.msra.mxu0 %v3331
        %7356 = vmatprep.subr.mxu0 %v3300
        %7357 = vmatpush2.xpose.msra.mxu0 %v3299
        %7358 = vmatprep.subr.mxu0 %v3268
        %7359 = vmatpush2.xpose.msra.mxu0 %v3267
        %7360 = vmatprep.subr.mxu0 %v3236
        %7361 = vmatpush2.xpose.msra.mxu0 %v3235
        %7362 = vmatprep.subr.mxu0 %v3204
        %7363 = vmatpush2.xpose.msra.mxu0 %v3203
        %7364 = vmatprep.subr.mxu0 %v3172
        %7365 = vmatpush2.xpose.msra.mxu0 %v3171
        %7366 = vmatprep.subr.mxu0 %v3140
        %7367 = vmatpush2.xpose.msra.mxu0 %v3139
        %7368 = vmatprep.subr.mxu0 %v3108
        %7369 = vmatpush2.xpose.msra.mxu0 %v3107
        %7370 = vmatprep.subr.mxu0 %v3076
        %7371 = vmatpush2.xpose.msra.mxu0 %v3075
        %7372 = vmatprep.subr.mxu0 %v3044
        %7373 = vmatpush2.xpose.msra.mxu0 %v3043
        %7374 = vmatprep.subr.mxu0 %v3012
        %7375 = vmatpush2.xpose.msra.mxu0 %v3011
        %7376 = vmatprep.subr.mxu0 %v2980
        %7377 = vmatpush2.xpose.msra.mxu0 %v2979
        %7378 = vmatprep.subr.mxu0 %v2948
        %7379 = vmatpush2.xpose.msra.mxu0 %v2947
        %7380 = vmatprep.subr.mxu0 %v2916
        %7381 = vmatpush2.xpose.msra.mxu0 %v2915
        %7382 = vmatprep.subr.mxu0 %v2884
        %7383 = vmatpush2.xpose.msra.mxu0 %v2883
        %7384 = vmatprep.subr.mxu0 %v2852
        %7385 = vmatpush2.xpose.msra.mxu0 %v2851
        %7386 = vmatprep.mubr.f32.mxu0 %v260
        %7387 = vmatmul.mubr.f32.gmra.mxu0 %v259
        %v7388 = vpop.f32.mrf.mxu0
        %v7389 = vadd.f32 %v7318, %v7388
        %v7390 = vpop.f32.mrf.mxu0
        %v7391 = vadd.f32 %v7320, %v7390
        %7392 = vdwg.mxu0
        %7393 = vmatprep.subr.mxu0 %v2822
        %7394 = vmatpush1.xpose.msra.mxu0 %v2821
        %7395 = vmatprep.subr.mxu0 %v2790
        %7396 = vmatpush1.xpose.msra.mxu0 %v2789
        %7397 = vmatprep.subr.mxu0 %v2758
        %7398 = vmatpush1.xpose.msra.mxu0 %v2757
        %7399 = vmatprep.subr.mxu0 %v2726
        %7400 = vmatpush1.xpose.msra.mxu0 %v2725
        %7401 = vmatprep.subr.mxu0 %v2694
        %7402 = vmatpush1.xpose.msra.mxu0 %v2693
        %7403 = vmatprep.subr.mxu0 %v2662
        %7404 = vmatpush1.xpose.msra.mxu0 %v2661
        %7405 = vmatprep.subr.mxu0 %v2630
        %7406 = vmatpush1.xpose.msra.mxu0 %v2629
        %7407 = vmatprep.subr.mxu0 %v2598
        %7408 = vmatpush1.xpose.msra.mxu0 %v2597
        %7409 = vmatprep.subr.mxu0 %v2566
        %7410 = vmatpush1.xpose.msra.mxu0 %v2565
        %7411 = vmatprep.subr.mxu0 %v2534
        %7412 = vmatpush1.xpose.msra.mxu0 %v2533
        %7413 = vmatprep.subr.mxu0 %v2502
        %7414 = vmatpush1.xpose.msra.mxu0 %v2501
        %7415 = vmatprep.subr.mxu0 %v2470
        %7416 = vmatpush1.xpose.msra.mxu0 %v2469
        %7417 = vmatprep.subr.mxu0 %v2438
        %7418 = vmatpush1.xpose.msra.mxu0 %v2437
        %7419 = vmatprep.subr.mxu0 %v2406
        %7420 = vmatpush1.xpose.msra.mxu0 %v2405
        %7421 = vmatprep.subr.mxu0 %v2374
        %7422 = vmatpush1.xpose.msra.mxu0 %v2373
        %7423 = vmatprep.subr.mxu0 %v2342
        %7424 = vmatpush1.xpose.msra.mxu0 %v2341
        %7425 = vmatprep.subr.mxu0 %v3334
        %7426 = vmatpush2.xpose.msra.mxu0 %v3333
        %7427 = vmatprep.subr.mxu0 %v3302
        %7428 = vmatpush2.xpose.msra.mxu0 %v3301
        %7429 = vmatprep.subr.mxu0 %v3270
        %7430 = vmatpush2.xpose.msra.mxu0 %v3269
        %7431 = vmatprep.subr.mxu0 %v3238
        %7432 = vmatpush2.xpose.msra.mxu0 %v3237
        %7433 = vmatprep.subr.mxu0 %v3206
        %7434 = vmatpush2.xpose.msra.mxu0 %v3205
        %7435 = vmatprep.subr.mxu0 %v3174
        %7436 = vmatpush2.xpose.msra.mxu0 %v3173
        %7437 = vmatprep.subr.mxu0 %v3142
        %7438 = vmatpush2.xpose.msra.mxu0 %v3141
        %7439 = vmatprep.subr.mxu0 %v3110
        %7440 = vmatpush2.xpose.msra.mxu0 %v3109
        %7441 = vmatprep.subr.mxu0 %v3078
        %7442 = vmatpush2.xpose.msra.mxu0 %v3077
        %7443 = vmatprep.subr.mxu0 %v3046
        %7444 = vmatpush2.xpose.msra.mxu0 %v3045
        %7445 = vmatprep.subr.mxu0 %v3014
        %7446 = vmatpush2.xpose.msra.mxu0 %v3013
        %7447 = vmatprep.subr.mxu0 %v2982
        %7448 = vmatpush2.xpose.msra.mxu0 %v2981
        %7449 = vmatprep.subr.mxu0 %v2950
        %7450 = vmatpush2.xpose.msra.mxu0 %v2949
        %7451 = vmatprep.subr.mxu0 %v2918
        %7452 = vmatpush2.xpose.msra.mxu0 %v2917
        %7453 = vmatprep.subr.mxu0 %v2886
        %7454 = vmatpush2.xpose.msra.mxu0 %v2885
        %7455 = vmatprep.subr.mxu0 %v2854
        %7456 = vmatpush2.xpose.msra.mxu0 %v2853
        %7457 = vmatprep.mubr.f32.mxu0 %v262
        %7458 = vmatmul.mubr.f32.gmra.mxu0 %v261
        %v7459 = vpop.f32.mrf.mxu0
        %v7460 = vadd.f32 %v7389, %v7459
        %v7461 = vpop.f32.mrf.mxu0
        %v7462 = vadd.f32 %v7391, %v7461
        %7463 = vdwg.mxu0
        %7464 = vmatprep.subr.mxu0 %v2824
        %7465 = vmatpush1.xpose.msra.mxu0 %v2823
        %7466 = vmatprep.subr.mxu0 %v2792
        %7467 = vmatpush1.xpose.msra.mxu0 %v2791
        %7468 = vmatprep.subr.mxu0 %v2760
        %7469 = vmatpush1.xpose.msra.mxu0 %v2759
        %7470 = vmatprep.subr.mxu0 %v2728
        %7471 = vmatpush1.xpose.msra.mxu0 %v2727
        %7472 = vmatprep.subr.mxu0 %v2696
        %7473 = vmatpush1.xpose.msra.mxu0 %v2695
        %7474 = vmatprep.subr.mxu0 %v2664
        %7475 = vmatpush1.xpose.msra.mxu0 %v2663
        %7476 = vmatprep.subr.mxu0 %v2632
        %7477 = vmatpush1.xpose.msra.mxu0 %v2631
        %7478 = vmatprep.subr.mxu0 %v2600
        %7479 = vmatpush1.xpose.msra.mxu0 %v2599
        %7480 = vmatprep.subr.mxu0 %v2568
        %7481 = vmatpush1.xpose.msra.mxu0 %v2567
        %7482 = vmatprep.subr.mxu0 %v2536
        %7483 = vmatpush1.xpose.msra.mxu0 %v2535
        %7484 = vmatprep.subr.mxu0 %v2504
        %7485 = vmatpush1.xpose.msra.mxu0 %v2503
        %7486 = vmatprep.subr.mxu0 %v2472
        %7487 = vmatpush1.xpose.msra.mxu0 %v2471
        %7488 = vmatprep.subr.mxu0 %v2440
        %7489 = vmatpush1.xpose.msra.mxu0 %v2439
        %7490 = vmatprep.subr.mxu0 %v2408
        %7491 = vmatpush1.xpose.msra.mxu0 %v2407
        %7492 = vmatprep.subr.mxu0 %v2376
        %7493 = vmatpush1.xpose.msra.mxu0 %v2375
        %7494 = vmatprep.subr.mxu0 %v2344
        %7495 = vmatpush1.xpose.msra.mxu0 %v2343
        %7496 = vmatprep.subr.mxu0 %v3336
        %7497 = vmatpush2.xpose.msra.mxu0 %v3335
        %7498 = vmatprep.subr.mxu0 %v3304
        %7499 = vmatpush2.xpose.msra.mxu0 %v3303
        %7500 = vmatprep.subr.mxu0 %v3272
        %7501 = vmatpush2.xpose.msra.mxu0 %v3271
        %7502 = vmatprep.subr.mxu0 %v3240
        %7503 = vmatpush2.xpose.msra.mxu0 %v3239
        %7504 = vmatprep.subr.mxu0 %v3208
        %7505 = vmatpush2.xpose.msra.mxu0 %v3207
        %7506 = vmatprep.subr.mxu0 %v3176
        %7507 = vmatpush2.xpose.msra.mxu0 %v3175
        %7508 = vmatprep.subr.mxu0 %v3144
        %7509 = vmatpush2.xpose.msra.mxu0 %v3143
        %7510 = vmatprep.subr.mxu0 %v3112
        %7511 = vmatpush2.xpose.msra.mxu0 %v3111
        %7512 = vmatprep.subr.mxu0 %v3080
        %7513 = vmatpush2.xpose.msra.mxu0 %v3079
        %7514 = vmatprep.subr.mxu0 %v3048
        %7515 = vmatpush2.xpose.msra.mxu0 %v3047
        %7516 = vmatprep.subr.mxu0 %v3016
        %7517 = vmatpush2.xpose.msra.mxu0 %v3015
        %7518 = vmatprep.subr.mxu0 %v2984
        %7519 = vmatpush2.xpose.msra.mxu0 %v2983
        %7520 = vmatprep.subr.mxu0 %v2952
        %7521 = vmatpush2.xpose.msra.mxu0 %v2951
        %7522 = vmatprep.subr.mxu0 %v2920
        %7523 = vmatpush2.xpose.msra.mxu0 %v2919
        %7524 = vmatprep.subr.mxu0 %v2888
        %7525 = vmatpush2.xpose.msra.mxu0 %v2887
        %7526 = vmatprep.subr.mxu0 %v2856
        %7527 = vmatpush2.xpose.msra.mxu0 %v2855
        %7528 = vmatprep.mubr.f32.mxu0 %v264
        %7529 = vmatmul.mubr.f32.gmra.mxu0 %v263
        %v7530 = vpop.f32.mrf.mxu0
        %v7531 = vadd.f32 %v7460, %v7530
        %v7532 = vpop.f32.mrf.mxu0
        %v7533 = vadd.f32 %v7462, %v7532
        %7534 = vdwg.mxu0
        %7535 = vmatprep.subr.mxu0 %v2826
        %7536 = vmatpush1.xpose.msra.mxu0 %v2825
        %7537 = vmatprep.subr.mxu0 %v2794
        %7538 = vmatpush1.xpose.msra.mxu0 %v2793
        %7539 = vmatprep.subr.mxu0 %v2762
        %7540 = vmatpush1.xpose.msra.mxu0 %v2761
        %7541 = vmatprep.subr.mxu0 %v2730
        %7542 = vmatpush1.xpose.msra.mxu0 %v2729
        %7543 = vmatprep.subr.mxu0 %v2698
        %7544 = vmatpush1.xpose.msra.mxu0 %v2697
        %7545 = vmatprep.subr.mxu0 %v2666
        %7546 = vmatpush1.xpose.msra.mxu0 %v2665
        %7547 = vmatprep.subr.mxu0 %v2634
        %7548 = vmatpush1.xpose.msra.mxu0 %v2633
        %7549 = vmatprep.subr.mxu0 %v2602
        %7550 = vmatpush1.xpose.msra.mxu0 %v2601
        %7551 = vmatprep.subr.mxu0 %v2570
        %7552 = vmatpush1.xpose.msra.mxu0 %v2569
        %7553 = vmatprep.subr.mxu0 %v2538
        %7554 = vmatpush1.xpose.msra.mxu0 %v2537
        %7555 = vmatprep.subr.mxu0 %v2506
        %7556 = vmatpush1.xpose.msra.mxu0 %v2505
        %7557 = vmatprep.subr.mxu0 %v2474
        %7558 = vmatpush1.xpose.msra.mxu0 %v2473
        %7559 = vmatprep.subr.mxu0 %v2442
        %7560 = vmatpush1.xpose.msra.mxu0 %v2441
        %7561 = vmatprep.subr.mxu0 %v2410
        %7562 = vmatpush1.xpose.msra.mxu0 %v2409
        %7563 = vmatprep.subr.mxu0 %v2378
        %7564 = vmatpush1.xpose.msra.mxu0 %v2377
        %7565 = vmatprep.subr.mxu0 %v2346
        %7566 = vmatpush1.xpose.msra.mxu0 %v2345
        %7567 = vmatprep.subr.mxu0 %v3338
        %7568 = vmatpush2.xpose.msra.mxu0 %v3337
        %7569 = vmatprep.subr.mxu0 %v3306
        %7570 = vmatpush2.xpose.msra.mxu0 %v3305
        %7571 = vmatprep.subr.mxu0 %v3274
        %7572 = vmatpush2.xpose.msra.mxu0 %v3273
        %7573 = vmatprep.subr.mxu0 %v3242
        %7574 = vmatpush2.xpose.msra.mxu0 %v3241
        %7575 = vmatprep.subr.mxu0 %v3210
        %7576 = vmatpush2.xpose.msra.mxu0 %v3209
        %7577 = vmatprep.subr.mxu0 %v3178
        %7578 = vmatpush2.xpose.msra.mxu0 %v3177
        %7579 = vmatprep.subr.mxu0 %v3146
        %7580 = vmatpush2.xpose.msra.mxu0 %v3145
        %7581 = vmatprep.subr.mxu0 %v3114
        %7582 = vmatpush2.xpose.msra.mxu0 %v3113
        %7583 = vmatprep.subr.mxu0 %v3082
        %7584 = vmatpush2.xpose.msra.mxu0 %v3081
        %7585 = vmatprep.subr.mxu0 %v3050
        %7586 = vmatpush2.xpose.msra.mxu0 %v3049
        %7587 = vmatprep.subr.mxu0 %v3018
        %7588 = vmatpush2.xpose.msra.mxu0 %v3017
        %7589 = vmatprep.subr.mxu0 %v2986
        %7590 = vmatpush2.xpose.msra.mxu0 %v2985
        %7591 = vmatprep.subr.mxu0 %v2954
        %7592 = vmatpush2.xpose.msra.mxu0 %v2953
        %7593 = vmatprep.subr.mxu0 %v2922
        %7594 = vmatpush2.xpose.msra.mxu0 %v2921
        %7595 = vmatprep.subr.mxu0 %v2890
        %7596 = vmatpush2.xpose.msra.mxu0 %v2889
        %7597 = vmatprep.subr.mxu0 %v2858
        %7598 = vmatpush2.xpose.msra.mxu0 %v2857
        %7599 = vmatprep.mubr.f32.mxu0 %v266
        %7600 = vmatmul.mubr.f32.gmra.mxu0 %v265
        %v7601 = vpop.f32.mrf.mxu0
        %v7602 = vadd.f32 %v7531, %v7601
        %v7603 = vpop.f32.mrf.mxu0
        %v7604 = vadd.f32 %v7533, %v7603
        %7605 = vdwg.mxu0
        %7606 = vmatprep.subr.mxu0 %v2828
        %7607 = vmatpush1.xpose.msra.mxu0 %v2827
        %7608 = vmatprep.subr.mxu0 %v2796
        %7609 = vmatpush1.xpose.msra.mxu0 %v2795
        %7610 = vmatprep.subr.mxu0 %v2764
        %7611 = vmatpush1.xpose.msra.mxu0 %v2763
        %7612 = vmatprep.subr.mxu0 %v2732
        %7613 = vmatpush1.xpose.msra.mxu0 %v2731
        %7614 = vmatprep.subr.mxu0 %v2700
        %7615 = vmatpush1.xpose.msra.mxu0 %v2699
        %7616 = vmatprep.subr.mxu0 %v2668
        %7617 = vmatpush1.xpose.msra.mxu0 %v2667
        %7618 = vmatprep.subr.mxu0 %v2636
        %7619 = vmatpush1.xpose.msra.mxu0 %v2635
        %7620 = vmatprep.subr.mxu0 %v2604
        %7621 = vmatpush1.xpose.msra.mxu0 %v2603
        %7622 = vmatprep.subr.mxu0 %v2572
        %7623 = vmatpush1.xpose.msra.mxu0 %v2571
        %7624 = vmatprep.subr.mxu0 %v2540
        %7625 = vmatpush1.xpose.msra.mxu0 %v2539
        %7626 = vmatprep.subr.mxu0 %v2508
        %7627 = vmatpush1.xpose.msra.mxu0 %v2507
        %7628 = vmatprep.subr.mxu0 %v2476
        %7629 = vmatpush1.xpose.msra.mxu0 %v2475
        %7630 = vmatprep.subr.mxu0 %v2444
        %7631 = vmatpush1.xpose.msra.mxu0 %v2443
        %7632 = vmatprep.subr.mxu0 %v2412
        %7633 = vmatpush1.xpose.msra.mxu0 %v2411
        %7634 = vmatprep.subr.mxu0 %v2380
        %7635 = vmatpush1.xpose.msra.mxu0 %v2379
        %7636 = vmatprep.subr.mxu0 %v2348
        %7637 = vmatpush1.xpose.msra.mxu0 %v2347
        %7638 = vmatprep.subr.mxu0 %v3340
        %7639 = vmatpush2.xpose.msra.mxu0 %v3339
        %7640 = vmatprep.subr.mxu0 %v3308
        %7641 = vmatpush2.xpose.msra.mxu0 %v3307
        %7642 = vmatprep.subr.mxu0 %v3276
        %7643 = vmatpush2.xpose.msra.mxu0 %v3275
        %7644 = vmatprep.subr.mxu0 %v3244
        %7645 = vmatpush2.xpose.msra.mxu0 %v3243
        %7646 = vmatprep.subr.mxu0 %v3212
        %7647 = vmatpush2.xpose.msra.mxu0 %v3211
        %7648 = vmatprep.subr.mxu0 %v3180
        %7649 = vmatpush2.xpose.msra.mxu0 %v3179
        %7650 = vmatprep.subr.mxu0 %v3148
        %7651 = vmatpush2.xpose.msra.mxu0 %v3147
        %7652 = vmatprep.subr.mxu0 %v3116
        %7653 = vmatpush2.xpose.msra.mxu0 %v3115
        %7654 = vmatprep.subr.mxu0 %v3084
        %7655 = vmatpush2.xpose.msra.mxu0 %v3083
        %7656 = vmatprep.subr.mxu0 %v3052
        %7657 = vmatpush2.xpose.msra.mxu0 %v3051
        %7658 = vmatprep.subr.mxu0 %v3020
        %7659 = vmatpush2.xpose.msra.mxu0 %v3019
        %7660 = vmatprep.subr.mxu0 %v2988
        %7661 = vmatpush2.xpose.msra.mxu0 %v2987
        %7662 = vmatprep.subr.mxu0 %v2956
        %7663 = vmatpush2.xpose.msra.mxu0 %v2955
        %7664 = vmatprep.subr.mxu0 %v2924
        %7665 = vmatpush2.xpose.msra.mxu0 %v2923
        %7666 = vmatprep.subr.mxu0 %v2892
        %7667 = vmatpush2.xpose.msra.mxu0 %v2891
        %7668 = vmatprep.subr.mxu0 %v2860
        %7669 = vmatpush2.xpose.msra.mxu0 %v2859
        %7670 = vmatprep.mubr.f32.mxu0 %v268
        %7671 = vmatmul.mubr.f32.gmra.mxu0 %v267
        %v7672 = vpop.f32.mrf.mxu0
        %v7673 = vadd.f32 %v7602, %v7672
        %v7674 = vpop.f32.mrf.mxu0
        %v7675 = vadd.f32 %v7604, %v7674
        %7676 = vdwg.mxu0
        %7677 = vmatprep.subr.mxu0 %v2830
        %7678 = vmatpush1.xpose.msra.mxu0 %v2829
        %7679 = vmatprep.subr.mxu0 %v2798
        %7680 = vmatpush1.xpose.msra.mxu0 %v2797
        %7681 = vmatprep.subr.mxu0 %v2766
        %7682 = vmatpush1.xpose.msra.mxu0 %v2765
        %7683 = vmatprep.subr.mxu0 %v2734
        %7684 = vmatpush1.xpose.msra.mxu0 %v2733
        %7685 = vmatprep.subr.mxu0 %v2702
        %7686 = vmatpush1.xpose.msra.mxu0 %v2701
        %7687 = vmatprep.subr.mxu0 %v2670
        %7688 = vmatpush1.xpose.msra.mxu0 %v2669
        %7689 = vmatprep.subr.mxu0 %v2638
        %7690 = vmatpush1.xpose.msra.mxu0 %v2637
        %7691 = vmatprep.subr.mxu0 %v2606
        %7692 = vmatpush1.xpose.msra.mxu0 %v2605
        %7693 = vmatprep.subr.mxu0 %v2574
        %7694 = vmatpush1.xpose.msra.mxu0 %v2573
        %7695 = vmatprep.subr.mxu0 %v2542
        %7696 = vmatpush1.xpose.msra.mxu0 %v2541
        %7697 = vmatprep.subr.mxu0 %v2510
        %7698 = vmatpush1.xpose.msra.mxu0 %v2509
        %7699 = vmatprep.subr.mxu0 %v2478
        %7700 = vmatpush1.xpose.msra.mxu0 %v2477
        %7701 = vmatprep.subr.mxu0 %v2446
        %7702 = vmatpush1.xpose.msra.mxu0 %v2445
        %7703 = vmatprep.subr.mxu0 %v2414
        %7704 = vmatpush1.xpose.msra.mxu0 %v2413
        %7705 = vmatprep.subr.mxu0 %v2382
        %7706 = vmatpush1.xpose.msra.mxu0 %v2381
        %7707 = vmatprep.subr.mxu0 %v2350
        %7708 = vmatpush1.xpose.msra.mxu0 %v2349
        %7709 = vmatprep.subr.mxu0 %v3342
        %7710 = vmatpush2.xpose.msra.mxu0 %v3341
        %7711 = vmatprep.subr.mxu0 %v3310
        %7712 = vmatpush2.xpose.msra.mxu0 %v3309
        %7713 = vmatprep.subr.mxu0 %v3278
        %7714 = vmatpush2.xpose.msra.mxu0 %v3277
        %7715 = vmatprep.subr.mxu0 %v3246
        %7716 = vmatpush2.xpose.msra.mxu0 %v3245
        %7717 = vmatprep.subr.mxu0 %v3214
        %7718 = vmatpush2.xpose.msra.mxu0 %v3213
        %7719 = vmatprep.subr.mxu0 %v3182
        %7720 = vmatpush2.xpose.msra.mxu0 %v3181
        %7721 = vmatprep.subr.mxu0 %v3150
        %7722 = vmatpush2.xpose.msra.mxu0 %v3149
        %7723 = vmatprep.subr.mxu0 %v3118
        %7724 = vmatpush2.xpose.msra.mxu0 %v3117
        %7725 = vmatprep.subr.mxu0 %v3086
        %7726 = vmatpush2.xpose.msra.mxu0 %v3085
        %7727 = vmatprep.subr.mxu0 %v3054
        %7728 = vmatpush2.xpose.msra.mxu0 %v3053
        %7729 = vmatprep.subr.mxu0 %v3022
        %7730 = vmatpush2.xpose.msra.mxu0 %v3021
        %7731 = vmatprep.subr.mxu0 %v2990
        %7732 = vmatpush2.xpose.msra.mxu0 %v2989
        %7733 = vmatprep.subr.mxu0 %v2958
        %7734 = vmatpush2.xpose.msra.mxu0 %v2957
        %7735 = vmatprep.subr.mxu0 %v2926
        %7736 = vmatpush2.xpose.msra.mxu0 %v2925
        %7737 = vmatprep.subr.mxu0 %v2894
        %7738 = vmatpush2.xpose.msra.mxu0 %v2893
        %7739 = vmatprep.subr.mxu0 %v2862
        %7740 = vmatpush2.xpose.msra.mxu0 %v2861
        %7741 = vmatprep.mubr.f32.mxu0 %v270
        %7742 = vmatmul.mubr.f32.gmra.mxu0 %v269
        %v7743 = vpop.f32.mrf.mxu0
        %v7744 = vadd.f32 %v7673, %v7743
        %v7745 = vpop.f32.mrf.mxu0
        %v7746 = vadd.f32 %v7675, %v7745
        %7747 = vdwg.mxu0
        %7748 = vmatprep.subr.mxu0 %v2832
        %7749 = vmatpush1.xpose.msra.mxu0 %v2831
        %7750 = vmatprep.subr.mxu0 %v2800
        %7751 = vmatpush1.xpose.msra.mxu0 %v2799
        %7752 = vmatprep.subr.mxu0 %v2768
        %7753 = vmatpush1.xpose.msra.mxu0 %v2767
        %7754 = vmatprep.subr.mxu0 %v2736
        %7755 = vmatpush1.xpose.msra.mxu0 %v2735
        %7756 = vmatprep.subr.mxu0 %v2704
        %7757 = vmatpush1.xpose.msra.mxu0 %v2703
        %7758 = vmatprep.subr.mxu0 %v2672
        %7759 = vmatpush1.xpose.msra.mxu0 %v2671
        %7760 = vmatprep.subr.mxu0 %v2640
        %7761 = vmatpush1.xpose.msra.mxu0 %v2639
        %7762 = vmatprep.subr.mxu0 %v2608
        %7763 = vmatpush1.xpose.msra.mxu0 %v2607
        %7764 = vmatprep.subr.mxu0 %v2576
        %7765 = vmatpush1.xpose.msra.mxu0 %v2575
        %7766 = vmatprep.subr.mxu0 %v2544
        %7767 = vmatpush1.xpose.msra.mxu0 %v2543
        %7768 = vmatprep.subr.mxu0 %v2512
        %7769 = vmatpush1.xpose.msra.mxu0 %v2511
        %7770 = vmatprep.subr.mxu0 %v2480
        %7771 = vmatpush1.xpose.msra.mxu0 %v2479
        %7772 = vmatprep.subr.mxu0 %v2448
        %7773 = vmatpush1.xpose.msra.mxu0 %v2447
        %7774 = vmatprep.subr.mxu0 %v2416
        %7775 = vmatpush1.xpose.msra.mxu0 %v2415
        %7776 = vmatprep.subr.mxu0 %v2384
        %7777 = vmatpush1.xpose.msra.mxu0 %v2383
        %7778 = vmatprep.subr.mxu0 %v2352
        %7779 = vmatpush1.xpose.msra.mxu0 %v2351
        %7780 = vmatprep.subr.mxu0 %v3344
        %7781 = vmatpush2.xpose.msra.mxu0 %v3343
        %7782 = vmatprep.subr.mxu0 %v3312
        %7783 = vmatpush2.xpose.msra.mxu0 %v3311
        %7784 = vmatprep.subr.mxu0 %v3280
        %7785 = vmatpush2.xpose.msra.mxu0 %v3279
        %7786 = vmatprep.subr.mxu0 %v3248
        %7787 = vmatpush2.xpose.msra.mxu0 %v3247
        %7788 = vmatprep.subr.mxu0 %v3216
        %7789 = vmatpush2.xpose.msra.mxu0 %v3215
        %7790 = vmatprep.subr.mxu0 %v3184
        %7791 = vmatpush2.xpose.msra.mxu0 %v3183
        %7792 = vmatprep.subr.mxu0 %v3152
        %7793 = vmatpush2.xpose.msra.mxu0 %v3151
        %7794 = vmatprep.subr.mxu0 %v3120
        %7795 = vmatpush2.xpose.msra.mxu0 %v3119
        %7796 = vmatprep.subr.mxu0 %v3088
        %7797 = vmatpush2.xpose.msra.mxu0 %v3087
        %7798 = vmatprep.subr.mxu0 %v3056
        %7799 = vmatpush2.xpose.msra.mxu0 %v3055
        %7800 = vmatprep.subr.mxu0 %v3024
        %7801 = vmatpush2.xpose.msra.mxu0 %v3023
        %7802 = vmatprep.subr.mxu0 %v2992
        %7803 = vmatpush2.xpose.msra.mxu0 %v2991
        %7804 = vmatprep.subr.mxu0 %v2960
        %7805 = vmatpush2.xpose.msra.mxu0 %v2959
        %7806 = vmatprep.subr.mxu0 %v2928
        %7807 = vmatpush2.xpose.msra.mxu0 %v2927
        %7808 = vmatprep.subr.mxu0 %v2896
        %7809 = vmatpush2.xpose.msra.mxu0 %v2895
        %7810 = vmatprep.subr.mxu0 %v2864
        %7811 = vmatpush2.xpose.msra.mxu0 %v2863
        %7812 = vmatprep.mubr.f32.mxu0 %v272
        %7813 = vmatmul.mubr.f32.gmra.mxu0 %v271
        %v7814 = vpop.f32.mrf.mxu0
        %v7815 = vadd.f32 %v7744, %v7814
        %v7816 = vpop.f32.mrf.mxu0
        %v7817 = vadd.f32 %v7746, %v7816
        %7818 = vdwg.mxu0
        %7819 = vmatprep.subr.mxu0 %v3826
        %7820 = vmatpush1.xpose.msra.mxu0 %v3825
        %7821 = vmatprep.subr.mxu0 %v3794
        %7822 = vmatpush1.xpose.msra.mxu0 %v3793
        %7823 = vmatprep.subr.mxu0 %v3762
        %7824 = vmatpush1.xpose.msra.mxu0 %v3761
        %7825 = vmatprep.subr.mxu0 %v3730
        %7826 = vmatpush1.xpose.msra.mxu0 %v3729
        %7827 = vmatprep.subr.mxu0 %v3698
        %7828 = vmatpush1.xpose.msra.mxu0 %v3697
        %7829 = vmatprep.subr.mxu0 %v3666
        %7830 = vmatpush1.xpose.msra.mxu0 %v3665
        %7831 = vmatprep.subr.mxu0 %v3634
        %7832 = vmatpush1.xpose.msra.mxu0 %v3633
        %7833 = vmatprep.subr.mxu0 %v3602
        %7834 = vmatpush1.xpose.msra.mxu0 %v3601
        %7835 = vmatprep.subr.mxu0 %v3570
        %7836 = vmatpush1.xpose.msra.mxu0 %v3569
        %7837 = vmatprep.subr.mxu0 %v3538
        %7838 = vmatpush1.xpose.msra.mxu0 %v3537
        %7839 = vmatprep.subr.mxu0 %v3506
        %7840 = vmatpush1.xpose.msra.mxu0 %v3505
        %7841 = vmatprep.subr.mxu0 %v3474
        %7842 = vmatpush1.xpose.msra.mxu0 %v3473
        %7843 = vmatprep.subr.mxu0 %v3442
        %7844 = vmatpush1.xpose.msra.mxu0 %v3441
        %7845 = vmatprep.subr.mxu0 %v3410
        %7846 = vmatpush1.xpose.msra.mxu0 %v3409
        %7847 = vmatprep.subr.mxu0 %v3378
        %7848 = vmatpush1.xpose.msra.mxu0 %v3377
        %7849 = vmatprep.subr.mxu0 %v3346
        %7850 = vmatpush1.xpose.msra.mxu0 %v3345
        %7851 = vmatprep.subr.mxu0 %v4338
        %7852 = vmatpush2.xpose.msra.mxu0 %v4337
        %7853 = vmatprep.subr.mxu0 %v4306
        %7854 = vmatpush2.xpose.msra.mxu0 %v4305
        %7855 = vmatprep.subr.mxu0 %v4274
        %7856 = vmatpush2.xpose.msra.mxu0 %v4273
        %7857 = vmatprep.subr.mxu0 %v4242
        %7858 = vmatpush2.xpose.msra.mxu0 %v4241
        %7859 = vmatprep.subr.mxu0 %v4210
        %7860 = vmatpush2.xpose.msra.mxu0 %v4209
        %7861 = vmatprep.subr.mxu0 %v4178
        %7862 = vmatpush2.xpose.msra.mxu0 %v4177
        %7863 = vmatprep.subr.mxu0 %v4146
        %7864 = vmatpush2.xpose.msra.mxu0 %v4145
        %7865 = vmatprep.subr.mxu0 %v4114
        %7866 = vmatpush2.xpose.msra.mxu0 %v4113
        %7867 = vmatprep.subr.mxu0 %v4082
        %7868 = vmatpush2.xpose.msra.mxu0 %v4081
        %7869 = vmatprep.subr.mxu0 %v4050
        %7870 = vmatpush2.xpose.msra.mxu0 %v4049
        %7871 = vmatprep.subr.mxu0 %v4018
        %7872 = vmatpush2.xpose.msra.mxu0 %v4017
        %7873 = vmatprep.subr.mxu0 %v3986
        %7874 = vmatpush2.xpose.msra.mxu0 %v3985
        %7875 = vmatprep.subr.mxu0 %v3954
        %7876 = vmatpush2.xpose.msra.mxu0 %v3953
        %7877 = vmatprep.subr.mxu0 %v3922
        %7878 = vmatpush2.xpose.msra.mxu0 %v3921
        %7879 = vmatprep.subr.mxu0 %v3890
        %7880 = vmatpush2.xpose.msra.mxu0 %v3889
        %7881 = vmatprep.subr.mxu0 %v3858
        %7882 = vmatpush2.xpose.msra.mxu0 %v3857
        %7883 = vmatprep.mubr.f32.mxu0 %v242
        %7884 = vmatmul.mubr.f32.gmra.mxu0 %v241
        %v7885 = vpop.f32.mrf.mxu0
        %v7886 = vadd.f32 %v4398, %v7885
        %v7887 = vpop.f32.mrf.mxu0
        %v7888 = vadd.f32 %v4402, %v7887
        %7889 = vdwg.mxu0
        %7890 = vmatprep.subr.mxu0 %v3828
        %7891 = vmatpush1.xpose.msra.mxu0 %v3827
        %7892 = vmatprep.subr.mxu0 %v3796
        %7893 = vmatpush1.xpose.msra.mxu0 %v3795
        %7894 = vmatprep.subr.mxu0 %v3764
        %7895 = vmatpush1.xpose.msra.mxu0 %v3763
        %7896 = vmatprep.subr.mxu0 %v3732
        %7897 = vmatpush1.xpose.msra.mxu0 %v3731
        %7898 = vmatprep.subr.mxu0 %v3700
        %7899 = vmatpush1.xpose.msra.mxu0 %v3699
        %7900 = vmatprep.subr.mxu0 %v3668
        %7901 = vmatpush1.xpose.msra.mxu0 %v3667
        %7902 = vmatprep.subr.mxu0 %v3636
        %7903 = vmatpush1.xpose.msra.mxu0 %v3635
        %7904 = vmatprep.subr.mxu0 %v3604
        %7905 = vmatpush1.xpose.msra.mxu0 %v3603
        %7906 = vmatprep.subr.mxu0 %v3572
        %7907 = vmatpush1.xpose.msra.mxu0 %v3571
        %7908 = vmatprep.subr.mxu0 %v3540
        %7909 = vmatpush1.xpose.msra.mxu0 %v3539
        %7910 = vmatprep.subr.mxu0 %v3508
        %7911 = vmatpush1.xpose.msra.mxu0 %v3507
        %7912 = vmatprep.subr.mxu0 %v3476
        %7913 = vmatpush1.xpose.msra.mxu0 %v3475
        %7914 = vmatprep.subr.mxu0 %v3444
        %7915 = vmatpush1.xpose.msra.mxu0 %v3443
        %7916 = vmatprep.subr.mxu0 %v3412
        %7917 = vmatpush1.xpose.msra.mxu0 %v3411
        %7918 = vmatprep.subr.mxu0 %v3380
        %7919 = vmatpush1.xpose.msra.mxu0 %v3379
        %7920 = vmatprep.subr.mxu0 %v3348
        %7921 = vmatpush1.xpose.msra.mxu0 %v3347
        %7922 = vmatprep.subr.mxu0 %v4340
        %7923 = vmatpush2.xpose.msra.mxu0 %v4339
        %7924 = vmatprep.subr.mxu0 %v4308
        %7925 = vmatpush2.xpose.msra.mxu0 %v4307
        %7926 = vmatprep.subr.mxu0 %v4276
        %7927 = vmatpush2.xpose.msra.mxu0 %v4275
        %7928 = vmatprep.subr.mxu0 %v4244
        %7929 = vmatpush2.xpose.msra.mxu0 %v4243
        %7930 = vmatprep.subr.mxu0 %v4212
        %7931 = vmatpush2.xpose.msra.mxu0 %v4211
        %7932 = vmatprep.subr.mxu0 %v4180
        %7933 = vmatpush2.xpose.msra.mxu0 %v4179
        %7934 = vmatprep.subr.mxu0 %v4148
        %7935 = vmatpush2.xpose.msra.mxu0 %v4147
        %7936 = vmatprep.subr.mxu0 %v4116
        %7937 = vmatpush2.xpose.msra.mxu0 %v4115
        %7938 = vmatprep.subr.mxu0 %v4084
        %7939 = vmatpush2.xpose.msra.mxu0 %v4083
        %7940 = vmatprep.subr.mxu0 %v4052
        %7941 = vmatpush2.xpose.msra.mxu0 %v4051
        %7942 = vmatprep.subr.mxu0 %v4020
        %7943 = vmatpush2.xpose.msra.mxu0 %v4019
        %7944 = vmatprep.subr.mxu0 %v3988
        %7945 = vmatpush2.xpose.msra.mxu0 %v3987
        %7946 = vmatprep.subr.mxu0 %v3956
        %7947 = vmatpush2.xpose.msra.mxu0 %v3955
        %7948 = vmatprep.subr.mxu0 %v3924
        %7949 = vmatpush2.xpose.msra.mxu0 %v3923
        %7950 = vmatprep.subr.mxu0 %v3892
        %7951 = vmatpush2.xpose.msra.mxu0 %v3891
        %7952 = vmatprep.subr.mxu0 %v3860
        %7953 = vmatpush2.xpose.msra.mxu0 %v3859
        %7954 = vmatprep.mubr.f32.mxu0 %v244
        %7955 = vmatmul.mubr.f32.gmra.mxu0 %v243
        %v7956 = vpop.f32.mrf.mxu0
        %v7957 = vadd.f32 %v7886, %v7956
        %v7958 = vpop.f32.mrf.mxu0
        %v7959 = vadd.f32 %v7888, %v7958
        %7960 = vdwg.mxu0
        %7961 = vmatprep.subr.mxu0 %v3830
        %7962 = vmatpush1.xpose.msra.mxu0 %v3829
        %7963 = vmatprep.subr.mxu0 %v3798
        %7964 = vmatpush1.xpose.msra.mxu0 %v3797
        %7965 = vmatprep.subr.mxu0 %v3766
        %7966 = vmatpush1.xpose.msra.mxu0 %v3765
        %7967 = vmatprep.subr.mxu0 %v3734
        %7968 = vmatpush1.xpose.msra.mxu0 %v3733
        %7969 = vmatprep.subr.mxu0 %v3702
        %7970 = vmatpush1.xpose.msra.mxu0 %v3701
        %7971 = vmatprep.subr.mxu0 %v3670
        %7972 = vmatpush1.xpose.msra.mxu0 %v3669
        %7973 = vmatprep.subr.mxu0 %v3638
        %7974 = vmatpush1.xpose.msra.mxu0 %v3637
        %7975 = vmatprep.subr.mxu0 %v3606
        %7976 = vmatpush1.xpose.msra.mxu0 %v3605
        %7977 = vmatprep.subr.mxu0 %v3574
        %7978 = vmatpush1.xpose.msra.mxu0 %v3573
        %7979 = vmatprep.subr.mxu0 %v3542
        %7980 = vmatpush1.xpose.msra.mxu0 %v3541
        %7981 = vmatprep.subr.mxu0 %v3510
        %7982 = vmatpush1.xpose.msra.mxu0 %v3509
        %7983 = vmatprep.subr.mxu0 %v3478
        %7984 = vmatpush1.xpose.msra.mxu0 %v3477
        %7985 = vmatprep.subr.mxu0 %v3446
        %7986 = vmatpush1.xpose.msra.mxu0 %v3445
        %7987 = vmatprep.subr.mxu0 %v3414
        %7988 = vmatpush1.xpose.msra.mxu0 %v3413
        %7989 = vmatprep.subr.mxu0 %v3382
        %7990 = vmatpush1.xpose.msra.mxu0 %v3381
        %7991 = vmatprep.subr.mxu0 %v3350
        %7992 = vmatpush1.xpose.msra.mxu0 %v3349
        %7993 = vmatprep.subr.mxu0 %v4342
        %7994 = vmatpush2.xpose.msra.mxu0 %v4341
        %7995 = vmatprep.subr.mxu0 %v4310
        %7996 = vmatpush2.xpose.msra.mxu0 %v4309
        %7997 = vmatprep.subr.mxu0 %v4278
        %7998 = vmatpush2.xpose.msra.mxu0 %v4277
        %7999 = vmatprep.subr.mxu0 %v4246
        %8000 = vmatpush2.xpose.msra.mxu0 %v4245
        %8001 = vmatprep.subr.mxu0 %v4214
        %8002 = vmatpush2.xpose.msra.mxu0 %v4213
        %8003 = vmatprep.subr.mxu0 %v4182
        %8004 = vmatpush2.xpose.msra.mxu0 %v4181
        %8005 = vmatprep.subr.mxu0 %v4150
        %8006 = vmatpush2.xpose.msra.mxu0 %v4149
        %8007 = vmatprep.subr.mxu0 %v4118
        %8008 = vmatpush2.xpose.msra.mxu0 %v4117
        %8009 = vmatprep.subr.mxu0 %v4086
        %8010 = vmatpush2.xpose.msra.mxu0 %v4085
        %8011 = vmatprep.subr.mxu0 %v4054
        %8012 = vmatpush2.xpose.msra.mxu0 %v4053
        %8013 = vmatprep.subr.mxu0 %v4022
        %8014 = vmatpush2.xpose.msra.mxu0 %v4021
        %8015 = vmatprep.subr.mxu0 %v3990
        %8016 = vmatpush2.xpose.msra.mxu0 %v3989
        %8017 = vmatprep.subr.mxu0 %v3958
        %8018 = vmatpush2.xpose.msra.mxu0 %v3957
        %8019 = vmatprep.subr.mxu0 %v3926
        %8020 = vmatpush2.xpose.msra.mxu0 %v3925
        %8021 = vmatprep.subr.mxu0 %v3894
        %8022 = vmatpush2.xpose.msra.mxu0 %v3893
        %8023 = vmatprep.subr.mxu0 %v3862
        %8024 = vmatpush2.xpose.msra.mxu0 %v3861
        %8025 = vmatprep.mubr.f32.mxu0 %v246
        %8026 = vmatmul.mubr.f32.gmra.mxu0 %v245
        %v8027 = vpop.f32.mrf.mxu0
        %v8028 = vadd.f32 %v7957, %v8027
        %v8029 = vpop.f32.mrf.mxu0
        %v8030 = vadd.f32 %v7959, %v8029
        %8031 = vdwg.mxu0
        %8032 = vmatprep.subr.mxu0 %v3832
        %8033 = vmatpush1.xpose.msra.mxu0 %v3831
        %8034 = vmatprep.subr.mxu0 %v3800
        %8035 = vmatpush1.xpose.msra.mxu0 %v3799
        %8036 = vmatprep.subr.mxu0 %v3768
        %8037 = vmatpush1.xpose.msra.mxu0 %v3767
        %8038 = vmatprep.subr.mxu0 %v3736
        %8039 = vmatpush1.xpose.msra.mxu0 %v3735
        %8040 = vmatprep.subr.mxu0 %v3704
        %8041 = vmatpush1.xpose.msra.mxu0 %v3703
        %8042 = vmatprep.subr.mxu0 %v3672
        %8043 = vmatpush1.xpose.msra.mxu0 %v3671
        %8044 = vmatprep.subr.mxu0 %v3640
        %8045 = vmatpush1.xpose.msra.mxu0 %v3639
        %8046 = vmatprep.subr.mxu0 %v3608
        %8047 = vmatpush1.xpose.msra.mxu0 %v3607
        %8048 = vmatprep.subr.mxu0 %v3576
        %8049 = vmatpush1.xpose.msra.mxu0 %v3575
        %8050 = vmatprep.subr.mxu0 %v3544
        %8051 = vmatpush1.xpose.msra.mxu0 %v3543
        %8052 = vmatprep.subr.mxu0 %v3512
        %8053 = vmatpush1.xpose.msra.mxu0 %v3511
        %8054 = vmatprep.subr.mxu0 %v3480
        %8055 = vmatpush1.xpose.msra.mxu0 %v3479
        %8056 = vmatprep.subr.mxu0 %v3448
        %8057 = vmatpush1.xpose.msra.mxu0 %v3447
        %8058 = vmatprep.subr.mxu0 %v3416
        %8059 = vmatpush1.xpose.msra.mxu0 %v3415
        %8060 = vmatprep.subr.mxu0 %v3384
        %8061 = vmatpush1.xpose.msra.mxu0 %v3383
        %8062 = vmatprep.subr.mxu0 %v3352
        %8063 = vmatpush1.xpose.msra.mxu0 %v3351
        %8064 = vmatprep.subr.mxu0 %v4344
        %8065 = vmatpush2.xpose.msra.mxu0 %v4343
        %8066 = vmatprep.subr.mxu0 %v4312
        %8067 = vmatpush2.xpose.msra.mxu0 %v4311
        %8068 = vmatprep.subr.mxu0 %v4280
        %8069 = vmatpush2.xpose.msra.mxu0 %v4279
        %8070 = vmatprep.subr.mxu0 %v4248
        %8071 = vmatpush2.xpose.msra.mxu0 %v4247
        %8072 = vmatprep.subr.mxu0 %v4216
        %8073 = vmatpush2.xpose.msra.mxu0 %v4215
        %8074 = vmatprep.subr.mxu0 %v4184
        %8075 = vmatpush2.xpose.msra.mxu0 %v4183
        %8076 = vmatprep.subr.mxu0 %v4152
        %8077 = vmatpush2.xpose.msra.mxu0 %v4151
        %8078 = vmatprep.subr.mxu0 %v4120
        %8079 = vmatpush2.xpose.msra.mxu0 %v4119
        %8080 = vmatprep.subr.mxu0 %v4088
        %8081 = vmatpush2.xpose.msra.mxu0 %v4087
        %8082 = vmatprep.subr.mxu0 %v4056
        %8083 = vmatpush2.xpose.msra.mxu0 %v4055
        %8084 = vmatprep.subr.mxu0 %v4024
        %8085 = vmatpush2.xpose.msra.mxu0 %v4023
        %8086 = vmatprep.subr.mxu0 %v3992
        %8087 = vmatpush2.xpose.msra.mxu0 %v3991
        %8088 = vmatprep.subr.mxu0 %v3960
        %8089 = vmatpush2.xpose.msra.mxu0 %v3959
        %8090 = vmatprep.subr.mxu0 %v3928
        %8091 = vmatpush2.xpose.msra.mxu0 %v3927
        %8092 = vmatprep.subr.mxu0 %v3896
        %8093 = vmatpush2.xpose.msra.mxu0 %v3895
        %8094 = vmatprep.subr.mxu0 %v3864
        %8095 = vmatpush2.xpose.msra.mxu0 %v3863
        %8096 = vmatprep.mubr.f32.mxu0 %v248
        %8097 = vmatmul.mubr.f32.gmra.mxu0 %v247
        %v8098 = vpop.f32.mrf.mxu0
        %v8099 = vadd.f32 %v8028, %v8098
        %v8100 = vpop.f32.mrf.mxu0
        %v8101 = vadd.f32 %v8030, %v8100
        %8102 = vdwg.mxu0
        %8103 = vmatprep.subr.mxu0 %v3834
        %8104 = vmatpush1.xpose.msra.mxu0 %v3833
        %8105 = vmatprep.subr.mxu0 %v3802
        %8106 = vmatpush1.xpose.msra.mxu0 %v3801
        %8107 = vmatprep.subr.mxu0 %v3770
        %8108 = vmatpush1.xpose.msra.mxu0 %v3769
        %8109 = vmatprep.subr.mxu0 %v3738
        %8110 = vmatpush1.xpose.msra.mxu0 %v3737
        %8111 = vmatprep.subr.mxu0 %v3706
        %8112 = vmatpush1.xpose.msra.mxu0 %v3705
        %8113 = vmatprep.subr.mxu0 %v3674
        %8114 = vmatpush1.xpose.msra.mxu0 %v3673
        %8115 = vmatprep.subr.mxu0 %v3642
        %8116 = vmatpush1.xpose.msra.mxu0 %v3641
        %8117 = vmatprep.subr.mxu0 %v3610
        %8118 = vmatpush1.xpose.msra.mxu0 %v3609
        %8119 = vmatprep.subr.mxu0 %v3578
        %8120 = vmatpush1.xpose.msra.mxu0 %v3577
        %8121 = vmatprep.subr.mxu0 %v3546
        %8122 = vmatpush1.xpose.msra.mxu0 %v3545
        %8123 = vmatprep.subr.mxu0 %v3514
        %8124 = vmatpush1.xpose.msra.mxu0 %v3513
        %8125 = vmatprep.subr.mxu0 %v3482
        %8126 = vmatpush1.xpose.msra.mxu0 %v3481
        %8127 = vmatprep.subr.mxu0 %v3450
        %8128 = vmatpush1.xpose.msra.mxu0 %v3449
        %8129 = vmatprep.subr.mxu0 %v3418
        %8130 = vmatpush1.xpose.msra.mxu0 %v3417
        %8131 = vmatprep.subr.mxu0 %v3386
        %8132 = vmatpush1.xpose.msra.mxu0 %v3385
        %8133 = vmatprep.subr.mxu0 %v3354
        %8134 = vmatpush1.xpose.msra.mxu0 %v3353
        %8135 = vmatprep.subr.mxu0 %v4346
        %8136 = vmatpush2.xpose.msra.mxu0 %v4345
        %8137 = vmatprep.subr.mxu0 %v4314
        %8138 = vmatpush2.xpose.msra.mxu0 %v4313
        %8139 = vmatprep.subr.mxu0 %v4282
        %8140 = vmatpush2.xpose.msra.mxu0 %v4281
        %8141 = vmatprep.subr.mxu0 %v4250
        %8142 = vmatpush2.xpose.msra.mxu0 %v4249
        %8143 = vmatprep.subr.mxu0 %v4218
        %8144 = vmatpush2.xpose.msra.mxu0 %v4217
        %8145 = vmatprep.subr.mxu0 %v4186
        %8146 = vmatpush2.xpose.msra.mxu0 %v4185
        %8147 = vmatprep.subr.mxu0 %v4154
        %8148 = vmatpush2.xpose.msra.mxu0 %v4153
        %8149 = vmatprep.subr.mxu0 %v4122
        %8150 = vmatpush2.xpose.msra.mxu0 %v4121
        %8151 = vmatprep.subr.mxu0 %v4090
        %8152 = vmatpush2.xpose.msra.mxu0 %v4089
        %8153 = vmatprep.subr.mxu0 %v4058
        %8154 = vmatpush2.xpose.msra.mxu0 %v4057
        %8155 = vmatprep.subr.mxu0 %v4026
        %8156 = vmatpush2.xpose.msra.mxu0 %v4025
        %8157 = vmatprep.subr.mxu0 %v3994
        %8158 = vmatpush2.xpose.msra.mxu0 %v3993
        %8159 = vmatprep.subr.mxu0 %v3962
        %8160 = vmatpush2.xpose.msra.mxu0 %v3961
        %8161 = vmatprep.subr.mxu0 %v3930
        %8162 = vmatpush2.xpose.msra.mxu0 %v3929
        %8163 = vmatprep.subr.mxu0 %v3898
        %8164 = vmatpush2.xpose.msra.mxu0 %v3897
        %8165 = vmatprep.subr.mxu0 %v3866
        %8166 = vmatpush2.xpose.msra.mxu0 %v3865
        %8167 = vmatprep.mubr.f32.mxu0 %v250
        %8168 = vmatmul.mubr.f32.gmra.mxu0 %v249
        %v8169 = vpop.f32.mrf.mxu0
        %v8170 = vadd.f32 %v8099, %v8169
        %v8171 = vpop.f32.mrf.mxu0
        %v8172 = vadd.f32 %v8101, %v8171
        %8173 = vdwg.mxu0
        %8174 = vmatprep.subr.mxu0 %v3836
        %8175 = vmatpush1.xpose.msra.mxu0 %v3835
        %8176 = vmatprep.subr.mxu0 %v3804
        %8177 = vmatpush1.xpose.msra.mxu0 %v3803
        %8178 = vmatprep.subr.mxu0 %v3772
        %8179 = vmatpush1.xpose.msra.mxu0 %v3771
        %8180 = vmatprep.subr.mxu0 %v3740
        %8181 = vmatpush1.xpose.msra.mxu0 %v3739
        %8182 = vmatprep.subr.mxu0 %v3708
        %8183 = vmatpush1.xpose.msra.mxu0 %v3707
        %8184 = vmatprep.subr.mxu0 %v3676
        %8185 = vmatpush1.xpose.msra.mxu0 %v3675
        %8186 = vmatprep.subr.mxu0 %v3644
        %8187 = vmatpush1.xpose.msra.mxu0 %v3643
        %8188 = vmatprep.subr.mxu0 %v3612
        %8189 = vmatpush1.xpose.msra.mxu0 %v3611
        %8190 = vmatprep.subr.mxu0 %v3580
        %8191 = vmatpush1.xpose.msra.mxu0 %v3579
        %8192 = vmatprep.subr.mxu0 %v3548
        %8193 = vmatpush1.xpose.msra.mxu0 %v3547
        %8194 = vmatprep.subr.mxu0 %v3516
        %8195 = vmatpush1.xpose.msra.mxu0 %v3515
        %8196 = vmatprep.subr.mxu0 %v3484
        %8197 = vmatpush1.xpose.msra.mxu0 %v3483
        %8198 = vmatprep.subr.mxu0 %v3452
        %8199 = vmatpush1.xpose.msra.mxu0 %v3451
        %8200 = vmatprep.subr.mxu0 %v3420
        %8201 = vmatpush1.xpose.msra.mxu0 %v3419
        %8202 = vmatprep.subr.mxu0 %v3388
        %8203 = vmatpush1.xpose.msra.mxu0 %v3387
        %8204 = vmatprep.subr.mxu0 %v3356
        %8205 = vmatpush1.xpose.msra.mxu0 %v3355
        %8206 = vmatprep.subr.mxu0 %v4348
        %8207 = vmatpush2.xpose.msra.mxu0 %v4347
        %8208 = vmatprep.subr.mxu0 %v4316
        %8209 = vmatpush2.xpose.msra.mxu0 %v4315
        %8210 = vmatprep.subr.mxu0 %v4284
        %8211 = vmatpush2.xpose.msra.mxu0 %v4283
        %8212 = vmatprep.subr.mxu0 %v4252
        %8213 = vmatpush2.xpose.msra.mxu0 %v4251
        %8214 = vmatprep.subr.mxu0 %v4220
        %8215 = vmatpush2.xpose.msra.mxu0 %v4219
        %8216 = vmatprep.subr.mxu0 %v4188
        %8217 = vmatpush2.xpose.msra.mxu0 %v4187
        %8218 = vmatprep.subr.mxu0 %v4156
        %8219 = vmatpush2.xpose.msra.mxu0 %v4155
        %8220 = vmatprep.subr.mxu0 %v4124
        %8221 = vmatpush2.xpose.msra.mxu0 %v4123
        %8222 = vmatprep.subr.mxu0 %v4092
        %8223 = vmatpush2.xpose.msra.mxu0 %v4091
        %8224 = vmatprep.subr.mxu0 %v4060
        %8225 = vmatpush2.xpose.msra.mxu0 %v4059
        %8226 = vmatprep.subr.mxu0 %v4028
        %8227 = vmatpush2.xpose.msra.mxu0 %v4027
        %8228 = vmatprep.subr.mxu0 %v3996
        %8229 = vmatpush2.xpose.msra.mxu0 %v3995
        %8230 = vmatprep.subr.mxu0 %v3964
        %8231 = vmatpush2.xpose.msra.mxu0 %v3963
        %8232 = vmatprep.subr.mxu0 %v3932
        %8233 = vmatpush2.xpose.msra.mxu0 %v3931
        %8234 = vmatprep.subr.mxu0 %v3900
        %8235 = vmatpush2.xpose.msra.mxu0 %v3899
        %8236 = vmatprep.subr.mxu0 %v3868
        %8237 = vmatpush2.xpose.msra.mxu0 %v3867
        %8238 = vmatprep.mubr.f32.mxu0 %v252
        %8239 = vmatmul.mubr.f32.gmra.mxu0 %v251
        %v8240 = vpop.f32.mrf.mxu0
        %v8241 = vadd.f32 %v8170, %v8240
        %v8242 = vpop.f32.mrf.mxu0
        %v8243 = vadd.f32 %v8172, %v8242
        %8244 = vdwg.mxu0
        %8245 = vmatprep.subr.mxu0 %v3838
        %8246 = vmatpush1.xpose.msra.mxu0 %v3837
        %8247 = vmatprep.subr.mxu0 %v3806
        %8248 = vmatpush1.xpose.msra.mxu0 %v3805
        %8249 = vmatprep.subr.mxu0 %v3774
        %8250 = vmatpush1.xpose.msra.mxu0 %v3773
        %8251 = vmatprep.subr.mxu0 %v3742
        %8252 = vmatpush1.xpose.msra.mxu0 %v3741
        %8253 = vmatprep.subr.mxu0 %v3710
        %8254 = vmatpush1.xpose.msra.mxu0 %v3709
        %8255 = vmatprep.subr.mxu0 %v3678
        %8256 = vmatpush1.xpose.msra.mxu0 %v3677
        %8257 = vmatprep.subr.mxu0 %v3646
        %8258 = vmatpush1.xpose.msra.mxu0 %v3645
        %8259 = vmatprep.subr.mxu0 %v3614
        %8260 = vmatpush1.xpose.msra.mxu0 %v3613
        %8261 = vmatprep.subr.mxu0 %v3582
        %8262 = vmatpush1.xpose.msra.mxu0 %v3581
        %8263 = vmatprep.subr.mxu0 %v3550
        %8264 = vmatpush1.xpose.msra.mxu0 %v3549
        %8265 = vmatprep.subr.mxu0 %v3518
        %8266 = vmatpush1.xpose.msra.mxu0 %v3517
        %8267 = vmatprep.subr.mxu0 %v3486
        %8268 = vmatpush1.xpose.msra.mxu0 %v3485
        %8269 = vmatprep.subr.mxu0 %v3454
        %8270 = vmatpush1.xpose.msra.mxu0 %v3453
        %8271 = vmatprep.subr.mxu0 %v3422
        %8272 = vmatpush1.xpose.msra.mxu0 %v3421
        %8273 = vmatprep.subr.mxu0 %v3390
        %8274 = vmatpush1.xpose.msra.mxu0 %v3389
        %8275 = vmatprep.subr.mxu0 %v3358
        %8276 = vmatpush1.xpose.msra.mxu0 %v3357
        %8277 = vmatprep.subr.mxu0 %v4350
        %8278 = vmatpush2.xpose.msra.mxu0 %v4349
        %8279 = vmatprep.subr.mxu0 %v4318
        %8280 = vmatpush2.xpose.msra.mxu0 %v4317
        %8281 = vmatprep.subr.mxu0 %v4286
        %8282 = vmatpush2.xpose.msra.mxu0 %v4285
        %8283 = vmatprep.subr.mxu0 %v4254
        %8284 = vmatpush2.xpose.msra.mxu0 %v4253
        %8285 = vmatprep.subr.mxu0 %v4222
        %8286 = vmatpush2.xpose.msra.mxu0 %v4221
        %8287 = vmatprep.subr.mxu0 %v4190
        %8288 = vmatpush2.xpose.msra.mxu0 %v4189
        %8289 = vmatprep.subr.mxu0 %v4158
        %8290 = vmatpush2.xpose.msra.mxu0 %v4157
        %8291 = vmatprep.subr.mxu0 %v4126
        %8292 = vmatpush2.xpose.msra.mxu0 %v4125
        %8293 = vmatprep.subr.mxu0 %v4094
        %8294 = vmatpush2.xpose.msra.mxu0 %v4093
        %8295 = vmatprep.subr.mxu0 %v4062
        %8296 = vmatpush2.xpose.msra.mxu0 %v4061
        %8297 = vmatprep.subr.mxu0 %v4030
        %8298 = vmatpush2.xpose.msra.mxu0 %v4029
        %8299 = vmatprep.subr.mxu0 %v3998
        %8300 = vmatpush2.xpose.msra.mxu0 %v3997
        %8301 = vmatprep.subr.mxu0 %v3966
        %8302 = vmatpush2.xpose.msra.mxu0 %v3965
        %8303 = vmatprep.subr.mxu0 %v3934
        %8304 = vmatpush2.xpose.msra.mxu0 %v3933
        %8305 = vmatprep.subr.mxu0 %v3902
        %8306 = vmatpush2.xpose.msra.mxu0 %v3901
        %8307 = vmatprep.subr.mxu0 %v3870
        %8308 = vmatpush2.xpose.msra.mxu0 %v3869
        %8309 = vmatprep.mubr.f32.mxu0 %v254
        %8310 = vmatmul.mubr.f32.gmra.mxu0 %v253
        %v8311 = vpop.f32.mrf.mxu0
        %v8312 = vadd.f32 %v8241, %v8311
        %v8313 = vpop.f32.mrf.mxu0
        %v8314 = vadd.f32 %v8243, %v8313
        %8315 = vdwg.mxu0
        %8316 = vmatprep.subr.mxu0 %v3840
        %8317 = vmatpush1.xpose.msra.mxu0 %v3839
        %8318 = vmatprep.subr.mxu0 %v3808
        %8319 = vmatpush1.xpose.msra.mxu0 %v3807
        %8320 = vmatprep.subr.mxu0 %v3776
        %8321 = vmatpush1.xpose.msra.mxu0 %v3775
        %8322 = vmatprep.subr.mxu0 %v3744
        %8323 = vmatpush1.xpose.msra.mxu0 %v3743
        %8324 = vmatprep.subr.mxu0 %v3712
        %8325 = vmatpush1.xpose.msra.mxu0 %v3711
        %8326 = vmatprep.subr.mxu0 %v3680
        %8327 = vmatpush1.xpose.msra.mxu0 %v3679
        %8328 = vmatprep.subr.mxu0 %v3648
        %8329 = vmatpush1.xpose.msra.mxu0 %v3647
        %8330 = vmatprep.subr.mxu0 %v3616
        %8331 = vmatpush1.xpose.msra.mxu0 %v3615
        %8332 = vmatprep.subr.mxu0 %v3584
        %8333 = vmatpush1.xpose.msra.mxu0 %v3583
        %8334 = vmatprep.subr.mxu0 %v3552
        %8335 = vmatpush1.xpose.msra.mxu0 %v3551
        %8336 = vmatprep.subr.mxu0 %v3520
        %8337 = vmatpush1.xpose.msra.mxu0 %v3519
        %8338 = vmatprep.subr.mxu0 %v3488
        %8339 = vmatpush1.xpose.msra.mxu0 %v3487
        %8340 = vmatprep.subr.mxu0 %v3456
        %8341 = vmatpush1.xpose.msra.mxu0 %v3455
        %8342 = vmatprep.subr.mxu0 %v3424
        %8343 = vmatpush1.xpose.msra.mxu0 %v3423
        %8344 = vmatprep.subr.mxu0 %v3392
        %8345 = vmatpush1.xpose.msra.mxu0 %v3391
        %8346 = vmatprep.subr.mxu0 %v3360
        %8347 = vmatpush1.xpose.msra.mxu0 %v3359
        %8348 = vmatprep.subr.mxu0 %v4352
        %8349 = vmatpush2.xpose.msra.mxu0 %v4351
        %8350 = vmatprep.subr.mxu0 %v4320
        %8351 = vmatpush2.xpose.msra.mxu0 %v4319
        %8352 = vmatprep.subr.mxu0 %v4288
        %8353 = vmatpush2.xpose.msra.mxu0 %v4287
        %8354 = vmatprep.subr.mxu0 %v4256
        %8355 = vmatpush2.xpose.msra.mxu0 %v4255
        %8356 = vmatprep.subr.mxu0 %v4224
        %8357 = vmatpush2.xpose.msra.mxu0 %v4223
        %8358 = vmatprep.subr.mxu0 %v4192
        %8359 = vmatpush2.xpose.msra.mxu0 %v4191
        %8360 = vmatprep.subr.mxu0 %v4160
        %8361 = vmatpush2.xpose.msra.mxu0 %v4159
        %8362 = vmatprep.subr.mxu0 %v4128
        %8363 = vmatpush2.xpose.msra.mxu0 %v4127
        %8364 = vmatprep.subr.mxu0 %v4096
        %8365 = vmatpush2.xpose.msra.mxu0 %v4095
        %8366 = vmatprep.subr.mxu0 %v4064
        %8367 = vmatpush2.xpose.msra.mxu0 %v4063
        %8368 = vmatprep.subr.mxu0 %v4032
        %8369 = vmatpush2.xpose.msra.mxu0 %v4031
        %8370 = vmatprep.subr.mxu0 %v4000
        %8371 = vmatpush2.xpose.msra.mxu0 %v3999
        %8372 = vmatprep.subr.mxu0 %v3968
        %8373 = vmatpush2.xpose.msra.mxu0 %v3967
        %8374 = vmatprep.subr.mxu0 %v3936
        %8375 = vmatpush2.xpose.msra.mxu0 %v3935
        %8376 = vmatprep.subr.mxu0 %v3904
        %8377 = vmatpush2.xpose.msra.mxu0 %v3903
        %8378 = vmatprep.subr.mxu0 %v3872
        %8379 = vmatpush2.xpose.msra.mxu0 %v3871
        %8380 = vmatprep.mubr.f32.mxu0 %v256
        %8381 = vmatmul.mubr.f32.gmra.mxu0 %v255
        %v8382 = vpop.f32.mrf.mxu0
        %v8383 = vadd.f32 %v8312, %v8382
        %v8384 = vpop.f32.mrf.mxu0
        %v8385 = vadd.f32 %v8314, %v8384
        %8386 = vdwg.mxu0
        %8387 = vmatprep.subr.mxu0 %v3842
        %8388 = vmatpush1.xpose.msra.mxu0 %v3841
        %8389 = vmatprep.subr.mxu0 %v3810
        %8390 = vmatpush1.xpose.msra.mxu0 %v3809
        %8391 = vmatprep.subr.mxu0 %v3778
        %8392 = vmatpush1.xpose.msra.mxu0 %v3777
        %8393 = vmatprep.subr.mxu0 %v3746
        %8394 = vmatpush1.xpose.msra.mxu0 %v3745
        %8395 = vmatprep.subr.mxu0 %v3714
        %8396 = vmatpush1.xpose.msra.mxu0 %v3713
        %8397 = vmatprep.subr.mxu0 %v3682
        %8398 = vmatpush1.xpose.msra.mxu0 %v3681
        %8399 = vmatprep.subr.mxu0 %v3650
        %8400 = vmatpush1.xpose.msra.mxu0 %v3649
        %8401 = vmatprep.subr.mxu0 %v3618
        %8402 = vmatpush1.xpose.msra.mxu0 %v3617
        %8403 = vmatprep.subr.mxu0 %v3586
        %8404 = vmatpush1.xpose.msra.mxu0 %v3585
        %8405 = vmatprep.subr.mxu0 %v3554
        %8406 = vmatpush1.xpose.msra.mxu0 %v3553
        %8407 = vmatprep.subr.mxu0 %v3522
        %8408 = vmatpush1.xpose.msra.mxu0 %v3521
        %8409 = vmatprep.subr.mxu0 %v3490
        %8410 = vmatpush1.xpose.msra.mxu0 %v3489
        %8411 = vmatprep.subr.mxu0 %v3458
        %8412 = vmatpush1.xpose.msra.mxu0 %v3457
        %8413 = vmatprep.subr.mxu0 %v3426
        %8414 = vmatpush1.xpose.msra.mxu0 %v3425
        %8415 = vmatprep.subr.mxu0 %v3394
        %8416 = vmatpush1.xpose.msra.mxu0 %v3393
        %8417 = vmatprep.subr.mxu0 %v3362
        %8418 = vmatpush1.xpose.msra.mxu0 %v3361
        %8419 = vmatprep.subr.mxu0 %v4354
        %8420 = vmatpush2.xpose.msra.mxu0 %v4353
        %8421 = vmatprep.subr.mxu0 %v4322
        %8422 = vmatpush2.xpose.msra.mxu0 %v4321
        %8423 = vmatprep.subr.mxu0 %v4290
        %8424 = vmatpush2.xpose.msra.mxu0 %v4289
        %8425 = vmatprep.subr.mxu0 %v4258
        %8426 = vmatpush2.xpose.msra.mxu0 %v4257
        %8427 = vmatprep.subr.mxu0 %v4226
        %8428 = vmatpush2.xpose.msra.mxu0 %v4225
        %8429 = vmatprep.subr.mxu0 %v4194
        %8430 = vmatpush2.xpose.msra.mxu0 %v4193
        %8431 = vmatprep.subr.mxu0 %v4162
        %8432 = vmatpush2.xpose.msra.mxu0 %v4161
        %8433 = vmatprep.subr.mxu0 %v4130
        %8434 = vmatpush2.xpose.msra.mxu0 %v4129
        %8435 = vmatprep.subr.mxu0 %v4098
        %8436 = vmatpush2.xpose.msra.mxu0 %v4097
        %8437 = vmatprep.subr.mxu0 %v4066
        %8438 = vmatpush2.xpose.msra.mxu0 %v4065
        %8439 = vmatprep.subr.mxu0 %v4034
        %8440 = vmatpush2.xpose.msra.mxu0 %v4033
        %8441 = vmatprep.subr.mxu0 %v4002
        %8442 = vmatpush2.xpose.msra.mxu0 %v4001
        %8443 = vmatprep.subr.mxu0 %v3970
        %8444 = vmatpush2.xpose.msra.mxu0 %v3969
        %8445 = vmatprep.subr.mxu0 %v3938
        %8446 = vmatpush2.xpose.msra.mxu0 %v3937
        %8447 = vmatprep.subr.mxu0 %v3906
        %8448 = vmatpush2.xpose.msra.mxu0 %v3905
        %8449 = vmatprep.subr.mxu0 %v3874
        %8450 = vmatpush2.xpose.msra.mxu0 %v3873
        %8451 = vmatprep.mubr.f32.mxu0 %v258
        %8452 = vmatmul.mubr.f32.gmra.mxu0 %v257
        %v8453 = vpop.f32.mrf.mxu0
        %v8454 = vadd.f32 %v8383, %v8453
        %v8455 = vpop.f32.mrf.mxu0
        %v8456 = vadd.f32 %v8385, %v8455
        %8457 = vdwg.mxu0
        %8458 = vmatprep.subr.mxu0 %v3844
        %8459 = vmatpush1.xpose.msra.mxu0 %v3843
        %8460 = vmatprep.subr.mxu0 %v3812
        %8461 = vmatpush1.xpose.msra.mxu0 %v3811
        %8462 = vmatprep.subr.mxu0 %v3780
        %8463 = vmatpush1.xpose.msra.mxu0 %v3779
        %8464 = vmatprep.subr.mxu0 %v3748
        %8465 = vmatpush1.xpose.msra.mxu0 %v3747
        %8466 = vmatprep.subr.mxu0 %v3716
        %8467 = vmatpush1.xpose.msra.mxu0 %v3715
        %8468 = vmatprep.subr.mxu0 %v3684
        %8469 = vmatpush1.xpose.msra.mxu0 %v3683
        %8470 = vmatprep.subr.mxu0 %v3652
        %8471 = vmatpush1.xpose.msra.mxu0 %v3651
        %8472 = vmatprep.subr.mxu0 %v3620
        %8473 = vmatpush1.xpose.msra.mxu0 %v3619
        %8474 = vmatprep.subr.mxu0 %v3588
        %8475 = vmatpush1.xpose.msra.mxu0 %v3587
        %8476 = vmatprep.subr.mxu0 %v3556
        %8477 = vmatpush1.xpose.msra.mxu0 %v3555
        %8478 = vmatprep.subr.mxu0 %v3524
        %8479 = vmatpush1.xpose.msra.mxu0 %v3523
        %8480 = vmatprep.subr.mxu0 %v3492
        %8481 = vmatpush1.xpose.msra.mxu0 %v3491
        %8482 = vmatprep.subr.mxu0 %v3460
        %8483 = vmatpush1.xpose.msra.mxu0 %v3459
        %8484 = vmatprep.subr.mxu0 %v3428
        %8485 = vmatpush1.xpose.msra.mxu0 %v3427
        %8486 = vmatprep.subr.mxu0 %v3396
        %8487 = vmatpush1.xpose.msra.mxu0 %v3395
        %8488 = vmatprep.subr.mxu0 %v3364
        %8489 = vmatpush1.xpose.msra.mxu0 %v3363
        %8490 = vmatprep.subr.mxu0 %v4356
        %8491 = vmatpush2.xpose.msra.mxu0 %v4355
        %8492 = vmatprep.subr.mxu0 %v4324
        %8493 = vmatpush2.xpose.msra.mxu0 %v4323
        %8494 = vmatprep.subr.mxu0 %v4292
        %8495 = vmatpush2.xpose.msra.mxu0 %v4291
        %8496 = vmatprep.subr.mxu0 %v4260
        %8497 = vmatpush2.xpose.msra.mxu0 %v4259
        %8498 = vmatprep.subr.mxu0 %v4228
        %8499 = vmatpush2.xpose.msra.mxu0 %v4227
        %8500 = vmatprep.subr.mxu0 %v4196
        %8501 = vmatpush2.xpose.msra.mxu0 %v4195
        %8502 = vmatprep.subr.mxu0 %v4164
        %8503 = vmatpush2.xpose.msra.mxu0 %v4163
        %8504 = vmatprep.subr.mxu0 %v4132
        %8505 = vmatpush2.xpose.msra.mxu0 %v4131
        %8506 = vmatprep.subr.mxu0 %v4100
        %8507 = vmatpush2.xpose.msra.mxu0 %v4099
        %8508 = vmatprep.subr.mxu0 %v4068
        %8509 = vmatpush2.xpose.msra.mxu0 %v4067
        %8510 = vmatprep.subr.mxu0 %v4036
        %8511 = vmatpush2.xpose.msra.mxu0 %v4035
        %8512 = vmatprep.subr.mxu0 %v4004
        %8513 = vmatpush2.xpose.msra.mxu0 %v4003
        %8514 = vmatprep.subr.mxu0 %v3972
        %8515 = vmatpush2.xpose.msra.mxu0 %v3971
        %8516 = vmatprep.subr.mxu0 %v3940
        %8517 = vmatpush2.xpose.msra.mxu0 %v3939
        %8518 = vmatprep.subr.mxu0 %v3908
        %8519 = vmatpush2.xpose.msra.mxu0 %v3907
        %8520 = vmatprep.subr.mxu0 %v3876
        %8521 = vmatpush2.xpose.msra.mxu0 %v3875
        %8522 = vmatprep.mubr.f32.mxu0 %v260
        %8523 = vmatmul.mubr.f32.gmra.mxu0 %v259
        %v8524 = vpop.f32.mrf.mxu0
        %v8525 = vadd.f32 %v8454, %v8524
        %v8526 = vpop.f32.mrf.mxu0
        %v8527 = vadd.f32 %v8456, %v8526
        %8528 = vdwg.mxu0
        %8529 = vmatprep.subr.mxu0 %v3846
        %8530 = vmatpush1.xpose.msra.mxu0 %v3845
        %8531 = vmatprep.subr.mxu0 %v3814
        %8532 = vmatpush1.xpose.msra.mxu0 %v3813
        %8533 = vmatprep.subr.mxu0 %v3782
        %8534 = vmatpush1.xpose.msra.mxu0 %v3781
        %8535 = vmatprep.subr.mxu0 %v3750
        %8536 = vmatpush1.xpose.msra.mxu0 %v3749
        %8537 = vmatprep.subr.mxu0 %v3718
        %8538 = vmatpush1.xpose.msra.mxu0 %v3717
        %8539 = vmatprep.subr.mxu0 %v3686
        %8540 = vmatpush1.xpose.msra.mxu0 %v3685
        %8541 = vmatprep.subr.mxu0 %v3654
        %8542 = vmatpush1.xpose.msra.mxu0 %v3653
        %8543 = vmatprep.subr.mxu0 %v3622
        %8544 = vmatpush1.xpose.msra.mxu0 %v3621
        %8545 = vmatprep.subr.mxu0 %v3590
        %8546 = vmatpush1.xpose.msra.mxu0 %v3589
        %8547 = vmatprep.subr.mxu0 %v3558
        %8548 = vmatpush1.xpose.msra.mxu0 %v3557
        %8549 = vmatprep.subr.mxu0 %v3526
        %8550 = vmatpush1.xpose.msra.mxu0 %v3525
        %8551 = vmatprep.subr.mxu0 %v3494
        %8552 = vmatpush1.xpose.msra.mxu0 %v3493
        %8553 = vmatprep.subr.mxu0 %v3462
        %8554 = vmatpush1.xpose.msra.mxu0 %v3461
        %8555 = vmatprep.subr.mxu0 %v3430
        %8556 = vmatpush1.xpose.msra.mxu0 %v3429
        %8557 = vmatprep.subr.mxu0 %v3398
        %8558 = vmatpush1.xpose.msra.mxu0 %v3397
        %8559 = vmatprep.subr.mxu0 %v3366
        %8560 = vmatpush1.xpose.msra.mxu0 %v3365
        %8561 = vmatprep.subr.mxu0 %v4358
        %8562 = vmatpush2.xpose.msra.mxu0 %v4357
        %8563 = vmatprep.subr.mxu0 %v4326
        %8564 = vmatpush2.xpose.msra.mxu0 %v4325
        %8565 = vmatprep.subr.mxu0 %v4294
        %8566 = vmatpush2.xpose.msra.mxu0 %v4293
        %8567 = vmatprep.subr.mxu0 %v4262
        %8568 = vmatpush2.xpose.msra.mxu0 %v4261
        %8569 = vmatprep.subr.mxu0 %v4230
        %8570 = vmatpush2.xpose.msra.mxu0 %v4229
        %8571 = vmatprep.subr.mxu0 %v4198
        %8572 = vmatpush2.xpose.msra.mxu0 %v4197
        %8573 = vmatprep.subr.mxu0 %v4166
        %8574 = vmatpush2.xpose.msra.mxu0 %v4165
        %8575 = vmatprep.subr.mxu0 %v4134
        %8576 = vmatpush2.xpose.msra.mxu0 %v4133
        %8577 = vmatprep.subr.mxu0 %v4102
        %8578 = vmatpush2.xpose.msra.mxu0 %v4101
        %8579 = vmatprep.subr.mxu0 %v4070
        %8580 = vmatpush2.xpose.msra.mxu0 %v4069
        %8581 = vmatprep.subr.mxu0 %v4038
        %8582 = vmatpush2.xpose.msra.mxu0 %v4037
        %8583 = vmatprep.subr.mxu0 %v4006
        %8584 = vmatpush2.xpose.msra.mxu0 %v4005
        %8585 = vmatprep.subr.mxu0 %v3974
        %8586 = vmatpush2.xpose.msra.mxu0 %v3973
        %8587 = vmatprep.subr.mxu0 %v3942
        %8588 = vmatpush2.xpose.msra.mxu0 %v3941
        %8589 = vmatprep.subr.mxu0 %v3910
        %8590 = vmatpush2.xpose.msra.mxu0 %v3909
        %8591 = vmatprep.subr.mxu0 %v3878
        %8592 = vmatpush2.xpose.msra.mxu0 %v3877
        %8593 = vmatprep.mubr.f32.mxu0 %v262
        %8594 = vmatmul.mubr.f32.gmra.mxu0 %v261
        %v8595 = vpop.f32.mrf.mxu0
        %v8596 = vadd.f32 %v8525, %v8595
        %v8597 = vpop.f32.mrf.mxu0
        %v8598 = vadd.f32 %v8527, %v8597
        %8599 = vdwg.mxu0
        %8600 = vmatprep.subr.mxu0 %v3848
        %8601 = vmatpush1.xpose.msra.mxu0 %v3847
        %8602 = vmatprep.subr.mxu0 %v3816
        %8603 = vmatpush1.xpose.msra.mxu0 %v3815
        %8604 = vmatprep.subr.mxu0 %v3784
        %8605 = vmatpush1.xpose.msra.mxu0 %v3783
        %8606 = vmatprep.subr.mxu0 %v3752
        %8607 = vmatpush1.xpose.msra.mxu0 %v3751
        %8608 = vmatprep.subr.mxu0 %v3720
        %8609 = vmatpush1.xpose.msra.mxu0 %v3719
        %8610 = vmatprep.subr.mxu0 %v3688
        %8611 = vmatpush1.xpose.msra.mxu0 %v3687
        %8612 = vmatprep.subr.mxu0 %v3656
        %8613 = vmatpush1.xpose.msra.mxu0 %v3655
        %8614 = vmatprep.subr.mxu0 %v3624
        %8615 = vmatpush1.xpose.msra.mxu0 %v3623
        %8616 = vmatprep.subr.mxu0 %v3592
        %8617 = vmatpush1.xpose.msra.mxu0 %v3591
        %8618 = vmatprep.subr.mxu0 %v3560
        %8619 = vmatpush1.xpose.msra.mxu0 %v3559
        %8620 = vmatprep.subr.mxu0 %v3528
        %8621 = vmatpush1.xpose.msra.mxu0 %v3527
        %8622 = vmatprep.subr.mxu0 %v3496
        %8623 = vmatpush1.xpose.msra.mxu0 %v3495
        %8624 = vmatprep.subr.mxu0 %v3464
        %8625 = vmatpush1.xpose.msra.mxu0 %v3463
        %8626 = vmatprep.subr.mxu0 %v3432
        %8627 = vmatpush1.xpose.msra.mxu0 %v3431
        %8628 = vmatprep.subr.mxu0 %v3400
        %8629 = vmatpush1.xpose.msra.mxu0 %v3399
        %8630 = vmatprep.subr.mxu0 %v3368
        %8631 = vmatpush1.xpose.msra.mxu0 %v3367
        %8632 = vmatprep.subr.mxu0 %v4360
        %8633 = vmatpush2.xpose.msra.mxu0 %v4359
        %8634 = vmatprep.subr.mxu0 %v4328
        %8635 = vmatpush2.xpose.msra.mxu0 %v4327
        %8636 = vmatprep.subr.mxu0 %v4296
        %8637 = vmatpush2.xpose.msra.mxu0 %v4295
        %8638 = vmatprep.subr.mxu0 %v4264
        %8639 = vmatpush2.xpose.msra.mxu0 %v4263
        %8640 = vmatprep.subr.mxu0 %v4232
        %8641 = vmatpush2.xpose.msra.mxu0 %v4231
        %8642 = vmatprep.subr.mxu0 %v4200
        %8643 = vmatpush2.xpose.msra.mxu0 %v4199
        %8644 = vmatprep.subr.mxu0 %v4168
        %8645 = vmatpush2.xpose.msra.mxu0 %v4167
        %8646 = vmatprep.subr.mxu0 %v4136
        %8647 = vmatpush2.xpose.msra.mxu0 %v4135
        %8648 = vmatprep.subr.mxu0 %v4104
        %8649 = vmatpush2.xpose.msra.mxu0 %v4103
        %8650 = vmatprep.subr.mxu0 %v4072
        %8651 = vmatpush2.xpose.msra.mxu0 %v4071
        %8652 = vmatprep.subr.mxu0 %v4040
        %8653 = vmatpush2.xpose.msra.mxu0 %v4039
        %8654 = vmatprep.subr.mxu0 %v4008
        %8655 = vmatpush2.xpose.msra.mxu0 %v4007
        %8656 = vmatprep.subr.mxu0 %v3976
        %8657 = vmatpush2.xpose.msra.mxu0 %v3975
        %8658 = vmatprep.subr.mxu0 %v3944
        %8659 = vmatpush2.xpose.msra.mxu0 %v3943
        %8660 = vmatprep.subr.mxu0 %v3912
        %8661 = vmatpush2.xpose.msra.mxu0 %v3911
        %8662 = vmatprep.subr.mxu0 %v3880
        %8663 = vmatpush2.xpose.msra.mxu0 %v3879
        %8664 = vmatprep.mubr.f32.mxu0 %v264
        %8665 = vmatmul.mubr.f32.gmra.mxu0 %v263
        %v8666 = vpop.f32.mrf.mxu0
        %v8667 = vadd.f32 %v8596, %v8666
        %v8668 = vpop.f32.mrf.mxu0
        %v8669 = vadd.f32 %v8598, %v8668
        %8670 = vdwg.mxu0
        %8671 = vmatprep.subr.mxu0 %v3850
        %8672 = vmatpush1.xpose.msra.mxu0 %v3849
        %8673 = vmatprep.subr.mxu0 %v3818
        %8674 = vmatpush1.xpose.msra.mxu0 %v3817
        %8675 = vmatprep.subr.mxu0 %v3786
        %8676 = vmatpush1.xpose.msra.mxu0 %v3785
        %8677 = vmatprep.subr.mxu0 %v3754
        %8678 = vmatpush1.xpose.msra.mxu0 %v3753
        %8679 = vmatprep.subr.mxu0 %v3722
        %8680 = vmatpush1.xpose.msra.mxu0 %v3721
        %8681 = vmatprep.subr.mxu0 %v3690
        %8682 = vmatpush1.xpose.msra.mxu0 %v3689
        %8683 = vmatprep.subr.mxu0 %v3658
        %8684 = vmatpush1.xpose.msra.mxu0 %v3657
        %8685 = vmatprep.subr.mxu0 %v3626
        %8686 = vmatpush1.xpose.msra.mxu0 %v3625
        %8687 = vmatprep.subr.mxu0 %v3594
        %8688 = vmatpush1.xpose.msra.mxu0 %v3593
        %8689 = vmatprep.subr.mxu0 %v3562
        %8690 = vmatpush1.xpose.msra.mxu0 %v3561
        %8691 = vmatprep.subr.mxu0 %v3530
        %8692 = vmatpush1.xpose.msra.mxu0 %v3529
        %8693 = vmatprep.subr.mxu0 %v3498
        %8694 = vmatpush1.xpose.msra.mxu0 %v3497
        %8695 = vmatprep.subr.mxu0 %v3466
        %8696 = vmatpush1.xpose.msra.mxu0 %v3465
        %8697 = vmatprep.subr.mxu0 %v3434
        %8698 = vmatpush1.xpose.msra.mxu0 %v3433
        %8699 = vmatprep.subr.mxu0 %v3402
        %8700 = vmatpush1.xpose.msra.mxu0 %v3401
        %8701 = vmatprep.subr.mxu0 %v3370
        %8702 = vmatpush1.xpose.msra.mxu0 %v3369
        %8703 = vmatprep.subr.mxu0 %v4362
        %8704 = vmatpush2.xpose.msra.mxu0 %v4361
        %8705 = vmatprep.subr.mxu0 %v4330
        %8706 = vmatpush2.xpose.msra.mxu0 %v4329
        %8707 = vmatprep.subr.mxu0 %v4298
        %8708 = vmatpush2.xpose.msra.mxu0 %v4297
        %8709 = vmatprep.subr.mxu0 %v4266
        %8710 = vmatpush2.xpose.msra.mxu0 %v4265
        %8711 = vmatprep.subr.mxu0 %v4234
        %8712 = vmatpush2.xpose.msra.mxu0 %v4233
        %8713 = vmatprep.subr.mxu0 %v4202
        %8714 = vmatpush2.xpose.msra.mxu0 %v4201
        %8715 = vmatprep.subr.mxu0 %v4170
        %8716 = vmatpush2.xpose.msra.mxu0 %v4169
        %8717 = vmatprep.subr.mxu0 %v4138
        %8718 = vmatpush2.xpose.msra.mxu0 %v4137
        %8719 = vmatprep.subr.mxu0 %v4106
        %8720 = vmatpush2.xpose.msra.mxu0 %v4105
        %8721 = vmatprep.subr.mxu0 %v4074
        %8722 = vmatpush2.xpose.msra.mxu0 %v4073
        %8723 = vmatprep.subr.mxu0 %v4042
        %8724 = vmatpush2.xpose.msra.mxu0 %v4041
        %8725 = vmatprep.subr.mxu0 %v4010
        %8726 = vmatpush2.xpose.msra.mxu0 %v4009
        %8727 = vmatprep.subr.mxu0 %v3978
        %8728 = vmatpush2.xpose.msra.mxu0 %v3977
        %8729 = vmatprep.subr.mxu0 %v3946
        %8730 = vmatpush2.xpose.msra.mxu0 %v3945
        %8731 = vmatprep.subr.mxu0 %v3914
        %8732 = vmatpush2.xpose.msra.mxu0 %v3913
        %8733 = vmatprep.subr.mxu0 %v3882
        %8734 = vmatpush2.xpose.msra.mxu0 %v3881
        %8735 = vmatprep.mubr.f32.mxu0 %v266
        %8736 = vmatmul.mubr.f32.gmra.mxu0 %v265
        %v8737 = vpop.f32.mrf.mxu0
        %v8738 = vadd.f32 %v8667, %v8737
        %v8739 = vpop.f32.mrf.mxu0
        %v8740 = vadd.f32 %v8669, %v8739
        %8741 = vdwg.mxu0
        %8742 = vmatprep.subr.mxu0 %v3852
        %8743 = vmatpush1.xpose.msra.mxu0 %v3851
        %8744 = vmatprep.subr.mxu0 %v3820
        %8745 = vmatpush1.xpose.msra.mxu0 %v3819
        %8746 = vmatprep.subr.mxu0 %v3788
        %8747 = vmatpush1.xpose.msra.mxu0 %v3787
        %8748 = vmatprep.subr.mxu0 %v3756
        %8749 = vmatpush1.xpose.msra.mxu0 %v3755
        %8750 = vmatprep.subr.mxu0 %v3724
        %8751 = vmatpush1.xpose.msra.mxu0 %v3723
        %8752 = vmatprep.subr.mxu0 %v3692
        %8753 = vmatpush1.xpose.msra.mxu0 %v3691
        %8754 = vmatprep.subr.mxu0 %v3660
        %8755 = vmatpush1.xpose.msra.mxu0 %v3659
        %8756 = vmatprep.subr.mxu0 %v3628
        %8757 = vmatpush1.xpose.msra.mxu0 %v3627
        %8758 = vmatprep.subr.mxu0 %v3596
        %8759 = vmatpush1.xpose.msra.mxu0 %v3595
        %8760 = vmatprep.subr.mxu0 %v3564
        %8761 = vmatpush1.xpose.msra.mxu0 %v3563
        %8762 = vmatprep.subr.mxu0 %v3532
        %8763 = vmatpush1.xpose.msra.mxu0 %v3531
        %8764 = vmatprep.subr.mxu0 %v3500
        %8765 = vmatpush1.xpose.msra.mxu0 %v3499
        %8766 = vmatprep.subr.mxu0 %v3468
        %8767 = vmatpush1.xpose.msra.mxu0 %v3467
        %8768 = vmatprep.subr.mxu0 %v3436
        %8769 = vmatpush1.xpose.msra.mxu0 %v3435
        %8770 = vmatprep.subr.mxu0 %v3404
        %8771 = vmatpush1.xpose.msra.mxu0 %v3403
        %8772 = vmatprep.subr.mxu0 %v3372
        %8773 = vmatpush1.xpose.msra.mxu0 %v3371
        %8774 = vmatprep.subr.mxu0 %v4364
        %8775 = vmatpush2.xpose.msra.mxu0 %v4363
        %8776 = vmatprep.subr.mxu0 %v4332
        %8777 = vmatpush2.xpose.msra.mxu0 %v4331
        %8778 = vmatprep.subr.mxu0 %v4300
        %8779 = vmatpush2.xpose.msra.mxu0 %v4299
        %8780 = vmatprep.subr.mxu0 %v4268
        %8781 = vmatpush2.xpose.msra.mxu0 %v4267
        %8782 = vmatprep.subr.mxu0 %v4236
        %8783 = vmatpush2.xpose.msra.mxu0 %v4235
        %8784 = vmatprep.subr.mxu0 %v4204
        %8785 = vmatpush2.xpose.msra.mxu0 %v4203
        %8786 = vmatprep.subr.mxu0 %v4172
        %8787 = vmatpush2.xpose.msra.mxu0 %v4171
        %8788 = vmatprep.subr.mxu0 %v4140
        %8789 = vmatpush2.xpose.msra.mxu0 %v4139
        %8790 = vmatprep.subr.mxu0 %v4108
        %8791 = vmatpush2.xpose.msra.mxu0 %v4107
        %8792 = vmatprep.subr.mxu0 %v4076
        %8793 = vmatpush2.xpose.msra.mxu0 %v4075
        %8794 = vmatprep.subr.mxu0 %v4044
        %8795 = vmatpush2.xpose.msra.mxu0 %v4043
        %8796 = vmatprep.subr.mxu0 %v4012
        %8797 = vmatpush2.xpose.msra.mxu0 %v4011
        %8798 = vmatprep.subr.mxu0 %v3980
        %8799 = vmatpush2.xpose.msra.mxu0 %v3979
        %8800 = vmatprep.subr.mxu0 %v3948
        %8801 = vmatpush2.xpose.msra.mxu0 %v3947
        %8802 = vmatprep.subr.mxu0 %v3916
        %8803 = vmatpush2.xpose.msra.mxu0 %v3915
        %8804 = vmatprep.subr.mxu0 %v3884
        %8805 = vmatpush2.xpose.msra.mxu0 %v3883
        %8806 = vmatprep.mubr.f32.mxu0 %v268
        %8807 = vmatmul.mubr.f32.gmra.mxu0 %v267
        %v8808 = vpop.f32.mrf.mxu0
        %v8809 = vadd.f32 %v8738, %v8808
        %v8810 = vpop.f32.mrf.mxu0
        %v8811 = vadd.f32 %v8740, %v8810
        %8812 = vdwg.mxu0
        %8813 = vmatprep.subr.mxu0 %v3854
        %8814 = vmatpush1.xpose.msra.mxu0 %v3853
        %8815 = vmatprep.subr.mxu0 %v3822
        %8816 = vmatpush1.xpose.msra.mxu0 %v3821
        %8817 = vmatprep.subr.mxu0 %v3790
        %8818 = vmatpush1.xpose.msra.mxu0 %v3789
        %8819 = vmatprep.subr.mxu0 %v3758
        %8820 = vmatpush1.xpose.msra.mxu0 %v3757
        %8821 = vmatprep.subr.mxu0 %v3726
        %8822 = vmatpush1.xpose.msra.mxu0 %v3725
        %8823 = vmatprep.subr.mxu0 %v3694
        %8824 = vmatpush1.xpose.msra.mxu0 %v3693
        %8825 = vmatprep.subr.mxu0 %v3662
        %8826 = vmatpush1.xpose.msra.mxu0 %v3661
        %8827 = vmatprep.subr.mxu0 %v3630
        %8828 = vmatpush1.xpose.msra.mxu0 %v3629
        %8829 = vmatprep.subr.mxu0 %v3598
        %8830 = vmatpush1.xpose.msra.mxu0 %v3597
        %8831 = vmatprep.subr.mxu0 %v3566
        %8832 = vmatpush1.xpose.msra.mxu0 %v3565
        %8833 = vmatprep.subr.mxu0 %v3534
        %8834 = vmatpush1.xpose.msra.mxu0 %v3533
        %8835 = vmatprep.subr.mxu0 %v3502
        %8836 = vmatpush1.xpose.msra.mxu0 %v3501
        %8837 = vmatprep.subr.mxu0 %v3470
        %8838 = vmatpush1.xpose.msra.mxu0 %v3469
        %8839 = vmatprep.subr.mxu0 %v3438
        %8840 = vmatpush1.xpose.msra.mxu0 %v3437
        %8841 = vmatprep.subr.mxu0 %v3406
        %8842 = vmatpush1.xpose.msra.mxu0 %v3405
        %8843 = vmatprep.subr.mxu0 %v3374
        %8844 = vmatpush1.xpose.msra.mxu0 %v3373
        %8845 = vmatprep.subr.mxu0 %v4366
        %8846 = vmatpush2.xpose.msra.mxu0 %v4365
        %8847 = vmatprep.subr.mxu0 %v4334
        %8848 = vmatpush2.xpose.msra.mxu0 %v4333
        %8849 = vmatprep.subr.mxu0 %v4302
        %8850 = vmatpush2.xpose.msra.mxu0 %v4301
        %8851 = vmatprep.subr.mxu0 %v4270
        %8852 = vmatpush2.xpose.msra.mxu0 %v4269
        %8853 = vmatprep.subr.mxu0 %v4238
        %8854 = vmatpush2.xpose.msra.mxu0 %v4237
        %8855 = vmatprep.subr.mxu0 %v4206
        %8856 = vmatpush2.xpose.msra.mxu0 %v4205
        %8857 = vmatprep.subr.mxu0 %v4174
        %8858 = vmatpush2.xpose.msra.mxu0 %v4173
        %8859 = vmatprep.subr.mxu0 %v4142
        %8860 = vmatpush2.xpose.msra.mxu0 %v4141
        %8861 = vmatprep.subr.mxu0 %v4110
        %8862 = vmatpush2.xpose.msra.mxu0 %v4109
        %8863 = vmatprep.subr.mxu0 %v4078
        %8864 = vmatpush2.xpose.msra.mxu0 %v4077
        %8865 = vmatprep.subr.mxu0 %v4046
        %8866 = vmatpush2.xpose.msra.mxu0 %v4045
        %8867 = vmatprep.subr.mxu0 %v4014
        %8868 = vmatpush2.xpose.msra.mxu0 %v4013
        %8869 = vmatprep.subr.mxu0 %v3982
        %8870 = vmatpush2.xpose.msra.mxu0 %v3981
        %8871 = vmatprep.subr.mxu0 %v3950
        %8872 = vmatpush2.xpose.msra.mxu0 %v3949
        %8873 = vmatprep.subr.mxu0 %v3918
        %8874 = vmatpush2.xpose.msra.mxu0 %v3917
        %8875 = vmatprep.subr.mxu0 %v3886
        %8876 = vmatpush2.xpose.msra.mxu0 %v3885
        %8877 = vmatprep.mubr.f32.mxu0 %v270
        %8878 = vmatmul.mubr.f32.gmra.mxu0 %v269
        %v8879 = vpop.f32.mrf.mxu0
        %v8880 = vadd.f32 %v8809, %v8879
        %v8881 = vpop.f32.mrf.mxu0
        %v8882 = vadd.f32 %v8811, %v8881
        %8883 = vdwg.mxu0
        %8884 = vmatprep.subr.mxu0 %v3856
        %8885 = vmatpush1.xpose.msra.mxu0 %v3855
        %8886 = vmatprep.subr.mxu0 %v3824
        %8887 = vmatpush1.xpose.msra.mxu0 %v3823
        %8888 = vmatprep.subr.mxu0 %v3792
        %8889 = vmatpush1.xpose.msra.mxu0 %v3791
        %8890 = vmatprep.subr.mxu0 %v3760
        %8891 = vmatpush1.xpose.msra.mxu0 %v3759
        %8892 = vmatprep.subr.mxu0 %v3728
        %8893 = vmatpush1.xpose.msra.mxu0 %v3727
        %8894 = vmatprep.subr.mxu0 %v3696
        %8895 = vmatpush1.xpose.msra.mxu0 %v3695
        %8896 = vmatprep.subr.mxu0 %v3664
        %8897 = vmatpush1.xpose.msra.mxu0 %v3663
        %8898 = vmatprep.subr.mxu0 %v3632
        %8899 = vmatpush1.xpose.msra.mxu0 %v3631
        %8900 = vmatprep.subr.mxu0 %v3600
        %8901 = vmatpush1.xpose.msra.mxu0 %v3599
        %8902 = vmatprep.subr.mxu0 %v3568
        %8903 = vmatpush1.xpose.msra.mxu0 %v3567
        %8904 = vmatprep.subr.mxu0 %v3536
        %8905 = vmatpush1.xpose.msra.mxu0 %v3535
        %8906 = vmatprep.subr.mxu0 %v3504
        %8907 = vmatpush1.xpose.msra.mxu0 %v3503
        %8908 = vmatprep.subr.mxu0 %v3472
        %8909 = vmatpush1.xpose.msra.mxu0 %v3471
        %8910 = vmatprep.subr.mxu0 %v3440
        %8911 = vmatpush1.xpose.msra.mxu0 %v3439
        %8912 = vmatprep.subr.mxu0 %v3408
        %8913 = vmatpush1.xpose.msra.mxu0 %v3407
        %8914 = vmatprep.subr.mxu0 %v3376
        %8915 = vmatpush1.xpose.msra.mxu0 %v3375
        %8916 = vmatprep.subr.mxu0 %v4368
        %8917 = vmatpush2.xpose.msra.mxu0 %v4367
        %8918 = vmatprep.subr.mxu0 %v4336
        %8919 = vmatpush2.xpose.msra.mxu0 %v4335
        %8920 = vmatprep.subr.mxu0 %v4304
        %8921 = vmatpush2.xpose.msra.mxu0 %v4303
        %8922 = vmatprep.subr.mxu0 %v4272
        %8923 = vmatpush2.xpose.msra.mxu0 %v4271
        %8924 = vmatprep.subr.mxu0 %v4240
        %8925 = vmatpush2.xpose.msra.mxu0 %v4239
        %8926 = vmatprep.subr.mxu0 %v4208
        %8927 = vmatpush2.xpose.msra.mxu0 %v4207
        %8928 = vmatprep.subr.mxu0 %v4176
        %8929 = vmatpush2.xpose.msra.mxu0 %v4175
        %8930 = vmatprep.subr.mxu0 %v4144
        %8931 = vmatpush2.xpose.msra.mxu0 %v4143
        %8932 = vmatprep.subr.mxu0 %v4112
        %8933 = vmatpush2.xpose.msra.mxu0 %v4111
        %8934 = vmatprep.subr.mxu0 %v4080
        %8935 = vmatpush2.xpose.msra.mxu0 %v4079
        %8936 = vmatprep.subr.mxu0 %v4048
        %8937 = vmatpush2.xpose.msra.mxu0 %v4047
        %8938 = vmatprep.subr.mxu0 %v4016
        %8939 = vmatpush2.xpose.msra.mxu0 %v4015
        %8940 = vmatprep.subr.mxu0 %v3984
        %8941 = vmatpush2.xpose.msra.mxu0 %v3983
        %8942 = vmatprep.subr.mxu0 %v3952
        %8943 = vmatpush2.xpose.msra.mxu0 %v3951
        %8944 = vmatprep.subr.mxu0 %v3920
        %8945 = vmatpush2.xpose.msra.mxu0 %v3919
        %8946 = vmatprep.subr.mxu0 %v3888
        %8947 = vmatpush2.xpose.msra.mxu0 %v3887
        %8948 = vmatprep.mubr.f32.mxu0 %v272
        %8949 = vmatmul.mubr.f32.gmra.mxu0 %v271
        %v8950 = vpop.f32.mrf.mxu0
        %v8951 = vadd.f32 %v8880, %v8950
        %v8952 = vpop.f32.mrf.mxu0
        %v8953 = vadd.f32 %v8882, %v8952
        %8954 = vdwg.mxu0
        %8955 = vst [vmem:[%s237] sm:$0xff] %v5543
        %8956 = vst [vmem:[%s237 + $0x8] sm:$0xff] %v5545
        %8957 = vst [vmem:[%s237 + $0x10] sm:$0xff] %v6679
        %8958 = vst [vmem:[%s237 + $0x18] sm:$0xff] %v6681
        %8959 = vst [vmem:[%s237 + $0x20] sm:$0xff] %v7815
        %8960 = vst [vmem:[%s237 + $0x28] sm:$0xff] %v7817
        %8961 = vst [vmem:[%s237 + $0x30] sm:$0xff] %v8951
        %8962 = vst [vmem:[%s237 + $0x38] sm:$0xff] %v8953
        %s8963 = sand.u32 %s102, 1
        %s8964 = scalar_lea.sflag [#allocation4], %s8963
        %s8965 = sand.u32 %s102, 1
        %s8966 = smul.addr %s8965, 64
        %s8967 = scalar_lea.vmem [#allocation8], %s8966
        // Predicated region
        $region45: #{tpu_custom_call.1} parent=31 // pred_check
          %p8968 = pneg %p112
        $region46: #{tpu_custom_call.1} parent=31 // pred_check_branch
          %8970 = sbr.rel (%p8968) target = $region48
        $region47: #{tpu_custom_call.1} parent=31 // pred_region
          %s8971 = smul.u32 8, %s21
          %s8973 = ssub.s32 1024, 1024
          %8974 = vsyncadd %s8964, %s8973
          %s8975 = smul.addr %s8971, 128
          %s8976 = scalar_lea.hbm %s3, %s8975
          %s8978 = sshll.u32 %s8967, 4
          %s8979 = int_to_ptr.vmem [resolvable:$true] %s8978
          %8981 = dma.vmem_to_hbm [thread:$0]  %s8979, 1024, %s8976, %s8964
        $region48: #{tpu_custom_call.1} parent=31 // pred_fallthru
          _
      $region32: #{tpu_custom_call.1} parent=5 // pred_fallthru
        _
      %p8982 = scmp.le.s32.totalorder 2, %s16
      // Predicated region
      $region49: #{tpu_custom_call.1} parent=5 // pred_check
        %p8983 = pneg %p8982
      $region50: #{tpu_custom_call.1} parent=5 // pred_check_branch
        %8985 = sbr.rel (%p8983) target = $region52
      $region51: #{tpu_custom_call.1} parent=5 // pred_region
        %s8986 = ssub.s32 %s16, 2
        // Predicated region
        $region53: #{tpu_custom_call.1} parent=51 // pred_check
          %p8987 = pneg %p118
        $region54: #{tpu_custom_call.1} parent=51 // pred_check_branch
          %8989 = sbr.rel (%p8987) target = $region56
        $region55: #{tpu_custom_call.1} parent=51 // pred_region
          %s8990 = sand.u32 %s103, 1
          %s8991 = scalar_lea.sflag [#allocation4], %s8990
          %s8992 = sand.u32 %s103, 1
          %s8993 = smul.addr %s8992, 64
          %s8994 = scalar_lea.vmem [#allocation8], %s8993
          %8995 = dma.done %s8991, 1024
        $region56: #{tpu_custom_call.1} parent=51 // pred_fallthru
          _
      $region52: #{tpu_custom_call.1} parent=5 // pred_fallthru
        _
    $region6: #{tpu_custom_call.1} parent=1 // loop_footer
      %s20 = sadd.s32 1, %s16
    $region7: #{tpu_custom_call.1} parent=1 // loop_footer_branch
      %15 = sbr.rel target = $region3
    $region8: #{tpu_custom_call.1} parent=1 // loop_exit
      _
    %8996 = vsyncpa [#allocation3], 1
    %s8997 = scalar_lea.sflag [#allocation3], 1
    %8998 = vsyncpa %s8997, 1
    %8999 = vsyncpa [#allocation6], 1
    %s9000 = scalar_lea.sflag [#allocation6], 1
    %9001 = vsyncpa %s9000, 1
    %9002 = vsyncpa [#allocation4], 1
    %s9003 = scalar_lea.sflag [#allocation4], 1
    %9004 = vsyncpa %s9003, 1

</llo_original>
